<compile_context>
chip_gen: v7x
topology: tpu7x:2x2x1
jax: 0.10.0
libtpu: 0.0.40
codegen_flags: <defaults>
</compile_context>

<pallas_src>
import functools
import math

import jax
import jax.numpy as jnp
from jax.experimental import pallas as pl
from jax.experimental.pallas import tpu as pltpu

LN_EPS = 1e-6                  # torchvision ViT uses LayerNorm(eps=1e-6)
VMEM_LIMIT = 32 * 1024 * 1024  # safe on v5e/v6e (128 MiB) and v7x (64 MiB)


# ----------------------------- helpers ------------------------------------

def _round_up(x, m):
    return (x + m - 1) // m * m


def _pick_tile(dim, prefs):
    for t in prefs:
        if dim % t == 0:
            return t
    return dim


# ----------------------------- Pallas kernels ------------------------------

def _matmul_kernel(x_ref, w_ref, b_ref, o_ref, acc_ref, *, activation):
    """Tiled (M,K)@(K,N) with f32 accumulator; bias (+ optional GELU) epilogue."""
    k = pl.program_id(2)

    @pl.when(k == 0)
    def _():
        acc_ref[...] = jnp.zeros_like(acc_ref)

    acc_ref[...] += jnp.dot(x_ref[...], w_ref[...],
                            preferred_element_type=jnp.float32)

    @pl.when(k == pl.num_programs(2) - 1)
    def _():
        out = acc_ref[...] + b_ref[...]
        if activation == "gelu":
            # TODO(synk): nn.GELU (exact erf) is approximated with tanh-GELU.
            out = jax.nn.gelu(out)
        o_ref[...] = out.astype(o_ref.dtype)


def _matmul_res_kernel(x_ref, w_ref, b_ref, r_ref, o_ref, acc_ref, *, activation):
    """Same as _matmul_kernel but fuses the residual add before the store."""
    k = pl.program_id(2)

    @pl.when(k == 0)
    def _():
        acc_ref[...] = jnp.zeros_like(acc_ref)

    acc_ref[...] += jnp.dot(x_ref[...], w_ref[...],
                            preferred_element_type=jnp.float32)

    @pl.when(k == pl.num_programs(2) - 1)
    def _():
        out = acc_ref[...] + b_ref[...] + r_ref[...].astype(jnp.float32)
        if activation == "gelu":
            out = jax.nn.gelu(out)
        o_ref[...] = out.astype(o_ref.dtype)


def _ln_matmul_kernel(x_ref, g_ref, bt_ref, w_ref, b_ref, o_ref, *, eps, activation):
    """LayerNorm(x) fused as a prologue to a full-K matmul (+bias, +optional GELU)."""
    x = x_ref[...].astype(jnp.float32)
    mean = jnp.mean(x, axis=-1, keepdims=True)
    xc = x - mean
    var = jnp.mean(xc * xc, axis=-1, keepdims=True)
    inv = jax.lax.rsqrt(var + eps)
    xn = (xc * inv * g_ref[...] + bt_ref[...]).astype(jnp.bfloat16)
    out = jnp.dot(xn, w_ref[...], preferred_element_type=jnp.float32) + b_ref[...]
    if activation == "gelu":
        # TODO(synk): nn.GELU (exact erf) is approximated with tanh-GELU.
        out = jax.nn.gelu(out)
    o_ref[...] = out.astype(o_ref.dtype)


def _attention_kernel(q_ref, k_ref, v_ref, o_ref, *, scale, seq_real):
    """Per-batch multi-head attention: softmax(q k^T * scale) v, padded keys masked."""
    q = q_ref[0]                                     # (H, S, dh) bf16
    k = k_ref[0]
    v = v_ref[0]
    s = jnp.einsum('hqd,hkd->hqk', q, k,
                   preferred_element_type=jnp.float32) * scale
    key_id = jax.lax.broadcasted_iota(jnp.int32, s.shape, 2)
    s = jnp.where(key_id < seq_real, s, -1e30)       # mask padded key positions
    m = jnp.max(s, axis=-1, keepdims=True)
    e = jnp.exp(s - m)
    p = e * pl.reciprocal(jnp.sum(e, axis=-1, keepdims=True), approx=True)
    o = jnp.einsum('hqk,hkd->hqd', p.astype(v.dtype), v,
                   preferred_element_type=jnp.float32)
    o_ref[0] = o.astype(o_ref.dtype)


# ----------------------------- kernel wrappers ------------------------------

def fused_matmul(x, w, bias, *, residual=None, activation=None,
                 out_dtype=jnp.bfloat16):
    """(M,K)@(K,N) + bias [+ residual] [+ GELU], tiled over (M,N,K)."""
    M, K = x.shape
    Kw, N = w.shape
    assert K == Kw

    Mp = _round_up(M, 8)
    Np = _round_up(N, 128)
    Kp = _round_up(K, 128)
    tm = _pick_tile(Mp, (256, 128, 64, 32, 16, 8))
    tn = _pick_tile(Np, (256, 128))
    tk = _pick_tile(Kp, (512, 256, 128))

    xb = x.astype(jnp.bfloat16)
    wb = w.astype(jnp.bfloat16)
    if (Mp, Kp) != (M, K):
        xb = jnp.pad(xb, ((0, Mp - M), (0, Kp - K)))
    if (Kp, Np) != (K, N):
        wb = jnp.pad(wb, ((0, Kp - K), (0, Np - N)))
    bb = bias.astype(jnp.float32).reshape(1, N)
    if Np != N:
        bb = jnp.pad(bb, ((0, 0), (0, Np - N)))

    args = [xb, wb, bb]
    in_specs = [
        pl.BlockSpec((tm, tk), lambda i, j, k: (i, k)),
        pl.BlockSpec((tk, tn), lambda i, j, k: (k, j)),
        pl.BlockSpec((1, tn), lambda i, j, k: (0, j)),
    ]
    if residual is None:
        kernel = functools.partial(_matmul_kernel, activation=activation)
    else:
        rb = residual.astype(jnp.bfloat16)
        if rb.shape != (Mp, Np):
            rb = jnp.pad(rb, ((0, Mp - rb.shape[0]), (0, Np - rb.shape[1])))
        args.append(rb)
        in_specs.append(pl.BlockSpec((tm, tn), lambda i, j, k: (i, j)))
        kernel = functools.partial(_matmul_res_kernel, activation=activation)

    out = pl.pallas_call(
        kernel,
        out_shape=jax.ShapeDtypeStruct((Mp, Np), out_dtype),
        grid=(Mp // tm, Np // tn, Kp // tk),
        in_specs=in_specs,
        out_specs=pl.BlockSpec((tm, tn), lambda i, j, k: (i, j)),
        scratch_shapes=[pltpu.VMEM((tm, tn), jnp.float32)],
        compiler_params=pltpu.CompilerParams(
            dimension_semantics=("parallel", "parallel", "arbitrary"),
            vmem_limit_bytes=VMEM_LIMIT),
    )(*args)

    if (Mp, Np) != (M, N):
        out = out[:M, :N]
    return out


def ln_matmul(x, gamma, beta, w, bias, *, activation=None, out_dtype=jnp.bfloat16):
    """LayerNorm(x) @ w + bias [+ GELU], LN fused into the matmul (full-K block)."""
    M, K = x.shape
    Kw, N = w.shape
    assert K == Kw and K % 128 == 0, "LN-fused matmul needs a lane-aligned K"

    Mp = _round_up(M, 8)
    Np = _round_up(N, 128)
    tm = _pick_tile(Mp, (256, 128, 64, 32, 16, 8))
    tn = _pick_tile(Np, (512, 256, 128))

    xb = x.astype(jnp.bfloat16)
    if Mp != M:
        xb = jnp.pad(xb, ((0, Mp - M), (0, 0)))
    wb = w.astype(jnp.bfloat16)
    if Np != N:
        wb = jnp.pad(wb, ((0, 0), (0, Np - N)))
    g = gamma.astype(jnp.float32).reshape(1, K)
    bt = beta.astype(jnp.float32).reshape(1, K)
    bb = bias.astype(jnp.float32).reshape(1, N)
    if Np != N:
        bb = jnp.pad(bb, ((0, 0), (0, Np - N)))

    out = pl.pallas_call(
        functools.partial(_ln_matmul_kernel, eps=LN_EPS, activation=activation),
        out_shape=jax.ShapeDtypeStruct((Mp, Np), out_dtype),
        grid=(Mp // tm, Np // tn),
        in_specs=[
            pl.BlockSpec((tm, K), lambda i, j: (i, 0)),
            pl.BlockSpec((1, K), lambda i, j: (0, 0)),
            pl.BlockSpec((1, K), lambda i, j: (0, 0)),
            pl.BlockSpec((K, tn), lambda i, j: (0, j)),
            pl.BlockSpec((1, tn), lambda i, j: (0, j)),
        ],
        out_specs=pl.BlockSpec((tm, tn), lambda i, j: (i, j)),
        compiler_params=pltpu.CompilerParams(
            dimension_semantics=("parallel", "parallel"),
            vmem_limit_bytes=VMEM_LIMIT),
    )(xb, g, bt, wb, bb)

    if (Mp, Np) != (M, N):
        out = out[:M, :N]
    return out


def multihead_attention(q, k, v, *, seq_real):
    B, H, S, dh = q.shape
    kernel = functools.partial(_attention_kernel,
                               scale=1.0 / math.sqrt(dh), seq_real=seq_real)
    return pl.pallas_call(
        kernel,
        out_shape=jax.ShapeDtypeStruct((B, H, S, dh), jnp.bfloat16),
        grid=(B,),
        in_specs=[pl.BlockSpec((1, H, S, dh), lambda b: (b, 0, 0, 0))] * 3,
        out_specs=pl.BlockSpec((1, H, S, dh), lambda b: (b, 0, 0, 0)),
        compiler_params=pltpu.CompilerParams(
            dimension_semantics=("parallel",),
            vmem_limit_bytes=VMEM_LIMIT),
    )(q.astype(jnp.bfloat16), k.astype(jnp.bfloat16), v.astype(jnp.bfloat16))


# ----------------------------- ViT forward ----------------------------------

@functools.partial(jax.jit, static_argnames=("patch", "seq_real", "seq_pad", "heads"))
def _vit_forward_impl(params, x_nchw, *, patch, seq_real, seq_pad, heads):
    # --- conv_proj (stride=kernel=16 => non-overlapping patch reshape + matmul) ---
    B = x_nchw.shape[0]
    x = jnp.transpose(x_nchw, (0, 2, 3, 1)).astype(jnp.bfloat16)      # NHWC
    _, Himg, Wimg, C = x.shape
    P = patch
    gh, gw = Himg // P, Wimg // P
    patches = x.reshape(B, gh, P, gw, P, C).transpose(0, 1, 3, 2, 4, 5)
    patches = patches.reshape(B * gh * gw, P * P * C)
    tok = fused_matmul(patches, params['w_patch'], params['b_patch'])  # (B*gh*gw, D)
    D = tok.shape[-1]
    tok = tok.reshape(B, gh * gw, D)

    # --- CLS token + position embedding, pad seq to a multiple of 8 ---
    cls = jnp.broadcast_to(params['cls'].astype(jnp.bfloat16), (B, 1, D))
    seq = jnp.concatenate([cls, tok], axis=1) + params['pos'].astype(jnp.bfloat16)
    seq = jnp.pad(seq, ((0, 0), (0, seq_pad - seq.shape[1]), (0, 0)))
    x2d = seq.reshape(B * seq_pad, D)

    dh = D // heads
    M = B * seq_pad

    # --- 12 pre-LN encoder layers via lax.scan (compiled once, no per-layer dispatch)
    # TODO(synk): dropout layers (p=0.0 in vit_b_16) are identity at inference.
    def layer(carry, lp):
        h = carry
        qkv = ln_matmul(h, lp['ln1_g'], lp['ln1_b'], lp['w_qkv'], lp['b_qkv'])
        qkv = qkv.reshape(B, seq_pad, 3, heads, dh).transpose(2, 0, 3, 1, 4)
        attn = multihead_attention(qkv[0], qkv[1], qkv[2], seq_real=seq_real)
        attn = attn.transpose(0, 2, 1, 3).reshape(M, D)
        h = fused_matmul(attn, lp['w_out'], lp['b_out'], residual=h)   # +residual
        ffn = ln_matmul(h, lp['ln2_g'], lp['ln2_b'], lp['w_fc1'], lp['b_fc1'],
                        activation="gelu")
        h = fused_matmul(ffn, lp['w_fc2'], lp['b_fc2'], residual=h)    # +residual
        return h, None

    x2d, _ = jax.lax.scan(layer, x2d, params['layers'])

    # --- final encoder LayerNorm + Linear(768 -> 3) head on the CLS token only ---
    cls_tok = x2d.reshape(B, seq_pad, D)[:, 0, :]
    logits = ln_matmul(cls_tok, params['ln_f_g'], params['ln_f_b'],
                       params['w_head'], params['b_head'], out_dtype=jnp.float32)
    return logits


def vit_forward(params, x_nchw, *, config):
    seq_real = config['seq']
    seq_pad = _round_up(seq_real, 8)
    return _vit_forward_impl(params, x_nchw, patch=config['patch'],
                             seq_real=seq_real, seq_pad=seq_pad,
                             heads=config['heads'])


# ----------------------------- parameters ----------------------------------

def init_vit_params(key, *, image_size=32, patch_size=16, hidden=768, num_layers=12,
                    num_heads=12, mlp_dim=3072, num_classes=3):
    # TODO(synk): `pretrained=True` weights cannot be loaded here; deterministic
    # random init with the same architecture is used instead.
    keys = iter(jax.random.split(key, 4 + 4 * num_layers))
    gh = image_size // patch_size
    seq = gh * gh + 1
    patch_dim = patch_size * patch_size * 3

    def dense(k, fan_in, shape):
        w = jax.random.normal(k, shape, jnp.float32) * (1.0 / math.sqrt(fan_in))
        return w.astype(jnp.bfloat16)

    params = {
        'w_patch': dense(next(keys), patch_dim, (patch_dim, hidden)),
        'b_patch': jnp.zeros((hidden,), jnp.float32),
        'cls': jnp.zeros((1, 1, hidden), jnp.float32),
        'pos': 0.02 * jax.random.normal(next(keys), (1, seq, hidden), jnp.float32),
        'ln_f_g': jnp.ones((hidden,), jnp.float32),
        'ln_f_b': jnp.zeros((hidden,), jnp.float32),
        'w_head': dense(next(keys), hidden, (hidden, num_classes)),
        'b_head': jnp.zeros((num_classes,), jnp.float32),
    }
    layers = []
    for _ in range(num_layers):
        layers.append({
            'ln1_g': jnp.ones((hidden,), jnp.float32),
            'ln1_b': jnp.zeros((hidden,), jnp.float32),
            'w_qkv': dense(next(keys), hidden, (hidden, 3 * hidden)),
            'b_qkv': jnp.zeros((3 * hidden,), jnp.float32),
            'w_out': dense(next(keys), hidden, (hidden, hidden)),
            'b_out': jnp.zeros((hidden,), jnp.float32),
            'ln2_g': jnp.ones((hidden,), jnp.float32),
            'ln2_b': jnp.zeros((hidden,), jnp.float32),
            'w_fc1': dense(next(keys), hidden, (hidden, mlp_dim)),
            'b_fc1': jnp.zeros((mlp_dim,), jnp.float32),
            'w_fc2': dense(next(keys), mlp_dim, (mlp_dim, hidden)),
            'b_fc2': jnp.zeros((hidden,), jnp.float32),
        })
    # stack layers for lax.scan (one compiled layer body reused 12 times)
    params['layers'] = jax.tree_util.tree_map(lambda *xs: jnp.stack(xs), *layers)
    config = {'patch': patch_size, 'seq': seq, 'heads': num_heads}
    return params, config


# --------------------------------- main -------------------------------------

if __name__ == "__main__":
    key = jax.random.PRNGKey(0)
    pkey, xkey = jax.random.split(key)
    # Real ViT-B/16 channel dims (hidden 768, 12 layers, 12 heads, MLP 3072),
    # classification head -> 3 classes.  A small 32x32 input (2x2 patch grid + CLS
    # = 5 tokens, padded to 8) keeps the example fast; the position embedding is
    # sized for the actual token count instead of torchvision's fixed 224x224.
    params, cfg = init_vit_params(pkey, image_size=32, patch_size=16, hidden=768,
                                  num_layers=12, num_heads=12, mlp_dim=3072,
                                  num_classes=3)
    x = jax.random.normal(xkey, (2, 3, 32, 32), jnp.float32)
    logits = vit_forward(params, x, config=cfg)
    jax.block_until_ready(logits)
    assert logits.shape == (2, 3) and logits.dtype == jnp.float32
    print("KERNEL_OK")
</pallas_src>

<mosaic_0001>
module attributes {stable_mosaic.version = 11 : i64} {
  func.func @_matmul_kernel(%arg0: i32, %arg1: i32, %arg2: i32, %arg3: memref<8x256xbf16, #tpu.memory_space<vmem>>, %arg4: memref<256x256xbf16, #tpu.memory_space<vmem>>, %arg5: memref<1x256xf32, #tpu.memory_space<vmem>>, %arg6: memref<8x256xbf16, #tpu.memory_space<vmem>>, %arg7: memref<8x256xf32, #tpu.memory_space<vmem>>) attributes {dimension_semantics = [#tpu.dimension_semantics<parallel>, #tpu.dimension_semantics<parallel>, #tpu.dimension_semantics<arbitrary>], iteration_bounds = array<i64: 1, 3, 3>, scalar_prefetch = 0 : i64, scratch_operands = 1 : i64, tpu.core_type = #tpu.core_type<tc>, window_params = [{transform_indices = @transform_0, window_bounds = array<i64: 8, 256>}, {transform_indices = @transform_1, window_bounds = array<i64: 256, 256>}, {transform_indices = @transform_2, window_bounds = array<i64: 1, 256>}, {transform_indices = @transform_3, window_bounds = array<i64: 8, 256>}]} {
    %c0_i32 = arith.constant 0 : i32
    %0 = arith.cmpi eq, %arg2, %c0_i32 : i32
    %1 = arith.extui %0 : i1 to i32
    %c0_i32_0 = arith.constant 0 : i32
    %2 = arith.cmpi ne, %1, %c0_i32_0 : i32
    scf.if %2 {
      %cst_9 = arith.constant 0.000000e+00 : f32
      %12 = vector.broadcast %cst_9 : f32 to vector<8x256xf32>
      %c0_10 = arith.constant 0 : index
      %c0_11 = arith.constant 0 : index
      %13 = vector.load %arg7[%c0_10, %c0_11] : memref<8x256xf32, #tpu.memory_space<vmem>>, vector<8x256xf32>
      tpu.vector_store %arg7[%c0_10, %c0_11], %12 {strides = array<i32>} : memref<8x256xf32, #tpu.memory_space<vmem>>, vector<8x256xf32>,
    } else {
    }
    %c0 = arith.constant 0 : index
    %c0_1 = arith.constant 0 : index
    %3 = vector.load %arg7[%c0, %c0_1] : memref<8x256xf32, #tpu.memory_space<vmem>>, vector<8x256xf32>
    %c0_2 = arith.constant 0 : index
    %c0_3 = arith.constant 0 : index
    %4 = vector.load %arg3[%c0_2, %c0_3] : memref<8x256xbf16, #tpu.memory_space<vmem>>, vector<8x256xbf16>
    %c0_4 = arith.constant 0 : index
    %c0_5 = arith.constant 0 : index
    %5 = vector.load %arg4[%c0_4, %c0_5] : memref<256x256xbf16, #tpu.memory_space<vmem>>, vector<256x256xbf16>
    %cst = arith.constant dense<0.000000e+00> : vector<8x256xf32>
    %6 = tpu.matmul %4, %5, %cst {dimension_numbers = #tpu.dot_dimension_numbers<[1], [0], [0], [1], [0, 0, 1, 1], [], []>} : vector<8x256xbf16>, vector<256x256xbf16>, vector<8x256xf32> -> vector<8x256xf32>
    %7 = arith.addf %3, %6 : vector<8x256xf32>
    %c0_6 = arith.constant 0 : index
    %c0_7 = arith.constant 0 : index
    %8 = vector.load %arg7[%c0_6, %c0_7] : memref<8x256xf32, #tpu.memory_space<vmem>>, vector<8x256xf32>
    tpu.vector_store %arg7[%c0_6, %c0_7], %7 {strides = array<i32>} : memref<8x256xf32, #tpu.memory_space<vmem>>, vector<8x256xf32>,
    %c2_i32 = arith.constant 2 : i32
    %9 = arith.cmpi eq, %arg2, %c2_i32 : i32
    %10 = arith.extui %9 : i1 to i32
    %c0_i32_8 = arith.constant 0 : i32
    %11 = arith.cmpi ne, %10, %c0_i32_8 : i32
    scf.if %11 {
      %c0_9 = arith.constant 0 : index
      %c0_10 = arith.constant 0 : index
      %12 = vector.load %arg7[%c0_9, %c0_10] : memref<8x256xf32, #tpu.memory_space<vmem>>, vector<8x256xf32>
      %c0_11 = arith.constant 0 : index
      %c0_12 = arith.constant 0 : index
      %13 = vector.load %arg5[%c0_11, %c0_12] : memref<1x256xf32, #tpu.memory_space<vmem>>, vector<1x256xf32>
      %14 = vector.broadcast %13 : vector<1x256xf32> to vector<8x256xf32>
      %15 = arith.addf %12, %14 : vector<8x256xf32>
      %16 = arith.truncf %15 : vector<8x256xf32> to vector<8x256xbf16>
      %c0_13 = arith.constant 0 : index
      %c0_14 = arith.constant 0 : index
      %17 = vector.load %arg6[%c0_13, %c0_14] : memref<8x256xbf16, #tpu.memory_space<vmem>>, vector<8x256xbf16>
      tpu.vector_store %arg6[%c0_13, %c0_14], %16 {strides = array<i32>} : memref<8x256xbf16, #tpu.memory_space<vmem>>, vector<8x256xbf16>,
    } else {
    }
    return
  }
  func.func @transform_0(%arg0: i32, %arg1: i32, %arg2: i32) -> (i32, i32) {
    %c0_i32 = arith.constant 0 : i32
    return %arg0, %arg2 : i32, i32
  }
  func.func @transform_1(%arg0: i32, %arg1: i32, %arg2: i32) -> (i32, i32) {
    %c0_i32 = arith.constant 0 : i32
    return %arg2, %arg1 : i32, i32
  }
  func.func @transform_2(%arg0: i32, %arg1: i32, %arg2: i32) -> (i32, i32) {
    %c0_i32 = arith.constant 0 : i32
    %c0_i32_0 = arith.constant 0 : i32
    return %c0_i32, %arg1 : i32, i32
  }
  func.func @transform_3(%arg0: i32, %arg1: i32, %arg2: i32) -> (i32, i32) {
    %c0_i32 = arith.constant 0 : i32
    return %arg0, %arg1 : i32, i32
  }
}

module attributes {stable_mosaic.version = 11 : i64} {
  func.func @_ln_matmul_kernel(%arg0: i32, %arg1: i32, %arg2: memref<16x768xbf16, #tpu.memory_space<vmem>>, %arg3: memref<1x768xf32, #tpu.memory_space<vmem>>, %arg4: memref<1x768xf32, #tpu.memory_space<vmem>>, %arg5: memref<768x256xbf16, #tpu.memory_space<vmem>>, %arg6: memref<1x256xf32, #tpu.memory_space<vmem>>, %arg7: memref<16x256xbf16, #tpu.memory_space<vmem>>) attributes {dimension_semantics = [#tpu.dimension_semantics<parallel>, #tpu.dimension_semantics<parallel>], iteration_bounds = array<i64: 1, 9>, scalar_prefetch = 0 : i64, scratch_operands = 0 : i64, tpu.core_type = #tpu.core_type<tc>, window_params = [{transform_indices = @transform_0, window_bounds = array<i64: 16, 768>}, {pipeline_mode = #tpu.pipeline_mode<synchronous>, transform_indices = @transform_1, window_bounds = array<i64: 1, 768>}, {pipeline_mode = #tpu.pipeline_mode<synchronous>, transform_indices = @transform_2, window_bounds = array<i64: 1, 768>}, {transform_indices = @transform_3, window_bounds = array<i64: 768, 256>}, {transform_indices = @transform_4, window_bounds = array<i64: 1, 256>}, {transform_indices = @transform_5, window_bounds = array<i64: 16, 256>}]} {
    %c0 = arith.constant 0 : index
    %c0_0 = arith.constant 0 : index
    %0 = vector.load %arg2[%c0, %c0_0] : memref<16x768xbf16, #tpu.memory_space<vmem>>, vector<16x768xbf16>
    %1 = arith.extf %0 : vector<16x768xbf16> to vector<16x768xf32>
    %cst = arith.constant dense<0.000000e+00> : vector<16xf32>
    %2 = vector.multi_reduction <add>, %1, %cst [1] : vector<16x768xf32> to vector<16xf32>
    %3 = vector.shape_cast %2 : vector<16xf32> to vector<16x1xf32>
    %cst_1 = arith.constant 7.680000e+02 : f32
    %4 = vector.broadcast %cst_1 : f32 to vector<16x1xf32>
    %5 = arith.divf %3, %4 : vector<16x1xf32>
    %6 = vector.broadcast %5 : vector<16x1xf32> to vector<16x768xf32>
    %7 = arith.subf %1, %6 : vector<16x768xf32>
    %8 = arith.mulf %7, %7 : vector<16x768xf32>
    %cst_2 = arith.constant dense<0.000000e+00> : vector<16xf32>
    %9 = vector.multi_reduction <add>, %8, %cst_2 [1] : vector<16x768xf32> to vector<16xf32>
    %10 = vector.shape_cast %9 : vector<16xf32> to vector<16x1xf32>
    %cst_3 = arith.constant 7.680000e+02 : f32
    %11 = vector.broadcast %cst_3 : f32 to vector<16x1xf32>
    %12 = arith.divf %10, %11 : vector<16x1xf32>
    %cst_4 = arith.constant 9.99999997E-7 : f32
    %13 = vector.broadcast %cst_4 : f32 to vector<16x1xf32>
    %14 = arith.addf %12, %13 : vector<16x1xf32>
    %15 = math.rsqrt %14 : vector<16x1xf32>
    %16 = vector.broadcast %15 : vector<16x1xf32> to vector<16x768xf32>
    %17 = arith.mulf %7, %16 : vector<16x768xf32>
    %c0_5 = arith.constant 0 : index
    %c0_6 = arith.constant 0 : index
    %18 = vector.load %arg3[%c0_5, %c0_6] : memref<1x768xf32, #tpu.memory_space<vmem>>, vector<1x768xf32>
    %19 = vector.broadcast %18 : vector<1x768xf32> to vector<16x768xf32>
    %20 = arith.mulf %17, %19 : vector<16x768xf32>
    %c0_7 = arith.constant 0 : index
    %c0_8 = arith.constant 0 : index
    %21 = vector.load %arg4[%c0_7, %c0_8] : memref<1x768xf32, #tpu.memory_space<vmem>>, vector<1x768xf32>
    %22 = vector.broadcast %21 : vector<1x768xf32> to vector<16x768xf32>
    %23 = arith.addf %20, %22 : vector<16x768xf32>
    %24 = arith.truncf %23 : vector<16x768xf32> to vector<16x768xbf16>
    %c0_9 = arith.constant 0 : index
    %c0_10 = arith.constant 0 : index
    %25 = vector.load %arg5[%c0_9, %c0_10] : memref<768x256xbf16, #tpu.memory_space<vmem>>, vector<768x256xbf16>
    %cst_11 = arith.constant dense<0.000000e+00> : vector<16x256xf32>
    %26 = tpu.matmul %24, %25, %cst_11 {dimension_numbers = #tpu.dot_dimension_numbers<[1], [0], [0], [1], [0, 0, 1, 1], [], []>} : vector<16x768xbf16>, vector<768x256xbf16>, vector<16x256xf32> -> vector<16x256xf32>
    %c0_12 = arith.constant 0 : index
    %c0_13 = arith.constant 0 : index
    %27 = vector.load %arg6[%c0_12, %c0_13] : memref<1x256xf32, #tpu.memory_space<vmem>>, vector<1x256xf32>
    %28 = vector.broadcast %27 : vector<1x256xf32> to vector<16x256xf32>
    %29 = arith.addf %26, %28 : vector<16x256xf32>
    %30 = arith.truncf %29 : vector<16x256xf32> to vector<16x256xbf16>
    %c0_14 = arith.constant 0 : index
    %c0_15 = arith.constant 0 : index
    %31 = vector.load %arg7[%c0_14, %c0_15] : memref<16x256xbf16, #tpu.memory_space<vmem>>, vector<16x256xbf16>
    tpu.vector_store %arg7[%c0_14, %c0_15], %30 {strides = array<i32>} : memref<16x256xbf16, #tpu.memory_space<vmem>>, vector<16x256xbf16>,
    return
  }
  func.func @transform_0(%arg0: i32, %arg1: i32) -> (i32, i32) {
    %c0_i32 = arith.constant 0 : i32
    %c0_i32_0 = arith.constant 0 : i32
    return %arg0, %c0_i32 : i32, i32
  }
  func.func @transform_1(%arg0: i32, %arg1: i32) -> (i32, i32) {
    %c0_i32 = arith.constant 0 : i32
    %c0_i32_0 = arith.constant 0 : i32
    %c0_i32_1 = arith.constant 0 : i32
    return %c0_i32, %c0_i32_0 : i32, i32
  }
  func.func @transform_2(%arg0: i32, %arg1: i32) -> (i32, i32) {
    %c0_i32 = arith.constant 0 : i32
    %c0_i32_0 = arith.constant 0 : i32
    %c0_i32_1 = arith.constant 0 : i32
    return %c0_i32, %c0_i32_0 : i32, i32
  }
  func.func @transform_3(%arg0: i32, %arg1: i32) -> (i32, i32) {
    %c0_i32 = arith.constant 0 : i32
    %c0_i32_0 = arith.constant 0 : i32
    return %c0_i32, %arg1 : i32, i32
  }
  func.func @transform_4(%arg0: i32, %arg1: i32) -> (i32, i32) {
    %c0_i32 = arith.constant 0 : i32
    %c0_i32_0 = arith.constant 0 : i32
    return %c0_i32, %arg1 : i32, i32
  }
  func.func @transform_5(%arg0: i32, %arg1: i32) -> (i32, i32) {
    %c0_i32 = arith.constant 0 : i32
    return %arg0, %arg1 : i32, i32
  }
}

module attributes {stable_mosaic.version = 11 : i64} {
  func.func @_attention_kernel(%arg0: i32, %arg1: memref<1x12x8x64xbf16, #tpu.memory_space<vmem>>, %arg2: memref<1x12x8x64xbf16, #tpu.memory_space<vmem>>, %arg3: memref<1x12x8x64xbf16, #tpu.memory_space<vmem>>, %arg4: memref<1x12x8x64xbf16, #tpu.memory_space<vmem>>) attributes {dimension_semantics = [#tpu.dimension_semantics<parallel>], iteration_bounds = array<i64: 2>, scalar_prefetch = 0 : i64, scratch_operands = 0 : i64, tpu.core_type = #tpu.core_type<tc>, window_params = [{transform_indices = @transform_0, window_bounds = array<i64: 1, 12, 8, 64>}, {transform_indices = @transform_1, window_bounds = array<i64: 1, 12, 8, 64>}, {transform_indices = @transform_2, window_bounds = array<i64: 1, 12, 8, 64>}, {transform_indices = @transform_3, window_bounds = array<i64: 1, 12, 8, 64>}]} {
    %c0 = arith.constant 0 : index
    %c0_0 = arith.constant 0 : index
    %c0_1 = arith.constant 0 : index
    %c0_2 = arith.constant 0 : index
    %0 = vector.load %arg1[%c0, %c0_0, %c0_1, %c0_2] : memref<1x12x8x64xbf16, #tpu.memory_space<vmem>>, vector<1x12x8x64xbf16>
    %1 = vector.shape_cast %0 : vector<1x12x8x64xbf16> to vector<12x8x64xbf16>
    %c0_3 = arith.constant 0 : index
    %c0_4 = arith.constant 0 : index
    %c0_5 = arith.constant 0 : index
    %c0_6 = arith.constant 0 : index
    %2 = vector.load %arg2[%c0_3, %c0_4, %c0_5, %c0_6] : memref<1x12x8x64xbf16, #tpu.memory_space<vmem>>, vector<1x12x8x64xbf16>
    %3 = vector.shape_cast %2 : vector<1x12x8x64xbf16> to vector<12x8x64xbf16>
    %c0_7 = arith.constant 0 : index
    %c0_8 = arith.constant 0 : index
    %c0_9 = arith.constant 0 : index
    %c0_10 = arith.constant 0 : index
    %4 = vector.load %arg3[%c0_7, %c0_8, %c0_9, %c0_10] : memref<1x12x8x64xbf16, #tpu.memory_space<vmem>>, vector<1x12x8x64xbf16>
    %5 = vector.shape_cast %4 : vector<1x12x8x64xbf16> to vector<12x8x64xbf16>
    "tpu.trace_start"() <{level = 10 : i32, message = "hqd,hkd->hqk"}> : () -> ()
    %cst = arith.constant dense<0.000000e+00> : vector<12x8x8xf32>
    %6 = tpu.matmul %1, %3, %cst {dimension_numbers = #tpu.dot_dimension_numbers<[2], [2], [1], [1], [0, 0, 0, 1, 1, 1], [0], [0]>} : vector<12x8x64xbf16>, vector<12x8x64xbf16>, vector<12x8x8xf32> -> vector<12x8x8xf32>
    "tpu.trace_stop"() : () -> ()
    %cst_11 = arith.constant 1.250000e-01 : f32
    %7 = vector.broadcast %cst_11 : f32 to vector<12x8x8xf32>
    %8 = arith.mulf %6, %7 : vector<12x8x8xf32>
    %9 = tpu.iota {dimensions = array<i32: 2>} : vector<12x8x8xi32>
    %c5_i32 = arith.constant 5 : i32
    %10 = vector.broadcast %c5_i32 : i32 to vector<12x8x8xi32>
    %11 = arith.cmpi slt, %9, %10 : vector<12x8x8xi32>
    %cst_12 = arith.constant -1.000000e+30 : f32
    %12 = vector.broadcast %cst_12 : f32 to vector<12x8x8xf32>
    %13 = arith.select %11, %8, %12 : vector<12x8x8xi1>, vector<12x8x8xf32>
    %cst_13 = arith.constant dense<0xFF800000> : vector<12x8xf32>
    %14 = vector.multi_reduction <maximumf>, %13, %cst_13 [2] : vector<12x8x8xf32> to vector<12x8xf32>
    %15 = vector.shape_cast %14 : vector<12x8xf32> to vector<12x8x1xf32>
    %16 = vector.broadcast %15 : vector<12x8x1xf32> to vector<12x8x8xf32>
    %17 = arith.subf %13, %16 : vector<12x8x8xf32>
    %18 = math.exp %17 : vector<12x8x8xf32>
    %cst_14 = arith.constant dense<0.000000e+00> : vector<12x8xf32>
    %19 = vector.multi_reduction <add>, %18, %cst_14 [2] : vector<12x8x8xf32> to vector<12x8xf32>
    %20 = vector.shape_cast %19 : vector<12x8xf32> to vector<12x8x1xf32>
    %21 = tpu.reciprocal %20 {approx = true} : vector<12x8x1xf32> -> vector<12x8x1xf32>
    %22 = vector.broadcast %21 : vector<12x8x1xf32> to vector<12x8x8xf32>
    %23 = arith.mulf %18, %22 : vector<12x8x8xf32>
    %24 = arith.truncf %23 : vector<12x8x8xf32> to vector<12x8x8xbf16>
    "tpu.trace_start"() <{level = 10 : i32, message = "hqk,hkd->hqd"}> : () -> ()
    %cst_15 = arith.constant dense<0.000000e+00> : vector<12x8x64xf32>
    %25 = tpu.matmul %24, %5, %cst_15 {dimension_numbers = #tpu.dot_dimension_numbers<[2], [1], [1], [2], [0, 0, 0, 1, 1, 2], [0], [0]>} : vector<12x8x8xbf16>, vector<12x8x64xbf16>, vector<12x8x64xf32> -> vector<12x8x64xf32>
    "tpu.trace_stop"() : () -> ()
    %26 = arith.truncf %25 : vector<12x8x64xf32> to vector<12x8x64xbf16>
    %c0_16 = arith.constant 0 : index
    %c0_17 = arith.constant 0 : index
    %c0_18 = arith.constant 0 : index
    %c0_19 = arith.constant 0 : index
    %27 = vector.load %arg4[%c0_16, %c0_17, %c0_18, %c0_19] : memref<1x12x8x64xbf16, #tpu.memory_space<vmem>>, vector<1x12x8x64xbf16>
    %28 = vector.shape_cast %27 : vector<1x12x8x64xbf16> to vector<12x8x64xbf16>
    %29 = vector.shape_cast %26 : vector<12x8x64xbf16> to vector<1x12x8x64xbf16>
    tpu.vector_store %arg4[%c0_16, %c0_17, %c0_18, %c0_19], %29 {strides = array<i32>} : memref<1x12x8x64xbf16, #tpu.memory_space<vmem>>, vector<1x12x8x64xbf16>,
    return
  }
  func.func @transform_0(%arg0: i32) -> (i32, i32, i32, i32) {
    %c0_i32 = arith.constant 0 : i32
    %c0_i32_0 = arith.constant 0 : i32
    %c0_i32_1 = arith.constant 0 : i32
    %c0_i32_2 = arith.constant 0 : i32
    return %arg0, %c0_i32, %c0_i32_0, %c0_i32_1 : i32, i32, i32, i32
  }
  func.func @transform_1(%arg0: i32) -> (i32, i32, i32, i32) {
    %c0_i32 = arith.constant 0 : i32
    %c0_i32_0 = arith.constant 0 : i32
    %c0_i32_1 = arith.constant 0 : i32
    %c0_i32_2 = arith.constant 0 : i32
    return %arg0, %c0_i32, %c0_i32_0, %c0_i32_1 : i32, i32, i32, i32
  }
  func.func @transform_2(%arg0: i32) -> (i32, i32, i32, i32) {
    %c0_i32 = arith.constant 0 : i32
    %c0_i32_0 = arith.constant 0 : i32
    %c0_i32_1 = arith.constant 0 : i32
    %c0_i32_2 = arith.constant 0 : i32
    return %arg0, %c0_i32, %c0_i32_0, %c0_i32_1 : i32, i32, i32, i32
  }
  func.func @transform_3(%arg0: i32) -> (i32, i32, i32, i32) {
    %c0_i32 = arith.constant 0 : i32
    %c0_i32_0 = arith.constant 0 : i32
    %c0_i32_1 = arith.constant 0 : i32
    %c0_i32_2 = arith.constant 0 : i32
    return %arg0, %c0_i32, %c0_i32_0, %c0_i32_1 : i32, i32, i32, i32
  }
}

module attributes {stable_mosaic.version = 11 : i64} {
  func.func @_matmul_res_kernel(%arg0: i32, %arg1: i32, %arg2: i32, %arg3: memref<16x256xbf16, #tpu.memory_space<vmem>>, %arg4: memref<256x256xbf16, #tpu.memory_space<vmem>>, %arg5: memref<1x256xf32, #tpu.memory_space<vmem>>, %arg6: memref<16x256xbf16, #tpu.memory_space<vmem>>, %arg7: memref<16x256xbf16, #tpu.memory_space<vmem>>, %arg8: memref<16x256xf32, #tpu.memory_space<vmem>>) attributes {dimension_semantics = [#tpu.dimension_semantics<parallel>, #tpu.dimension_semantics<parallel>, #tpu.dimension_semantics<arbitrary>], iteration_bounds = array<i64: 1, 3, 3>, scalar_prefetch = 0 : i64, scratch_operands = 1 : i64, tpu.core_type = #tpu.core_type<tc>, window_params = [{transform_indices = @transform_0, window_bounds = array<i64: 16, 256>}, {transform_indices = @transform_1, window_bounds = array<i64: 256, 256>}, {transform_indices = @transform_2, window_bounds = array<i64: 1, 256>}, {transform_indices = @transform_3, window_bounds = array<i64: 16, 256>}, {transform_indices = @transform_4, window_bounds = array<i64: 16, 256>}]} {
    %c0_i32 = arith.constant 0 : i32
    %0 = arith.cmpi eq, %arg2, %c0_i32 : i32
    %1 = arith.extui %0 : i1 to i32
    %c0_i32_0 = arith.constant 0 : i32
    %2 = arith.cmpi ne, %1, %c0_i32_0 : i32
    scf.if %2 {
      %cst_9 = arith.constant 0.000000e+00 : f32
      %12 = vector.broadcast %cst_9 : f32 to vector<16x256xf32>
      %c0_10 = arith.constant 0 : index
      %c0_11 = arith.constant 0 : index
      %13 = vector.load %arg8[%c0_10, %c0_11] : memref<16x256xf32, #tpu.memory_space<vmem>>, vector<16x256xf32>
      tpu.vector_store %arg8[%c0_10, %c0_11], %12 {strides = array<i32>} : memref<16x256xf32, #tpu.memory_space<vmem>>, vector<16x256xf32>,
    } else {
    }
    %c0 = arith.constant 0 : index
    %c0_1 = arith.constant 0 : index
    %3 = vector.load %arg8[%c0, %c0_1] : memref<16x256xf32, #tpu.memory_space<vmem>>, vector<16x256xf32>
    %c0_2 = arith.constant 0 : index
    %c0_3 = arith.constant 0 : index
    %4 = vector.load %arg3[%c0_2, %c0_3] : memref<16x256xbf16, #tpu.memory_space<vmem>>, vector<16x256xbf16>
    %c0_4 = arith.constant 0 : index
    %c0_5 = arith.constant 0 : index
    %5 = vector.load %arg4[%c0_4, %c0_5] : memref<256x256xbf16, #tpu.memory_space<vmem>>, vector<256x256xbf16>
    %cst = arith.constant dense<0.000000e+00> : vector<16x256xf32>
    %6 = tpu.matmul %4, %5, %cst {dimension_numbers = #tpu.dot_dimension_numbers<[1], [0], [0], [1], [0, 0, 1, 1], [], []>} : vector<16x256xbf16>, vector<256x256xbf16>, vector<16x256xf32> -> vector<16x256xf32>
    %7 = arith.addf %3, %6 : vector<16x256xf32>
    %c0_6 = arith.constant 0 : index
    %c0_7 = arith.constant 0 : index
    %8 = vector.load %arg8[%c0_6, %c0_7] : memref<16x256xf32, #tpu.memory_space<vmem>>, vector<16x256xf32>
    tpu.vector_store %arg8[%c0_6, %c0_7], %7 {strides = array<i32>} : memref<16x256xf32, #tpu.memory_space<vmem>>, vector<16x256xf32>,
    %c2_i32 = arith.constant 2 : i32
    %9 = arith.cmpi eq, %arg2, %c2_i32 : i32
    %10 = arith.extui %9 : i1 to i32
    %c0_i32_8 = arith.constant 0 : i32
    %11 = arith.cmpi ne, %10, %c0_i32_8 : i32
    scf.if %11 {
      %c0_9 = arith.constant 0 : index
      %c0_10 = arith.constant 0 : index
      %12 = vector.load %arg8[%c0_9, %c0_10] : memref<16x256xf32, #tpu.memory_space<vmem>>, vector<16x256xf32>
      %c0_11 = arith.constant 0 : index
      %c0_12 = arith.constant 0 : index
      %13 = vector.load %arg5[%c0_11, %c0_12] : memref<1x256xf32, #tpu.memory_space<vmem>>, vector<1x256xf32>
      %14 = vector.broadcast %13 : vector<1x256xf32> to vector<16x256xf32>
      %15 = arith.addf %12, %14 : vector<16x256xf32>
      %c0_13 = arith.constant 0 : index
      %c0_14 = arith.constant 0 : index
      %16 = vector.load %arg6[%c0_13, %c0_14] : memref<16x256xbf16, #tpu.memory_space<vmem>>, vector<16x256xbf16>
      %17 = arith.extf %16 : vector<16x256xbf16> to vector<16x256xf32>
      %18 = arith.addf %15, %17 : vector<16x256xf32>
      %19 = arith.truncf %18 : vector<16x256xf32> to vector<16x256xbf16>
      %c0_15 = arith.constant 0 : index
      %c0_16 = arith.constant 0 : index
      %20 = vector.load %arg7[%c0_15, %c0_16] : memref<16x256xbf16, #tpu.memory_space<vmem>>, vector<16x256xbf16>
      tpu.vector_store %arg7[%c0_15, %c0_16], %19 {strides = array<i32>} : memref<16x256xbf16, #tpu.memory_space<vmem>>, vector<16x256xbf16>,
    } else {
    }
    return
  }
  func.func @transform_0(%arg0: i32, %arg1: i32, %arg2: i32) -> (i32, i32) {
    %c0_i32 = arith.constant 0 : i32
    return %arg0, %arg2 : i32, i32
  }
  func.func @transform_1(%arg0: i32, %arg1: i32, %arg2: i32) -> (i32, i32) {
    %c0_i32 = arith.constant 0 : i32
    return %arg2, %arg1 : i32, i32
  }
  func.func @transform_2(%arg0: i32, %arg1: i32, %arg2: i32) -> (i32, i32) {
    %c0_i32 = arith.constant 0 : i32
    %c0_i32_0 = arith.constant 0 : i32
    return %c0_i32, %arg1 : i32, i32
  }
  func.func @transform_3(%arg0: i32, %arg1: i32, %arg2: i32) -> (i32, i32) {
    %c0_i32 = arith.constant 0 : i32
    return %arg0, %arg1 : i32, i32
  }
  func.func @transform_4(%arg0: i32, %arg1: i32, %arg2: i32) -> (i32, i32) {
    %c0_i32 = arith.constant 0 : i32
    return %arg0, %arg1 : i32, i32
  }
}

module attributes {stable_mosaic.version = 11 : i64} {
  func.func @_ln_matmul_kernel(%arg0: i32, %arg1: i32, %arg2: memref<16x768xbf16, #tpu.memory_space<vmem>>, %arg3: memref<1x768xf32, #tpu.memory_space<vmem>>, %arg4: memref<1x768xf32, #tpu.memory_space<vmem>>, %arg5: memref<768x512xbf16, #tpu.memory_space<vmem>>, %arg6: memref<1x512xf32, #tpu.memory_space<vmem>>, %arg7: memref<16x512xbf16, #tpu.memory_space<vmem>>) attributes {dimension_semantics = [#tpu.dimension_semantics<parallel>, #tpu.dimension_semantics<parallel>], iteration_bounds = array<i64: 1, 6>, scalar_prefetch = 0 : i64, scratch_operands = 0 : i64, tpu.core_type = #tpu.core_type<tc>, window_params = [{transform_indices = @transform_0, window_bounds = array<i64: 16, 768>}, {pipeline_mode = #tpu.pipeline_mode<synchronous>, transform_indices = @transform_1, window_bounds = array<i64: 1, 768>}, {pipeline_mode = #tpu.pipeline_mode<synchronous>, transform_indices = @transform_2, window_bounds = array<i64: 1, 768>}, {transform_indices = @transform_3, window_bounds = array<i64: 768, 512>}, {transform_indices = @transform_4, window_bounds = array<i64: 1, 512>}, {transform_indices = @transform_5, window_bounds = array<i64: 16, 512>}]} {
    %c0 = arith.constant 0 : index
    %c0_0 = arith.constant 0 : index
    %0 = vector.load %arg2[%c0, %c0_0] : memref<16x768xbf16, #tpu.memory_space<vmem>>, vector<16x768xbf16>
    %1 = arith.extf %0 : vector<16x768xbf16> to vector<16x768xf32>
    %cst = arith.constant dense<0.000000e+00> : vector<16xf32>
    %2 = vector.multi_reduction <add>, %1, %cst [1] : vector<16x768xf32> to vector<16xf32>
    %3 = vector.shape_cast %2 : vector<16xf32> to vector<16x1xf32>
    %cst_1 = arith.constant 7.680000e+02 : f32
    %4 = vector.broadcast %cst_1 : f32 to vector<16x1xf32>
    %5 = arith.divf %3, %4 : vector<16x1xf32>
    %6 = vector.broadcast %5 : vector<16x1xf32> to vector<16x768xf32>
    %7 = arith.subf %1, %6 : vector<16x768xf32>
    %8 = arith.mulf %7, %7 : vector<16x768xf32>
    %cst_2 = arith.constant dense<0.000000e+00> : vector<16xf32>
    %9 = vector.multi_reduction <add>, %8, %cst_2 [1] : vector<16x768xf32> to vector<16xf32>
    %10 = vector.shape_cast %9 : vector<16xf32> to vector<16x1xf32>
    %cst_3 = arith.constant 7.680000e+02 : f32
    %11 = vector.broadcast %cst_3 : f32 to vector<16x1xf32>
    %12 = arith.divf %10, %11 : vector<16x1xf32>
    %cst_4 = arith.constant 9.99999997E-7 : f32
    %13 = vector.broadcast %cst_4 : f32 to vector<16x1xf32>
    %14 = arith.addf %12, %13 : vector<16x1xf32>
    %15 = math.rsqrt %14 : vector<16x1xf32>
    %16 = vector.broadcast %15 : vector<16x1xf32> to vector<16x768xf32>
    %17 = arith.mulf %7, %16 : vector<16x768xf32>
    %c0_5 = arith.constant 0 : index
    %c0_6 = arith.constant 0 : index
    %18 = vector.load %arg3[%c0_5, %c0_6] : memref<1x768xf32, #tpu.memory_space<vmem>>, vector<1x768xf32>
    %19 = vector.broadcast %18 : vector<1x768xf32> to vector<16x768xf32>
    %20 = arith.mulf %17, %19 : vector<16x768xf32>
    %c0_7 = arith.constant 0 : index
    %c0_8 = arith.constant 0 : index
    %21 = vector.load %arg4[%c0_7, %c0_8] : memref<1x768xf32, #tpu.memory_space<vmem>>, vector<1x768xf32>
    %22 = vector.broadcast %21 : vector<1x768xf32> to vector<16x768xf32>
    %23 = arith.addf %20, %22 : vector<16x768xf32>
    %24 = arith.truncf %23 : vector<16x768xf32> to vector<16x768xbf16>
    %c0_9 = arith.constant 0 : index
    %c0_10 = arith.constant 0 : index
    %25 = vector.load %arg5[%c0_9, %c0_10] : memref<768x512xbf16, #tpu.memory_space<vmem>>, vector<768x512xbf16>
    %cst_11 = arith.constant dense<0.000000e+00> : vector<16x512xf32>
    %26 = tpu.matmul %24, %25, %cst_11 {dimension_numbers = #tpu.dot_dimension_numbers<[1], [0], [0], [1], [0, 0, 1, 1], [], []>} : vector<16x768xbf16>, vector<768x512xbf16>, vector<16x512xf32> -> vector<16x512xf32>
    %c0_12 = arith.constant 0 : index
    %c0_13 = arith.constant 0 : index
    %27 = vector.load %arg6[%c0_12, %c0_13] : memref<1x512xf32, #tpu.memory_space<vmem>>, vector<1x512xf32>
    %28 = vector.broadcast %27 : vector<1x512xf32> to vector<16x512xf32>
    %29 = arith.addf %26, %28 : vector<16x512xf32>
    %30 = arith.mulf %29, %29 : vector<16x512xf32>
    %31 = arith.mulf %29, %30 : vector<16x512xf32>
    %cst_14 = arith.constant 4.471500e-02 : f32
    %32 = vector.broadcast %cst_14 : f32 to vector<16x512xf32>
    %33 = arith.mulf %32, %31 : vector<16x512xf32>
    %34 = arith.addf %29, %33 : vector<16x512xf32>
    %cst_15 = arith.constant 0.797884583 : f32
    %35 = vector.broadcast %cst_15 : f32 to vector<16x512xf32>
    %36 = arith.mulf %35, %34 : vector<16x512xf32>
    %37 = math.tanh %36 : vector<16x512xf32>
    %cst_16 = arith.constant 1.000000e+00 : f32
    %38 = vector.broadcast %cst_16 : f32 to vector<16x512xf32>
    %39 = arith.addf %38, %37 : vector<16x512xf32>
    %cst_17 = arith.constant 5.000000e-01 : f32
    %40 = vector.broadcast %cst_17 : f32 to vector<16x512xf32>
    %41 = arith.mulf %40, %39 : vector<16x512xf32>
    %42 = arith.mulf %29, %41 : vector<16x512xf32>
    %43 = arith.truncf %42 : vector<16x512xf32> to vector<16x512xbf16>
    %c0_18 = arith.constant 0 : index
    %c0_19 = arith.constant 0 : index
    %44 = vector.load %arg7[%c0_18, %c0_19] : memref<16x512xbf16, #tpu.memory_space<vmem>>, vector<16x512xbf16>
    tpu.vector_store %arg7[%c0_18, %c0_19], %43 {strides = array<i32>} : memref<16x512xbf16, #tpu.memory_space<vmem>>, vector<16x512xbf16>,
    return
  }
  func.func @transform_0(%arg0: i32, %arg1: i32) -> (i32, i32) {
    %c0_i32 = arith.constant 0 : i32
    %c0_i32_0 = arith.constant 0 : i32
    return %arg0, %c0_i32 : i32, i32
  }
  func.func @transform_1(%arg0: i32, %arg1: i32) -> (i32, i32) {
    %c0_i32 = arith.constant 0 : i32
    %c0_i32_0 = arith.constant 0 : i32
    %c0_i32_1 = arith.constant 0 : i32
    return %c0_i32, %c0_i32_0 : i32, i32
  }
  func.func @transform_2(%arg0: i32, %arg1: i32) -> (i32, i32) {
    %c0_i32 = arith.constant 0 : i32
    %c0_i32_0 = arith.constant 0 : i32
    %c0_i32_1 = arith.constant 0 : i32
    return %c0_i32, %c0_i32_0 : i32, i32
  }
  func.func @transform_3(%arg0: i32, %arg1: i32) -> (i32, i32) {
    %c0_i32 = arith.constant 0 : i32
    %c0_i32_0 = arith.constant 0 : i32
    return %c0_i32, %arg1 : i32, i32
  }
  func.func @transform_4(%arg0: i32, %arg1: i32) -> (i32, i32) {
    %c0_i32 = arith.constant 0 : i32
    %c0_i32_0 = arith.constant 0 : i32
    return %c0_i32, %arg1 : i32, i32
  }
  func.func @transform_5(%arg0: i32, %arg1: i32) -> (i32, i32) {
    %c0_i32 = arith.constant 0 : i32
    return %arg0, %arg1 : i32, i32
  }
}

module attributes {stable_mosaic.version = 11 : i64} {
  func.func @_matmul_res_kernel(%arg0: i32, %arg1: i32, %arg2: i32, %arg3: memref<16x512xbf16, #tpu.memory_space<vmem>>, %arg4: memref<512x256xbf16, #tpu.memory_space<vmem>>, %arg5: memref<1x256xf32, #tpu.memory_space<vmem>>, %arg6: memref<16x256xbf16, #tpu.memory_space<vmem>>, %arg7: memref<16x256xbf16, #tpu.memory_space<vmem>>, %arg8: memref<16x256xf32, #tpu.memory_space<vmem>>) attributes {dimension_semantics = [#tpu.dimension_semantics<parallel>, #tpu.dimension_semantics<parallel>, #tpu.dimension_semantics<arbitrary>], iteration_bounds = array<i64: 1, 3, 6>, scalar_prefetch = 0 : i64, scratch_operands = 1 : i64, tpu.core_type = #tpu.core_type<tc>, window_params = [{transform_indices = @transform_0, window_bounds = array<i64: 16, 512>}, {transform_indices = @transform_1, window_bounds = array<i64: 512, 256>}, {transform_indices = @transform_2, window_bounds = array<i64: 1, 256>}, {transform_indices = @transform_3, window_bounds = array<i64: 16, 256>}, {transform_indices = @transform_4, window_bounds = array<i64: 16, 256>}]} {
    %c0_i32 = arith.constant 0 : i32
    %0 = arith.cmpi eq, %arg2, %c0_i32 : i32
    %1 = arith.extui %0 : i1 to i32
    %c0_i32_0 = arith.constant 0 : i32
    %2 = arith.cmpi ne, %1, %c0_i32_0 : i32
    scf.if %2 {
      %cst_9 = arith.constant 0.000000e+00 : f32
      %12 = vector.broadcast %cst_9 : f32 to vector<16x256xf32>
      %c0_10 = arith.constant 0 : index
      %c0_11 = arith.constant 0 : index
      %13 = vector.load %arg8[%c0_10, %c0_11] : memref<16x256xf32, #tpu.memory_space<vmem>>, vector<16x256xf32>
      tpu.vector_store %arg8[%c0_10, %c0_11], %12 {strides = array<i32>} : memref<16x256xf32, #tpu.memory_space<vmem>>, vector<16x256xf32>,
    } else {
    }
    %c0 = arith.constant 0 : index
    %c0_1 = arith.constant 0 : index
    %3 = vector.load %arg8[%c0, %c0_1] : memref<16x256xf32, #tpu.memory_space<vmem>>, vector<16x256xf32>
    %c0_2 = arith.constant 0 : index
    %c0_3 = arith.constant 0 : index
    %4 = vector.load %arg3[%c0_2, %c0_3] : memref<16x512xbf16, #tpu.memory_space<vmem>>, vector<16x512xbf16>
    %c0_4 = arith.constant 0 : index
    %c0_5 = arith.constant 0 : index
    %5 = vector.load %arg4[%c0_4, %c0_5] : memref<512x256xbf16, #tpu.memory_space<vmem>>, vector<512x256xbf16>
    %cst = arith.constant dense<0.000000e+00> : vector<16x256xf32>
    %6 = tpu.matmul %4, %5, %cst {dimension_numbers = #tpu.dot_dimension_numbers<[1], [0], [0], [1], [0, 0, 1, 1], [], []>} : vector<16x512xbf16>, vector<512x256xbf16>, vector<16x256xf32> -> vector<16x256xf32>
    %7 = arith.addf %3, %6 : vector<16x256xf32>
    %c0_6 = arith.constant 0 : index
    %c0_7 = arith.constant 0 : index
    %8 = vector.load %arg8[%c0_6, %c0_7] : memref<16x256xf32, #tpu.memory_space<vmem>>, vector<16x256xf32>
    tpu.vector_store %arg8[%c0_6, %c0_7], %7 {strides = array<i32>} : memref<16x256xf32, #tpu.memory_space<vmem>>, vector<16x256xf32>,
    %c5_i32 = arith.constant 5 : i32
    %9 = arith.cmpi eq, %arg2, %c5_i32 : i32
    %10 = arith.extui %9 : i1 to i32
    %c0_i32_8 = arith.constant 0 : i32
    %11 = arith.cmpi ne, %10, %c0_i32_8 : i32
    scf.if %11 {
      %c0_9 = arith.constant 0 : index
      %c0_10 = arith.constant 0 : index
      %12 = vector.load %arg8[%c0_9, %c0_10] : memref<16x256xf32, #tpu.memory_space<vmem>>, vector<16x256xf32>
      %c0_11 = arith.constant 0 : index
      %c0_12 = arith.constant 0 : index
      %13 = vector.load %arg5[%c0_11, %c0_12] : memref<1x256xf32, #tpu.memory_space<vmem>>, vector<1x256xf32>
      %14 = vector.broadcast %13 : vector<1x256xf32> to vector<16x256xf32>
      %15 = arith.addf %12, %14 : vector<16x256xf32>
      %c0_13 = arith.constant 0 : index
      %c0_14 = arith.constant 0 : index
      %16 = vector.load %arg6[%c0_13, %c0_14] : memref<16x256xbf16, #tpu.memory_space<vmem>>, vector<16x256xbf16>
      %17 = arith.extf %16 : vector<16x256xbf16> to vector<16x256xf32>
      %18 = arith.addf %15, %17 : vector<16x256xf32>
      %19 = arith.truncf %18 : vector<16x256xf32> to vector<16x256xbf16>
      %c0_15 = arith.constant 0 : index
      %c0_16 = arith.constant 0 : index
      %20 = vector.load %arg7[%c0_15, %c0_16] : memref<16x256xbf16, #tpu.memory_space<vmem>>, vector<16x256xbf16>
      tpu.vector_store %arg7[%c0_15, %c0_16], %19 {strides = array<i32>} : memref<16x256xbf16, #tpu.memory_space<vmem>>, vector<16x256xbf16>,
    } else {
    }
    return
  }
  func.func @transform_0(%arg0: i32, %arg1: i32, %arg2: i32) -> (i32, i32) {
    %c0_i32 = arith.constant 0 : i32
    return %arg0, %arg2 : i32, i32
  }
  func.func @transform_1(%arg0: i32, %arg1: i32, %arg2: i32) -> (i32, i32) {
    %c0_i32 = arith.constant 0 : i32
    return %arg2, %arg1 : i32, i32
  }
  func.func @transform_2(%arg0: i32, %arg1: i32, %arg2: i32) -> (i32, i32) {
    %c0_i32 = arith.constant 0 : i32
    %c0_i32_0 = arith.constant 0 : i32
    return %c0_i32, %arg1 : i32, i32
  }
  func.func @transform_3(%arg0: i32, %arg1: i32, %arg2: i32) -> (i32, i32) {
    %c0_i32 = arith.constant 0 : i32
    return %arg0, %arg1 : i32, i32
  }
  func.func @transform_4(%arg0: i32, %arg1: i32, %arg2: i32) -> (i32, i32) {
    %c0_i32 = arith.constant 0 : i32
    return %arg0, %arg1 : i32, i32
  }
}

module attributes {stable_mosaic.version = 11 : i64} {
  func.func @_ln_matmul_kernel(%arg0: i32, %arg1: i32, %arg2: memref<8x768xbf16, #tpu.memory_space<vmem>>, %arg3: memref<1x768xf32, #tpu.memory_space<vmem>>, %arg4: memref<1x768xf32, #tpu.memory_space<vmem>>, %arg5: memref<768x128xbf16, #tpu.memory_space<vmem>>, %arg6: memref<1x128xf32, #tpu.memory_space<vmem>>, %arg7: memref<8x128xf32, #tpu.memory_space<vmem>>) attributes {dimension_semantics = [#tpu.dimension_semantics<parallel>, #tpu.dimension_semantics<parallel>], iteration_bounds = array<i64: 1, 1>, scalar_prefetch = 0 : i64, scratch_operands = 0 : i64, tpu.core_type = #tpu.core_type<tc>, window_params = [{transform_indices = @transform_0, window_bounds = array<i64: 8, 768>}, {pipeline_mode = #tpu.pipeline_mode<synchronous>, transform_indices = @transform_1, window_bounds = array<i64: 1, 768>}, {pipeline_mode = #tpu.pipeline_mode<synchronous>, transform_indices = @transform_2, window_bounds = array<i64: 1, 768>}, {transform_indices = @transform_3, window_bounds = array<i64: 768, 128>}, {transform_indices = @transform_4, window_bounds = array<i64: 1, 128>}, {transform_indices = @transform_5, window_bounds = array<i64: 8, 128>}]} {
    %c0 = arith.constant 0 : index
    %c0_0 = arith.constant 0 : index
    %0 = vector.load %arg2[%c0, %c0_0] : memref<8x768xbf16, #tpu.memory_space<vmem>>, vector<8x768xbf16>
    %1 = arith.extf %0 : vector<8x768xbf16> to vector<8x768xf32>
    %cst = arith.constant dense<0.000000e+00> : vector<8xf32>
    %2 = vector.multi_reduction <add>, %1, %cst [1] : vector<8x768xf32> to vector<8xf32>
    %3 = vector.shape_cast %2 : vector<8xf32> to vector<8x1xf32>
    %cst_1 = arith.constant 7.680000e+02 : f32
    %4 = vector.broadcast %cst_1 : f32 to vector<8x1xf32>
    %5 = arith.divf %3, %4 : vector<8x1xf32>
    %6 = vector.broadcast %5 : vector<8x1xf32> to vector<8x768xf32>
    %7 = arith.subf %1, %6 : vector<8x768xf32>
    %8 = arith.mulf %7, %7 : vector<8x768xf32>
    %cst_2 = arith.constant dense<0.000000e+00> : vector<8xf32>
    %9 = vector.multi_reduction <add>, %8, %cst_2 [1] : vector<8x768xf32> to vector<8xf32>
    %10 = vector.shape_cast %9 : vector<8xf32> to vector<8x1xf32>
    %cst_3 = arith.constant 7.680000e+02 : f32
    %11 = vector.broadcast %cst_3 : f32 to vector<8x1xf32>
    %12 = arith.divf %10, %11 : vector<8x1xf32>
    %cst_4 = arith.constant 9.99999997E-7 : f32
    %13 = vector.broadcast %cst_4 : f32 to vector<8x1xf32>
    %14 = arith.addf %12, %13 : vector<8x1xf32>
    %15 = math.rsqrt %14 : vector<8x1xf32>
    %16 = vector.broadcast %15 : vector<8x1xf32> to vector<8x768xf32>
    %17 = arith.mulf %7, %16 : vector<8x768xf32>
    %c0_5 = arith.constant 0 : index
    %c0_6 = arith.constant 0 : index
    %18 = vector.load %arg3[%c0_5, %c0_6] : memref<1x768xf32, #tpu.memory_space<vmem>>, vector<1x768xf32>
    %19 = vector.broadcast %18 : vector<1x768xf32> to vector<8x768xf32>
    %20 = arith.mulf %17, %19 : vector<8x768xf32>
    %c0_7 = arith.constant 0 : index
    %c0_8 = arith.constant 0 : index
    %21 = vector.load %arg4[%c0_7, %c0_8] : memref<1x768xf32, #tpu.memory_space<vmem>>, vector<1x768xf32>
    %22 = vector.broadcast %21 : vector<1x768xf32> to vector<8x768xf32>
    %23 = arith.addf %20, %22 : vector<8x768xf32>
    %24 = arith.truncf %23 : vector<8x768xf32> to vector<8x768xbf16>
    %c0_9 = arith.constant 0 : index
    %c0_10 = arith.constant 0 : index
    %25 = vector.load %arg5[%c0_9, %c0_10] : memref<768x128xbf16, #tpu.memory_space<vmem>>, vector<768x128xbf16>
    %cst_11 = arith.constant dense<0.000000e+00> : vector<8x128xf32>
    %26 = tpu.matmul %24, %25, %cst_11 {dimension_numbers = #tpu.dot_dimension_numbers<[1], [0], [0], [1], [0, 0, 1, 1], [], []>} : vector<8x768xbf16>, vector<768x128xbf16>, vector<8x128xf32> -> vector<8x128xf32>
    %c0_12 = arith.constant 0 : index
    %c0_13 = arith.constant 0 : index
    %27 = vector.load %arg6[%c0_12, %c0_13] : memref<1x128xf32, #tpu.memory_space<vmem>>, vector<1x128xf32>
    %28 = vector.broadcast %27 : vector<1x128xf32> to vector<8x128xf32>
    %29 = arith.addf %26, %28 : vector<8x128xf32>
    %c0_14 = arith.constant 0 : index
    %c0_15 = arith.constant 0 : index
    %30 = vector.load %arg7[%c0_14, %c0_15] : memref<8x128xf32, #tpu.memory_space<vmem>>, vector<8x128xf32>
    tpu.vector_store %arg7[%c0_14, %c0_15], %29 {strides = array<i32>} : memref<8x128xf32, #tpu.memory_space<vmem>>, vector<8x128xf32>,
    return
  }
  func.func @transform_0(%arg0: i32, %arg1: i32) -> (i32, i32) {
    %c0_i32 = arith.constant 0 : i32
    %c0_i32_0 = arith.constant 0 : i32
    return %arg0, %c0_i32 : i32, i32
  }
  func.func @transform_1(%arg0: i32, %arg1: i32) -> (i32, i32) {
    %c0_i32 = arith.constant 0 : i32
    %c0_i32_0 = arith.constant 0 : i32
    %c0_i32_1 = arith.constant 0 : i32
    return %c0_i32, %c0_i32_0 : i32, i32
  }
  func.func @transform_2(%arg0: i32, %arg1: i32) -> (i32, i32) {
    %c0_i32 = arith.constant 0 : i32
    %c0_i32_0 = arith.constant 0 : i32
    %c0_i32_1 = arith.constant 0 : i32
    return %c0_i32, %c0_i32_0 : i32, i32
  }
  func.func @transform_3(%arg0: i32, %arg1: i32) -> (i32, i32) {
    %c0_i32 = arith.constant 0 : i32
    %c0_i32_0 = arith.constant 0 : i32
    return %c0_i32, %arg1 : i32, i32
  }
  func.func @transform_4(%arg0: i32, %arg1: i32) -> (i32, i32) {
    %c0_i32 = arith.constant 0 : i32
    %c0_i32_0 = arith.constant 0 : i32
    return %c0_i32, %arg1 : i32, i32
  }
  func.func @transform_5(%arg0: i32, %arg1: i32) -> (i32, i32) {
    %c0_i32 = arith.constant 0 : i32
    return %arg0, %arg1 : i32, i32
  }
}

</mosaic_0001>

<llo_original>
// kernel: _vit_forward_impl.2
$region0: #{_vit_forward_impl.2}
  #allocation0 [shape = 'u32[]', space=smem, size = 0x4, offset = 0x4, fixed_abs, tag = 'smem constant byte address 0x4 - core index']
  #allocation1 [shape = 'u32[144,128]{1,0:T(1,128)}', space=vmem, size = 0x12000, scoped, tag = 'internal scratch']
  #allocation2 [shape = 'f32[8,256]{1,0:T(8,128)}', space=vmem, size = 0x2000, scoped, tag = 'scratch operand']
  %s0 = inlined_call_operand.vmem [shape: bf16[8,768], index: 0, kind: input, shape index: {}]
  %s1 = inlined_call_operand.hbm [shape: bf16[768,768], index: 1, kind: input, shape index: {}]
  %s2 = inlined_call_operand.vmem [shape: f32[1,768], index: 2, kind: input, shape index: {}]
  %s3 = inlined_call_operand.vmem [shape: bf16[8,768], index: 3, kind: output, shape index: {}]
  %s4 = sld [smem:[#allocation0]]
  $region57: #{_vit_forward_impl.2} parent=0
    _
  %s6 = ssub.s32 1, %s4
  %s7 = scalar_select 0, %s6, %s4
  $region1: #{_vit_forward_impl.2} parent=0
    #allocation3 [shape = 'u8[262144]{0}', space=vmem, size = 0x40000, scoped, tag = 'input window, operand 1']
    #allocation4 [shape = 's32[2]{0}', space=sflag, size = 0x8, scoped, tag = 'scoped memory for _vit_forward_impl.2']
    %8 = vsyncpa [#allocation4], 0
    %s9 = scalar_lea.sflag [#allocation4], 1
    %10 = vsyncpa %s9, 0
    loop: start=0, step=1, limit=11
    $region2: #{_vit_forward_impl.2} parent=1 // loop_pre_header
      _
    $region3: #{_vit_forward_impl.2} parent=1 // loop_header
      %s12 = sphi 0, %s16
      %p13 = scmp.ge.s32.totalorder %s12, 11
      %s19 = sphi 0, %s38
      %s20 = sphi 0, %s34
      %s21 = sphi 0, %s30
      %s22 = sphi 0, %s19
      %s23 = sphi 0, %s20
      %s24 = sphi 0, %s21
      %s25 = sphi 0, %s22
      %s26 = sphi 0, %s23
      %s27 = sphi 0, %s24
      %s43 = sphi 0, %s45
      %s46 = sphi 0, %s43
      %s47 = sphi 0, %s46
      %s63 = sphi 0, %s47
      %s71 = sphi 0, %s73
      %s74 = sphi 0, %s71
      %s75 = sphi 0, %s74
      %s91 = sphi 0, %s75
      %s97 = sphi 0, %s99
      %s100 = sphi 0, %s97
      %s101 = sphi 0, %s100
      %s117 = sphi 0, %s101
      %s125 = sphi 0, %s127
      %s128 = sphi 0, %s125
      %s129 = sphi 0, %s128
      %s145 = sphi 0, %s129
    $region4: #{_vit_forward_impl.2} parent=1 // loop_header_branch
      %15 = sbr.rel (%p13) target = $region8
    $region5: #{_vit_forward_impl.2} parent=1 // loop_body
      %s17 = ssub.s32 %s12, 1
      %s18 = ssub.s32 %s12, 2
      %s28 = sadd.s32 1, %s21
      %p29 = scmp.ge.s32.totalorder %s28, 3
      %s30 = scalar_select %p29, 0, %s28
      %s31 = sadd.s32 1, %s20
      %s32 = scalar_select %p29, %s31, %s20
      %p33 = scmp.ge.s32.totalorder %s32, 3
      %s34 = scalar_select %p33, 0, %s32
      %s35 = sadd.s32 1, %s19
      %s36 = scalar_select %p33, %s35, %s19
      %p37 = scmp.ge.s32.totalorder %s36, 1
      %s38 = scalar_select %p37, 0, %s36
      %s39 = ssub.s32 %s19, %s38
      %s40 = ssub.s32 %s21, %s30
      %s41 = sor.u32 %s39, %s40
      %p42 = scmp.eq.s32.totalorder %s41, 0
      %s44 = sadd.s32 %s43, 1
      %s45 = scalar_select %p42, %s43, %s44
      %p48 = pneg %p42
      %p49 = scmp.eq.s32.totalorder %s12, 8
      %p50 = por %p48, %p49
      %p51 = scmp.ne.s32.totalorder %s43, %s46
      %p52 = scmp.eq.s32.totalorder %s12, 0
      %p53 = por %p51, %p52
      %p54 = scmp.ne.s32.totalorder %s43, %s46
      %p55 = scmp.eq.s32.totalorder %s17, 8
      %p56 = por %p54, %p55
      %p57 = scmp.ne.s32.totalorder %s46, %s47
      %p58 = scmp.eq.s32.totalorder %s17, 0
      %p59 = por %p57, %p58
      %p60 = scmp.ne.s32.totalorder %s46, %s47
      %p61 = scmp.eq.s32.totalorder %s18, 8
      %p62 = por %p60, %p61
      %p64 = scmp.ne.s32.totalorder %s47, %s63
      %p65 = scmp.eq.s32.totalorder %s18, 0
      %p66 = por %p64, %p65
      %s67 = ssub.s32 %s21, %s30
      %s68 = ssub.s32 %s20, %s34
      %s69 = sor.u32 %s67, %s68
      %p70 = scmp.eq.s32.totalorder %s69, 0
      %s72 = sadd.s32 %s71, 1
      %s73 = scalar_select %p70, %s71, %s72
      %p76 = pneg %p70
      %p77 = scmp.eq.s32.totalorder %s12, 8
      %p78 = por %p76, %p77
      %p79 = scmp.ne.s32.totalorder %s71, %s74
      %p80 = scmp.eq.s32.totalorder %s12, 0
      %p81 = por %p79, %p80
      %p82 = scmp.ne.s32.totalorder %s71, %s74
      %p83 = scmp.eq.s32.totalorder %s17, 8
      %p84 = por %p82, %p83
      %p85 = scmp.ne.s32.totalorder %s74, %s75
      %p86 = scmp.eq.s32.totalorder %s17, 0
      %p87 = por %p85, %p86
      %p88 = scmp.ne.s32.totalorder %s74, %s75
      %p89 = scmp.eq.s32.totalorder %s18, 8
      %p90 = por %p88, %p89
      %p92 = scmp.ne.s32.totalorder %s75, %s91
      %p93 = scmp.eq.s32.totalorder %s18, 0
      %p94 = por %p92, %p93
      %s95 = ssub.s32 %s20, %s34
      %p96 = scmp.eq.s32.totalorder %s95, 0
      %s98 = sadd.s32 %s97, 1
      %s99 = scalar_select %p96, %s97, %s98
      %p102 = pneg %p96
      %p103 = scmp.eq.s32.totalorder %s12, 8
      %p104 = por %p102, %p103
      %p105 = scmp.ne.s32.totalorder %s97, %s100
      %p106 = scmp.eq.s32.totalorder %s12, 0
      %p107 = por %p105, %p106
      %p108 = scmp.ne.s32.totalorder %s97, %s100
      %p109 = scmp.eq.s32.totalorder %s17, 8
      %p110 = por %p108, %p109
      %p111 = scmp.ne.s32.totalorder %s100, %s101
      %p112 = scmp.eq.s32.totalorder %s17, 0
      %p113 = por %p111, %p112
      %p114 = scmp.ne.s32.totalorder %s100, %s101
      %p115 = scmp.eq.s32.totalorder %s18, 8
      %p116 = por %p114, %p115
      %p118 = scmp.ne.s32.totalorder %s101, %s117
      %p119 = scmp.eq.s32.totalorder %s18, 0
      %p120 = por %p118, %p119
      %s121 = ssub.s32 %s19, %s38
      %s122 = ssub.s32 %s20, %s34
      %s123 = sor.u32 %s121, %s122
      %p124 = scmp.eq.s32.totalorder %s123, 0
      %s126 = sadd.s32 %s125, 1
      %s127 = scalar_select %p124, %s125, %s126
      %p130 = pneg %p124
      %p131 = scmp.eq.s32.totalorder %s12, 8
      %p132 = por %p130, %p131
      %p133 = scmp.ne.s32.totalorder %s125, %s128
      %p134 = scmp.eq.s32.totalorder %s12, 0
      %p135 = por %p133, %p134
      %p136 = scmp.ne.s32.totalorder %s125, %s128
      %p137 = scmp.eq.s32.totalorder %s17, 8
      %p138 = por %p136, %p137
      %p139 = scmp.ne.s32.totalorder %s128, %s129
      %p140 = scmp.eq.s32.totalorder %s17, 0
      %p141 = por %p139, %p140
      %p142 = scmp.ne.s32.totalorder %s128, %s129
      %p143 = scmp.eq.s32.totalorder %s18, 8
      %p144 = por %p142, %p143
      %p146 = scmp.ne.s32.totalorder %s129, %s145
      %p147 = scmp.eq.s32.totalorder %s18, 0
      %p148 = por %p146, %p147
      %p149 = scmp.le.s32.totalorder 1, %s12
      %p150 = scmp.lt.s32.totalorder %s12, 10
      %p151 = pnand %p149, %p150
      %p152 = pneg %p151
      // Predicated region
      $region9: #{_vit_forward_impl.2} parent=5 // pred_check
        _
      $region10: #{_vit_forward_impl.2} parent=5 // pred_check_branch
        %154 = sbr.rel (%p151) target = $region12
      $region11: #{_vit_forward_impl.2} parent=5 // pred_region
        %s155 = ssub.s32 %s12, 1
      $region12: #{_vit_forward_impl.2} parent=5 // pred_fallthru
        _
      %p156 = scmp.lt.s32.totalorder %s12, 9
      // Predicated region
      $region13: #{_vit_forward_impl.2} parent=5 // pred_check
        %p157 = pneg %p156
      $region14: #{_vit_forward_impl.2} parent=5 // pred_check_branch
        %159 = sbr.rel (%p157) target = $region16
      $region15: #{_vit_forward_impl.2} parent=5 // pred_region
        // Predicated region
        $region17: #{_vit_forward_impl.2} parent=15 // pred_check
          %p160 = pneg %p53
        $region18: #{_vit_forward_impl.2} parent=15 // pred_check_branch
          %162 = sbr.rel (%p160) target = $region20
        $region19: #{_vit_forward_impl.2} parent=15 // pred_region
          %s163 = smul.u32 2, %s21
          %p164 = scmp.lt.s32.totalorder %s19, 0
          %s165 = scalar_select %p164, %s19, 0
          %p166 = scmp.lt.s32.totalorder %s163, 5
          %s167 = scalar_select %p166, %s163, 5
          %s168 = smul.addr %s165, 6
          %s169 = sadd.s32 %s167, %s168
          %s170 = smul.addr %s169, 4
          %s171 = scalar_lea.vmem %s0, %s170
          %s172 = smul.u32 2, %s21
        $region20: #{_vit_forward_impl.2} parent=15 // pred_fallthru
          _
        // Predicated region
        $region21: #{_vit_forward_impl.2} parent=15 // pred_check
          %p173 = pneg %p81
        $region22: #{_vit_forward_impl.2} parent=15 // pred_check_branch
          %175 = sbr.rel (%p173) target = $region24
        $region23: #{_vit_forward_impl.2} parent=15 // pred_region
          %s176 = sand.u32 %s71, 1
          %s177 = scalar_lea.sflag [#allocation4], %s176
          %s178 = sand.u32 %s71, 1
          %s179 = smul.addr %s178, 256
          %s180 = scalar_lea.vmem [#allocation3], %s179
          %s181 = smul.u32 32, %s21
          %s182 = smul.u32 2, %s20
          %s184 = ssub.s32 4096, 4096
          %185 = vsyncadd %s177, %s184
          %s186 = smul.addr %s181, 6
          %s187 = sadd.s32 %s182, %s186
          %s188 = smul.addr %s187, 64
          %s189 = scalar_lea.hbm %s1, %s188
          %s190 = sshll.u32 %s180, 4
          %s191 = int_to_ptr.vmem [resolvable:$true] %s190
          %196 = dma.hbm_to_vmem [thread:$0]  %s189, 4096, %s191, %s177, 384, 128, 8
        $region24: #{_vit_forward_impl.2} parent=15 // pred_fallthru
          _
        // Predicated region
        $region25: #{_vit_forward_impl.2} parent=15 // pred_check
          %p197 = pneg %p107
        $region26: #{_vit_forward_impl.2} parent=15 // pred_check_branch
          %199 = sbr.rel (%p197) target = $region28
        $region27: #{_vit_forward_impl.2} parent=15 // pred_region
          %s200 = smul.u32 2, %s20
          %p201 = scmp.lt.s32.totalorder %s200, 5
          %s202 = scalar_select %p201, %s200, 5
          %s203 = scalar_lea.vmem %s2, %s202
          %s204 = smul.u32 2, %s20
        $region28: #{_vit_forward_impl.2} parent=15 // pred_fallthru
          _
      $region16: #{_vit_forward_impl.2} parent=5 // pred_fallthru
        _
      %p205 = scmp.le.s32.totalorder 1, %s12
      %p206 = scmp.lt.s32.totalorder %s12, 10
      %p207 = pnand %p205, %p206
      %p208 = pneg %p207
      // Predicated region
      $region29: #{_vit_forward_impl.2} parent=5 // pred_check
        _
      $region30: #{_vit_forward_impl.2} parent=5 // pred_check_branch
        %210 = sbr.rel (%p207) target = $region32
      $region31: #{_vit_forward_impl.2} parent=5 // pred_region
        %s211 = ssub.s32 %s12, 1
        %s212 = sand.u32 %s74, 1
        %s213 = scalar_lea.sflag [#allocation4], %s212
        %s214 = sand.u32 %s74, 1
        %s215 = smul.addr %s214, 256
        %s216 = scalar_lea.vmem [#allocation3], %s215
        // Predicated region
        $region33: #{_vit_forward_impl.2} parent=31 // pred_check
          %p217 = pneg %p87
        $region34: #{_vit_forward_impl.2} parent=31 // pred_check_branch
          %219 = sbr.rel (%p217) target = $region36
        $region35: #{_vit_forward_impl.2} parent=31 // pred_region
          %220 = dma.done %s213, 4096
        $region36: #{_vit_forward_impl.2} parent=31 // pred_fallthru
          _
        %s221 = smul.u32 2, %s24
        %p222 = scmp.lt.s32.totalorder %s22, 0
        %s223 = scalar_select %p222, %s22, 0
        %p224 = scmp.lt.s32.totalorder %s221, 5
        %s225 = scalar_select %p224, %s221, 5
        %s226 = smul.addr %s223, 6
        %s227 = sadd.s32 %s225, %s226
        %s228 = smul.addr %s227, 4
        %s229 = scalar_lea.vmem %s0, %s228
        %p230 = pneg %p59
        %p231 = pneg %p56
        %s232 = sand.u32 %s74, 1
        %s233 = scalar_lea.sflag [#allocation4], %s232
        %s234 = sand.u32 %s74, 1
        %s235 = smul.addr %s234, 256
        %s236 = scalar_lea.vmem [#allocation3], %s235
        %p237 = pneg %p87
        %p238 = pneg %p84
        %s239 = smul.u32 2, %s23
        %p240 = scmp.lt.s32.totalorder %s239, 5
        %s241 = scalar_select %p240, %s239, 5
        %s242 = scalar_lea.vmem %s2, %s241
        %p243 = pneg %p113
        %p244 = pneg %p110
        %p245 = pneg %p141
        %p246 = pneg %p138
        %s247 = smul.u32 2, %s23
        %p248 = scmp.lt.s32.totalorder %s22, 0
        %s249 = scalar_select %p248, %s22, 0
        %p250 = scmp.lt.s32.totalorder %s247, 5
        %s251 = scalar_select %p250, %s247, 5
        %s252 = smul.addr %s249, 6
        %s253 = sadd.s32 %s251, %s252
        %s254 = smul.addr %s253, 4
        %s255 = scalar_lea.vmem %s3, %s254
        %s256 = smul.u32 2, %s24
        %p257 = scmp.lt.s32.totalorder %s22, 0
        %s258 = scalar_select %p257, %s22, 0
        %p259 = scmp.lt.s32.totalorder %s256, 5
        %s260 = scalar_select %p259, %s256, 5
        %s261 = smul.addr %s258, 6
        %s262 = sadd.s32 %s260, %s261
        %s263 = smul.addr %s262, 4
        %s264 = scalar_lea.vmem %s0, %s263
        %s265 = smul.u32 2, %s24
        %s266 = smul.u32 32, %s24
        %s267 = smul.u32 2, %s23
        %s268 = smul.u32 2, %s23
        %p269 = scmp.lt.s32.totalorder %s268, 5
        %s270 = scalar_select %p269, %s268, 5
        %s271 = scalar_lea.vmem %s2, %s270
        %s272 = smul.u32 2, %s23
        %s273 = smul.u32 2, %s23
        %p274 = scmp.lt.s32.totalorder %s22, 0
        %s275 = scalar_select %p274, %s22, 0
        %p276 = scmp.lt.s32.totalorder %s273, 5
        %s277 = scalar_select %p276, %s273, 5
        %s278 = smul.addr %s275, 6
        %s279 = sadd.s32 %s277, %s278
        %s280 = smul.addr %s279, 4
        %s281 = scalar_lea.vmem %s3, %s280
        %s282 = smul.u32 2, %s23
        %p283 = scmp.eq.s32.totalorder %s24, 0
        // Predicated region
        $region37: #{_vit_forward_impl.2} parent=31 // pred_check
          %p284 = pneg %p283
        $region38: #{_vit_forward_impl.2} parent=31 // pred_check_branch
          %286 = sbr.rel (%p284) target = $region40
        $region39: #{_vit_forward_impl.2} parent=31 // pred_region
          %287 = vst [vmem:[#allocation2] sm:$0xff] 0.0
          %288 = vst [vmem:[#allocation2 + $0x8] sm:$0xff] 0.0
        $region40: #{_vit_forward_impl.2} parent=31 // pred_fallthru
          _
        %v289 = vld [vmem:[#allocation2] sm:$0xff]
        %v290 = vld [vmem:[#allocation2 + $0x8] sm:$0xff]
        %v291 = vld [vmem:[%s264] sm:$0xff]
        %v292 = vld [vmem:[%s216] sm:$0xff]
        %v293 = vld [vmem:[%s216 + $0x8] sm:$0xff]
        %v294 = vld [vmem:[%s216 + $0x10] sm:$0xff]
        %v295 = vld [vmem:[%s216 + $0x18] sm:$0xff]
        %v296 = vld [vmem:[%s216 + $0x20] sm:$0xff]
        %v297 = vld [vmem:[%s216 + $0x28] sm:$0xff]
        %v298 = vld [vmem:[%s216 + $0x30] sm:$0xff]
        %v299 = vld [vmem:[%s216 + $0x38] sm:$0xff]
        %v300 = vld [vmem:[%s216 + $0x40] sm:$0xff]
        %v301 = vld [vmem:[%s216 + $0x48] sm:$0xff]
        %v302 = vld [vmem:[%s216 + $0x50] sm:$0xff]
        %v303 = vld [vmem:[%s216 + $0x58] sm:$0xff]
        %v304 = vld [vmem:[%s216 + $0x60] sm:$0xff]
        %v305 = vld [vmem:[%s216 + $0x68] sm:$0xff]
        %v306 = vld [vmem:[%s216 + $0x70] sm:$0xff]
        %v307 = vld [vmem:[%s216 + $0x78] sm:$0xff]
        %v308 = vld [vmem:[%s216 + $0x80] sm:$0xff]
        %v309 = vld [vmem:[%s216 + $0x88] sm:$0xff]
        %v310 = vld [vmem:[%s216 + $0x90] sm:$0xff]
        %v311 = vld [vmem:[%s216 + $0x98] sm:$0xff]
        %v312 = vld [vmem:[%s216 + $0xa0] sm:$0xff]
        %v313 = vld [vmem:[%s216 + $0xa8] sm:$0xff]
        %v314 = vld [vmem:[%s216 + $0xb0] sm:$0xff]
        %v315 = vld [vmem:[%s216 + $0xb8] sm:$0xff]
        %v316 = vld [vmem:[%s216 + $0xc0] sm:$0xff]
        %v317 = vld [vmem:[%s216 + $0xc8] sm:$0xff]
        %v318 = vld [vmem:[%s216 + $0xd0] sm:$0xff]
        %v319 = vld [vmem:[%s216 + $0xd8] sm:$0xff]
        %v320 = vld [vmem:[%s216 + $0xe0] sm:$0xff]
        %v321 = vld [vmem:[%s216 + $0xe8] sm:$0xff]
        %v322 = vld [vmem:[%s216 + $0xf0] sm:$0xff]
        %v323 = vld [vmem:[%s216 + $0xf8] sm:$0xff]
        %v325 = vunpack.c.l.b16 %v291
        %v326 = vunpack.c.h.b16 %v291
        %v327 = vpack.c.b16 %v325, %v325
        %v328 = vpack.c.b16 %v326, %v326
        %v363 = vunpack.c.l.b16 %v292
        %v364 = vunpack.c.h.b16 %v292
        %v365 = vunpack.c.l.b16 %v293
        %v366 = vunpack.c.h.b16 %v293
        %v367 = vunpack.c.l.b16 %v294
        %v368 = vunpack.c.h.b16 %v294
        %v369 = vunpack.c.l.b16 %v295
        %v370 = vunpack.c.h.b16 %v295
        %v371 = vunpack.c.l.b16 %v296
        %v372 = vunpack.c.h.b16 %v296
        %v373 = vunpack.c.l.b16 %v297
        %v374 = vunpack.c.h.b16 %v297
        %v375 = vunpack.c.l.b16 %v298
        %v376 = vunpack.c.h.b16 %v298
        %v377 = vunpack.c.l.b16 %v299
        %v378 = vunpack.c.h.b16 %v299
        %v379 = vunpack.c.l.b16 %v300
        %v380 = vunpack.c.h.b16 %v300
        %v381 = vunpack.c.l.b16 %v301
        %v382 = vunpack.c.h.b16 %v301
        %v383 = vunpack.c.l.b16 %v302
        %v384 = vunpack.c.h.b16 %v302
        %v385 = vunpack.c.l.b16 %v303
        %v386 = vunpack.c.h.b16 %v303
        %v387 = vunpack.c.l.b16 %v304
        %v388 = vunpack.c.h.b16 %v304
        %v389 = vunpack.c.l.b16 %v305
        %v390 = vunpack.c.h.b16 %v305
        %v391 = vunpack.c.l.b16 %v306
        %v392 = vunpack.c.h.b16 %v306
        %v393 = vunpack.c.l.b16 %v307
        %v394 = vunpack.c.h.b16 %v307
        %v395 = vunpack.c.l.b16 %v308
        %v396 = vunpack.c.h.b16 %v308
        %v397 = vunpack.c.l.b16 %v309
        %v398 = vunpack.c.h.b16 %v309
        %v399 = vunpack.c.l.b16 %v310
        %v400 = vunpack.c.h.b16 %v310
        %v401 = vunpack.c.l.b16 %v311
        %v402 = vunpack.c.h.b16 %v311
        %v403 = vunpack.c.l.b16 %v312
        %v404 = vunpack.c.h.b16 %v312
        %v405 = vunpack.c.l.b16 %v313
        %v406 = vunpack.c.h.b16 %v313
        %v407 = vunpack.c.l.b16 %v314
        %v408 = vunpack.c.h.b16 %v314
        %v409 = vunpack.c.l.b16 %v315
        %v410 = vunpack.c.h.b16 %v315
        %v411 = vunpack.c.l.b16 %v316
        %v412 = vunpack.c.h.b16 %v316
        %v413 = vunpack.c.l.b16 %v317
        %v414 = vunpack.c.h.b16 %v317
        %v415 = vunpack.c.l.b16 %v318
        %v416 = vunpack.c.h.b16 %v318
        %v417 = vunpack.c.l.b16 %v319
        %v418 = vunpack.c.h.b16 %v319
        %v419 = vunpack.c.l.b16 %v320
        %v420 = vunpack.c.h.b16 %v320
        %v421 = vunpack.c.l.b16 %v321
        %v422 = vunpack.c.h.b16 %v321
        %v423 = vunpack.c.l.b16 %v322
        %v424 = vunpack.c.h.b16 %v322
        %v425 = vunpack.c.l.b16 %v323
        %v426 = vunpack.c.h.b16 %v323
        %v427 = vpack.c.b16 %v365, %v363
        %v428 = vpack.c.b16 %v366, %v364
        %v429 = vpack.c.b16 %v369, %v367
        %v430 = vpack.c.b16 %v370, %v368
        %v431 = vpack.c.b16 %v373, %v371
        %v432 = vpack.c.b16 %v374, %v372
        %v433 = vpack.c.b16 %v377, %v375
        %v434 = vpack.c.b16 %v378, %v376
        %v435 = vpack.c.b16 %v381, %v379
        %v436 = vpack.c.b16 %v382, %v380
        %v437 = vpack.c.b16 %v385, %v383
        %v438 = vpack.c.b16 %v386, %v384
        %v439 = vpack.c.b16 %v389, %v387
        %v440 = vpack.c.b16 %v390, %v388
        %v441 = vpack.c.b16 %v393, %v391
        %v442 = vpack.c.b16 %v394, %v392
        %v443 = vpack.c.b16 %v397, %v395
        %v444 = vpack.c.b16 %v398, %v396
        %v445 = vpack.c.b16 %v401, %v399
        %v446 = vpack.c.b16 %v402, %v400
        %v447 = vpack.c.b16 %v405, %v403
        %v448 = vpack.c.b16 %v406, %v404
        %v449 = vpack.c.b16 %v409, %v407
        %v450 = vpack.c.b16 %v410, %v408
        %v451 = vpack.c.b16 %v413, %v411
        %v452 = vpack.c.b16 %v414, %v412
        %v453 = vpack.c.b16 %v417, %v415
        %v454 = vpack.c.b16 %v418, %v416
        %v455 = vpack.c.b16 %v421, %v419
        %v456 = vpack.c.b16 %v422, %v420
        %v457 = vpack.c.b16 %v425, %v423
        %v458 = vpack.c.b16 %v426, %v424
        %491 = vmatprep.subr.bf16.mxu0 %v428
        %492 = vmatpush1.bf16.msra.mxu0 %v427
        %493 = vmatprep.subr.bf16.mxu0 %v430
        %494 = vmatpush1.bf16.msra.mxu0 %v429
        %495 = vmatprep.subr.bf16.mxu0 %v432
        %496 = vmatpush1.bf16.msra.mxu0 %v431
        %497 = vmatprep.subr.bf16.mxu0 %v434
        %498 = vmatpush1.bf16.msra.mxu0 %v433
        %499 = vmatprep.subr.bf16.mxu0 %v436
        %500 = vmatpush1.bf16.msra.mxu0 %v435
        %501 = vmatprep.subr.bf16.mxu0 %v438
        %502 = vmatpush1.bf16.msra.mxu0 %v437
        %503 = vmatprep.subr.bf16.mxu0 %v440
        %504 = vmatpush1.bf16.msra.mxu0 %v439
        %505 = vmatprep.subr.bf16.mxu0 %v442
        %506 = vmatpush1.bf16.msra.mxu0 %v441
        %507 = vmatprep.subr.bf16.mxu0 %v444
        %508 = vmatpush1.bf16.msra.mxu0 %v443
        %509 = vmatprep.subr.bf16.mxu0 %v446
        %510 = vmatpush1.bf16.msra.mxu0 %v445
        %511 = vmatprep.subr.bf16.mxu0 %v448
        %512 = vmatpush1.bf16.msra.mxu0 %v447
        %513 = vmatprep.subr.bf16.mxu0 %v450
        %514 = vmatpush1.bf16.msra.mxu0 %v449
        %515 = vmatprep.subr.bf16.mxu0 %v452
        %516 = vmatpush1.bf16.msra.mxu0 %v451
        %517 = vmatprep.subr.bf16.mxu0 %v454
        %518 = vmatpush1.bf16.msra.mxu0 %v453
        %519 = vmatprep.subr.bf16.mxu0 %v456
        %520 = vmatpush1.bf16.msra.mxu0 %v455
        %521 = vmatprep.subr.bf16.mxu0 %v458
        %522 = vmatpush1.bf16.msra.mxu0 %v457
        %523 = vmatprep.mubr.bf16.mxu0 %v328
        %524 = vmatmul.mubr.bf16.gmra.mrb[0].mxu0 %v327
        %v525 = vpop.f32.mrb[0].mxu0
        %v526 = vadd.f32 0.0, %v525
        %v527 = vpop.f32.mrb[0].mxu0
        %v528 = vadd.f32 0.0, %v527
        %v529 = vpop.f32.mrb[0].mxu0
        %v530 = vpop.f32.mrb[0].mxu0
        %531 = vdwg.mxu0
        %v532 = vadd.f32 %v289, %v526
        %v533 = vadd.f32 %v290, %v528
        %534 = vst [vmem:[#allocation2] sm:$0xff] %v532
        %535 = vst [vmem:[#allocation2 + $0x8] sm:$0xff] %v533
        %p536 = scmp.eq.s32.totalorder %s24, 2
        // Predicated region
        $region41: #{_vit_forward_impl.2} parent=31 // pred_check
          %p537 = pneg %p536
        $region42: #{_vit_forward_impl.2} parent=31 // pred_check_branch
          %539 = sbr.rel (%p537) target = $region44
        $region43: #{_vit_forward_impl.2} parent=31 // pred_region
          %v540 = vld [vmem:[#allocation2] sm:$0xff]
          %v541 = vld [vmem:[#allocation2 + $0x8] sm:$0xff]
          %v542 = vld [vmem:[%s271] sm:$0x3]
          %v544 = vlaneseq
          %v545 = vshrl.u32 %v544, 7
          %v546 = vsub.s32 0, %v545
          %v547 = vrot.slane %v542, %v546
          %v548 = vlaneseq
          %v549 = vshrl.u32 %v548, 7
          %v550 = vsub.s32 1, %v549
          %v551 = vrot.slane %v542, %v550
          %v554 = vadd.f32 %v540, %v547
          %v555 = vadd.f32 %v541, %v551
          %v556 = vpack.c.bf16 %v554, %v554
          %v557 = vpack.c.bf16 %v555, %v555
          %v560 = vunpack.c.l.b16 %v556
          %v561 = vunpack.c.l.b16 %v557
          %v562 = vpack.c.b16 %v561, %v560
          %564 = vst [vmem:[%s281] sm:$0xff] %v562
        $region44: #{_vit_forward_impl.2} parent=31 // pred_fallthru
          _
        %s565 = smul.u32 2, %s23
        %p566 = scmp.lt.s32.totalorder %s22, 0
        %s567 = scalar_select %p566, %s22, 0
        %p568 = scmp.lt.s32.totalorder %s565, 5
        %s569 = scalar_select %p568, %s565, 5
        %s570 = smul.addr %s567, 6
        %s571 = sadd.s32 %s569, %s570
        %s572 = smul.addr %s571, 4
        %s573 = scalar_lea.vmem %s3, %s572
        // Predicated region
        $region45: #{_vit_forward_impl.2} parent=31 // pred_check
          %p574 = pneg %p138
        $region46: #{_vit_forward_impl.2} parent=31 // pred_check_branch
          %576 = sbr.rel (%p574) target = $region48
        $region47: #{_vit_forward_impl.2} parent=31 // pred_region
          %s577 = smul.u32 2, %s23
        $region48: #{_vit_forward_impl.2} parent=31 // pred_fallthru
          _
      $region32: #{_vit_forward_impl.2} parent=5 // pred_fallthru
        _
      %p578 = scmp.le.s32.totalorder 2, %s12
      // Predicated region
      $region49: #{_vit_forward_impl.2} parent=5 // pred_check
        %p579 = pneg %p578
      $region50: #{_vit_forward_impl.2} parent=5 // pred_check_branch
        %581 = sbr.rel (%p579) target = $region52
      $region51: #{_vit_forward_impl.2} parent=5 // pred_region
        %s582 = ssub.s32 %s12, 2
        // Predicated region
        $region53: #{_vit_forward_impl.2} parent=51 // pred_check
          %p583 = pneg %p144
        $region54: #{_vit_forward_impl.2} parent=51 // pred_check_branch
          %585 = sbr.rel (%p583) target = $region56
        $region55: #{_vit_forward_impl.2} parent=51 // pred_region
          %s586 = smul.u32 2, %s26
          %p587 = scmp.lt.s32.totalorder %s25, 0
          %s588 = scalar_select %p587, %s25, 0
          %p589 = scmp.lt.s32.totalorder %s586, 5
          %s590 = scalar_select %p589, %s586, 5
          %s591 = smul.addr %s588, 6
          %s592 = sadd.s32 %s590, %s591
          %s593 = smul.addr %s592, 4
          %s594 = scalar_lea.vmem %s3, %s593
        $region56: #{_vit_forward_impl.2} parent=51 // pred_fallthru
          _
      $region52: #{_vit_forward_impl.2} parent=5 // pred_fallthru
        _
    $region6: #{_vit_forward_impl.2} parent=1 // loop_footer
      %s16 = sadd.s32 1, %s12
    $region7: #{_vit_forward_impl.2} parent=1 // loop_footer_branch
      %11 = sbr.rel target = $region3
    $region8: #{_vit_forward_impl.2} parent=1 // loop_exit
      _
    %595 = vsyncpa [#allocation4], 1
    %s596 = scalar_lea.sflag [#allocation4], 1
    %597 = vsyncpa %s596, 1

// kernel: closed_call.16
$region0: #{closed_call.16}
  #allocation0 [shape = 'u32[]', space=smem, size = 0x4, offset = 0x4, fixed_abs, tag = 'smem constant byte address 0x4 - core index']
  #allocation1 [shape = 'u32[144,128]{1,0:T(1,128)}', space=vmem, size = 0x12000, scoped, tag = 'internal scratch']
  %s0 = inlined_call_operand.vmem [shape: bf16[16,768], index: 0, kind: input, shape index: {}]
  %s1 = inlined_call_operand.vmem [shape: f32[1,768], index: 1, kind: input, shape index: {}]
  %s2 = inlined_call_operand.vmem [shape: f32[1,768], index: 2, kind: input, shape index: {}]
  %s3 = inlined_call_operand.vmem [shape: bf16[768,2304], index: 3, kind: input, shape index: {}]
  %s4 = inlined_call_operand.vmem [shape: f32[1,2304], index: 4, kind: input, shape index: {}]
  %s5 = inlined_call_operand.vmem [shape: bf16[16,2304], index: 5, kind: output, shape index: {}]
  %s6 = sld [smem:[#allocation0]]
  $region125: #{closed_call.16} parent=0
    _
  %s8 = ssub.s32 1, %s6
  %s9 = scalar_select 0, %s8, %s6
  $region1: #{closed_call.16} parent=0
    #allocation2 [shape = 'u8[786432]{0}', space=vmem, size = 0xc0000, scoped, tag = 'input window, operand 3']
    #allocation3 [shape = 'u8[16384]{0}', space=vmem, size = 0x4000, scoped, tag = 'output window, operand 0']
    loop: start=0, step=1, limit=11
    $region2: #{closed_call.16} parent=1 // loop_pre_header
      _
    $region3: #{closed_call.16} parent=1 // loop_header
      %s11 = sphi 0, %s15
      %p12 = scmp.ge.s32.totalorder %s11, 11
      %s18 = sphi 0, %s30
      %s19 = sphi 0, %s26
      %s20 = sphi 0, %s18
      %s21 = sphi 0, %s19
      %s22 = sphi 0, %s20
      %s23 = sphi 0, %s21
      %s33 = sphi 0, %s35
      %s36 = sphi 0, %s33
      %s37 = sphi 0, %s36
      %s53 = sphi 0, %s37
      %s57 = sphi 0, %s57
      %s59 = sphi 0, %s57
      %s60 = sphi 0, %s59
      %s74 = sphi 0, %s60
      %s78 = sphi 0, %s78
      %s80 = sphi 0, %s78
      %s81 = sphi 0, %s80
      %s95 = sphi 0, %s81
      %s101 = sphi 0, %s103
      %s104 = sphi 0, %s101
      %s105 = sphi 0, %s104
      %s121 = sphi 0, %s105
      %s127 = sphi 0, %s129
      %s130 = sphi 0, %s127
      %s131 = sphi 0, %s130
      %s147 = sphi 0, %s131
      %s155 = sphi 0, %s157
      %s158 = sphi 0, %s155
      %s159 = sphi 0, %s158
      %s175 = sphi 0, %s159
    $region4: #{closed_call.16} parent=1 // loop_header_branch
      %14 = sbr.rel (%p12) target = $region8
    $region5: #{closed_call.16} parent=1 // loop_body
      %s16 = ssub.s32 %s11, 1
      %s17 = ssub.s32 %s11, 2
      %s24 = sadd.s32 1, %s19
      %p25 = scmp.ge.s32.totalorder %s24, 9
      %s26 = scalar_select %p25, 0, %s24
      %s27 = sadd.s32 1, %s18
      %s28 = scalar_select %p25, %s27, %s18
      %p29 = scmp.ge.s32.totalorder %s28, 1
      %s30 = scalar_select %p29, 0, %s28
      %s31 = ssub.s32 %s18, %s30
      %p32 = scmp.eq.s32.totalorder %s31, 0
      %s34 = sadd.s32 %s33, 1
      %s35 = scalar_select %p32, %s33, %s34
      %p38 = pneg %p32
      %p39 = scmp.eq.s32.totalorder %s11, 8
      %p40 = por %p38, %p39
      %p41 = scmp.ne.s32.totalorder %s33, %s36
      %p42 = scmp.eq.s32.totalorder %s11, 0
      %p43 = por %p41, %p42
      %p44 = scmp.ne.s32.totalorder %s33, %s36
      %p45 = scmp.eq.s32.totalorder %s16, 8
      %p46 = por %p44, %p45
      %p47 = scmp.ne.s32.totalorder %s36, %s37
      %p48 = scmp.eq.s32.totalorder %s16, 0
      %p49 = por %p47, %p48
      %p50 = scmp.ne.s32.totalorder %s36, %s37
      %p51 = scmp.eq.s32.totalorder %s17, 8
      %p52 = por %p50, %p51
      %p54 = scmp.ne.s32.totalorder %s37, %s53
      %p55 = scmp.eq.s32.totalorder %s17, 0
      %p56 = por %p54, %p55
      %s58 = sadd.s32 %s57, 1
      %p61 = scmp.eq.s32.totalorder %s11, 8
      %p62 = scmp.ne.s32.totalorder %s57, %s59
      %p63 = scmp.eq.s32.totalorder %s11, 0
      %p64 = por %p62, %p63
      %p65 = scmp.ne.s32.totalorder %s57, %s59
      %p66 = scmp.eq.s32.totalorder %s16, 8
      %p67 = por %p65, %p66
      %p68 = scmp.ne.s32.totalorder %s59, %s60
      %p69 = scmp.eq.s32.totalorder %s16, 0
      %p70 = por %p68, %p69
      %p71 = scmp.ne.s32.totalorder %s59, %s60
      %p72 = scmp.eq.s32.totalorder %s17, 8
      %p73 = por %p71, %p72
      %p75 = scmp.ne.s32.totalorder %s60, %s74
      %p76 = scmp.eq.s32.totalorder %s17, 0
      %p77 = por %p75, %p76
      %s79 = sadd.s32 %s78, 1
      %p82 = scmp.eq.s32.totalorder %s11, 8
      %p83 = scmp.ne.s32.totalorder %s78, %s80
      %p84 = scmp.eq.s32.totalorder %s11, 0
      %p85 = por %p83, %p84
      %p86 = scmp.ne.s32.totalorder %s78, %s80
      %p87 = scmp.eq.s32.totalorder %s16, 8
      %p88 = por %p86, %p87
      %p89 = scmp.ne.s32.totalorder %s80, %s81
      %p90 = scmp.eq.s32.totalorder %s16, 0
      %p91 = por %p89, %p90
      %p92 = scmp.ne.s32.totalorder %s80, %s81
      %p93 = scmp.eq.s32.totalorder %s17, 8
      %p94 = por %p92, %p93
      %p96 = scmp.ne.s32.totalorder %s81, %s95
      %p97 = scmp.eq.s32.totalorder %s17, 0
      %p98 = por %p96, %p97
      %s99 = ssub.s32 %s19, %s26
      %p100 = scmp.eq.s32.totalorder %s99, 0
      %s102 = sadd.s32 %s101, 1
      %s103 = scalar_select %p100, %s101, %s102
      %p106 = pneg %p100
      %p107 = scmp.eq.s32.totalorder %s11, 8
      %p108 = por %p106, %p107
      %p109 = scmp.ne.s32.totalorder %s101, %s104
      %p110 = scmp.eq.s32.totalorder %s11, 0
      %p111 = por %p109, %p110
      %p112 = scmp.ne.s32.totalorder %s101, %s104
      %p113 = scmp.eq.s32.totalorder %s16, 8
      %p114 = por %p112, %p113
      %p115 = scmp.ne.s32.totalorder %s104, %s105
      %p116 = scmp.eq.s32.totalorder %s16, 0
      %p117 = por %p115, %p116
      %p118 = scmp.ne.s32.totalorder %s104, %s105
      %p119 = scmp.eq.s32.totalorder %s17, 8
      %p120 = por %p118, %p119
      %p122 = scmp.ne.s32.totalorder %s105, %s121
      %p123 = scmp.eq.s32.totalorder %s17, 0
      %p124 = por %p122, %p123
      %s125 = ssub.s32 %s19, %s26
      %p126 = scmp.eq.s32.totalorder %s125, 0
      %s128 = sadd.s32 %s127, 1
      %s129 = scalar_select %p126, %s127, %s128
      %p132 = pneg %p126
      %p133 = scmp.eq.s32.totalorder %s11, 8
      %p134 = por %p132, %p133
      %p135 = scmp.ne.s32.totalorder %s127, %s130
      %p136 = scmp.eq.s32.totalorder %s11, 0
      %p137 = por %p135, %p136
      %p138 = scmp.ne.s32.totalorder %s127, %s130
      %p139 = scmp.eq.s32.totalorder %s16, 8
      %p140 = por %p138, %p139
      %p141 = scmp.ne.s32.totalorder %s130, %s131
      %p142 = scmp.eq.s32.totalorder %s16, 0
      %p143 = por %p141, %p142
      %p144 = scmp.ne.s32.totalorder %s130, %s131
      %p145 = scmp.eq.s32.totalorder %s17, 8
      %p146 = por %p144, %p145
      %p148 = scmp.ne.s32.totalorder %s131, %s147
      %p149 = scmp.eq.s32.totalorder %s17, 0
      %p150 = por %p148, %p149
      %s151 = ssub.s32 %s18, %s30
      %s152 = ssub.s32 %s19, %s26
      %s153 = sor.u32 %s151, %s152
      %p154 = scmp.eq.s32.totalorder %s153, 0
      %s156 = sadd.s32 %s155, 1
      %s157 = scalar_select %p154, %s155, %s156
      %p160 = pneg %p154
      %p161 = scmp.eq.s32.totalorder %s11, 8
      %p162 = por %p160, %p161
      %p163 = scmp.ne.s32.totalorder %s155, %s158
      %p164 = scmp.eq.s32.totalorder %s11, 0
      %p165 = por %p163, %p164
      %p166 = scmp.ne.s32.totalorder %s155, %s158
      %p167 = scmp.eq.s32.totalorder %s16, 8
      %p168 = por %p166, %p167
      %p169 = scmp.ne.s32.totalorder %s158, %s159
      %p170 = scmp.eq.s32.totalorder %s16, 0
      %p171 = por %p169, %p170
      %p172 = scmp.ne.s32.totalorder %s158, %s159
      %p173 = scmp.eq.s32.totalorder %s17, 8
      %p174 = por %p172, %p173
      %p176 = scmp.ne.s32.totalorder %s159, %s175
      %p177 = scmp.eq.s32.totalorder %s17, 0
      %p178 = por %p176, %p177
      %p179 = scmp.le.s32.totalorder 1, %s11
      %p180 = scmp.lt.s32.totalorder %s11, 10
      %p181 = pnand %p179, %p180
      %p182 = pneg %p181
      // Predicated region
      $region9: #{closed_call.16} parent=5 // pred_check
        _
      $region10: #{closed_call.16} parent=5 // pred_check_branch
        %184 = sbr.rel (%p181) target = $region12
      $region11: #{closed_call.16} parent=5 // pred_region
        %s185 = ssub.s32 %s11, 1
        // Predicated region
        $region13: #{closed_call.16} parent=11 // pred_check
          %p186 = pneg %p49
        $region14: #{closed_call.16} parent=11 // pred_check_branch
          %188 = sbr.rel (%p186) target = $region16
        $region15: #{closed_call.16} parent=11 // pred_region
          %s189 = smul.u32 2, %s20
          %p190 = scmp.lt.s32.totalorder %s189, 1
          %s191 = scalar_select %p190, %s189, 1
          %s192 = smul.addr %s191, 6
          %s193 = smul.addr %s192, 4
          %s194 = scalar_lea.vmem %s0, %s193
          %s195 = smul.u32 2, %s20
        $region16: #{closed_call.16} parent=11 // pred_fallthru
          _
        // Predicated region
        $region17: #{closed_call.16} parent=11 // pred_check
          %p196 = pneg %p70
        $region18: #{closed_call.16} parent=11 // pred_check_branch
          %198 = sbr.rel (%p196) target = $region20
        $region19: #{closed_call.16} parent=11 // pred_region
          _
        $region20: #{closed_call.16} parent=11 // pred_fallthru
          _
        // Predicated region
        $region21: #{closed_call.16} parent=11 // pred_check
          %p199 = pneg %p91
        $region22: #{closed_call.16} parent=11 // pred_check_branch
          %201 = sbr.rel (%p199) target = $region24
        $region23: #{closed_call.16} parent=11 // pred_region
          _
        $region24: #{closed_call.16} parent=11 // pred_fallthru
          _
      $region12: #{closed_call.16} parent=5 // pred_fallthru
        _
      %p202 = scmp.lt.s32.totalorder %s11, 9
      // Predicated region
      $region25: #{closed_call.16} parent=5 // pred_check
        %p203 = pneg %p202
      $region26: #{closed_call.16} parent=5 // pred_check_branch
        %205 = sbr.rel (%p203) target = $region28
      $region27: #{closed_call.16} parent=5 // pred_region
        // Predicated region
        $region29: #{closed_call.16} parent=27 // pred_check
          %p206 = pneg %p111
        $region30: #{closed_call.16} parent=27 // pred_check_branch
          %208 = sbr.rel (%p206) target = $region32
        $region31: #{closed_call.16} parent=27 // pred_region
          %s209 = sand.u32 %s101, 1
          %s210 = sand.u32 %s101, 1
          %s211 = smul.addr %s210, 768
          %s212 = scalar_lea.vmem [#allocation2], %s211
          %s213 = smul.u32 2, %s19
          %s214 = smul.addr %s213, 4
          %s215 = scalar_lea.vmem %s3, %s214
          // Predicated region
          $region33: #{closed_call.16} parent=31 // pred_check
            _
          $region34: #{closed_call.16} parent=31 // pred_check_branch
            %217 = sbr.rel (0) target = $region36
          $region35: #{closed_call.16} parent=31 // pred_region
            // Predicated region
            $region37: #{closed_call.16} parent=35 // pred_check
              _
            $region38: #{closed_call.16} parent=35 // pred_check_branch
              %219 = sbr.rel (0) target = $region40
            $region39: #{closed_call.16} parent=35 // pred_region
              // Predicated region
              $region52: #{closed_call.16} parent=39 // pred_check
                _
              $region53: #{closed_call.16} parent=39 // pred_check_branch
                %424 = sbr.rel (0) target = $region55
              $region54: #{closed_call.16} parent=39 // pred_region
                loop: start=0, step=1, limit=1
                $region56: #{closed_call.16} parent=54 // loop_pre_header
                  _
                $region57: #{closed_call.16} parent=54 // loop_header
                  %s426 = sphi 0, %s430
                  %p427 = scmp.ge.s32.totalorder %s426, 1
                  %s431 = sphi %s215, %s215
                  %s432 = sphi %s212, %s212
                $region58: #{closed_call.16} parent=54 // loop_header_branch
                  %429 = sbr.rel (%p427) target = $region62
                $region59: #{closed_call.16} parent=54 // loop_body
                  %v433 = vld [vmem:[%s431] sm:$0xff]
                  %434 = vst [vmem:[%s432] sm:$0xff] %v433
                  %v435 = vld [vmem:[%s431 + $0x48] sm:$0xff]
                  %436 = vst [vmem:[%s432 + $0x8] sm:$0xff] %v435
                  %v437 = vld [vmem:[%s431 + $0x90] sm:$0xff]
                  %438 = vst [vmem:[%s432 + $0x10] sm:$0xff] %v437
                  %v439 = vld [vmem:[%s431 + $0xd8] sm:$0xff]
                  %440 = vst [vmem:[%s432 + $0x18] sm:$0xff] %v439
                  %v441 = vld [vmem:[%s431 + $0x120] sm:$0xff]
                  %442 = vst [vmem:[%s432 + $0x20] sm:$0xff] %v441
                  %v443 = vld [vmem:[%s431 + $0x168] sm:$0xff]
                  %444 = vst [vmem:[%s432 + $0x28] sm:$0xff] %v443
                  %v445 = vld [vmem:[%s431 + $0x1b0] sm:$0xff]
                  %446 = vst [vmem:[%s432 + $0x30] sm:$0xff] %v445
                  %v447 = vld [vmem:[%s431 + $0x1f8] sm:$0xff]
                  %448 = vst [vmem:[%s432 + $0x38] sm:$0xff] %v447
                  %v449 = vld [vmem:[%s431 + $0x240] sm:$0xff]
                  %450 = vst [vmem:[%s432 + $0x40] sm:$0xff] %v449
                  %v451 = vld [vmem:[%s431 + $0x288] sm:$0xff]
                  %452 = vst [vmem:[%s432 + $0x48] sm:$0xff] %v451
                  %v453 = vld [vmem:[%s431 + $0x2d0] sm:$0xff]
                  %454 = vst [vmem:[%s432 + $0x50] sm:$0xff] %v453
                  %v455 = vld [vmem:[%s431 + $0x318] sm:$0xff]
                  %456 = vst [vmem:[%s432 + $0x58] sm:$0xff] %v455
                  %v457 = vld [vmem:[%s431 + $0x360] sm:$0xff]
                  %458 = vst [vmem:[%s432 + $0x60] sm:$0xff] %v457
                  %v459 = vld [vmem:[%s431 + $0x3a8] sm:$0xff]
                  %460 = vst [vmem:[%s432 + $0x68] sm:$0xff] %v459
                  %v461 = vld [vmem:[%s431 + $0x3f0] sm:$0xff]
                  %462 = vst [vmem:[%s432 + $0x70] sm:$0xff] %v461
                  %v463 = vld [vmem:[%s431 + $0x438] sm:$0xff]
                  %464 = vst [vmem:[%s432 + $0x78] sm:$0xff] %v463
                  %v465 = vld [vmem:[%s431 + $0x480] sm:$0xff]
                  %466 = vst [vmem:[%s432 + $0x80] sm:$0xff] %v465
                  %v467 = vld [vmem:[%s431 + $0x4c8] sm:$0xff]
                  %468 = vst [vmem:[%s432 + $0x88] sm:$0xff] %v467
                  %v469 = vld [vmem:[%s431 + $0x510] sm:$0xff]
                  %470 = vst [vmem:[%s432 + $0x90] sm:$0xff] %v469
                  %v471 = vld [vmem:[%s431 + $0x558] sm:$0xff]
                  %472 = vst [vmem:[%s432 + $0x98] sm:$0xff] %v471
                  %v473 = vld [vmem:[%s431 + $0x5a0] sm:$0xff]
                  %474 = vst [vmem:[%s432 + $0xa0] sm:$0xff] %v473
                  %v475 = vld [vmem:[%s431 + $0x5e8] sm:$0xff]
                  %476 = vst [vmem:[%s432 + $0xa8] sm:$0xff] %v475
                  %v477 = vld [vmem:[%s431 + $0x630] sm:$0xff]
                  %478 = vst [vmem:[%s432 + $0xb0] sm:$0xff] %v477
                  %v479 = vld [vmem:[%s431 + $0x678] sm:$0xff]
                  %480 = vst [vmem:[%s432 + $0xb8] sm:$0xff] %v479
                  %v481 = vld [vmem:[%s431 + $0x6c0] sm:$0xff]
                  %482 = vst [vmem:[%s432 + $0xc0] sm:$0xff] %v481
                  %v483 = vld [vmem:[%s431 + $0x708] sm:$0xff]
                  %484 = vst [vmem:[%s432 + $0xc8] sm:$0xff] %v483
                  %v485 = vld [vmem:[%s431 + $0x750] sm:$0xff]
                  %486 = vst [vmem:[%s432 + $0xd0] sm:$0xff] %v485
                  %v487 = vld [vmem:[%s431 + $0x798] sm:$0xff]
                  %488 = vst [vmem:[%s432 + $0xd8] sm:$0xff] %v487
                  %v489 = vld [vmem:[%s431 + $0x7e0] sm:$0xff]
                  %490 = vst [vmem:[%s432 + $0xe0] sm:$0xff] %v489
                  %v491 = vld [vmem:[%s431 + $0x828] sm:$0xff]
                  %492 = vst [vmem:[%s432 + $0xe8] sm:$0xff] %v491
                  %v493 = vld [vmem:[%s431 + $0x870] sm:$0xff]
                  %494 = vst [vmem:[%s432 + $0xf0] sm:$0xff] %v493
                  %v495 = vld [vmem:[%s431 + $0x8b8] sm:$0xff]
                  %496 = vst [vmem:[%s432 + $0xf8] sm:$0xff] %v495
                  %v497 = vld [vmem:[%s431 + $0x900] sm:$0xff]
                  %498 = vst [vmem:[%s432 + $0x100] sm:$0xff] %v497
                  %v499 = vld [vmem:[%s431 + $0x948] sm:$0xff]
                  %500 = vst [vmem:[%s432 + $0x108] sm:$0xff] %v499
                  %v501 = vld [vmem:[%s431 + $0x990] sm:$0xff]
                  %502 = vst [vmem:[%s432 + $0x110] sm:$0xff] %v501
                  %v503 = vld [vmem:[%s431 + $0x9d8] sm:$0xff]
                  %504 = vst [vmem:[%s432 + $0x118] sm:$0xff] %v503
                  %v505 = vld [vmem:[%s431 + $0xa20] sm:$0xff]
                  %506 = vst [vmem:[%s432 + $0x120] sm:$0xff] %v505
                  %v507 = vld [vmem:[%s431 + $0xa68] sm:$0xff]
                  %508 = vst [vmem:[%s432 + $0x128] sm:$0xff] %v507
                  %v509 = vld [vmem:[%s431 + $0xab0] sm:$0xff]
                  %510 = vst [vmem:[%s432 + $0x130] sm:$0xff] %v509
                  %v511 = vld [vmem:[%s431 + $0xaf8] sm:$0xff]
                  %512 = vst [vmem:[%s432 + $0x138] sm:$0xff] %v511
                  %v513 = vld [vmem:[%s431 + $0xb40] sm:$0xff]
                  %514 = vst [vmem:[%s432 + $0x140] sm:$0xff] %v513
                  %v515 = vld [vmem:[%s431 + $0xb88] sm:$0xff]
                  %516 = vst [vmem:[%s432 + $0x148] sm:$0xff] %v515
                  %v517 = vld [vmem:[%s431 + $0xbd0] sm:$0xff]
                  %518 = vst [vmem:[%s432 + $0x150] sm:$0xff] %v517
                  %v519 = vld [vmem:[%s431 + $0xc18] sm:$0xff]
                  %520 = vst [vmem:[%s432 + $0x158] sm:$0xff] %v519
                  %v521 = vld [vmem:[%s431 + $0xc60] sm:$0xff]
                  %522 = vst [vmem:[%s432 + $0x160] sm:$0xff] %v521
                  %v523 = vld [vmem:[%s431 + $0xca8] sm:$0xff]
                  %524 = vst [vmem:[%s432 + $0x168] sm:$0xff] %v523
                  %v525 = vld [vmem:[%s431 + $0xcf0] sm:$0xff]
                  %526 = vst [vmem:[%s432 + $0x170] sm:$0xff] %v525
                  %v527 = vld [vmem:[%s431 + $0xd38] sm:$0xff]
                  %528 = vst [vmem:[%s432 + $0x178] sm:$0xff] %v527
                  %v529 = vld [vmem:[%s431 + $0xd80] sm:$0xff]
                  %530 = vst [vmem:[%s432 + $0x180] sm:$0xff] %v529
                  %v531 = vld [vmem:[%s431 + $0xdc8] sm:$0xff]
                  %532 = vst [vmem:[%s432 + $0x188] sm:$0xff] %v531
                  %v533 = vld [vmem:[%s431 + $0xe10] sm:$0xff]
                  %534 = vst [vmem:[%s432 + $0x190] sm:$0xff] %v533
                  %v535 = vld [vmem:[%s431 + $0xe58] sm:$0xff]
                  %536 = vst [vmem:[%s432 + $0x198] sm:$0xff] %v535
                  %v537 = vld [vmem:[%s431 + $0xea0] sm:$0xff]
                  %538 = vst [vmem:[%s432 + $0x1a0] sm:$0xff] %v537
                  %v539 = vld [vmem:[%s431 + $0xee8] sm:$0xff]
                  %540 = vst [vmem:[%s432 + $0x1a8] sm:$0xff] %v539
                  %v541 = vld [vmem:[%s431 + $0xf30] sm:$0xff]
                  %542 = vst [vmem:[%s432 + $0x1b0] sm:$0xff] %v541
                  %v543 = vld [vmem:[%s431 + $0xf78] sm:$0xff]
                  %544 = vst [vmem:[%s432 + $0x1b8] sm:$0xff] %v543
                  %v545 = vld [vmem:[%s431 + $0xfc0] sm:$0xff]
                  %546 = vst [vmem:[%s432 + $0x1c0] sm:$0xff] %v545
                  %v547 = vld [vmem:[%s431 + $0x1008] sm:$0xff]
                  %548 = vst [vmem:[%s432 + $0x1c8] sm:$0xff] %v547
                  %v549 = vld [vmem:[%s431 + $0x1050] sm:$0xff]
                  %550 = vst [vmem:[%s432 + $0x1d0] sm:$0xff] %v549
                  %v551 = vld [vmem:[%s431 + $0x1098] sm:$0xff]
                  %552 = vst [vmem:[%s432 + $0x1d8] sm:$0xff] %v551
                  %v553 = vld [vmem:[%s431 + $0x10e0] sm:$0xff]
                  %554 = vst [vmem:[%s432 + $0x1e0] sm:$0xff] %v553
                  %v555 = vld [vmem:[%s431 + $0x1128] sm:$0xff]
                  %556 = vst [vmem:[%s432 + $0x1e8] sm:$0xff] %v555
                  %v557 = vld [vmem:[%s431 + $0x1170] sm:$0xff]
                  %558 = vst [vmem:[%s432 + $0x1f0] sm:$0xff] %v557
                  %v559 = vld [vmem:[%s431 + $0x11b8] sm:$0xff]
                  %560 = vst [vmem:[%s432 + $0x1f8] sm:$0xff] %v559
                  %v561 = vld [vmem:[%s431 + $0x1200] sm:$0xff]
                  %562 = vst [vmem:[%s432 + $0x200] sm:$0xff] %v561
                  %v563 = vld [vmem:[%s431 + $0x1248] sm:$0xff]
                  %564 = vst [vmem:[%s432 + $0x208] sm:$0xff] %v563
                  %v565 = vld [vmem:[%s431 + $0x1290] sm:$0xff]
                  %566 = vst [vmem:[%s432 + $0x210] sm:$0xff] %v565
                  %v567 = vld [vmem:[%s431 + $0x12d8] sm:$0xff]
                  %568 = vst [vmem:[%s432 + $0x218] sm:$0xff] %v567
                  %v569 = vld [vmem:[%s431 + $0x1320] sm:$0xff]
                  %570 = vst [vmem:[%s432 + $0x220] sm:$0xff] %v569
                  %v571 = vld [vmem:[%s431 + $0x1368] sm:$0xff]
                  %572 = vst [vmem:[%s432 + $0x228] sm:$0xff] %v571
                  %v573 = vld [vmem:[%s431 + $0x13b0] sm:$0xff]
                  %574 = vst [vmem:[%s432 + $0x230] sm:$0xff] %v573
                  %v575 = vld [vmem:[%s431 + $0x13f8] sm:$0xff]
                  %576 = vst [vmem:[%s432 + $0x238] sm:$0xff] %v575
                  %v577 = vld [vmem:[%s431 + $0x1440] sm:$0xff]
                  %578 = vst [vmem:[%s432 + $0x240] sm:$0xff] %v577
                  %v579 = vld [vmem:[%s431 + $0x1488] sm:$0xff]
                  %580 = vst [vmem:[%s432 + $0x248] sm:$0xff] %v579
                  %v581 = vld [vmem:[%s431 + $0x14d0] sm:$0xff]
                  %582 = vst [vmem:[%s432 + $0x250] sm:$0xff] %v581
                  %v583 = vld [vmem:[%s431 + $0x1518] sm:$0xff]
                  %584 = vst [vmem:[%s432 + $0x258] sm:$0xff] %v583
                  %v585 = vld [vmem:[%s431 + $0x1560] sm:$0xff]
                  %586 = vst [vmem:[%s432 + $0x260] sm:$0xff] %v585
                  %v587 = vld [vmem:[%s431 + $0x15a8] sm:$0xff]
                  %588 = vst [vmem:[%s432 + $0x268] sm:$0xff] %v587
                  %v589 = vld [vmem:[%s431 + $0x15f0] sm:$0xff]
                  %590 = vst [vmem:[%s432 + $0x270] sm:$0xff] %v589
                  %v591 = vld [vmem:[%s431 + $0x1638] sm:$0xff]
                  %592 = vst [vmem:[%s432 + $0x278] sm:$0xff] %v591
                  %v593 = vld [vmem:[%s431 + $0x1680] sm:$0xff]
                  %594 = vst [vmem:[%s432 + $0x280] sm:$0xff] %v593
                  %v595 = vld [vmem:[%s431 + $0x16c8] sm:$0xff]
                  %596 = vst [vmem:[%s432 + $0x288] sm:$0xff] %v595
                  %v597 = vld [vmem:[%s431 + $0x1710] sm:$0xff]
                  %598 = vst [vmem:[%s432 + $0x290] sm:$0xff] %v597
                  %v599 = vld [vmem:[%s431 + $0x1758] sm:$0xff]
                  %600 = vst [vmem:[%s432 + $0x298] sm:$0xff] %v599
                  %v601 = vld [vmem:[%s431 + $0x17a0] sm:$0xff]
                  %602 = vst [vmem:[%s432 + $0x2a0] sm:$0xff] %v601
                  %v603 = vld [vmem:[%s431 + $0x17e8] sm:$0xff]
                  %604 = vst [vmem:[%s432 + $0x2a8] sm:$0xff] %v603
                  %v605 = vld [vmem:[%s431 + $0x1830] sm:$0xff]
                  %606 = vst [vmem:[%s432 + $0x2b0] sm:$0xff] %v605
                  %v607 = vld [vmem:[%s431 + $0x1878] sm:$0xff]
                  %608 = vst [vmem:[%s432 + $0x2b8] sm:$0xff] %v607
                  %v609 = vld [vmem:[%s431 + $0x18c0] sm:$0xff]
                  %610 = vst [vmem:[%s432 + $0x2c0] sm:$0xff] %v609
                  %v611 = vld [vmem:[%s431 + $0x1908] sm:$0xff]
                  %612 = vst [vmem:[%s432 + $0x2c8] sm:$0xff] %v611
                  %v613 = vld [vmem:[%s431 + $0x1950] sm:$0xff]
                  %614 = vst [vmem:[%s432 + $0x2d0] sm:$0xff] %v613
                  %v615 = vld [vmem:[%s431 + $0x1998] sm:$0xff]
                  %616 = vst [vmem:[%s432 + $0x2d8] sm:$0xff] %v615
                  %v617 = vld [vmem:[%s431 + $0x19e0] sm:$0xff]
                  %618 = vst [vmem:[%s432 + $0x2e0] sm:$0xff] %v617
                  %v619 = vld [vmem:[%s431 + $0x1a28] sm:$0xff]
                  %620 = vst [vmem:[%s432 + $0x2e8] sm:$0xff] %v619
                  %v621 = vld [vmem:[%s431 + $0x1a70] sm:$0xff]
                  %622 = vst [vmem:[%s432 + $0x2f0] sm:$0xff] %v621
                  %v623 = vld [vmem:[%s431 + $0x1ab8] sm:$0xff]
                  %624 = vst [vmem:[%s432 + $0x2f8] sm:$0xff] %v623
                $region60: #{closed_call.16} parent=54 // loop_footer
                  %s430 = sadd.s32 1, %s426
                $region61: #{closed_call.16} parent=54 // loop_footer_branch
                  %425 = sbr.rel target = $region57
                $region62: #{closed_call.16} parent=54 // loop_exit
                  _
              $region55: #{closed_call.16} parent=39 // pred_fallthru
                _
              // Predicated region
              $region63: #{closed_call.16} parent=39 // pred_check
                _
              $region64: #{closed_call.16} parent=39 // pred_check_branch
                %626 = sbr.rel target = $region66
              $region65: #{closed_call.16} parent=39 // pred_region
                _
              $region66: #{closed_call.16} parent=39 // pred_fallthru
                _
            $region40: #{closed_call.16} parent=35 // pred_fallthru
              _
            // Predicated region
            $region41: #{closed_call.16} parent=35 // pred_check
              _
            $region42: #{closed_call.16} parent=35 // pred_check_branch
              %221 = sbr.rel target = $region44
            $region43: #{closed_call.16} parent=35 // pred_region
              loop: start=0, step=1, limit=1
              $region45: #{closed_call.16} parent=43 // loop_pre_header
                _
              $region46: #{closed_call.16} parent=43 // loop_header
                %s224 = sphi 0, %s228
                %p225 = scmp.ge.s32.totalorder %s224, 1
                %s229 = sphi %s215, %s215
                %s230 = sphi %s212, %s212
              $region47: #{closed_call.16} parent=43 // loop_header_branch
                %227 = sbr.rel (%p225) target = $region51
              $region48: #{closed_call.16} parent=43 // loop_body
                %v231 = vld [vmem:[%s229] sm:$0xff]
                %232 = vst [vmem:[%s230] sm:$0xff] %v231
                %v233 = vld [vmem:[%s229 + $0x48] sm:$0xff]
                %234 = vst [vmem:[%s230 + $0x8] sm:$0xff] %v233
                %v235 = vld [vmem:[%s229 + $0x90] sm:$0xff]
                %236 = vst [vmem:[%s230 + $0x10] sm:$0xff] %v235
                %v237 = vld [vmem:[%s229 + $0xd8] sm:$0xff]
                %238 = vst [vmem:[%s230 + $0x18] sm:$0xff] %v237
                %v239 = vld [vmem:[%s229 + $0x120] sm:$0xff]
                %240 = vst [vmem:[%s230 + $0x20] sm:$0xff] %v239
                %v241 = vld [vmem:[%s229 + $0x168] sm:$0xff]
                %242 = vst [vmem:[%s230 + $0x28] sm:$0xff] %v241
                %v243 = vld [vmem:[%s229 + $0x1b0] sm:$0xff]
                %244 = vst [vmem:[%s230 + $0x30] sm:$0xff] %v243
                %v245 = vld [vmem:[%s229 + $0x1f8] sm:$0xff]
                %246 = vst [vmem:[%s230 + $0x38] sm:$0xff] %v245
                %v247 = vld [vmem:[%s229 + $0x240] sm:$0xff]
                %248 = vst [vmem:[%s230 + $0x40] sm:$0xff] %v247
                %v249 = vld [vmem:[%s229 + $0x288] sm:$0xff]
                %250 = vst [vmem:[%s230 + $0x48] sm:$0xff] %v249
                %v251 = vld [vmem:[%s229 + $0x2d0] sm:$0xff]
                %252 = vst [vmem:[%s230 + $0x50] sm:$0xff] %v251
                %v253 = vld [vmem:[%s229 + $0x318] sm:$0xff]
                %254 = vst [vmem:[%s230 + $0x58] sm:$0xff] %v253
                %v255 = vld [vmem:[%s229 + $0x360] sm:$0xff]
                %256 = vst [vmem:[%s230 + $0x60] sm:$0xff] %v255
                %v257 = vld [vmem:[%s229 + $0x3a8] sm:$0xff]
                %258 = vst [vmem:[%s230 + $0x68] sm:$0xff] %v257
                %v259 = vld [vmem:[%s229 + $0x3f0] sm:$0xff]
                %260 = vst [vmem:[%s230 + $0x70] sm:$0xff] %v259
                %v261 = vld [vmem:[%s229 + $0x438] sm:$0xff]
                %262 = vst [vmem:[%s230 + $0x78] sm:$0xff] %v261
                %v263 = vld [vmem:[%s229 + $0x480] sm:$0xff]
                %264 = vst [vmem:[%s230 + $0x80] sm:$0xff] %v263
                %v265 = vld [vmem:[%s229 + $0x4c8] sm:$0xff]
                %266 = vst [vmem:[%s230 + $0x88] sm:$0xff] %v265
                %v267 = vld [vmem:[%s229 + $0x510] sm:$0xff]
                %268 = vst [vmem:[%s230 + $0x90] sm:$0xff] %v267
                %v269 = vld [vmem:[%s229 + $0x558] sm:$0xff]
                %270 = vst [vmem:[%s230 + $0x98] sm:$0xff] %v269
                %v271 = vld [vmem:[%s229 + $0x5a0] sm:$0xff]
                %272 = vst [vmem:[%s230 + $0xa0] sm:$0xff] %v271
                %v273 = vld [vmem:[%s229 + $0x5e8] sm:$0xff]
                %274 = vst [vmem:[%s230 + $0xa8] sm:$0xff] %v273
                %v275 = vld [vmem:[%s229 + $0x630] sm:$0xff]
                %276 = vst [vmem:[%s230 + $0xb0] sm:$0xff] %v275
                %v277 = vld [vmem:[%s229 + $0x678] sm:$0xff]
                %278 = vst [vmem:[%s230 + $0xb8] sm:$0xff] %v277
                %v279 = vld [vmem:[%s229 + $0x6c0] sm:$0xff]
                %280 = vst [vmem:[%s230 + $0xc0] sm:$0xff] %v279
                %v281 = vld [vmem:[%s229 + $0x708] sm:$0xff]
                %282 = vst [vmem:[%s230 + $0xc8] sm:$0xff] %v281
                %v283 = vld [vmem:[%s229 + $0x750] sm:$0xff]
                %284 = vst [vmem:[%s230 + $0xd0] sm:$0xff] %v283
                %v285 = vld [vmem:[%s229 + $0x798] sm:$0xff]
                %286 = vst [vmem:[%s230 + $0xd8] sm:$0xff] %v285
                %v287 = vld [vmem:[%s229 + $0x7e0] sm:$0xff]
                %288 = vst [vmem:[%s230 + $0xe0] sm:$0xff] %v287
                %v289 = vld [vmem:[%s229 + $0x828] sm:$0xff]
                %290 = vst [vmem:[%s230 + $0xe8] sm:$0xff] %v289
                %v291 = vld [vmem:[%s229 + $0x870] sm:$0xff]
                %292 = vst [vmem:[%s230 + $0xf0] sm:$0xff] %v291
                %v293 = vld [vmem:[%s229 + $0x8b8] sm:$0xff]
                %294 = vst [vmem:[%s230 + $0xf8] sm:$0xff] %v293
                %v295 = vld [vmem:[%s229 + $0x900] sm:$0xff]
                %296 = vst [vmem:[%s230 + $0x100] sm:$0xff] %v295
                %v297 = vld [vmem:[%s229 + $0x948] sm:$0xff]
                %298 = vst [vmem:[%s230 + $0x108] sm:$0xff] %v297
                %v299 = vld [vmem:[%s229 + $0x990] sm:$0xff]
                %300 = vst [vmem:[%s230 + $0x110] sm:$0xff] %v299
                %v301 = vld [vmem:[%s229 + $0x9d8] sm:$0xff]
                %302 = vst [vmem:[%s230 + $0x118] sm:$0xff] %v301
                %v303 = vld [vmem:[%s229 + $0xa20] sm:$0xff]
                %304 = vst [vmem:[%s230 + $0x120] sm:$0xff] %v303
                %v305 = vld [vmem:[%s229 + $0xa68] sm:$0xff]
                %306 = vst [vmem:[%s230 + $0x128] sm:$0xff] %v305
                %v307 = vld [vmem:[%s229 + $0xab0] sm:$0xff]
                %308 = vst [vmem:[%s230 + $0x130] sm:$0xff] %v307
                %v309 = vld [vmem:[%s229 + $0xaf8] sm:$0xff]
                %310 = vst [vmem:[%s230 + $0x138] sm:$0xff] %v309
                %v311 = vld [vmem:[%s229 + $0xb40] sm:$0xff]
                %312 = vst [vmem:[%s230 + $0x140] sm:$0xff] %v311
                %v313 = vld [vmem:[%s229 + $0xb88] sm:$0xff]
                %314 = vst [vmem:[%s230 + $0x148] sm:$0xff] %v313
                %v315 = vld [vmem:[%s229 + $0xbd0] sm:$0xff]
                %316 = vst [vmem:[%s230 + $0x150] sm:$0xff] %v315
                %v317 = vld [vmem:[%s229 + $0xc18] sm:$0xff]
                %318 = vst [vmem:[%s230 + $0x158] sm:$0xff] %v317
                %v319 = vld [vmem:[%s229 + $0xc60] sm:$0xff]
                %320 = vst [vmem:[%s230 + $0x160] sm:$0xff] %v319
                %v321 = vld [vmem:[%s229 + $0xca8] sm:$0xff]
                %322 = vst [vmem:[%s230 + $0x168] sm:$0xff] %v321
                %v323 = vld [vmem:[%s229 + $0xcf0] sm:$0xff]
                %324 = vst [vmem:[%s230 + $0x170] sm:$0xff] %v323
                %v325 = vld [vmem:[%s229 + $0xd38] sm:$0xff]
                %326 = vst [vmem:[%s230 + $0x178] sm:$0xff] %v325
                %v327 = vld [vmem:[%s229 + $0xd80] sm:$0xff]
                %328 = vst [vmem:[%s230 + $0x180] sm:$0xff] %v327
                %v329 = vld [vmem:[%s229 + $0xdc8] sm:$0xff]
                %330 = vst [vmem:[%s230 + $0x188] sm:$0xff] %v329
                %v331 = vld [vmem:[%s229 + $0xe10] sm:$0xff]
                %332 = vst [vmem:[%s230 + $0x190] sm:$0xff] %v331
                %v333 = vld [vmem:[%s229 + $0xe58] sm:$0xff]
                %334 = vst [vmem:[%s230 + $0x198] sm:$0xff] %v333
                %v335 = vld [vmem:[%s229 + $0xea0] sm:$0xff]
                %336 = vst [vmem:[%s230 + $0x1a0] sm:$0xff] %v335
                %v337 = vld [vmem:[%s229 + $0xee8] sm:$0xff]
                %338 = vst [vmem:[%s230 + $0x1a8] sm:$0xff] %v337
                %v339 = vld [vmem:[%s229 + $0xf30] sm:$0xff]
                %340 = vst [vmem:[%s230 + $0x1b0] sm:$0xff] %v339
                %v341 = vld [vmem:[%s229 + $0xf78] sm:$0xff]
                %342 = vst [vmem:[%s230 + $0x1b8] sm:$0xff] %v341
                %v343 = vld [vmem:[%s229 + $0xfc0] sm:$0xff]
                %344 = vst [vmem:[%s230 + $0x1c0] sm:$0xff] %v343
                %v345 = vld [vmem:[%s229 + $0x1008] sm:$0xff]
                %346 = vst [vmem:[%s230 + $0x1c8] sm:$0xff] %v345
                %v347 = vld [vmem:[%s229 + $0x1050] sm:$0xff]
                %348 = vst [vmem:[%s230 + $0x1d0] sm:$0xff] %v347
                %v349 = vld [vmem:[%s229 + $0x1098] sm:$0xff]
                %350 = vst [vmem:[%s230 + $0x1d8] sm:$0xff] %v349
                %v351 = vld [vmem:[%s229 + $0x10e0] sm:$0xff]
                %352 = vst [vmem:[%s230 + $0x1e0] sm:$0xff] %v351
                %v353 = vld [vmem:[%s229 + $0x1128] sm:$0xff]
                %354 = vst [vmem:[%s230 + $0x1e8] sm:$0xff] %v353
                %v355 = vld [vmem:[%s229 + $0x1170] sm:$0xff]
                %356 = vst [vmem:[%s230 + $0x1f0] sm:$0xff] %v355
                %v357 = vld [vmem:[%s229 + $0x11b8] sm:$0xff]
                %358 = vst [vmem:[%s230 + $0x1f8] sm:$0xff] %v357
                %v359 = vld [vmem:[%s229 + $0x1200] sm:$0xff]
                %360 = vst [vmem:[%s230 + $0x200] sm:$0xff] %v359
                %v361 = vld [vmem:[%s229 + $0x1248] sm:$0xff]
                %362 = vst [vmem:[%s230 + $0x208] sm:$0xff] %v361
                %v363 = vld [vmem:[%s229 + $0x1290] sm:$0xff]
                %364 = vst [vmem:[%s230 + $0x210] sm:$0xff] %v363
                %v365 = vld [vmem:[%s229 + $0x12d8] sm:$0xff]
                %366 = vst [vmem:[%s230 + $0x218] sm:$0xff] %v365
                %v367 = vld [vmem:[%s229 + $0x1320] sm:$0xff]
                %368 = vst [vmem:[%s230 + $0x220] sm:$0xff] %v367
                %v369 = vld [vmem:[%s229 + $0x1368] sm:$0xff]
                %370 = vst [vmem:[%s230 + $0x228] sm:$0xff] %v369
                %v371 = vld [vmem:[%s229 + $0x13b0] sm:$0xff]
                %372 = vst [vmem:[%s230 + $0x230] sm:$0xff] %v371
                %v373 = vld [vmem:[%s229 + $0x13f8] sm:$0xff]
                %374 = vst [vmem:[%s230 + $0x238] sm:$0xff] %v373
                %v375 = vld [vmem:[%s229 + $0x1440] sm:$0xff]
                %376 = vst [vmem:[%s230 + $0x240] sm:$0xff] %v375
                %v377 = vld [vmem:[%s229 + $0x1488] sm:$0xff]
                %378 = vst [vmem:[%s230 + $0x248] sm:$0xff] %v377
                %v379 = vld [vmem:[%s229 + $0x14d0] sm:$0xff]
                %380 = vst [vmem:[%s230 + $0x250] sm:$0xff] %v379
                %v381 = vld [vmem:[%s229 + $0x1518] sm:$0xff]
                %382 = vst [vmem:[%s230 + $0x258] sm:$0xff] %v381
                %v383 = vld [vmem:[%s229 + $0x1560] sm:$0xff]
                %384 = vst [vmem:[%s230 + $0x260] sm:$0xff] %v383
                %v385 = vld [vmem:[%s229 + $0x15a8] sm:$0xff]
                %386 = vst [vmem:[%s230 + $0x268] sm:$0xff] %v385
                %v387 = vld [vmem:[%s229 + $0x15f0] sm:$0xff]
                %388 = vst [vmem:[%s230 + $0x270] sm:$0xff] %v387
                %v389 = vld [vmem:[%s229 + $0x1638] sm:$0xff]
                %390 = vst [vmem:[%s230 + $0x278] sm:$0xff] %v389
                %v391 = vld [vmem:[%s229 + $0x1680] sm:$0xff]
                %392 = vst [vmem:[%s230 + $0x280] sm:$0xff] %v391
                %v393 = vld [vmem:[%s229 + $0x16c8] sm:$0xff]
                %394 = vst [vmem:[%s230 + $0x288] sm:$0xff] %v393
                %v395 = vld [vmem:[%s229 + $0x1710] sm:$0xff]
                %396 = vst [vmem:[%s230 + $0x290] sm:$0xff] %v395
                %v397 = vld [vmem:[%s229 + $0x1758] sm:$0xff]
                %398 = vst [vmem:[%s230 + $0x298] sm:$0xff] %v397
                %v399 = vld [vmem:[%s229 + $0x17a0] sm:$0xff]
                %400 = vst [vmem:[%s230 + $0x2a0] sm:$0xff] %v399
                %v401 = vld [vmem:[%s229 + $0x17e8] sm:$0xff]
                %402 = vst [vmem:[%s230 + $0x2a8] sm:$0xff] %v401
                %v403 = vld [vmem:[%s229 + $0x1830] sm:$0xff]
                %404 = vst [vmem:[%s230 + $0x2b0] sm:$0xff] %v403
                %v405 = vld [vmem:[%s229 + $0x1878] sm:$0xff]
                %406 = vst [vmem:[%s230 + $0x2b8] sm:$0xff] %v405
                %v407 = vld [vmem:[%s229 + $0x18c0] sm:$0xff]
                %408 = vst [vmem:[%s230 + $0x2c0] sm:$0xff] %v407
                %v409 = vld [vmem:[%s229 + $0x1908] sm:$0xff]
                %410 = vst [vmem:[%s230 + $0x2c8] sm:$0xff] %v409
                %v411 = vld [vmem:[%s229 + $0x1950] sm:$0xff]
                %412 = vst [vmem:[%s230 + $0x2d0] sm:$0xff] %v411
                %v413 = vld [vmem:[%s229 + $0x1998] sm:$0xff]
                %414 = vst [vmem:[%s230 + $0x2d8] sm:$0xff] %v413
                %v415 = vld [vmem:[%s229 + $0x19e0] sm:$0xff]
                %416 = vst [vmem:[%s230 + $0x2e0] sm:$0xff] %v415
                %v417 = vld [vmem:[%s229 + $0x1a28] sm:$0xff]
                %418 = vst [vmem:[%s230 + $0x2e8] sm:$0xff] %v417
                %v419 = vld [vmem:[%s229 + $0x1a70] sm:$0xff]
                %420 = vst [vmem:[%s230 + $0x2f0] sm:$0xff] %v419
                %v421 = vld [vmem:[%s229 + $0x1ab8] sm:$0xff]
                %422 = vst [vmem:[%s230 + $0x2f8] sm:$0xff] %v421
              $region49: #{closed_call.16} parent=43 // loop_footer
                %s228 = sadd.s32 1, %s224
              $region50: #{closed_call.16} parent=43 // loop_footer_branch
                %223 = sbr.rel target = $region46
              $region51: #{closed_call.16} parent=43 // loop_exit
                _
            $region44: #{closed_call.16} parent=35 // pred_fallthru
              _
          $region36: #{closed_call.16} parent=31 // pred_fallthru
            _
          %627 = vnop
        $region32: #{closed_call.16} parent=27 // pred_fallthru
          _
        // Predicated region
        $region67: #{closed_call.16} parent=27 // pred_check
          %p628 = pneg %p137
        $region68: #{closed_call.16} parent=27 // pred_check_branch
          %630 = sbr.rel (%p628) target = $region70
        $region69: #{closed_call.16} parent=27 // pred_region
          %s631 = smul.u32 2, %s19
          %p632 = scmp.lt.s32.totalorder %s631, 17
          %s633 = scalar_select %p632, %s631, 17
          %s634 = scalar_lea.vmem %s4, %s633
          %s635 = smul.u32 2, %s19
        $region70: #{closed_call.16} parent=27 // pred_fallthru
          _
      $region28: #{closed_call.16} parent=5 // pred_fallthru
        _
      %p636 = scmp.le.s32.totalorder 1, %s11
      %p637 = scmp.lt.s32.totalorder %s11, 10
      %p638 = pnand %p636, %p637
      %p639 = pneg %p638
      // Predicated region
      $region71: #{closed_call.16} parent=5 // pred_check
        _
      $region72: #{closed_call.16} parent=5 // pred_check_branch
        %641 = sbr.rel (%p638) target = $region74
      $region73: #{closed_call.16} parent=5 // pred_region
        %s642 = ssub.s32 %s11, 1
        %s643 = sand.u32 %s104, 1
        %s644 = sand.u32 %s104, 1
        %s645 = smul.addr %s644, 768
        %s646 = scalar_lea.vmem [#allocation2], %s645
        // Predicated region
        $region75: #{closed_call.16} parent=73 // pred_check
          %p647 = pneg %p117
        $region76: #{closed_call.16} parent=73 // pred_check_branch
          %649 = sbr.rel (%p647) target = $region78
        $region77: #{closed_call.16} parent=73 // pred_region
          _
        $region78: #{closed_call.16} parent=73 // pred_fallthru
          _
        %s650 = smul.u32 2, %s20
        %p651 = scmp.lt.s32.totalorder %s650, 1
        %s652 = scalar_select %p651, %s650, 1
        %s653 = smul.addr %s652, 6
        %s654 = smul.addr %s653, 4
        %s655 = scalar_lea.vmem %s0, %s654
        %p656 = pneg %p49
        %p657 = pneg %p46
        %p658 = pneg %p70
        %p659 = pneg %p67
        %p660 = pneg %p91
        %p661 = pneg %p88
        %s662 = sand.u32 %s104, 1
        %s663 = sand.u32 %s104, 1
        %s664 = smul.addr %s663, 768
        %s665 = scalar_lea.vmem [#allocation2], %s664
        %p666 = pneg %p117
        %p667 = pneg %p114
        %s668 = smul.u32 2, %s21
        %p669 = scmp.lt.s32.totalorder %s668, 17
        %s670 = scalar_select %p669, %s668, 17
        %s671 = scalar_lea.vmem %s4, %s670
        %p672 = pneg %p143
        %p673 = pneg %p140
        %p674 = pneg %p171
        %p675 = pneg %p168
        %s676 = sand.u32 %s158, 1
        %s677 = sand.u32 %s158, 1
        %s678 = smul.addr %s677, 16
        %s679 = scalar_lea.vmem [#allocation3], %s678
        %s680 = smul.u32 2, %s20
        %p681 = scmp.lt.s32.totalorder %s680, 1
        %s682 = scalar_select %p681, %s680, 1
        %s683 = smul.addr %s682, 6
        %s684 = smul.addr %s683, 4
        %s685 = scalar_lea.vmem %s0, %s684
        %s686 = smul.u32 2, %s20
        %s687 = smul.u32 2, %s21
        %s688 = smul.u32 2, %s21
        %p689 = scmp.lt.s32.totalorder %s688, 17
        %s690 = scalar_select %p689, %s688, 17
        %s691 = scalar_lea.vmem %s4, %s690
        %s692 = smul.u32 2, %s21
        %s693 = smul.u32 2, %s20
        %s694 = smul.u32 2, %s21
        %v695 = vld [vmem:[%s685] sm:$0xff]
        %v696 = vld [vmem:[%s685 + $0x8] sm:$0xff]
        %v697 = vld [vmem:[%s685 + $0x10] sm:$0xff]
        %v698 = vld [vmem:[%s685 + $0x18] sm:$0xff]
        %v699 = vld [vmem:[%s685 + $0x20] sm:$0xff]
        %v700 = vld [vmem:[%s685 + $0x28] sm:$0xff]
        %v701 = vunpack.c.l.bf16 %v695
        %v702 = vunpack.c.h.bf16 %v695
        %v703 = vunpack.c.l.bf16 %v696
        %v704 = vunpack.c.h.bf16 %v696
        %v705 = vunpack.c.l.bf16 %v697
        %v706 = vunpack.c.h.bf16 %v697
        %v707 = vunpack.c.l.bf16 %v698
        %v708 = vunpack.c.h.bf16 %v698
        %v709 = vunpack.c.l.bf16 %v699
        %v710 = vunpack.c.h.bf16 %v699
        %v711 = vunpack.c.l.bf16 %v700
        %v712 = vunpack.c.h.bf16 %v700
        %v713 = vadd.f32 %v701, %v702
        %v714 = vadd.f32 %v713, %v703
        %v715 = vadd.f32 %v714, %v704
        %v716 = vadd.f32 %v715, %v705
        %v717 = vadd.f32 %v716, %v706
        %718 = vadd.xlane.f32.xlu0 %v717
        %v719 = vpop.xlane.xlu0 %718
        %v720 = vadd.f32 %v707, %v708
        %v721 = vadd.f32 %v720, %v709
        %v722 = vadd.f32 %v721, %v710
        %v723 = vadd.f32 %v722, %v711
        %v724 = vadd.f32 %v723, %v712
        %725 = vadd.xlane.f32.xlu0 %v724
        %v726 = vpop.xlane.xlu0 %725
        %v727 = vrcp.pop 768.0
        %v728 = vmul.f32 %v719, %v727
        %v729 = vmul.f32 %v726, %v727
        %v730 = vsub.f32 %v701, %v728
        %v731 = vsub.f32 %v702, %v728
        %v732 = vsub.f32 %v703, %v728
        %v733 = vsub.f32 %v704, %v728
        %v734 = vsub.f32 %v705, %v728
        %v735 = vsub.f32 %v706, %v728
        %v736 = vsub.f32 %v707, %v729
        %v737 = vsub.f32 %v708, %v729
        %v738 = vsub.f32 %v709, %v729
        %v739 = vsub.f32 %v710, %v729
        %v740 = vsub.f32 %v711, %v729
        %v741 = vsub.f32 %v712, %v729
        %v742 = vmul.f32 %v730, %v730
        %v743 = vmul.f32 %v731, %v731
        %v744 = vmul.f32 %v732, %v732
        %v745 = vmul.f32 %v733, %v733
        %v746 = vmul.f32 %v734, %v734
        %v747 = vmul.f32 %v735, %v735
        %v748 = vmul.f32 %v736, %v736
        %v749 = vmul.f32 %v737, %v737
        %v750 = vmul.f32 %v738, %v738
        %v751 = vmul.f32 %v739, %v739
        %v752 = vmul.f32 %v740, %v740
        %v753 = vmul.f32 %v741, %v741
        %v754 = vadd.f32 %v742, %v743
        %v755 = vadd.f32 %v754, %v744
        %v756 = vadd.f32 %v755, %v745
        %v757 = vadd.f32 %v756, %v746
        %v758 = vadd.f32 %v757, %v747
        %759 = vadd.xlane.f32.xlu0 %v758
        %v760 = vpop.xlane.xlu0 %759
        %v761 = vadd.f32 %v748, %v749
        %v762 = vadd.f32 %v761, %v750
        %v763 = vadd.f32 %v762, %v751
        %v764 = vadd.f32 %v763, %v752
        %v765 = vadd.f32 %v764, %v753
        %766 = vadd.xlane.f32.xlu0 %v765
        %v767 = vpop.xlane.xlu0 %766
        %v768 = vmul.f32 %v760, %v727
        %v769 = vmul.f32 %v767, %v727
        %v770 = vadd.f32 %v768, 1e-06
        %v771 = vadd.f32 %v769, 1e-06
        %v772 = vrsqrt.pop %v770
        %v773 = vrsqrt.pop %v771
        %v774 = vmul.f32 %v730, %v772
        %v775 = vmul.f32 %v731, %v772
        %v776 = vmul.f32 %v732, %v772
        %v777 = vmul.f32 %v733, %v772
        %v778 = vmul.f32 %v734, %v772
        %v779 = vmul.f32 %v735, %v772
        %v780 = vmul.f32 %v736, %v773
        %v781 = vmul.f32 %v737, %v773
        %v782 = vmul.f32 %v738, %v773
        %v783 = vmul.f32 %v739, %v773
        %v784 = vmul.f32 %v740, %v773
        %v785 = vmul.f32 %v741, %v773
        %v786 = vld [vmem:[%s1] sm:$0x3f]
        %v788 = vlaneseq
        %v789 = vshrl.u32 %v788, 7
        %v790 = vsub.s32 0, %v789
        %v791 = vrot.slane %v786, %v790
        %v792 = vlaneseq
        %v793 = vshrl.u32 %v792, 7
        %v794 = vsub.s32 1, %v793
        %v795 = vrot.slane %v786, %v794
        %v796 = vlaneseq
        %v797 = vshrl.u32 %v796, 7
        %v798 = vsub.s32 2, %v797
        %v799 = vrot.slane %v786, %v798
        %v800 = vlaneseq
        %v801 = vshrl.u32 %v800, 7
        %v802 = vsub.s32 3, %v801
        %v803 = vrot.slane %v786, %v802
        %v804 = vlaneseq
        %v805 = vshrl.u32 %v804, 7
        %v806 = vsub.s32 4, %v805
        %v807 = vrot.slane %v786, %v806
        %v808 = vlaneseq
        %v809 = vshrl.u32 %v808, 7
        %v810 = vsub.s32 5, %v809
        %v811 = vrot.slane %v786, %v810
        %v818 = vmul.f32 %v774, %v791
        %v819 = vmul.f32 %v775, %v795
        %v820 = vmul.f32 %v776, %v799
        %v821 = vmul.f32 %v777, %v803
        %v822 = vmul.f32 %v778, %v807
        %v823 = vmul.f32 %v779, %v811
        %v824 = vmul.f32 %v780, %v791
        %v825 = vmul.f32 %v781, %v795
        %v826 = vmul.f32 %v782, %v799
        %v827 = vmul.f32 %v783, %v803
        %v828 = vmul.f32 %v784, %v807
        %v829 = vmul.f32 %v785, %v811
        %v830 = vld [vmem:[%s2] sm:$0x3f]
        %v832 = vlaneseq
        %v833 = vshrl.u32 %v832, 7
        %v834 = vsub.s32 0, %v833
        %v835 = vrot.slane %v830, %v834
        %v836 = vlaneseq
        %v837 = vshrl.u32 %v836, 7
        %v838 = vsub.s32 1, %v837
        %v839 = vrot.slane %v830, %v838
        %v840 = vlaneseq
        %v841 = vshrl.u32 %v840, 7
        %v842 = vsub.s32 2, %v841
        %v843 = vrot.slane %v830, %v842
        %v844 = vlaneseq
        %v845 = vshrl.u32 %v844, 7
        %v846 = vsub.s32 3, %v845
        %v847 = vrot.slane %v830, %v846
        %v848 = vlaneseq
        %v849 = vshrl.u32 %v848, 7
        %v850 = vsub.s32 4, %v849
        %v851 = vrot.slane %v830, %v850
        %v852 = vlaneseq
        %v853 = vshrl.u32 %v852, 7
        %v854 = vsub.s32 5, %v853
        %v855 = vrot.slane %v830, %v854
        %v862 = vadd.f32 %v818, %v835
        %v863 = vadd.f32 %v819, %v839
        %v864 = vadd.f32 %v820, %v843
        %v865 = vadd.f32 %v821, %v847
        %v866 = vadd.f32 %v822, %v851
        %v867 = vadd.f32 %v823, %v855
        %v868 = vadd.f32 %v824, %v835
        %v869 = vadd.f32 %v825, %v839
        %v870 = vadd.f32 %v826, %v843
        %v871 = vadd.f32 %v827, %v847
        %v872 = vadd.f32 %v828, %v851
        %v873 = vadd.f32 %v829, %v855
        %v874 = vpack.c.bf16 %v868, %v862
        %v875 = vpack.c.bf16 %v869, %v863
        %v876 = vpack.c.bf16 %v870, %v864
        %v877 = vpack.c.bf16 %v871, %v865
        %v878 = vpack.c.bf16 %v872, %v866
        %v879 = vpack.c.bf16 %v873, %v867
        %v880 = vld [vmem:[%s646] sm:$0xff]
        %v881 = vld [vmem:[%s646 + $0x8] sm:$0xff]
        %v882 = vld [vmem:[%s646 + $0x10] sm:$0xff]
        %v883 = vld [vmem:[%s646 + $0x18] sm:$0xff]
        %v884 = vld [vmem:[%s646 + $0x20] sm:$0xff]
        %v885 = vld [vmem:[%s646 + $0x28] sm:$0xff]
        %v886 = vld [vmem:[%s646 + $0x30] sm:$0xff]
        %v887 = vld [vmem:[%s646 + $0x38] sm:$0xff]
        %v888 = vld [vmem:[%s646 + $0x40] sm:$0xff]
        %v889 = vld [vmem:[%s646 + $0x48] sm:$0xff]
        %v890 = vld [vmem:[%s646 + $0x50] sm:$0xff]
        %v891 = vld [vmem:[%s646 + $0x58] sm:$0xff]
        %v892 = vld [vmem:[%s646 + $0x60] sm:$0xff]
        %v893 = vld [vmem:[%s646 + $0x68] sm:$0xff]
        %v894 = vld [vmem:[%s646 + $0x70] sm:$0xff]
        %v895 = vld [vmem:[%s646 + $0x78] sm:$0xff]
        %v896 = vld [vmem:[%s646 + $0x80] sm:$0xff]
        %v897 = vld [vmem:[%s646 + $0x88] sm:$0xff]
        %v898 = vld [vmem:[%s646 + $0x90] sm:$0xff]
        %v899 = vld [vmem:[%s646 + $0x98] sm:$0xff]
        %v900 = vld [vmem:[%s646 + $0xa0] sm:$0xff]
        %v901 = vld [vmem:[%s646 + $0xa8] sm:$0xff]
        %v902 = vld [vmem:[%s646 + $0xb0] sm:$0xff]
        %v903 = vld [vmem:[%s646 + $0xb8] sm:$0xff]
        %v904 = vld [vmem:[%s646 + $0xc0] sm:$0xff]
        %v905 = vld [vmem:[%s646 + $0xc8] sm:$0xff]
        %v906 = vld [vmem:[%s646 + $0xd0] sm:$0xff]
        %v907 = vld [vmem:[%s646 + $0xd8] sm:$0xff]
        %v908 = vld [vmem:[%s646 + $0xe0] sm:$0xff]
        %v909 = vld [vmem:[%s646 + $0xe8] sm:$0xff]
        %v910 = vld [vmem:[%s646 + $0xf0] sm:$0xff]
        %v911 = vld [vmem:[%s646 + $0xf8] sm:$0xff]
        %v912 = vld [vmem:[%s646 + $0x100] sm:$0xff]
        %v913 = vld [vmem:[%s646 + $0x108] sm:$0xff]
        %v914 = vld [vmem:[%s646 + $0x110] sm:$0xff]
        %v915 = vld [vmem:[%s646 + $0x118] sm:$0xff]
        %v916 = vld [vmem:[%s646 + $0x120] sm:$0xff]
        %v917 = vld [vmem:[%s646 + $0x128] sm:$0xff]
        %v918 = vld [vmem:[%s646 + $0x130] sm:$0xff]
        %v919 = vld [vmem:[%s646 + $0x138] sm:$0xff]
        %v920 = vld [vmem:[%s646 + $0x140] sm:$0xff]
        %v921 = vld [vmem:[%s646 + $0x148] sm:$0xff]
        %v922 = vld [vmem:[%s646 + $0x150] sm:$0xff]
        %v923 = vld [vmem:[%s646 + $0x158] sm:$0xff]
        %v924 = vld [vmem:[%s646 + $0x160] sm:$0xff]
        %v925 = vld [vmem:[%s646 + $0x168] sm:$0xff]
        %v926 = vld [vmem:[%s646 + $0x170] sm:$0xff]
        %v927 = vld [vmem:[%s646 + $0x178] sm:$0xff]
        %v928 = vld [vmem:[%s646 + $0x180] sm:$0xff]
        %v929 = vld [vmem:[%s646 + $0x188] sm:$0xff]
        %v930 = vld [vmem:[%s646 + $0x190] sm:$0xff]
        %v931 = vld [vmem:[%s646 + $0x198] sm:$0xff]
        %v932 = vld [vmem:[%s646 + $0x1a0] sm:$0xff]
        %v933 = vld [vmem:[%s646 + $0x1a8] sm:$0xff]
        %v934 = vld [vmem:[%s646 + $0x1b0] sm:$0xff]
        %v935 = vld [vmem:[%s646 + $0x1b8] sm:$0xff]
        %v936 = vld [vmem:[%s646 + $0x1c0] sm:$0xff]
        %v937 = vld [vmem:[%s646 + $0x1c8] sm:$0xff]
        %v938 = vld [vmem:[%s646 + $0x1d0] sm:$0xff]
        %v939 = vld [vmem:[%s646 + $0x1d8] sm:$0xff]
        %v940 = vld [vmem:[%s646 + $0x1e0] sm:$0xff]
        %v941 = vld [vmem:[%s646 + $0x1e8] sm:$0xff]
        %v942 = vld [vmem:[%s646 + $0x1f0] sm:$0xff]
        %v943 = vld [vmem:[%s646 + $0x1f8] sm:$0xff]
        %v944 = vld [vmem:[%s646 + $0x200] sm:$0xff]
        %v945 = vld [vmem:[%s646 + $0x208] sm:$0xff]
        %v946 = vld [vmem:[%s646 + $0x210] sm:$0xff]
        %v947 = vld [vmem:[%s646 + $0x218] sm:$0xff]
        %v948 = vld [vmem:[%s646 + $0x220] sm:$0xff]
        %v949 = vld [vmem:[%s646 + $0x228] sm:$0xff]
        %v950 = vld [vmem:[%s646 + $0x230] sm:$0xff]
        %v951 = vld [vmem:[%s646 + $0x238] sm:$0xff]
        %v952 = vld [vmem:[%s646 + $0x240] sm:$0xff]
        %v953 = vld [vmem:[%s646 + $0x248] sm:$0xff]
        %v954 = vld [vmem:[%s646 + $0x250] sm:$0xff]
        %v955 = vld [vmem:[%s646 + $0x258] sm:$0xff]
        %v956 = vld [vmem:[%s646 + $0x260] sm:$0xff]
        %v957 = vld [vmem:[%s646 + $0x268] sm:$0xff]
        %v958 = vld [vmem:[%s646 + $0x270] sm:$0xff]
        %v959 = vld [vmem:[%s646 + $0x278] sm:$0xff]
        %v960 = vld [vmem:[%s646 + $0x280] sm:$0xff]
        %v961 = vld [vmem:[%s646 + $0x288] sm:$0xff]
        %v962 = vld [vmem:[%s646 + $0x290] sm:$0xff]
        %v963 = vld [vmem:[%s646 + $0x298] sm:$0xff]
        %v964 = vld [vmem:[%s646 + $0x2a0] sm:$0xff]
        %v965 = vld [vmem:[%s646 + $0x2a8] sm:$0xff]
        %v966 = vld [vmem:[%s646 + $0x2b0] sm:$0xff]
        %v967 = vld [vmem:[%s646 + $0x2b8] sm:$0xff]
        %v968 = vld [vmem:[%s646 + $0x2c0] sm:$0xff]
        %v969 = vld [vmem:[%s646 + $0x2c8] sm:$0xff]
        %v970 = vld [vmem:[%s646 + $0x2d0] sm:$0xff]
        %v971 = vld [vmem:[%s646 + $0x2d8] sm:$0xff]
        %v972 = vld [vmem:[%s646 + $0x2e0] sm:$0xff]
        %v973 = vld [vmem:[%s646 + $0x2e8] sm:$0xff]
        %v974 = vld [vmem:[%s646 + $0x2f0] sm:$0xff]
        %v975 = vld [vmem:[%s646 + $0x2f8] sm:$0xff]
        %v976 = vld [vmem:[%s691] sm:$0x3]
        %v978 = vlaneseq
        %v979 = vshrl.u32 %v978, 7
        %v980 = vsub.s32 0, %v979
        %v981 = vrot.slane %v976, %v980
        %v982 = vlaneseq
        %v983 = vshrl.u32 %v982, 7
        %v984 = vsub.s32 1, %v983
        %v985 = vrot.slane %v976, %v984
        %v1084 = vunpack.c.l.b16 %v880
        %v1085 = vunpack.c.h.b16 %v880
        %v1086 = vunpack.c.l.b16 %v881
        %v1087 = vunpack.c.h.b16 %v881
        %v1088 = vunpack.c.l.b16 %v882
        %v1089 = vunpack.c.h.b16 %v882
        %v1090 = vunpack.c.l.b16 %v883
        %v1091 = vunpack.c.h.b16 %v883
        %v1092 = vunpack.c.l.b16 %v884
        %v1093 = vunpack.c.h.b16 %v884
        %v1094 = vunpack.c.l.b16 %v885
        %v1095 = vunpack.c.h.b16 %v885
        %v1096 = vunpack.c.l.b16 %v886
        %v1097 = vunpack.c.h.b16 %v886
        %v1098 = vunpack.c.l.b16 %v887
        %v1099 = vunpack.c.h.b16 %v887
        %v1100 = vunpack.c.l.b16 %v888
        %v1101 = vunpack.c.h.b16 %v888
        %v1102 = vunpack.c.l.b16 %v889
        %v1103 = vunpack.c.h.b16 %v889
        %v1104 = vunpack.c.l.b16 %v890
        %v1105 = vunpack.c.h.b16 %v890
        %v1106 = vunpack.c.l.b16 %v891
        %v1107 = vunpack.c.h.b16 %v891
        %v1108 = vunpack.c.l.b16 %v892
        %v1109 = vunpack.c.h.b16 %v892
        %v1110 = vunpack.c.l.b16 %v893
        %v1111 = vunpack.c.h.b16 %v893
        %v1112 = vunpack.c.l.b16 %v894
        %v1113 = vunpack.c.h.b16 %v894
        %v1114 = vunpack.c.l.b16 %v895
        %v1115 = vunpack.c.h.b16 %v895
        %v1116 = vunpack.c.l.b16 %v896
        %v1117 = vunpack.c.h.b16 %v896
        %v1118 = vunpack.c.l.b16 %v897
        %v1119 = vunpack.c.h.b16 %v897
        %v1120 = vunpack.c.l.b16 %v898
        %v1121 = vunpack.c.h.b16 %v898
        %v1122 = vunpack.c.l.b16 %v899
        %v1123 = vunpack.c.h.b16 %v899
        %v1124 = vunpack.c.l.b16 %v900
        %v1125 = vunpack.c.h.b16 %v900
        %v1126 = vunpack.c.l.b16 %v901
        %v1127 = vunpack.c.h.b16 %v901
        %v1128 = vunpack.c.l.b16 %v902
        %v1129 = vunpack.c.h.b16 %v902
        %v1130 = vunpack.c.l.b16 %v903
        %v1131 = vunpack.c.h.b16 %v903
        %v1132 = vunpack.c.l.b16 %v904
        %v1133 = vunpack.c.h.b16 %v904
        %v1134 = vunpack.c.l.b16 %v905
        %v1135 = vunpack.c.h.b16 %v905
        %v1136 = vunpack.c.l.b16 %v906
        %v1137 = vunpack.c.h.b16 %v906
        %v1138 = vunpack.c.l.b16 %v907
        %v1139 = vunpack.c.h.b16 %v907
        %v1140 = vunpack.c.l.b16 %v908
        %v1141 = vunpack.c.h.b16 %v908
        %v1142 = vunpack.c.l.b16 %v909
        %v1143 = vunpack.c.h.b16 %v909
        %v1144 = vunpack.c.l.b16 %v910
        %v1145 = vunpack.c.h.b16 %v910
        %v1146 = vunpack.c.l.b16 %v911
        %v1147 = vunpack.c.h.b16 %v911
        %v1148 = vunpack.c.l.b16 %v912
        %v1149 = vunpack.c.h.b16 %v912
        %v1150 = vunpack.c.l.b16 %v913
        %v1151 = vunpack.c.h.b16 %v913
        %v1152 = vunpack.c.l.b16 %v914
        %v1153 = vunpack.c.h.b16 %v914
        %v1154 = vunpack.c.l.b16 %v915
        %v1155 = vunpack.c.h.b16 %v915
        %v1156 = vunpack.c.l.b16 %v916
        %v1157 = vunpack.c.h.b16 %v916
        %v1158 = vunpack.c.l.b16 %v917
        %v1159 = vunpack.c.h.b16 %v917
        %v1160 = vunpack.c.l.b16 %v918
        %v1161 = vunpack.c.h.b16 %v918
        %v1162 = vunpack.c.l.b16 %v919
        %v1163 = vunpack.c.h.b16 %v919
        %v1164 = vunpack.c.l.b16 %v920
        %v1165 = vunpack.c.h.b16 %v920
        %v1166 = vunpack.c.l.b16 %v921
        %v1167 = vunpack.c.h.b16 %v921
        %v1168 = vunpack.c.l.b16 %v922
        %v1169 = vunpack.c.h.b16 %v922
        %v1170 = vunpack.c.l.b16 %v923
        %v1171 = vunpack.c.h.b16 %v923
        %v1172 = vunpack.c.l.b16 %v924
        %v1173 = vunpack.c.h.b16 %v924
        %v1174 = vunpack.c.l.b16 %v925
        %v1175 = vunpack.c.h.b16 %v925
        %v1176 = vunpack.c.l.b16 %v926
        %v1177 = vunpack.c.h.b16 %v926
        %v1178 = vunpack.c.l.b16 %v927
        %v1179 = vunpack.c.h.b16 %v927
        %v1180 = vunpack.c.l.b16 %v928
        %v1181 = vunpack.c.h.b16 %v928
        %v1182 = vunpack.c.l.b16 %v929
        %v1183 = vunpack.c.h.b16 %v929
        %v1184 = vunpack.c.l.b16 %v930
        %v1185 = vunpack.c.h.b16 %v930
        %v1186 = vunpack.c.l.b16 %v931
        %v1187 = vunpack.c.h.b16 %v931
        %v1188 = vunpack.c.l.b16 %v932
        %v1189 = vunpack.c.h.b16 %v932
        %v1190 = vunpack.c.l.b16 %v933
        %v1191 = vunpack.c.h.b16 %v933
        %v1192 = vunpack.c.l.b16 %v934
        %v1193 = vunpack.c.h.b16 %v934
        %v1194 = vunpack.c.l.b16 %v935
        %v1195 = vunpack.c.h.b16 %v935
        %v1196 = vunpack.c.l.b16 %v936
        %v1197 = vunpack.c.h.b16 %v936
        %v1198 = vunpack.c.l.b16 %v937
        %v1199 = vunpack.c.h.b16 %v937
        %v1200 = vunpack.c.l.b16 %v938
        %v1201 = vunpack.c.h.b16 %v938
        %v1202 = vunpack.c.l.b16 %v939
        %v1203 = vunpack.c.h.b16 %v939
        %v1204 = vunpack.c.l.b16 %v940
        %v1205 = vunpack.c.h.b16 %v940
        %v1206 = vunpack.c.l.b16 %v941
        %v1207 = vunpack.c.h.b16 %v941
        %v1208 = vunpack.c.l.b16 %v942
        %v1209 = vunpack.c.h.b16 %v942
        %v1210 = vunpack.c.l.b16 %v943
        %v1211 = vunpack.c.h.b16 %v943
        %v1212 = vunpack.c.l.b16 %v944
        %v1213 = vunpack.c.h.b16 %v944
        %v1214 = vunpack.c.l.b16 %v945
        %v1215 = vunpack.c.h.b16 %v945
        %v1216 = vunpack.c.l.b16 %v946
        %v1217 = vunpack.c.h.b16 %v946
        %v1218 = vunpack.c.l.b16 %v947
        %v1219 = vunpack.c.h.b16 %v947
        %v1220 = vunpack.c.l.b16 %v948
        %v1221 = vunpack.c.h.b16 %v948
        %v1222 = vunpack.c.l.b16 %v949
        %v1223 = vunpack.c.h.b16 %v949
        %v1224 = vunpack.c.l.b16 %v950
        %v1225 = vunpack.c.h.b16 %v950
        %v1226 = vunpack.c.l.b16 %v951
        %v1227 = vunpack.c.h.b16 %v951
        %v1228 = vunpack.c.l.b16 %v952
        %v1229 = vunpack.c.h.b16 %v952
        %v1230 = vunpack.c.l.b16 %v953
        %v1231 = vunpack.c.h.b16 %v953
        %v1232 = vunpack.c.l.b16 %v954
        %v1233 = vunpack.c.h.b16 %v954
        %v1234 = vunpack.c.l.b16 %v955
        %v1235 = vunpack.c.h.b16 %v955
        %v1236 = vunpack.c.l.b16 %v956
        %v1237 = vunpack.c.h.b16 %v956
        %v1238 = vunpack.c.l.b16 %v957
        %v1239 = vunpack.c.h.b16 %v957
        %v1240 = vunpack.c.l.b16 %v958
        %v1241 = vunpack.c.h.b16 %v958
        %v1242 = vunpack.c.l.b16 %v959
        %v1243 = vunpack.c.h.b16 %v959
        %v1244 = vunpack.c.l.b16 %v960
        %v1245 = vunpack.c.h.b16 %v960
        %v1246 = vunpack.c.l.b16 %v961
        %v1247 = vunpack.c.h.b16 %v961
        %v1248 = vunpack.c.l.b16 %v962
        %v1249 = vunpack.c.h.b16 %v962
        %v1250 = vunpack.c.l.b16 %v963
        %v1251 = vunpack.c.h.b16 %v963
        %v1252 = vunpack.c.l.b16 %v964
        %v1253 = vunpack.c.h.b16 %v964
        %v1254 = vunpack.c.l.b16 %v965
        %v1255 = vunpack.c.h.b16 %v965
        %v1256 = vunpack.c.l.b16 %v966
        %v1257 = vunpack.c.h.b16 %v966
        %v1258 = vunpack.c.l.b16 %v967
        %v1259 = vunpack.c.h.b16 %v967
        %v1260 = vunpack.c.l.b16 %v968
        %v1261 = vunpack.c.h.b16 %v968
        %v1262 = vunpack.c.l.b16 %v969
        %v1263 = vunpack.c.h.b16 %v969
        %v1264 = vunpack.c.l.b16 %v970
        %v1265 = vunpack.c.h.b16 %v970
        %v1266 = vunpack.c.l.b16 %v971
        %v1267 = vunpack.c.h.b16 %v971
        %v1268 = vunpack.c.l.b16 %v972
        %v1269 = vunpack.c.h.b16 %v972
        %v1270 = vunpack.c.l.b16 %v973
        %v1271 = vunpack.c.h.b16 %v973
        %v1272 = vunpack.c.l.b16 %v974
        %v1273 = vunpack.c.h.b16 %v974
        %v1274 = vunpack.c.l.b16 %v975
        %v1275 = vunpack.c.h.b16 %v975
        %v1276 = vpack.c.b16 %v1086, %v1084
        %v1277 = vpack.c.b16 %v1087, %v1085
        %v1278 = vpack.c.b16 %v1090, %v1088
        %v1279 = vpack.c.b16 %v1091, %v1089
        %v1280 = vpack.c.b16 %v1094, %v1092
        %v1281 = vpack.c.b16 %v1095, %v1093
        %v1282 = vpack.c.b16 %v1098, %v1096
        %v1283 = vpack.c.b16 %v1099, %v1097
        %v1284 = vpack.c.b16 %v1102, %v1100
        %v1285 = vpack.c.b16 %v1103, %v1101
        %v1286 = vpack.c.b16 %v1106, %v1104
        %v1287 = vpack.c.b16 %v1107, %v1105
        %v1288 = vpack.c.b16 %v1110, %v1108
        %v1289 = vpack.c.b16 %v1111, %v1109
        %v1290 = vpack.c.b16 %v1114, %v1112
        %v1291 = vpack.c.b16 %v1115, %v1113
        %v1292 = vpack.c.b16 %v1118, %v1116
        %v1293 = vpack.c.b16 %v1119, %v1117
        %v1294 = vpack.c.b16 %v1122, %v1120
        %v1295 = vpack.c.b16 %v1123, %v1121
        %v1296 = vpack.c.b16 %v1126, %v1124
        %v1297 = vpack.c.b16 %v1127, %v1125
        %v1298 = vpack.c.b16 %v1130, %v1128
        %v1299 = vpack.c.b16 %v1131, %v1129
        %v1300 = vpack.c.b16 %v1134, %v1132
        %v1301 = vpack.c.b16 %v1135, %v1133
        %v1302 = vpack.c.b16 %v1138, %v1136
        %v1303 = vpack.c.b16 %v1139, %v1137
        %v1304 = vpack.c.b16 %v1142, %v1140
        %v1305 = vpack.c.b16 %v1143, %v1141
        %v1306 = vpack.c.b16 %v1146, %v1144
        %v1307 = vpack.c.b16 %v1147, %v1145
        %v1308 = vpack.c.b16 %v1150, %v1148
        %v1309 = vpack.c.b16 %v1151, %v1149
        %v1310 = vpack.c.b16 %v1154, %v1152
        %v1311 = vpack.c.b16 %v1155, %v1153
        %v1312 = vpack.c.b16 %v1158, %v1156
        %v1313 = vpack.c.b16 %v1159, %v1157
        %v1314 = vpack.c.b16 %v1162, %v1160
        %v1315 = vpack.c.b16 %v1163, %v1161
        %v1316 = vpack.c.b16 %v1166, %v1164
        %v1317 = vpack.c.b16 %v1167, %v1165
        %v1318 = vpack.c.b16 %v1170, %v1168
        %v1319 = vpack.c.b16 %v1171, %v1169
        %v1320 = vpack.c.b16 %v1174, %v1172
        %v1321 = vpack.c.b16 %v1175, %v1173
        %v1322 = vpack.c.b16 %v1178, %v1176
        %v1323 = vpack.c.b16 %v1179, %v1177
        %v1324 = vpack.c.b16 %v1182, %v1180
        %v1325 = vpack.c.b16 %v1183, %v1181
        %v1326 = vpack.c.b16 %v1186, %v1184
        %v1327 = vpack.c.b16 %v1187, %v1185
        %v1328 = vpack.c.b16 %v1190, %v1188
        %v1329 = vpack.c.b16 %v1191, %v1189
        %v1330 = vpack.c.b16 %v1194, %v1192
        %v1331 = vpack.c.b16 %v1195, %v1193
        %v1332 = vpack.c.b16 %v1198, %v1196
        %v1333 = vpack.c.b16 %v1199, %v1197
        %v1334 = vpack.c.b16 %v1202, %v1200
        %v1335 = vpack.c.b16 %v1203, %v1201
        %v1336 = vpack.c.b16 %v1206, %v1204
        %v1337 = vpack.c.b16 %v1207, %v1205
        %v1338 = vpack.c.b16 %v1210, %v1208
        %v1339 = vpack.c.b16 %v1211, %v1209
        %v1340 = vpack.c.b16 %v1214, %v1212
        %v1341 = vpack.c.b16 %v1215, %v1213
        %v1342 = vpack.c.b16 %v1218, %v1216
        %v1343 = vpack.c.b16 %v1219, %v1217
        %v1344 = vpack.c.b16 %v1222, %v1220
        %v1345 = vpack.c.b16 %v1223, %v1221
        %v1346 = vpack.c.b16 %v1226, %v1224
        %v1347 = vpack.c.b16 %v1227, %v1225
        %v1348 = vpack.c.b16 %v1230, %v1228
        %v1349 = vpack.c.b16 %v1231, %v1229
        %v1350 = vpack.c.b16 %v1234, %v1232
        %v1351 = vpack.c.b16 %v1235, %v1233
        %v1352 = vpack.c.b16 %v1238, %v1236
        %v1353 = vpack.c.b16 %v1239, %v1237
        %v1354 = vpack.c.b16 %v1242, %v1240
        %v1355 = vpack.c.b16 %v1243, %v1241
        %v1356 = vpack.c.b16 %v1246, %v1244
        %v1357 = vpack.c.b16 %v1247, %v1245
        %v1358 = vpack.c.b16 %v1250, %v1248
        %v1359 = vpack.c.b16 %v1251, %v1249
        %v1360 = vpack.c.b16 %v1254, %v1252
        %v1361 = vpack.c.b16 %v1255, %v1253
        %v1362 = vpack.c.b16 %v1258, %v1256
        %v1363 = vpack.c.b16 %v1259, %v1257
        %v1364 = vpack.c.b16 %v1262, %v1260
        %v1365 = vpack.c.b16 %v1263, %v1261
        %v1366 = vpack.c.b16 %v1266, %v1264
        %v1367 = vpack.c.b16 %v1267, %v1265
        %v1368 = vpack.c.b16 %v1270, %v1268
        %v1369 = vpack.c.b16 %v1271, %v1269
        %v1370 = vpack.c.b16 %v1274, %v1272
        %v1371 = vpack.c.b16 %v1275, %v1273
        %1468 = vmatprep.subr.bf16.mxu0 %v1277
        %1469 = vmatpush1.bf16.msra.mxu0 %v1276
        %1470 = vmatprep.subr.bf16.mxu0 %v1279
        %1471 = vmatpush1.bf16.msra.mxu0 %v1278
        %1472 = vmatprep.subr.bf16.mxu0 %v1281
        %1473 = vmatpush1.bf16.msra.mxu0 %v1280
        %1474 = vmatprep.subr.bf16.mxu0 %v1283
        %1475 = vmatpush1.bf16.msra.mxu0 %v1282
        %1476 = vmatprep.subr.bf16.mxu0 %v1285
        %1477 = vmatpush1.bf16.msra.mxu0 %v1284
        %1478 = vmatprep.subr.bf16.mxu0 %v1287
        %1479 = vmatpush1.bf16.msra.mxu0 %v1286
        %1480 = vmatprep.subr.bf16.mxu0 %v1289
        %1481 = vmatpush1.bf16.msra.mxu0 %v1288
        %1482 = vmatprep.subr.bf16.mxu0 %v1291
        %1483 = vmatpush1.bf16.msra.mxu0 %v1290
        %1484 = vmatprep.subr.bf16.mxu0 %v1293
        %1485 = vmatpush1.bf16.msra.mxu0 %v1292
        %1486 = vmatprep.subr.bf16.mxu0 %v1295
        %1487 = vmatpush1.bf16.msra.mxu0 %v1294
        %1488 = vmatprep.subr.bf16.mxu0 %v1297
        %1489 = vmatpush1.bf16.msra.mxu0 %v1296
        %1490 = vmatprep.subr.bf16.mxu0 %v1299
        %1491 = vmatpush1.bf16.msra.mxu0 %v1298
        %1492 = vmatprep.subr.bf16.mxu0 %v1301
        %1493 = vmatpush1.bf16.msra.mxu0 %v1300
        %1494 = vmatprep.subr.bf16.mxu0 %v1303
        %1495 = vmatpush1.bf16.msra.mxu0 %v1302
        %1496 = vmatprep.subr.bf16.mxu0 %v1305
        %1497 = vmatpush1.bf16.msra.mxu0 %v1304
        %1498 = vmatprep.subr.bf16.mxu0 %v1307
        %1499 = vmatpush1.bf16.msra.mxu0 %v1306
        %1500 = vmatprep.mubr.bf16.mxu0 %v875
        %1501 = vmatmul.mubr.bf16.gmra.mrb[0].mxu0 %v874
        %v1502 = vpop.f32.mrb[0].mxu0
        %v1503 = vadd.f32 %v981, %v1502
        %v1504 = vpop.f32.mrb[0].mxu0
        %v1505 = vadd.f32 %v985, %v1504
        %v1506 = vpop.f32.mrb[0].mxu0
        %v1507 = vadd.f32 %v981, %v1506
        %v1508 = vpop.f32.mrb[0].mxu0
        %v1509 = vadd.f32 %v985, %v1508
        %1510 = vdwg.mxu0
        %1511 = vmatprep.subr.bf16.mxu0 %v1309
        %1512 = vmatpush1.bf16.msra.mxu0 %v1308
        %1513 = vmatprep.subr.bf16.mxu0 %v1311
        %1514 = vmatpush1.bf16.msra.mxu0 %v1310
        %1515 = vmatprep.subr.bf16.mxu0 %v1313
        %1516 = vmatpush1.bf16.msra.mxu0 %v1312
        %1517 = vmatprep.subr.bf16.mxu0 %v1315
        %1518 = vmatpush1.bf16.msra.mxu0 %v1314
        %1519 = vmatprep.subr.bf16.mxu0 %v1317
        %1520 = vmatpush1.bf16.msra.mxu0 %v1316
        %1521 = vmatprep.subr.bf16.mxu0 %v1319
        %1522 = vmatpush1.bf16.msra.mxu0 %v1318
        %1523 = vmatprep.subr.bf16.mxu0 %v1321
        %1524 = vmatpush1.bf16.msra.mxu0 %v1320
        %1525 = vmatprep.subr.bf16.mxu0 %v1323
        %1526 = vmatpush1.bf16.msra.mxu0 %v1322
        %1527 = vmatprep.subr.bf16.mxu0 %v1325
        %1528 = vmatpush1.bf16.msra.mxu0 %v1324
        %1529 = vmatprep.subr.bf16.mxu0 %v1327
        %1530 = vmatpush1.bf16.msra.mxu0 %v1326
        %1531 = vmatprep.subr.bf16.mxu0 %v1329
        %1532 = vmatpush1.bf16.msra.mxu0 %v1328
        %1533 = vmatprep.subr.bf16.mxu0 %v1331
        %1534 = vmatpush1.bf16.msra.mxu0 %v1330
        %1535 = vmatprep.subr.bf16.mxu0 %v1333
        %1536 = vmatpush1.bf16.msra.mxu0 %v1332
        %1537 = vmatprep.subr.bf16.mxu0 %v1335
        %1538 = vmatpush1.bf16.msra.mxu0 %v1334
        %1539 = vmatprep.subr.bf16.mxu0 %v1337
        %1540 = vmatpush1.bf16.msra.mxu0 %v1336
        %1541 = vmatprep.subr.bf16.mxu0 %v1339
        %1542 = vmatpush1.bf16.msra.mxu0 %v1338
        %1543 = vmatprep.mubr.bf16.mxu0 %v877
        %1544 = vmatmul.mubr.bf16.gmra.mrb[0].mxu0 %v876
        %v1545 = vpop.f32.mrb[0].mxu0
        %v1546 = vadd.f32 %v1503, %v1545
        %v1547 = vpop.f32.mrb[0].mxu0
        %v1548 = vadd.f32 %v1505, %v1547
        %v1549 = vpop.f32.mrb[0].mxu0
        %v1550 = vadd.f32 %v1507, %v1549
        %v1551 = vpop.f32.mrb[0].mxu0
        %v1552 = vadd.f32 %v1509, %v1551
        %1553 = vdwg.mxu0
        %1554 = vmatprep.subr.bf16.mxu0 %v1341
        %1555 = vmatpush1.bf16.msra.mxu0 %v1340
        %1556 = vmatprep.subr.bf16.mxu0 %v1343
        %1557 = vmatpush1.bf16.msra.mxu0 %v1342
        %1558 = vmatprep.subr.bf16.mxu0 %v1345
        %1559 = vmatpush1.bf16.msra.mxu0 %v1344
        %1560 = vmatprep.subr.bf16.mxu0 %v1347
        %1561 = vmatpush1.bf16.msra.mxu0 %v1346
        %1562 = vmatprep.subr.bf16.mxu0 %v1349
        %1563 = vmatpush1.bf16.msra.mxu0 %v1348
        %1564 = vmatprep.subr.bf16.mxu0 %v1351
        %1565 = vmatpush1.bf16.msra.mxu0 %v1350
        %1566 = vmatprep.subr.bf16.mxu0 %v1353
        %1567 = vmatpush1.bf16.msra.mxu0 %v1352
        %1568 = vmatprep.subr.bf16.mxu0 %v1355
        %1569 = vmatpush1.bf16.msra.mxu0 %v1354
        %1570 = vmatprep.subr.bf16.mxu0 %v1357
        %1571 = vmatpush1.bf16.msra.mxu0 %v1356
        %1572 = vmatprep.subr.bf16.mxu0 %v1359
        %1573 = vmatpush1.bf16.msra.mxu0 %v1358
        %1574 = vmatprep.subr.bf16.mxu0 %v1361
        %1575 = vmatpush1.bf16.msra.mxu0 %v1360
        %1576 = vmatprep.subr.bf16.mxu0 %v1363
        %1577 = vmatpush1.bf16.msra.mxu0 %v1362
        %1578 = vmatprep.subr.bf16.mxu0 %v1365
        %1579 = vmatpush1.bf16.msra.mxu0 %v1364
        %1580 = vmatprep.subr.bf16.mxu0 %v1367
        %1581 = vmatpush1.bf16.msra.mxu0 %v1366
        %1582 = vmatprep.subr.bf16.mxu0 %v1369
        %1583 = vmatpush1.bf16.msra.mxu0 %v1368
        %1584 = vmatprep.subr.bf16.mxu0 %v1371
        %1585 = vmatpush1.bf16.msra.mxu0 %v1370
        %1586 = vmatprep.mubr.bf16.mxu0 %v879
        %1587 = vmatmul.mubr.bf16.gmra.mrb[0].mxu0 %v878
        %v1588 = vpop.f32.mrb[0].mxu0
        %v1589 = vadd.f32 %v1546, %v1588
        %v1590 = vpop.f32.mrb[0].mxu0
        %v1591 = vadd.f32 %v1548, %v1590
        %v1592 = vpop.f32.mrb[0].mxu0
        %v1593 = vadd.f32 %v1550, %v1592
        %v1594 = vpop.f32.mrb[0].mxu0
        %v1595 = vadd.f32 %v1552, %v1594
        %1596 = vdwg.mxu0
        %v1597 = vpack.c.bf16 %v1593, %v1589
        %v1598 = vpack.c.bf16 %v1595, %v1591
        %v1601 = vunpack.c.l.b16 %v1597
        %v1602 = vunpack.c.l.b16 %v1598
        %v1603 = vunpack.c.h.b16 %v1597
        %v1604 = vunpack.c.h.b16 %v1598
        %v1605 = vpack.c.b16 %v1602, %v1601
        %v1606 = vpack.c.b16 %v1604, %v1603
        %1609 = vst [vmem:[%s679] sm:$0xff] %v1605
        %1610 = vst [vmem:[%s679 + $0x8] sm:$0xff] %v1606
        %s1611 = sand.u32 %s158, 1
        %s1612 = sand.u32 %s158, 1
        %s1613 = smul.addr %s1612, 16
        %s1614 = scalar_lea.vmem [#allocation3], %s1613
        // Predicated region
        $region79: #{closed_call.16} parent=73 // pred_check
          %p1615 = pneg %p168
        $region80: #{closed_call.16} parent=73 // pred_check_branch
          %1617 = sbr.rel (%p1615) target = $region82
        $region81: #{closed_call.16} parent=73 // pred_region
          %s1618 = smul.u32 2, %s20
          %s1619 = smul.u32 2, %s21
          %s1620 = smul.addr %s1618, 18
          %s1621 = sadd.s32 %s1619, %s1620
          %s1622 = smul.addr %s1621, 4
          %s1623 = scalar_lea.vmem %s5, %s1622
          // Predicated region
          $region83: #{closed_call.16} parent=81 // pred_check
            _
          $region84: #{closed_call.16} parent=81 // pred_check_branch
            %1625 = sbr.rel (0) target = $region86
          $region85: #{closed_call.16} parent=81 // pred_region
            // Predicated region
            $region87: #{closed_call.16} parent=85 // pred_check
              _
            $region88: #{closed_call.16} parent=85 // pred_check_branch
              %1627 = sbr.rel (0) target = $region90
            $region89: #{closed_call.16} parent=85 // pred_region
              // Predicated region
              $region102: #{closed_call.16} parent=89 // pred_check
                _
              $region103: #{closed_call.16} parent=89 // pred_check_branch
                %1644 = sbr.rel (0) target = $region105
              $region104: #{closed_call.16} parent=89 // pred_region
                loop: start=0, step=1, limit=1
                $region106: #{closed_call.16} parent=104 // loop_pre_header
                  _
                $region107: #{closed_call.16} parent=104 // loop_header
                  %s1646 = sphi 0, %s1650
                  %p1647 = scmp.ge.s32.totalorder %s1646, 1
                  %s1651 = sphi %s1614, %s1614
                  %s1652 = sphi %s1623, %s1623
                $region108: #{closed_call.16} parent=104 // loop_header_branch
                  %1649 = sbr.rel (%p1647) target = $region112
                $region109: #{closed_call.16} parent=104 // loop_body
                  %v1653 = vld [vmem:[%s1651] sm:$0xff]
                  %1654 = vst [vmem:[%s1652] sm:$0xff] %v1653
                  %v1655 = vld [vmem:[%s1651 + $0x8] sm:$0xff]
                  %1656 = vst [vmem:[%s1652 + $0x48] sm:$0xff] %v1655
                $region110: #{closed_call.16} parent=104 // loop_footer
                  %s1650 = sadd.s32 1, %s1646
                $region111: #{closed_call.16} parent=104 // loop_footer_branch
                  %1645 = sbr.rel target = $region107
                $region112: #{closed_call.16} parent=104 // loop_exit
                  _
              $region105: #{closed_call.16} parent=89 // pred_fallthru
                _
              // Predicated region
              $region113: #{closed_call.16} parent=89 // pred_check
                _
              $region114: #{closed_call.16} parent=89 // pred_check_branch
                %1658 = sbr.rel target = $region116
              $region115: #{closed_call.16} parent=89 // pred_region
                _
              $region116: #{closed_call.16} parent=89 // pred_fallthru
                _
            $region90: #{closed_call.16} parent=85 // pred_fallthru
              _
            // Predicated region
            $region91: #{closed_call.16} parent=85 // pred_check
              _
            $region92: #{closed_call.16} parent=85 // pred_check_branch
              %1629 = sbr.rel target = $region94
            $region93: #{closed_call.16} parent=85 // pred_region
              loop: start=0, step=1, limit=1
              $region95: #{closed_call.16} parent=93 // loop_pre_header
                _
              $region96: #{closed_call.16} parent=93 // loop_header
                %s1632 = sphi 0, %s1636
                %p1633 = scmp.ge.s32.totalorder %s1632, 1
                %s1637 = sphi %s1614, %s1614
                %s1638 = sphi %s1623, %s1623
              $region97: #{closed_call.16} parent=93 // loop_header_branch
                %1635 = sbr.rel (%p1633) target = $region101
              $region98: #{closed_call.16} parent=93 // loop_body
                %v1639 = vld [vmem:[%s1637] sm:$0xff]
                %1640 = vst [vmem:[%s1638] sm:$0xff] %v1639
                %v1641 = vld [vmem:[%s1637 + $0x8] sm:$0xff]
                %1642 = vst [vmem:[%s1638 + $0x48] sm:$0xff] %v1641
              $region99: #{closed_call.16} parent=93 // loop_footer
                %s1636 = sadd.s32 1, %s1632
              $region100: #{closed_call.16} parent=93 // loop_footer_branch
                %1631 = sbr.rel target = $region96
              $region101: #{closed_call.16} parent=93 // loop_exit
                _
            $region94: #{closed_call.16} parent=85 // pred_fallthru
              _
          $region86: #{closed_call.16} parent=81 // pred_fallthru
            _
          %1659 = vnop
        $region82: #{closed_call.16} parent=73 // pred_fallthru
          _
      $region74: #{closed_call.16} parent=5 // pred_fallthru
        _
      %p1660 = scmp.le.s32.totalorder 2, %s11
      // Predicated region
      $region117: #{closed_call.16} parent=5 // pred_check
        %p1661 = pneg %p1660
      $region118: #{closed_call.16} parent=5 // pred_check_branch
        %1663 = sbr.rel (%p1661) target = $region120
      $region119: #{closed_call.16} parent=5 // pred_region
        %s1664 = ssub.s32 %s11, 2
        // Predicated region
        $region121: #{closed_call.16} parent=119 // pred_check
          %p1665 = pneg %p174
        $region122: #{closed_call.16} parent=119 // pred_check_branch
          %1667 = sbr.rel (%p1665) target = $region124
        $region123: #{closed_call.16} parent=119 // pred_region
          %s1668 = sand.u32 %s159, 1
          %s1669 = sand.u32 %s159, 1
          %s1670 = smul.addr %s1669, 16
          %s1671 = scalar_lea.vmem [#allocation3], %s1670
        $region124: #{closed_call.16} parent=119 // pred_fallthru
          _
      $region120: #{closed_call.16} parent=5 // pred_fallthru
        _
    $region6: #{closed_call.16} parent=1 // loop_footer
      %s15 = sadd.s32 1, %s11
    $region7: #{closed_call.16} parent=1 // loop_footer_branch
      %10 = sbr.rel target = $region3
    $region8: #{closed_call.16} parent=1 // loop_exit
      _

// kernel: closed_call.17
$region0: #{closed_call.17}
  #allocation0 [shape = 'u32[]', space=smem, size = 0x4, offset = 0x4, fixed_abs, tag = 'smem constant byte address 0x4 - core index']
  #allocation1 [shape = 'u32[144,128]{1,0:T(1,128)}', space=vmem, size = 0x12000, scoped, tag = 'internal scratch']
  %s0 = inlined_call_operand.vmem [shape: bf16[2,12,8,64], index: 0, kind: input, shape index: {}]
  %s1 = inlined_call_operand.vmem [shape: bf16[2,12,8,64], index: 1, kind: input, shape index: {}]
  %s2 = inlined_call_operand.vmem [shape: bf16[2,12,8,64], index: 2, kind: input, shape index: {}]
  %s3 = inlined_call_operand.vmem [shape: bf16[2,12,8,64], index: 3, kind: output, shape index: {}]
  %s4 = sld [smem:[#allocation0]]
  $region45: #{closed_call.17} parent=0
    _
  %s6 = ssub.s32 1, %s4
  %s7 = scalar_select 0, %s6, %s4
  loop: start=0, step=1, limit=4
  $region2: #{closed_call.17} parent=0 // loop_pre_header
    _
  $region3: #{closed_call.17} parent=0 // loop_header
    %s9 = sphi 0, %s13
    %p10 = scmp.ge.s32.totalorder %s9, 4
    %s19 = sphi 0, %s21
    %s22 = sphi 0, %s19
    %s23 = sphi 0, %s22
    %s39 = sphi 0, %s23
    %s45 = sphi 0, %s47
    %s48 = sphi 0, %s45
    %s49 = sphi 0, %s48
    %s65 = sphi 0, %s49
    %s71 = sphi 0, %s73
    %s74 = sphi 0, %s71
    %s75 = sphi 0, %s74
    %s91 = sphi 0, %s75
    %s97 = sphi 0, %s99
    %s100 = sphi 0, %s97
    %s101 = sphi 0, %s100
    %s117 = sphi 0, %s101
  $region4: #{closed_call.17} parent=0 // loop_header_branch
    %12 = sbr.rel (%p10) target = $region8
  $region5: #{closed_call.17} parent=0 // loop_body
    %s14 = ssub.s32 %s9, 1
    %s15 = ssub.s32 %s9, 2
    %s16 = sadd.s32 %s9, 1
    %s17 = ssub.s32 %s9, %s16
    %p18 = scmp.eq.s32.totalorder %s17, 0
    %s20 = sadd.s32 %s19, 1
    %s21 = scalar_select %p18, %s19, %s20
    %p24 = pneg %p18
    %p25 = scmp.eq.s32.totalorder %s9, 1
    %p26 = por %p24, %p25
    %p27 = scmp.ne.s32.totalorder %s19, %s22
    %p28 = scmp.eq.s32.totalorder %s9, 0
    %p29 = por %p27, %p28
    %p30 = scmp.ne.s32.totalorder %s19, %s22
    %p31 = scmp.eq.s32.totalorder %s14, 1
    %p32 = por %p30, %p31
    %p33 = scmp.ne.s32.totalorder %s22, %s23
    %p34 = scmp.eq.s32.totalorder %s14, 0
    %p35 = por %p33, %p34
    %p36 = scmp.ne.s32.totalorder %s22, %s23
    %p37 = scmp.eq.s32.totalorder %s15, 1
    %p38 = por %p36, %p37
    %p40 = scmp.ne.s32.totalorder %s23, %s39
    %p41 = scmp.eq.s32.totalorder %s15, 0
    %p42 = por %p40, %p41
    %s43 = ssub.s32 %s9, %s16
    %p44 = scmp.eq.s32.totalorder %s43, 0
    %s46 = sadd.s32 %s45, 1
    %s47 = scalar_select %p44, %s45, %s46
    %p50 = pneg %p44
    %p51 = scmp.eq.s32.totalorder %s9, 1
    %p52 = por %p50, %p51
    %p53 = scmp.ne.s32.totalorder %s45, %s48
    %p54 = scmp.eq.s32.totalorder %s9, 0
    %p55 = por %p53, %p54
    %p56 = scmp.ne.s32.totalorder %s45, %s48
    %p57 = scmp.eq.s32.totalorder %s14, 1
    %p58 = por %p56, %p57
    %p59 = scmp.ne.s32.totalorder %s48, %s49
    %p60 = scmp.eq.s32.totalorder %s14, 0
    %p61 = por %p59, %p60
    %p62 = scmp.ne.s32.totalorder %s48, %s49
    %p63 = scmp.eq.s32.totalorder %s15, 1
    %p64 = por %p62, %p63
    %p66 = scmp.ne.s32.totalorder %s49, %s65
    %p67 = scmp.eq.s32.totalorder %s15, 0
    %p68 = por %p66, %p67
    %s69 = ssub.s32 %s9, %s16
    %p70 = scmp.eq.s32.totalorder %s69, 0
    %s72 = sadd.s32 %s71, 1
    %s73 = scalar_select %p70, %s71, %s72
    %p76 = pneg %p70
    %p77 = scmp.eq.s32.totalorder %s9, 1
    %p78 = por %p76, %p77
    %p79 = scmp.ne.s32.totalorder %s71, %s74
    %p80 = scmp.eq.s32.totalorder %s9, 0
    %p81 = por %p79, %p80
    %p82 = scmp.ne.s32.totalorder %s71, %s74
    %p83 = scmp.eq.s32.totalorder %s14, 1
    %p84 = por %p82, %p83
    %p85 = scmp.ne.s32.totalorder %s74, %s75
    %p86 = scmp.eq.s32.totalorder %s14, 0
    %p87 = por %p85, %p86
    %p88 = scmp.ne.s32.totalorder %s74, %s75
    %p89 = scmp.eq.s32.totalorder %s15, 1
    %p90 = por %p88, %p89
    %p92 = scmp.ne.s32.totalorder %s75, %s91
    %p93 = scmp.eq.s32.totalorder %s15, 0
    %p94 = por %p92, %p93
    %s95 = ssub.s32 %s9, %s16
    %p96 = scmp.eq.s32.totalorder %s95, 0
    %s98 = sadd.s32 %s97, 1
    %s99 = scalar_select %p96, %s97, %s98
    %p102 = pneg %p96
    %p103 = scmp.eq.s32.totalorder %s9, 1
    %p104 = por %p102, %p103
    %p105 = scmp.ne.s32.totalorder %s97, %s100
    %p106 = scmp.eq.s32.totalorder %s9, 0
    %p107 = por %p105, %p106
    %p108 = scmp.ne.s32.totalorder %s97, %s100
    %p109 = scmp.eq.s32.totalorder %s14, 1
    %p110 = por %p108, %p109
    %p111 = scmp.ne.s32.totalorder %s100, %s101
    %p112 = scmp.eq.s32.totalorder %s14, 0
    %p113 = por %p111, %p112
    %p114 = scmp.ne.s32.totalorder %s100, %s101
    %p115 = scmp.eq.s32.totalorder %s15, 1
    %p116 = por %p114, %p115
    %p118 = scmp.ne.s32.totalorder %s101, %s117
    %p119 = scmp.eq.s32.totalorder %s15, 0
    %p120 = por %p118, %p119
    %p121 = scmp.le.s32.totalorder 1, %s9
    %p122 = scmp.lt.s32.totalorder %s9, 3
    %p123 = pnand %p121, %p122
    %p124 = pneg %p123
    // Predicated region
    $region9: #{closed_call.17} parent=5 // pred_check
      _
    $region10: #{closed_call.17} parent=5 // pred_check_branch
      %126 = sbr.rel (%p123) target = $region12
    $region11: #{closed_call.17} parent=5 // pred_region
      %s127 = ssub.s32 %s9, 1
    $region12: #{closed_call.17} parent=5 // pred_fallthru
      _
    %p128 = scmp.lt.s32.totalorder %s9, 2
    // Predicated region
    $region13: #{closed_call.17} parent=5 // pred_check
      %p129 = pneg %p128
    $region14: #{closed_call.17} parent=5 // pred_check_branch
      %131 = sbr.rel (%p129) target = $region16
    $region15: #{closed_call.17} parent=5 // pred_region
      // Predicated region
      $region17: #{closed_call.17} parent=15 // pred_check
        %p132 = pneg %p29
      $region18: #{closed_call.17} parent=15 // pred_check_branch
        %134 = sbr.rel (%p132) target = $region20
      $region19: #{closed_call.17} parent=15 // pred_region
        %p135 = scmp.lt.s32.totalorder %s9, 1
        %s136 = scalar_select %p135, %s9, 1
        %s137 = smul.addr %s136, 12
        %s138 = smul.addr %s137, 4
        %s139 = scalar_lea.vmem %s0, %s138
      $region20: #{closed_call.17} parent=15 // pred_fallthru
        _
      // Predicated region
      $region21: #{closed_call.17} parent=15 // pred_check
        %p140 = pneg %p55
      $region22: #{closed_call.17} parent=15 // pred_check_branch
        %142 = sbr.rel (%p140) target = $region24
      $region23: #{closed_call.17} parent=15 // pred_region
        %p143 = scmp.lt.s32.totalorder %s9, 1
        %s144 = scalar_select %p143, %s9, 1
        %s145 = smul.addr %s144, 12
        %s146 = smul.addr %s145, 4
        %s147 = scalar_lea.vmem %s1, %s146
      $region24: #{closed_call.17} parent=15 // pred_fallthru
        _
      // Predicated region
      $region25: #{closed_call.17} parent=15 // pred_check
        %p148 = pneg %p81
      $region26: #{closed_call.17} parent=15 // pred_check_branch
        %150 = sbr.rel (%p148) target = $region28
      $region27: #{closed_call.17} parent=15 // pred_region
        %p151 = scmp.lt.s32.totalorder %s9, 1
        %s152 = scalar_select %p151, %s9, 1
        %s153 = smul.addr %s152, 12
        %s154 = smul.addr %s153, 4
        %s155 = scalar_lea.vmem %s2, %s154
      $region28: #{closed_call.17} parent=15 // pred_fallthru
        _
    $region16: #{closed_call.17} parent=5 // pred_fallthru
      _
    %p156 = scmp.le.s32.totalorder 1, %s9
    %p157 = scmp.lt.s32.totalorder %s9, 3
    %p158 = pnand %p156, %p157
    %p159 = pneg %p158
    // Predicated region
    $region29: #{closed_call.17} parent=5 // pred_check
      _
    $region30: #{closed_call.17} parent=5 // pred_check_branch
      %161 = sbr.rel (%p158) target = $region32
    $region31: #{closed_call.17} parent=5 // pred_region
      %s162 = ssub.s32 %s9, 1
      %p163 = scmp.lt.s32.totalorder %s14, 1
      %s164 = scalar_select %p163, %s14, 1
      %s165 = smul.addr %s164, 12
      %s166 = smul.addr %s165, 4
      %s167 = scalar_lea.vmem %s0, %s166
      %p168 = pneg %p35
      %p169 = pneg %p32
      %p170 = scmp.lt.s32.totalorder %s14, 1
      %s171 = scalar_select %p170, %s14, 1
      %s172 = smul.addr %s171, 12
      %s173 = smul.addr %s172, 4
      %s174 = scalar_lea.vmem %s1, %s173
      %p175 = pneg %p61
      %p176 = pneg %p58
      %p177 = scmp.lt.s32.totalorder %s14, 1
      %s178 = scalar_select %p177, %s14, 1
      %s179 = smul.addr %s178, 12
      %s180 = smul.addr %s179, 4
      %s181 = scalar_lea.vmem %s2, %s180
      %p182 = pneg %p87
      %p183 = pneg %p84
      %p184 = pneg %p113
      %p185 = pneg %p110
      %p186 = scmp.lt.s32.totalorder %s14, 1
      %s187 = scalar_select %p186, %s14, 1
      %s188 = smul.addr %s187, 12
      %s189 = smul.addr %s188, 4
      %s190 = scalar_lea.vmem %s3, %s189
      %p191 = scmp.lt.s32.totalorder %s14, 1
      %s192 = scalar_select %p191, %s14, 1
      %s193 = smul.addr %s192, 12
      %s194 = smul.addr %s193, 4
      %s195 = scalar_lea.vmem %s0, %s194
      %p196 = scmp.lt.s32.totalorder %s14, 1
      %s197 = scalar_select %p196, %s14, 1
      %s198 = smul.addr %s197, 12
      %s199 = smul.addr %s198, 4
      %s200 = scalar_lea.vmem %s1, %s199
      %p201 = scmp.lt.s32.totalorder %s14, 1
      %s202 = scalar_select %p201, %s14, 1
      %s203 = smul.addr %s202, 12
      %s204 = smul.addr %s203, 4
      %s205 = scalar_lea.vmem %s2, %s204
      %p206 = scmp.lt.s32.totalorder %s14, 1
      %s207 = scalar_select %p206, %s14, 1
      %s208 = smul.addr %s207, 12
      %s209 = smul.addr %s208, 4
      %s210 = scalar_lea.vmem %s3, %s209
      %v212 = vld [vmem:[%s195] sm:$0xf]
      %v213 = vld [vmem:[%s195 + $0x4] sm:$0xf]
      %v214 = vld [vmem:[%s195 + $0x8] sm:$0xf]
      %v215 = vld [vmem:[%s195 + $0xc] sm:$0xf]
      %v216 = vld [vmem:[%s195 + $0x10] sm:$0xf]
      %v217 = vld [vmem:[%s195 + $0x14] sm:$0xf]
      %v218 = vld [vmem:[%s195 + $0x18] sm:$0xf]
      %v219 = vld [vmem:[%s195 + $0x1c] sm:$0xf]
      %v220 = vld [vmem:[%s195 + $0x20] sm:$0xf]
      %v221 = vld [vmem:[%s195 + $0x24] sm:$0xf]
      %v222 = vld [vmem:[%s195 + $0x28] sm:$0xf]
      %v223 = vld [vmem:[%s195 + $0x2c] sm:$0xf]
      %v224 = vld [vmem:[%s200] sm:$0xf]
      %v225 = vld [vmem:[%s200 + $0x4] sm:$0xf]
      %v226 = vld [vmem:[%s200 + $0x8] sm:$0xf]
      %v227 = vld [vmem:[%s200 + $0xc] sm:$0xf]
      %v228 = vld [vmem:[%s200 + $0x10] sm:$0xf]
      %v229 = vld [vmem:[%s200 + $0x14] sm:$0xf]
      %v230 = vld [vmem:[%s200 + $0x18] sm:$0xf]
      %v231 = vld [vmem:[%s200 + $0x1c] sm:$0xf]
      %v232 = vld [vmem:[%s200 + $0x20] sm:$0xf]
      %v233 = vld [vmem:[%s200 + $0x24] sm:$0xf]
      %v234 = vld [vmem:[%s200 + $0x28] sm:$0xf]
      %v235 = vld [vmem:[%s200 + $0x2c] sm:$0xf]
      %v236 = vld [vmem:[%s205] sm:$0xf]
      %v237 = vld [vmem:[%s205 + $0x4] sm:$0xf]
      %v238 = vld [vmem:[%s205 + $0x8] sm:$0xf]
      %v239 = vld [vmem:[%s205 + $0xc] sm:$0xf]
      %v240 = vld [vmem:[%s205 + $0x10] sm:$0xf]
      %v241 = vld [vmem:[%s205 + $0x14] sm:$0xf]
      %v242 = vld [vmem:[%s205 + $0x18] sm:$0xf]
      %v243 = vld [vmem:[%s205 + $0x1c] sm:$0xf]
      %v244 = vld [vmem:[%s205 + $0x20] sm:$0xf]
      %v245 = vld [vmem:[%s205 + $0x24] sm:$0xf]
      %v246 = vld [vmem:[%s205 + $0x28] sm:$0xf]
      %v247 = vld [vmem:[%s205 + $0x2c] sm:$0xf]
      %vm248 = vcmask 523264
      %v250 = vsel %vm248, %v212, 0
      %v253 = vsel %vm248, %v224, 0
      %255 = vmatprep.subr.bf16.mxu0 0
      %256 = vmatpush1.bf16.xpose.msra.mxu0 %v253
      %257 = vmatprep.subr.bf16.mxu0 0
      %258 = vmatpush1.bf16.xpose.msra.mxu0 0
      %259 = vmatprep.subr.bf16.mxu0 0
      %260 = vmatpush1.bf16.xpose.msra.mxu0 0
      %261 = vmatprep.subr.bf16.mxu0 0
      %262 = vmatpush1.bf16.xpose.msra.mxu0 0
      %263 = vmatprep.subr.bf16.mxu0 0
      %264 = vmatpush1.bf16.xpose.msra.mxu0 0
      %265 = vmatprep.subr.bf16.mxu0 0
      %266 = vmatpush1.bf16.xpose.msra.mxu0 0
      %267 = vmatprep.subr.bf16.mxu0 0
      %268 = vmatpush1.bf16.xpose.msra.mxu0 0
      %269 = vmatprep.subr.bf16.mxu0 0
      %270 = vmatpush1.bf16.xpose.msra.mxu0 0
      %271 = vmatprep.subr.bf16.mxu0 0
      %272 = vmatpush1.bf16.xpose.msra.mxu0 0
      %273 = vmatprep.subr.bf16.mxu0 0
      %274 = vmatpush1.bf16.xpose.msra.mxu0 0
      %275 = vmatprep.subr.bf16.mxu0 0
      %276 = vmatpush1.bf16.xpose.msra.mxu0 0
      %277 = vmatprep.subr.bf16.mxu0 0
      %278 = vmatpush1.bf16.xpose.msra.mxu0 0
      %279 = vmatprep.subr.bf16.mxu0 0
      %280 = vmatpush1.bf16.xpose.msra.mxu0 0
      %281 = vmatprep.subr.bf16.mxu0 0
      %282 = vmatpush1.bf16.xpose.msra.mxu0 0
      %283 = vmatprep.subr.bf16.mxu0 0
      %284 = vmatpush1.bf16.xpose.msra.mxu0 0
      %285 = vmatprep.subr.bf16.mxu0 0
      %286 = vmatpush1.bf16.xpose.msra.mxu0 0
      %287 = vmatprep.mubr.bf16.mxu0 0
      %288 = vmatmul.mubr.bf16.gmra.mrb[0].mxu0 %v250
      %v289 = vpop.f32.mrb[0].mxu0
      %v290 = vadd.f32 0.0, %v289
      %v291 = vpop.f32.mrb[0].mxu0
      %v292 = vpop.f32.mrb[0].mxu0
      %v293 = vpop.f32.mrb[0].mxu0
      %294 = vdwg.mxu0
      %v296 = vsel %vm248, %v213, 0
      %v299 = vsel %vm248, %v225, 0
      %301 = vmatprep.subr.bf16.mxu0 0
      %302 = vmatpush1.bf16.xpose.msra.mxu0 %v299
      %303 = vmatprep.subr.bf16.mxu0 0
      %304 = vmatpush1.bf16.xpose.msra.mxu0 0
      %305 = vmatprep.subr.bf16.mxu0 0
      %306 = vmatpush1.bf16.xpose.msra.mxu0 0
      %307 = vmatprep.subr.bf16.mxu0 0
      %308 = vmatpush1.bf16.xpose.msra.mxu0 0
      %309 = vmatprep.subr.bf16.mxu0 0
      %310 = vmatpush1.bf16.xpose.msra.mxu0 0
      %311 = vmatprep.subr.bf16.mxu0 0
      %312 = vmatpush1.bf16.xpose.msra.mxu0 0
      %313 = vmatprep.subr.bf16.mxu0 0
      %314 = vmatpush1.bf16.xpose.msra.mxu0 0
      %315 = vmatprep.subr.bf16.mxu0 0
      %316 = vmatpush1.bf16.xpose.msra.mxu0 0
      %317 = vmatprep.subr.bf16.mxu0 0
      %318 = vmatpush1.bf16.xpose.msra.mxu0 0
      %319 = vmatprep.subr.bf16.mxu0 0
      %320 = vmatpush1.bf16.xpose.msra.mxu0 0
      %321 = vmatprep.subr.bf16.mxu0 0
      %322 = vmatpush1.bf16.xpose.msra.mxu0 0
      %323 = vmatprep.subr.bf16.mxu0 0
      %324 = vmatpush1.bf16.xpose.msra.mxu0 0
      %325 = vmatprep.subr.bf16.mxu0 0
      %326 = vmatpush1.bf16.xpose.msra.mxu0 0
      %327 = vmatprep.subr.bf16.mxu0 0
      %328 = vmatpush1.bf16.xpose.msra.mxu0 0
      %329 = vmatprep.subr.bf16.mxu0 0
      %330 = vmatpush1.bf16.xpose.msra.mxu0 0
      %331 = vmatprep.subr.bf16.mxu0 0
      %332 = vmatpush1.bf16.xpose.msra.mxu0 0
      %333 = vmatprep.mubr.bf16.mxu0 0
      %334 = vmatmul.mubr.bf16.gmra.mrb[0].mxu0 %v296
      %v335 = vpop.f32.mrb[0].mxu0
      %v336 = vadd.f32 0.0, %v335
      %v337 = vpop.f32.mrb[0].mxu0
      %v338 = vpop.f32.mrb[0].mxu0
      %v339 = vpop.f32.mrb[0].mxu0
      %340 = vdwg.mxu0
      %v342 = vsel %vm248, %v214, 0
      %v345 = vsel %vm248, %v226, 0
      %347 = vmatprep.subr.bf16.mxu0 0
      %348 = vmatpush1.bf16.xpose.msra.mxu0 %v345
      %349 = vmatprep.subr.bf16.mxu0 0
      %350 = vmatpush1.bf16.xpose.msra.mxu0 0
      %351 = vmatprep.subr.bf16.mxu0 0
      %352 = vmatpush1.bf16.xpose.msra.mxu0 0
      %353 = vmatprep.subr.bf16.mxu0 0
      %354 = vmatpush1.bf16.xpose.msra.mxu0 0
      %355 = vmatprep.subr.bf16.mxu0 0
      %356 = vmatpush1.bf16.xpose.msra.mxu0 0
      %357 = vmatprep.subr.bf16.mxu0 0
      %358 = vmatpush1.bf16.xpose.msra.mxu0 0
      %359 = vmatprep.subr.bf16.mxu0 0
      %360 = vmatpush1.bf16.xpose.msra.mxu0 0
      %361 = vmatprep.subr.bf16.mxu0 0
      %362 = vmatpush1.bf16.xpose.msra.mxu0 0
      %363 = vmatprep.subr.bf16.mxu0 0
      %364 = vmatpush1.bf16.xpose.msra.mxu0 0
      %365 = vmatprep.subr.bf16.mxu0 0
      %366 = vmatpush1.bf16.xpose.msra.mxu0 0
      %367 = vmatprep.subr.bf16.mxu0 0
      %368 = vmatpush1.bf16.xpose.msra.mxu0 0
      %369 = vmatprep.subr.bf16.mxu0 0
      %370 = vmatpush1.bf16.xpose.msra.mxu0 0
      %371 = vmatprep.subr.bf16.mxu0 0
      %372 = vmatpush1.bf16.xpose.msra.mxu0 0
      %373 = vmatprep.subr.bf16.mxu0 0
      %374 = vmatpush1.bf16.xpose.msra.mxu0 0
      %375 = vmatprep.subr.bf16.mxu0 0
      %376 = vmatpush1.bf16.xpose.msra.mxu0 0
      %377 = vmatprep.subr.bf16.mxu0 0
      %378 = vmatpush1.bf16.xpose.msra.mxu0 0
      %379 = vmatprep.mubr.bf16.mxu0 0
      %380 = vmatmul.mubr.bf16.gmra.mrb[0].mxu0 %v342
      %v381 = vpop.f32.mrb[0].mxu0
      %v382 = vadd.f32 0.0, %v381
      %v383 = vpop.f32.mrb[0].mxu0
      %v384 = vpop.f32.mrb[0].mxu0
      %v385 = vpop.f32.mrb[0].mxu0
      %386 = vdwg.mxu0
      %v388 = vsel %vm248, %v215, 0
      %v391 = vsel %vm248, %v227, 0
      %393 = vmatprep.subr.bf16.mxu0 0
      %394 = vmatpush1.bf16.xpose.msra.mxu0 %v391
      %395 = vmatprep.subr.bf16.mxu0 0
      %396 = vmatpush1.bf16.xpose.msra.mxu0 0
      %397 = vmatprep.subr.bf16.mxu0 0
      %398 = vmatpush1.bf16.xpose.msra.mxu0 0
      %399 = vmatprep.subr.bf16.mxu0 0
      %400 = vmatpush1.bf16.xpose.msra.mxu0 0
      %401 = vmatprep.subr.bf16.mxu0 0
      %402 = vmatpush1.bf16.xpose.msra.mxu0 0
      %403 = vmatprep.subr.bf16.mxu0 0
      %404 = vmatpush1.bf16.xpose.msra.mxu0 0
      %405 = vmatprep.subr.bf16.mxu0 0
      %406 = vmatpush1.bf16.xpose.msra.mxu0 0
      %407 = vmatprep.subr.bf16.mxu0 0
      %408 = vmatpush1.bf16.xpose.msra.mxu0 0
      %409 = vmatprep.subr.bf16.mxu0 0
      %410 = vmatpush1.bf16.xpose.msra.mxu0 0
      %411 = vmatprep.subr.bf16.mxu0 0
      %412 = vmatpush1.bf16.xpose.msra.mxu0 0
      %413 = vmatprep.subr.bf16.mxu0 0
      %414 = vmatpush1.bf16.xpose.msra.mxu0 0
      %415 = vmatprep.subr.bf16.mxu0 0
      %416 = vmatpush1.bf16.xpose.msra.mxu0 0
      %417 = vmatprep.subr.bf16.mxu0 0
      %418 = vmatpush1.bf16.xpose.msra.mxu0 0
      %419 = vmatprep.subr.bf16.mxu0 0
      %420 = vmatpush1.bf16.xpose.msra.mxu0 0
      %421 = vmatprep.subr.bf16.mxu0 0
      %422 = vmatpush1.bf16.xpose.msra.mxu0 0
      %423 = vmatprep.subr.bf16.mxu0 0
      %424 = vmatpush1.bf16.xpose.msra.mxu0 0
      %425 = vmatprep.mubr.bf16.mxu0 0
      %426 = vmatmul.mubr.bf16.gmra.mrb[0].mxu0 %v388
      %v427 = vpop.f32.mrb[0].mxu0
      %v428 = vadd.f32 0.0, %v427
      %v429 = vpop.f32.mrb[0].mxu0
      %v430 = vpop.f32.mrb[0].mxu0
      %v431 = vpop.f32.mrb[0].mxu0
      %432 = vdwg.mxu0
      %v434 = vsel %vm248, %v216, 0
      %v437 = vsel %vm248, %v228, 0
      %439 = vmatprep.subr.bf16.mxu0 0
      %440 = vmatpush1.bf16.xpose.msra.mxu0 %v437
      %441 = vmatprep.subr.bf16.mxu0 0
      %442 = vmatpush1.bf16.xpose.msra.mxu0 0
      %443 = vmatprep.subr.bf16.mxu0 0
      %444 = vmatpush1.bf16.xpose.msra.mxu0 0
      %445 = vmatprep.subr.bf16.mxu0 0
      %446 = vmatpush1.bf16.xpose.msra.mxu0 0
      %447 = vmatprep.subr.bf16.mxu0 0
      %448 = vmatpush1.bf16.xpose.msra.mxu0 0
      %449 = vmatprep.subr.bf16.mxu0 0
      %450 = vmatpush1.bf16.xpose.msra.mxu0 0
      %451 = vmatprep.subr.bf16.mxu0 0
      %452 = vmatpush1.bf16.xpose.msra.mxu0 0
      %453 = vmatprep.subr.bf16.mxu0 0
      %454 = vmatpush1.bf16.xpose.msra.mxu0 0
      %455 = vmatprep.subr.bf16.mxu0 0
      %456 = vmatpush1.bf16.xpose.msra.mxu0 0
      %457 = vmatprep.subr.bf16.mxu0 0
      %458 = vmatpush1.bf16.xpose.msra.mxu0 0
      %459 = vmatprep.subr.bf16.mxu0 0
      %460 = vmatpush1.bf16.xpose.msra.mxu0 0
      %461 = vmatprep.subr.bf16.mxu0 0
      %462 = vmatpush1.bf16.xpose.msra.mxu0 0
      %463 = vmatprep.subr.bf16.mxu0 0
      %464 = vmatpush1.bf16.xpose.msra.mxu0 0
      %465 = vmatprep.subr.bf16.mxu0 0
      %466 = vmatpush1.bf16.xpose.msra.mxu0 0
      %467 = vmatprep.subr.bf16.mxu0 0
      %468 = vmatpush1.bf16.xpose.msra.mxu0 0
      %469 = vmatprep.subr.bf16.mxu0 0
      %470 = vmatpush1.bf16.xpose.msra.mxu0 0
      %471 = vmatprep.mubr.bf16.mxu0 0
      %472 = vmatmul.mubr.bf16.gmra.mrb[0].mxu0 %v434
      %v473 = vpop.f32.mrb[0].mxu0
      %v474 = vadd.f32 0.0, %v473
      %v475 = vpop.f32.mrb[0].mxu0
      %v476 = vpop.f32.mrb[0].mxu0
      %v477 = vpop.f32.mrb[0].mxu0
      %478 = vdwg.mxu0
      %v480 = vsel %vm248, %v217, 0
      %v483 = vsel %vm248, %v229, 0
      %485 = vmatprep.subr.bf16.mxu0 0
      %486 = vmatpush1.bf16.xpose.msra.mxu0 %v483
      %487 = vmatprep.subr.bf16.mxu0 0
      %488 = vmatpush1.bf16.xpose.msra.mxu0 0
      %489 = vmatprep.subr.bf16.mxu0 0
      %490 = vmatpush1.bf16.xpose.msra.mxu0 0
      %491 = vmatprep.subr.bf16.mxu0 0
      %492 = vmatpush1.bf16.xpose.msra.mxu0 0
      %493 = vmatprep.subr.bf16.mxu0 0
      %494 = vmatpush1.bf16.xpose.msra.mxu0 0
      %495 = vmatprep.subr.bf16.mxu0 0
      %496 = vmatpush1.bf16.xpose.msra.mxu0 0
      %497 = vmatprep.subr.bf16.mxu0 0
      %498 = vmatpush1.bf16.xpose.msra.mxu0 0
      %499 = vmatprep.subr.bf16.mxu0 0
      %500 = vmatpush1.bf16.xpose.msra.mxu0 0
      %501 = vmatprep.subr.bf16.mxu0 0
      %502 = vmatpush1.bf16.xpose.msra.mxu0 0
      %503 = vmatprep.subr.bf16.mxu0 0
      %504 = vmatpush1.bf16.xpose.msra.mxu0 0
      %505 = vmatprep.subr.bf16.mxu0 0
      %506 = vmatpush1.bf16.xpose.msra.mxu0 0
      %507 = vmatprep.subr.bf16.mxu0 0
      %508 = vmatpush1.bf16.xpose.msra.mxu0 0
      %509 = vmatprep.subr.bf16.mxu0 0
      %510 = vmatpush1.bf16.xpose.msra.mxu0 0
      %511 = vmatprep.subr.bf16.mxu0 0
      %512 = vmatpush1.bf16.xpose.msra.mxu0 0
      %513 = vmatprep.subr.bf16.mxu0 0
      %514 = vmatpush1.bf16.xpose.msra.mxu0 0
      %515 = vmatprep.subr.bf16.mxu0 0
      %516 = vmatpush1.bf16.xpose.msra.mxu0 0
      %517 = vmatprep.mubr.bf16.mxu0 0
      %518 = vmatmul.mubr.bf16.gmra.mrb[0].mxu0 %v480
      %v519 = vpop.f32.mrb[0].mxu0
      %v520 = vadd.f32 0.0, %v519
      %v521 = vpop.f32.mrb[0].mxu0
      %v522 = vpop.f32.mrb[0].mxu0
      %v523 = vpop.f32.mrb[0].mxu0
      %524 = vdwg.mxu0
      %v526 = vsel %vm248, %v218, 0
      %v529 = vsel %vm248, %v230, 0
      %531 = vmatprep.subr.bf16.mxu0 0
      %532 = vmatpush1.bf16.xpose.msra.mxu0 %v529
      %533 = vmatprep.subr.bf16.mxu0 0
      %534 = vmatpush1.bf16.xpose.msra.mxu0 0
      %535 = vmatprep.subr.bf16.mxu0 0
      %536 = vmatpush1.bf16.xpose.msra.mxu0 0
      %537 = vmatprep.subr.bf16.mxu0 0
      %538 = vmatpush1.bf16.xpose.msra.mxu0 0
      %539 = vmatprep.subr.bf16.mxu0 0
      %540 = vmatpush1.bf16.xpose.msra.mxu0 0
      %541 = vmatprep.subr.bf16.mxu0 0
      %542 = vmatpush1.bf16.xpose.msra.mxu0 0
      %543 = vmatprep.subr.bf16.mxu0 0
      %544 = vmatpush1.bf16.xpose.msra.mxu0 0
      %545 = vmatprep.subr.bf16.mxu0 0
      %546 = vmatpush1.bf16.xpose.msra.mxu0 0
      %547 = vmatprep.subr.bf16.mxu0 0
      %548 = vmatpush1.bf16.xpose.msra.mxu0 0
      %549 = vmatprep.subr.bf16.mxu0 0
      %550 = vmatpush1.bf16.xpose.msra.mxu0 0
      %551 = vmatprep.subr.bf16.mxu0 0
      %552 = vmatpush1.bf16.xpose.msra.mxu0 0
      %553 = vmatprep.subr.bf16.mxu0 0
      %554 = vmatpush1.bf16.xpose.msra.mxu0 0
      %555 = vmatprep.subr.bf16.mxu0 0
      %556 = vmatpush1.bf16.xpose.msra.mxu0 0
      %557 = vmatprep.subr.bf16.mxu0 0
      %558 = vmatpush1.bf16.xpose.msra.mxu0 0
      %559 = vmatprep.subr.bf16.mxu0 0
      %560 = vmatpush1.bf16.xpose.msra.mxu0 0
      %561 = vmatprep.subr.bf16.mxu0 0
      %562 = vmatpush1.bf16.xpose.msra.mxu0 0
      %563 = vmatprep.mubr.bf16.mxu0 0
      %564 = vmatmul.mubr.bf16.gmra.mrb[0].mxu0 %v526
      %v565 = vpop.f32.mrb[0].mxu0
      %v566 = vadd.f32 0.0, %v565
      %v567 = vpop.f32.mrb[0].mxu0
      %v568 = vpop.f32.mrb[0].mxu0
      %v569 = vpop.f32.mrb[0].mxu0
      %570 = vdwg.mxu0
      %v572 = vsel %vm248, %v219, 0
      %v575 = vsel %vm248, %v231, 0
      %577 = vmatprep.subr.bf16.mxu0 0
      %578 = vmatpush1.bf16.xpose.msra.mxu0 %v575
      %579 = vmatprep.subr.bf16.mxu0 0
      %580 = vmatpush1.bf16.xpose.msra.mxu0 0
      %581 = vmatprep.subr.bf16.mxu0 0
      %582 = vmatpush1.bf16.xpose.msra.mxu0 0
      %583 = vmatprep.subr.bf16.mxu0 0
      %584 = vmatpush1.bf16.xpose.msra.mxu0 0
      %585 = vmatprep.subr.bf16.mxu0 0
      %586 = vmatpush1.bf16.xpose.msra.mxu0 0
      %587 = vmatprep.subr.bf16.mxu0 0
      %588 = vmatpush1.bf16.xpose.msra.mxu0 0
      %589 = vmatprep.subr.bf16.mxu0 0
      %590 = vmatpush1.bf16.xpose.msra.mxu0 0
      %591 = vmatprep.subr.bf16.mxu0 0
      %592 = vmatpush1.bf16.xpose.msra.mxu0 0
      %593 = vmatprep.subr.bf16.mxu0 0
      %594 = vmatpush1.bf16.xpose.msra.mxu0 0
      %595 = vmatprep.subr.bf16.mxu0 0
      %596 = vmatpush1.bf16.xpose.msra.mxu0 0
      %597 = vmatprep.subr.bf16.mxu0 0
      %598 = vmatpush1.bf16.xpose.msra.mxu0 0
      %599 = vmatprep.subr.bf16.mxu0 0
      %600 = vmatpush1.bf16.xpose.msra.mxu0 0
      %601 = vmatprep.subr.bf16.mxu0 0
      %602 = vmatpush1.bf16.xpose.msra.mxu0 0
      %603 = vmatprep.subr.bf16.mxu0 0
      %604 = vmatpush1.bf16.xpose.msra.mxu0 0
      %605 = vmatprep.subr.bf16.mxu0 0
      %606 = vmatpush1.bf16.xpose.msra.mxu0 0
      %607 = vmatprep.subr.bf16.mxu0 0
      %608 = vmatpush1.bf16.xpose.msra.mxu0 0
      %609 = vmatprep.mubr.bf16.mxu0 0
      %610 = vmatmul.mubr.bf16.gmra.mrb[0].mxu0 %v572
      %v611 = vpop.f32.mrb[0].mxu0
      %v612 = vadd.f32 0.0, %v611
      %v613 = vpop.f32.mrb[0].mxu0
      %v614 = vpop.f32.mrb[0].mxu0
      %v615 = vpop.f32.mrb[0].mxu0
      %616 = vdwg.mxu0
      %v618 = vsel %vm248, %v220, 0
      %v621 = vsel %vm248, %v232, 0
      %623 = vmatprep.subr.bf16.mxu0 0
      %624 = vmatpush1.bf16.xpose.msra.mxu0 %v621
      %625 = vmatprep.subr.bf16.mxu0 0
      %626 = vmatpush1.bf16.xpose.msra.mxu0 0
      %627 = vmatprep.subr.bf16.mxu0 0
      %628 = vmatpush1.bf16.xpose.msra.mxu0 0
      %629 = vmatprep.subr.bf16.mxu0 0
      %630 = vmatpush1.bf16.xpose.msra.mxu0 0
      %631 = vmatprep.subr.bf16.mxu0 0
      %632 = vmatpush1.bf16.xpose.msra.mxu0 0
      %633 = vmatprep.subr.bf16.mxu0 0
      %634 = vmatpush1.bf16.xpose.msra.mxu0 0
      %635 = vmatprep.subr.bf16.mxu0 0
      %636 = vmatpush1.bf16.xpose.msra.mxu0 0
      %637 = vmatprep.subr.bf16.mxu0 0
      %638 = vmatpush1.bf16.xpose.msra.mxu0 0
      %639 = vmatprep.subr.bf16.mxu0 0
      %640 = vmatpush1.bf16.xpose.msra.mxu0 0
      %641 = vmatprep.subr.bf16.mxu0 0
      %642 = vmatpush1.bf16.xpose.msra.mxu0 0
      %643 = vmatprep.subr.bf16.mxu0 0
      %644 = vmatpush1.bf16.xpose.msra.mxu0 0
      %645 = vmatprep.subr.bf16.mxu0 0
      %646 = vmatpush1.bf16.xpose.msra.mxu0 0
      %647 = vmatprep.subr.bf16.mxu0 0
      %648 = vmatpush1.bf16.xpose.msra.mxu0 0
      %649 = vmatprep.subr.bf16.mxu0 0
      %650 = vmatpush1.bf16.xpose.msra.mxu0 0
      %651 = vmatprep.subr.bf16.mxu0 0
      %652 = vmatpush1.bf16.xpose.msra.mxu0 0
      %653 = vmatprep.subr.bf16.mxu0 0
      %654 = vmatpush1.bf16.xpose.msra.mxu0 0
      %655 = vmatprep.mubr.bf16.mxu0 0
      %656 = vmatmul.mubr.bf16.gmra.mrb[0].mxu0 %v618
      %v657 = vpop.f32.mrb[0].mxu0
      %v658 = vadd.f32 0.0, %v657
      %v659 = vpop.f32.mrb[0].mxu0
      %v660 = vpop.f32.mrb[0].mxu0
      %v661 = vpop.f32.mrb[0].mxu0
      %662 = vdwg.mxu0
      %v664 = vsel %vm248, %v221, 0
      %v667 = vsel %vm248, %v233, 0
      %669 = vmatprep.subr.bf16.mxu0 0
      %670 = vmatpush1.bf16.xpose.msra.mxu0 %v667
      %671 = vmatprep.subr.bf16.mxu0 0
      %672 = vmatpush1.bf16.xpose.msra.mxu0 0
      %673 = vmatprep.subr.bf16.mxu0 0
      %674 = vmatpush1.bf16.xpose.msra.mxu0 0
      %675 = vmatprep.subr.bf16.mxu0 0
      %676 = vmatpush1.bf16.xpose.msra.mxu0 0
      %677 = vmatprep.subr.bf16.mxu0 0
      %678 = vmatpush1.bf16.xpose.msra.mxu0 0
      %679 = vmatprep.subr.bf16.mxu0 0
      %680 = vmatpush1.bf16.xpose.msra.mxu0 0
      %681 = vmatprep.subr.bf16.mxu0 0
      %682 = vmatpush1.bf16.xpose.msra.mxu0 0
      %683 = vmatprep.subr.bf16.mxu0 0
      %684 = vmatpush1.bf16.xpose.msra.mxu0 0
      %685 = vmatprep.subr.bf16.mxu0 0
      %686 = vmatpush1.bf16.xpose.msra.mxu0 0
      %687 = vmatprep.subr.bf16.mxu0 0
      %688 = vmatpush1.bf16.xpose.msra.mxu0 0
      %689 = vmatprep.subr.bf16.mxu0 0
      %690 = vmatpush1.bf16.xpose.msra.mxu0 0
      %691 = vmatprep.subr.bf16.mxu0 0
      %692 = vmatpush1.bf16.xpose.msra.mxu0 0
      %693 = vmatprep.subr.bf16.mxu0 0
      %694 = vmatpush1.bf16.xpose.msra.mxu0 0
      %695 = vmatprep.subr.bf16.mxu0 0
      %696 = vmatpush1.bf16.xpose.msra.mxu0 0
      %697 = vmatprep.subr.bf16.mxu0 0
      %698 = vmatpush1.bf16.xpose.msra.mxu0 0
      %699 = vmatprep.subr.bf16.mxu0 0
      %700 = vmatpush1.bf16.xpose.msra.mxu0 0
      %701 = vmatprep.mubr.bf16.mxu0 0
      %702 = vmatmul.mubr.bf16.gmra.mrb[0].mxu0 %v664
      %v703 = vpop.f32.mrb[0].mxu0
      %v704 = vadd.f32 0.0, %v703
      %v705 = vpop.f32.mrb[0].mxu0
      %v706 = vpop.f32.mrb[0].mxu0
      %v707 = vpop.f32.mrb[0].mxu0
      %708 = vdwg.mxu0
      %v710 = vsel %vm248, %v222, 0
      %v713 = vsel %vm248, %v234, 0
      %715 = vmatprep.subr.bf16.mxu0 0
      %716 = vmatpush1.bf16.xpose.msra.mxu0 %v713
      %717 = vmatprep.subr.bf16.mxu0 0
      %718 = vmatpush1.bf16.xpose.msra.mxu0 0
      %719 = vmatprep.subr.bf16.mxu0 0
      %720 = vmatpush1.bf16.xpose.msra.mxu0 0
      %721 = vmatprep.subr.bf16.mxu0 0
      %722 = vmatpush1.bf16.xpose.msra.mxu0 0
      %723 = vmatprep.subr.bf16.mxu0 0
      %724 = vmatpush1.bf16.xpose.msra.mxu0 0
      %725 = vmatprep.subr.bf16.mxu0 0
      %726 = vmatpush1.bf16.xpose.msra.mxu0 0
      %727 = vmatprep.subr.bf16.mxu0 0
      %728 = vmatpush1.bf16.xpose.msra.mxu0 0
      %729 = vmatprep.subr.bf16.mxu0 0
      %730 = vmatpush1.bf16.xpose.msra.mxu0 0
      %731 = vmatprep.subr.bf16.mxu0 0
      %732 = vmatpush1.bf16.xpose.msra.mxu0 0
      %733 = vmatprep.subr.bf16.mxu0 0
      %734 = vmatpush1.bf16.xpose.msra.mxu0 0
      %735 = vmatprep.subr.bf16.mxu0 0
      %736 = vmatpush1.bf16.xpose.msra.mxu0 0
      %737 = vmatprep.subr.bf16.mxu0 0
      %738 = vmatpush1.bf16.xpose.msra.mxu0 0
      %739 = vmatprep.subr.bf16.mxu0 0
      %740 = vmatpush1.bf16.xpose.msra.mxu0 0
      %741 = vmatprep.subr.bf16.mxu0 0
      %742 = vmatpush1.bf16.xpose.msra.mxu0 0
      %743 = vmatprep.subr.bf16.mxu0 0
      %744 = vmatpush1.bf16.xpose.msra.mxu0 0
      %745 = vmatprep.subr.bf16.mxu0 0
      %746 = vmatpush1.bf16.xpose.msra.mxu0 0
      %747 = vmatprep.mubr.bf16.mxu0 0
      %748 = vmatmul.mubr.bf16.gmra.mrb[0].mxu0 %v710
      %v749 = vpop.f32.mrb[0].mxu0
      %v750 = vadd.f32 0.0, %v749
      %v751 = vpop.f32.mrb[0].mxu0
      %v752 = vpop.f32.mrb[0].mxu0
      %v753 = vpop.f32.mrb[0].mxu0
      %754 = vdwg.mxu0
      %v756 = vsel %vm248, %v223, 0
      %v759 = vsel %vm248, %v235, 0
      %761 = vmatprep.subr.bf16.mxu0 0
      %762 = vmatpush1.bf16.xpose.msra.mxu0 %v759
      %763 = vmatprep.subr.bf16.mxu0 0
      %764 = vmatpush1.bf16.xpose.msra.mxu0 0
      %765 = vmatprep.subr.bf16.mxu0 0
      %766 = vmatpush1.bf16.xpose.msra.mxu0 0
      %767 = vmatprep.subr.bf16.mxu0 0
      %768 = vmatpush1.bf16.xpose.msra.mxu0 0
      %769 = vmatprep.subr.bf16.mxu0 0
      %770 = vmatpush1.bf16.xpose.msra.mxu0 0
      %771 = vmatprep.subr.bf16.mxu0 0
      %772 = vmatpush1.bf16.xpose.msra.mxu0 0
      %773 = vmatprep.subr.bf16.mxu0 0
      %774 = vmatpush1.bf16.xpose.msra.mxu0 0
      %775 = vmatprep.subr.bf16.mxu0 0
      %776 = vmatpush1.bf16.xpose.msra.mxu0 0
      %777 = vmatprep.subr.bf16.mxu0 0
      %778 = vmatpush1.bf16.xpose.msra.mxu0 0
      %779 = vmatprep.subr.bf16.mxu0 0
      %780 = vmatpush1.bf16.xpose.msra.mxu0 0
      %781 = vmatprep.subr.bf16.mxu0 0
      %782 = vmatpush1.bf16.xpose.msra.mxu0 0
      %783 = vmatprep.subr.bf16.mxu0 0
      %784 = vmatpush1.bf16.xpose.msra.mxu0 0
      %785 = vmatprep.subr.bf16.mxu0 0
      %786 = vmatpush1.bf16.xpose.msra.mxu0 0
      %787 = vmatprep.subr.bf16.mxu0 0
      %788 = vmatpush1.bf16.xpose.msra.mxu0 0
      %789 = vmatprep.subr.bf16.mxu0 0
      %790 = vmatpush1.bf16.xpose.msra.mxu0 0
      %791 = vmatprep.subr.bf16.mxu0 0
      %792 = vmatpush1.bf16.xpose.msra.mxu0 0
      %793 = vmatprep.mubr.bf16.mxu0 0
      %794 = vmatmul.mubr.bf16.gmra.mrb[0].mxu0 %v756
      %v795 = vpop.f32.mrb[0].mxu0
      %v796 = vadd.f32 0.0, %v795
      %v797 = vpop.f32.mrb[0].mxu0
      %v798 = vpop.f32.mrb[0].mxu0
      %v799 = vpop.f32.mrb[0].mxu0
      %800 = vdwg.mxu0
      %v801 = vmul.f32 %v290, 0.125
      %v802 = vmul.f32 %v336, 0.125
      %v803 = vmul.f32 %v382, 0.125
      %v804 = vmul.f32 %v428, 0.125
      %v805 = vmul.f32 %v474, 0.125
      %v806 = vmul.f32 %v520, 0.125
      %v807 = vmul.f32 %v566, 0.125
      %v808 = vmul.f32 %v612, 0.125
      %v809 = vmul.f32 %v658, 0.125
      %v810 = vmul.f32 %v704, 0.125
      %v811 = vmul.f32 %v750, 0.125
      %v812 = vmul.f32 %v796, 0.125
      %v813 = vlaneseq
      %v814 = vand.u32 %v813, 127
      %vm815 = vcmp.lt.s32.totalorder %v814, 5
      %v816 = vsel %vm815, %v801, -1e+30
      %v817 = vsel %vm815, %v802, -1e+30
      %v818 = vsel %vm815, %v803, -1e+30
      %v819 = vsel %vm815, %v804, -1e+30
      %v820 = vsel %vm815, %v805, -1e+30
      %v821 = vsel %vm815, %v806, -1e+30
      %v822 = vsel %vm815, %v807, -1e+30
      %v823 = vsel %vm815, %v808, -1e+30
      %v824 = vsel %vm815, %v809, -1e+30
      %v825 = vsel %vm815, %v810, -1e+30
      %v826 = vsel %vm815, %v811, -1e+30
      %v827 = vsel %vm815, %v812, -1e+30
      %vm828 = vcmask 64512
      %v829 = vsel %vm828, %v816, -inf
      %830 = vmax.xlane.f32.xlu0 %v829
      %v831 = vpop.xlane.xlu0 %830
      %v832 = vsel %vm828, %v817, -inf
      %833 = vmax.xlane.f32.xlu0 %v832
      %v834 = vpop.xlane.xlu0 %833
      %v835 = vsel %vm828, %v818, -inf
      %836 = vmax.xlane.f32.xlu0 %v835
      %v837 = vpop.xlane.xlu0 %836
      %v838 = vsel %vm828, %v819, -inf
      %839 = vmax.xlane.f32.xlu0 %v838
      %v840 = vpop.xlane.xlu0 %839
      %v841 = vsel %vm828, %v820, -inf
      %842 = vmax.xlane.f32.xlu0 %v841
      %v843 = vpop.xlane.xlu0 %842
      %v844 = vsel %vm828, %v821, -inf
      %845 = vmax.xlane.f32.xlu0 %v844
      %v846 = vpop.xlane.xlu0 %845
      %v847 = vsel %vm828, %v822, -inf
      %848 = vmax.xlane.f32.xlu0 %v847
      %v849 = vpop.xlane.xlu0 %848
      %v850 = vsel %vm828, %v823, -inf
      %851 = vmax.xlane.f32.xlu0 %v850
      %v852 = vpop.xlane.xlu0 %851
      %v853 = vsel %vm828, %v824, -inf
      %854 = vmax.xlane.f32.xlu0 %v853
      %v855 = vpop.xlane.xlu0 %854
      %v856 = vsel %vm828, %v825, -inf
      %857 = vmax.xlane.f32.xlu0 %v856
      %v858 = vpop.xlane.xlu0 %857
      %v859 = vsel %vm828, %v826, -inf
      %860 = vmax.xlane.f32.xlu0 %v859
      %v861 = vpop.xlane.xlu0 %860
      %v862 = vsel %vm828, %v827, -inf
      %863 = vmax.xlane.f32.xlu0 %v862
      %v864 = vpop.xlane.xlu0 %863
      %v865 = vsub.f32 %v816, %v831
      %v866 = vsub.f32 %v817, %v834
      %v867 = vsub.f32 %v818, %v837
      %v868 = vsub.f32 %v819, %v840
      %v869 = vsub.f32 %v820, %v843
      %v870 = vsub.f32 %v821, %v846
      %v871 = vsub.f32 %v822, %v849
      %v872 = vsub.f32 %v823, %v852
      %v873 = vsub.f32 %v824, %v855
      %v874 = vsub.f32 %v825, %v858
      %v875 = vsub.f32 %v826, %v861
      %v876 = vsub.f32 %v827, %v864
      %v877 = vmul.f32 %v865, 1.442695
      %v878 = vpow.pop %v877
      %v879 = vmul.f32 %v866, 1.442695
      %v880 = vpow.pop %v879
      %v881 = vmul.f32 %v867, 1.442695
      %v882 = vpow.pop %v881
      %v883 = vmul.f32 %v868, 1.442695
      %v884 = vpow.pop %v883
      %v885 = vmul.f32 %v869, 1.442695
      %v886 = vpow.pop %v885
      %v887 = vmul.f32 %v870, 1.442695
      %v888 = vpow.pop %v887
      %v889 = vmul.f32 %v871, 1.442695
      %v890 = vpow.pop %v889
      %v891 = vmul.f32 %v872, 1.442695
      %v892 = vpow.pop %v891
      %v893 = vmul.f32 %v873, 1.442695
      %v894 = vpow.pop %v893
      %v895 = vmul.f32 %v874, 1.442695
      %v896 = vpow.pop %v895
      %v897 = vmul.f32 %v875, 1.442695
      %v898 = vpow.pop %v897
      %v899 = vmul.f32 %v876, 1.442695
      %v900 = vpow.pop %v899
      %v901 = vsel %vm828, %v878, 0.0
      %902 = vadd.xlane.f32.xlu0 %v901
      %v903 = vpop.xlane.xlu0 %902
      %v904 = vsel %vm828, %v880, 0.0
      %905 = vadd.xlane.f32.xlu0 %v904
      %v906 = vpop.xlane.xlu0 %905
      %v907 = vsel %vm828, %v882, 0.0
      %908 = vadd.xlane.f32.xlu0 %v907
      %v909 = vpop.xlane.xlu0 %908
      %v910 = vsel %vm828, %v884, 0.0
      %911 = vadd.xlane.f32.xlu0 %v910
      %v912 = vpop.xlane.xlu0 %911
      %v913 = vsel %vm828, %v886, 0.0
      %914 = vadd.xlane.f32.xlu0 %v913
      %v915 = vpop.xlane.xlu0 %914
      %v916 = vsel %vm828, %v888, 0.0
      %917 = vadd.xlane.f32.xlu0 %v916
      %v918 = vpop.xlane.xlu0 %917
      %v919 = vsel %vm828, %v890, 0.0
      %920 = vadd.xlane.f32.xlu0 %v919
      %v921 = vpop.xlane.xlu0 %920
      %v922 = vsel %vm828, %v892, 0.0
      %923 = vadd.xlane.f32.xlu0 %v922
      %v924 = vpop.xlane.xlu0 %923
      %v925 = vsel %vm828, %v894, 0.0
      %926 = vadd.xlane.f32.xlu0 %v925
      %v927 = vpop.xlane.xlu0 %926
      %v928 = vsel %vm828, %v896, 0.0
      %929 = vadd.xlane.f32.xlu0 %v928
      %v930 = vpop.xlane.xlu0 %929
      %v931 = vsel %vm828, %v898, 0.0
      %932 = vadd.xlane.f32.xlu0 %v931
      %v933 = vpop.xlane.xlu0 %932
      %v934 = vsel %vm828, %v900, 0.0
      %935 = vadd.xlane.f32.xlu0 %v934
      %v936 = vpop.xlane.xlu0 %935
      %v937 = vrcp.pop %v903
      %v938 = vrcp.pop %v906
      %v939 = vrcp.pop %v909
      %v940 = vrcp.pop %v912
      %v941 = vrcp.pop %v915
      %v942 = vrcp.pop %v918
      %v943 = vrcp.pop %v921
      %v944 = vrcp.pop %v924
      %v945 = vrcp.pop %v927
      %v946 = vrcp.pop %v930
      %v947 = vrcp.pop %v933
      %v948 = vrcp.pop %v936
      %v949 = vmul.f32 %v878, %v937
      %v950 = vmul.f32 %v880, %v938
      %v951 = vmul.f32 %v882, %v939
      %v952 = vmul.f32 %v884, %v940
      %v953 = vmul.f32 %v886, %v941
      %v954 = vmul.f32 %v888, %v942
      %v955 = vmul.f32 %v890, %v943
      %v956 = vmul.f32 %v892, %v944
      %v957 = vmul.f32 %v894, %v945
      %v958 = vmul.f32 %v896, %v946
      %v959 = vmul.f32 %v898, %v947
      %v960 = vmul.f32 %v900, %v948
      %v961 = vpack.c.bf16 %v949, %v949
      %v962 = vpack.c.bf16 %v950, %v950
      %v963 = vpack.c.bf16 %v951, %v951
      %v964 = vpack.c.bf16 %v952, %v952
      %v965 = vpack.c.bf16 %v953, %v953
      %v966 = vpack.c.bf16 %v954, %v954
      %v967 = vpack.c.bf16 %v955, %v955
      %v968 = vpack.c.bf16 %v956, %v956
      %v969 = vpack.c.bf16 %v957, %v957
      %v970 = vpack.c.bf16 %v958, %v958
      %v971 = vpack.c.bf16 %v959, %v959
      %v972 = vpack.c.bf16 %v960, %v960
      %v974 = vsel %vm828, %v961, 0
      %vm976 = vcmask 1043456
      %v978 = vsel %vm976, %v236, 0
      %980 = vmatprep.subr.bf16.mxu0 0
      %981 = vmatpush1.bf16.msra.mxu0 %v978
      %982 = vmatprep.subr.bf16.mxu0 0
      %983 = vmatpush1.bf16.msra.mxu0 0
      %984 = vmatprep.subr.bf16.mxu0 0
      %985 = vmatpush1.bf16.msra.mxu0 0
      %986 = vmatprep.subr.bf16.mxu0 0
      %987 = vmatpush1.bf16.msra.mxu0 0
      %988 = vmatprep.subr.bf16.mxu0 0
      %989 = vmatpush1.bf16.msra.mxu0 0
      %990 = vmatprep.subr.bf16.mxu0 0
      %991 = vmatpush1.bf16.msra.mxu0 0
      %992 = vmatprep.subr.bf16.mxu0 0
      %993 = vmatpush1.bf16.msra.mxu0 0
      %994 = vmatprep.subr.bf16.mxu0 0
      %995 = vmatpush1.bf16.msra.mxu0 0
      %996 = vmatprep.subr.bf16.mxu0 0
      %997 = vmatpush1.bf16.msra.mxu0 0
      %998 = vmatprep.subr.bf16.mxu0 0
      %999 = vmatpush1.bf16.msra.mxu0 0
      %1000 = vmatprep.subr.bf16.mxu0 0
      %1001 = vmatpush1.bf16.msra.mxu0 0
      %1002 = vmatprep.subr.bf16.mxu0 0
      %1003 = vmatpush1.bf16.msra.mxu0 0
      %1004 = vmatprep.subr.bf16.mxu0 0
      %1005 = vmatpush1.bf16.msra.mxu0 0
      %1006 = vmatprep.subr.bf16.mxu0 0
      %1007 = vmatpush1.bf16.msra.mxu0 0
      %1008 = vmatprep.subr.bf16.mxu0 0
      %1009 = vmatpush1.bf16.msra.mxu0 0
      %1010 = vmatprep.subr.bf16.mxu0 0
      %1011 = vmatpush1.bf16.msra.mxu0 0
      %1012 = vmatprep.mubr.bf16.mxu0 0
      %1013 = vmatmul.mubr.bf16.gmra.mrb[0].mxu0 %v974
      %v1014 = vpop.f32.mrb[0].mxu0
      %v1015 = vadd.f32 0.0, %v1014
      %v1016 = vpop.f32.mrb[0].mxu0
      %v1017 = vpop.f32.mrb[0].mxu0
      %v1018 = vpop.f32.mrb[0].mxu0
      %1019 = vdwg.mxu0
      %v1021 = vsel %vm828, %v962, 0
      %v1024 = vsel %vm976, %v237, 0
      %1026 = vmatprep.subr.bf16.mxu0 0
      %1027 = vmatpush1.bf16.msra.mxu0 %v1024
      %1028 = vmatprep.subr.bf16.mxu0 0
      %1029 = vmatpush1.bf16.msra.mxu0 0
      %1030 = vmatprep.subr.bf16.mxu0 0
      %1031 = vmatpush1.bf16.msra.mxu0 0
      %1032 = vmatprep.subr.bf16.mxu0 0
      %1033 = vmatpush1.bf16.msra.mxu0 0
      %1034 = vmatprep.subr.bf16.mxu0 0
      %1035 = vmatpush1.bf16.msra.mxu0 0
      %1036 = vmatprep.subr.bf16.mxu0 0
      %1037 = vmatpush1.bf16.msra.mxu0 0
      %1038 = vmatprep.subr.bf16.mxu0 0
      %1039 = vmatpush1.bf16.msra.mxu0 0
      %1040 = vmatprep.subr.bf16.mxu0 0
      %1041 = vmatpush1.bf16.msra.mxu0 0
      %1042 = vmatprep.subr.bf16.mxu0 0
      %1043 = vmatpush1.bf16.msra.mxu0 0
      %1044 = vmatprep.subr.bf16.mxu0 0
      %1045 = vmatpush1.bf16.msra.mxu0 0
      %1046 = vmatprep.subr.bf16.mxu0 0
      %1047 = vmatpush1.bf16.msra.mxu0 0
      %1048 = vmatprep.subr.bf16.mxu0 0
      %1049 = vmatpush1.bf16.msra.mxu0 0
      %1050 = vmatprep.subr.bf16.mxu0 0
      %1051 = vmatpush1.bf16.msra.mxu0 0
      %1052 = vmatprep.subr.bf16.mxu0 0
      %1053 = vmatpush1.bf16.msra.mxu0 0
      %1054 = vmatprep.subr.bf16.mxu0 0
      %1055 = vmatpush1.bf16.msra.mxu0 0
      %1056 = vmatprep.subr.bf16.mxu0 0
      %1057 = vmatpush1.bf16.msra.mxu0 0
      %1058 = vmatprep.mubr.bf16.mxu0 0
      %1059 = vmatmul.mubr.bf16.gmra.mrb[0].mxu0 %v1021
      %v1060 = vpop.f32.mrb[0].mxu0
      %v1061 = vadd.f32 0.0, %v1060
      %v1062 = vpop.f32.mrb[0].mxu0
      %v1063 = vpop.f32.mrb[0].mxu0
      %v1064 = vpop.f32.mrb[0].mxu0
      %1065 = vdwg.mxu0
      %v1067 = vsel %vm828, %v963, 0
      %v1070 = vsel %vm976, %v238, 0
      %1072 = vmatprep.subr.bf16.mxu0 0
      %1073 = vmatpush1.bf16.msra.mxu0 %v1070
      %1074 = vmatprep.subr.bf16.mxu0 0
      %1075 = vmatpush1.bf16.msra.mxu0 0
      %1076 = vmatprep.subr.bf16.mxu0 0
      %1077 = vmatpush1.bf16.msra.mxu0 0
      %1078 = vmatprep.subr.bf16.mxu0 0
      %1079 = vmatpush1.bf16.msra.mxu0 0
      %1080 = vmatprep.subr.bf16.mxu0 0
      %1081 = vmatpush1.bf16.msra.mxu0 0
      %1082 = vmatprep.subr.bf16.mxu0 0
      %1083 = vmatpush1.bf16.msra.mxu0 0
      %1084 = vmatprep.subr.bf16.mxu0 0
      %1085 = vmatpush1.bf16.msra.mxu0 0
      %1086 = vmatprep.subr.bf16.mxu0 0
      %1087 = vmatpush1.bf16.msra.mxu0 0
      %1088 = vmatprep.subr.bf16.mxu0 0
      %1089 = vmatpush1.bf16.msra.mxu0 0
      %1090 = vmatprep.subr.bf16.mxu0 0
      %1091 = vmatpush1.bf16.msra.mxu0 0
      %1092 = vmatprep.subr.bf16.mxu0 0
      %1093 = vmatpush1.bf16.msra.mxu0 0
      %1094 = vmatprep.subr.bf16.mxu0 0
      %1095 = vmatpush1.bf16.msra.mxu0 0
      %1096 = vmatprep.subr.bf16.mxu0 0
      %1097 = vmatpush1.bf16.msra.mxu0 0
      %1098 = vmatprep.subr.bf16.mxu0 0
      %1099 = vmatpush1.bf16.msra.mxu0 0
      %1100 = vmatprep.subr.bf16.mxu0 0
      %1101 = vmatpush1.bf16.msra.mxu0 0
      %1102 = vmatprep.subr.bf16.mxu0 0
      %1103 = vmatpush1.bf16.msra.mxu0 0
      %1104 = vmatprep.mubr.bf16.mxu0 0
      %1105 = vmatmul.mubr.bf16.gmra.mrb[0].mxu0 %v1067
      %v1106 = vpop.f32.mrb[0].mxu0
      %v1107 = vadd.f32 0.0, %v1106
      %v1108 = vpop.f32.mrb[0].mxu0
      %v1109 = vpop.f32.mrb[0].mxu0
      %v1110 = vpop.f32.mrb[0].mxu0
      %1111 = vdwg.mxu0
      %v1113 = vsel %vm828, %v964, 0
      %v1116 = vsel %vm976, %v239, 0
      %1118 = vmatprep.subr.bf16.mxu0 0
      %1119 = vmatpush1.bf16.msra.mxu0 %v1116
      %1120 = vmatprep.subr.bf16.mxu0 0
      %1121 = vmatpush1.bf16.msra.mxu0 0
      %1122 = vmatprep.subr.bf16.mxu0 0
      %1123 = vmatpush1.bf16.msra.mxu0 0
      %1124 = vmatprep.subr.bf16.mxu0 0
      %1125 = vmatpush1.bf16.msra.mxu0 0
      %1126 = vmatprep.subr.bf16.mxu0 0
      %1127 = vmatpush1.bf16.msra.mxu0 0
      %1128 = vmatprep.subr.bf16.mxu0 0
      %1129 = vmatpush1.bf16.msra.mxu0 0
      %1130 = vmatprep.subr.bf16.mxu0 0
      %1131 = vmatpush1.bf16.msra.mxu0 0
      %1132 = vmatprep.subr.bf16.mxu0 0
      %1133 = vmatpush1.bf16.msra.mxu0 0
      %1134 = vmatprep.subr.bf16.mxu0 0
      %1135 = vmatpush1.bf16.msra.mxu0 0
      %1136 = vmatprep.subr.bf16.mxu0 0
      %1137 = vmatpush1.bf16.msra.mxu0 0
      %1138 = vmatprep.subr.bf16.mxu0 0
      %1139 = vmatpush1.bf16.msra.mxu0 0
      %1140 = vmatprep.subr.bf16.mxu0 0
      %1141 = vmatpush1.bf16.msra.mxu0 0
      %1142 = vmatprep.subr.bf16.mxu0 0
      %1143 = vmatpush1.bf16.msra.mxu0 0
      %1144 = vmatprep.subr.bf16.mxu0 0
      %1145 = vmatpush1.bf16.msra.mxu0 0
      %1146 = vmatprep.subr.bf16.mxu0 0
      %1147 = vmatpush1.bf16.msra.mxu0 0
      %1148 = vmatprep.subr.bf16.mxu0 0
      %1149 = vmatpush1.bf16.msra.mxu0 0
      %1150 = vmatprep.mubr.bf16.mxu0 0
      %1151 = vmatmul.mubr.bf16.gmra.mrb[0].mxu0 %v1113
      %v1152 = vpop.f32.mrb[0].mxu0
      %v1153 = vadd.f32 0.0, %v1152
      %v1154 = vpop.f32.mrb[0].mxu0
      %v1155 = vpop.f32.mrb[0].mxu0
      %v1156 = vpop.f32.mrb[0].mxu0
      %1157 = vdwg.mxu0
      %v1159 = vsel %vm828, %v965, 0
      %v1162 = vsel %vm976, %v240, 0
      %1164 = vmatprep.subr.bf16.mxu0 0
      %1165 = vmatpush1.bf16.msra.mxu0 %v1162
      %1166 = vmatprep.subr.bf16.mxu0 0
      %1167 = vmatpush1.bf16.msra.mxu0 0
      %1168 = vmatprep.subr.bf16.mxu0 0
      %1169 = vmatpush1.bf16.msra.mxu0 0
      %1170 = vmatprep.subr.bf16.mxu0 0
      %1171 = vmatpush1.bf16.msra.mxu0 0
      %1172 = vmatprep.subr.bf16.mxu0 0
      %1173 = vmatpush1.bf16.msra.mxu0 0
      %1174 = vmatprep.subr.bf16.mxu0 0
      %1175 = vmatpush1.bf16.msra.mxu0 0
      %1176 = vmatprep.subr.bf16.mxu0 0
      %1177 = vmatpush1.bf16.msra.mxu0 0
      %1178 = vmatprep.subr.bf16.mxu0 0
      %1179 = vmatpush1.bf16.msra.mxu0 0
      %1180 = vmatprep.subr.bf16.mxu0 0
      %1181 = vmatpush1.bf16.msra.mxu0 0
      %1182 = vmatprep.subr.bf16.mxu0 0
      %1183 = vmatpush1.bf16.msra.mxu0 0
      %1184 = vmatprep.subr.bf16.mxu0 0
      %1185 = vmatpush1.bf16.msra.mxu0 0
      %1186 = vmatprep.subr.bf16.mxu0 0
      %1187 = vmatpush1.bf16.msra.mxu0 0
      %1188 = vmatprep.subr.bf16.mxu0 0
      %1189 = vmatpush1.bf16.msra.mxu0 0
      %1190 = vmatprep.subr.bf16.mxu0 0
      %1191 = vmatpush1.bf16.msra.mxu0 0
      %1192 = vmatprep.subr.bf16.mxu0 0
      %1193 = vmatpush1.bf16.msra.mxu0 0
      %1194 = vmatprep.subr.bf16.mxu0 0
      %1195 = vmatpush1.bf16.msra.mxu0 0
      %1196 = vmatprep.mubr.bf16.mxu0 0
      %1197 = vmatmul.mubr.bf16.gmra.mrb[0].mxu0 %v1159
      %v1198 = vpop.f32.mrb[0].mxu0
      %v1199 = vadd.f32 0.0, %v1198
      %v1200 = vpop.f32.mrb[0].mxu0
      %v1201 = vpop.f32.mrb[0].mxu0
      %v1202 = vpop.f32.mrb[0].mxu0
      %1203 = vdwg.mxu0
      %v1205 = vsel %vm828, %v966, 0
      %v1208 = vsel %vm976, %v241, 0
      %1210 = vmatprep.subr.bf16.mxu0 0
      %1211 = vmatpush1.bf16.msra.mxu0 %v1208
      %1212 = vmatprep.subr.bf16.mxu0 0
      %1213 = vmatpush1.bf16.msra.mxu0 0
      %1214 = vmatprep.subr.bf16.mxu0 0
      %1215 = vmatpush1.bf16.msra.mxu0 0
      %1216 = vmatprep.subr.bf16.mxu0 0
      %1217 = vmatpush1.bf16.msra.mxu0 0
      %1218 = vmatprep.subr.bf16.mxu0 0
      %1219 = vmatpush1.bf16.msra.mxu0 0
      %1220 = vmatprep.subr.bf16.mxu0 0
      %1221 = vmatpush1.bf16.msra.mxu0 0
      %1222 = vmatprep.subr.bf16.mxu0 0
      %1223 = vmatpush1.bf16.msra.mxu0 0
      %1224 = vmatprep.subr.bf16.mxu0 0
      %1225 = vmatpush1.bf16.msra.mxu0 0
      %1226 = vmatprep.subr.bf16.mxu0 0
      %1227 = vmatpush1.bf16.msra.mxu0 0
      %1228 = vmatprep.subr.bf16.mxu0 0
      %1229 = vmatpush1.bf16.msra.mxu0 0
      %1230 = vmatprep.subr.bf16.mxu0 0
      %1231 = vmatpush1.bf16.msra.mxu0 0
      %1232 = vmatprep.subr.bf16.mxu0 0
      %1233 = vmatpush1.bf16.msra.mxu0 0
      %1234 = vmatprep.subr.bf16.mxu0 0
      %1235 = vmatpush1.bf16.msra.mxu0 0
      %1236 = vmatprep.subr.bf16.mxu0 0
      %1237 = vmatpush1.bf16.msra.mxu0 0
      %1238 = vmatprep.subr.bf16.mxu0 0
      %1239 = vmatpush1.bf16.msra.mxu0 0
      %1240 = vmatprep.subr.bf16.mxu0 0
      %1241 = vmatpush1.bf16.msra.mxu0 0
      %1242 = vmatprep.mubr.bf16.mxu0 0
      %1243 = vmatmul.mubr.bf16.gmra.mrb[0].mxu0 %v1205
      %v1244 = vpop.f32.mrb[0].mxu0
      %v1245 = vadd.f32 0.0, %v1244
      %v1246 = vpop.f32.mrb[0].mxu0
      %v1247 = vpop.f32.mrb[0].mxu0
      %v1248 = vpop.f32.mrb[0].mxu0
      %1249 = vdwg.mxu0
      %v1251 = vsel %vm828, %v967, 0
      %v1254 = vsel %vm976, %v242, 0
      %1256 = vmatprep.subr.bf16.mxu0 0
      %1257 = vmatpush1.bf16.msra.mxu0 %v1254
      %1258 = vmatprep.subr.bf16.mxu0 0
      %1259 = vmatpush1.bf16.msra.mxu0 0
      %1260 = vmatprep.subr.bf16.mxu0 0
      %1261 = vmatpush1.bf16.msra.mxu0 0
      %1262 = vmatprep.subr.bf16.mxu0 0
      %1263 = vmatpush1.bf16.msra.mxu0 0
      %1264 = vmatprep.subr.bf16.mxu0 0
      %1265 = vmatpush1.bf16.msra.mxu0 0
      %1266 = vmatprep.subr.bf16.mxu0 0
      %1267 = vmatpush1.bf16.msra.mxu0 0
      %1268 = vmatprep.subr.bf16.mxu0 0
      %1269 = vmatpush1.bf16.msra.mxu0 0
      %1270 = vmatprep.subr.bf16.mxu0 0
      %1271 = vmatpush1.bf16.msra.mxu0 0
      %1272 = vmatprep.subr.bf16.mxu0 0
      %1273 = vmatpush1.bf16.msra.mxu0 0
      %1274 = vmatprep.subr.bf16.mxu0 0
      %1275 = vmatpush1.bf16.msra.mxu0 0
      %1276 = vmatprep.subr.bf16.mxu0 0
      %1277 = vmatpush1.bf16.msra.mxu0 0
      %1278 = vmatprep.subr.bf16.mxu0 0
      %1279 = vmatpush1.bf16.msra.mxu0 0
      %1280 = vmatprep.subr.bf16.mxu0 0
      %1281 = vmatpush1.bf16.msra.mxu0 0
      %1282 = vmatprep.subr.bf16.mxu0 0
      %1283 = vmatpush1.bf16.msra.mxu0 0
      %1284 = vmatprep.subr.bf16.mxu0 0
      %1285 = vmatpush1.bf16.msra.mxu0 0
      %1286 = vmatprep.subr.bf16.mxu0 0
      %1287 = vmatpush1.bf16.msra.mxu0 0
      %1288 = vmatprep.mubr.bf16.mxu0 0
      %1289 = vmatmul.mubr.bf16.gmra.mrb[0].mxu0 %v1251
      %v1290 = vpop.f32.mrb[0].mxu0
      %v1291 = vadd.f32 0.0, %v1290
      %v1292 = vpop.f32.mrb[0].mxu0
      %v1293 = vpop.f32.mrb[0].mxu0
      %v1294 = vpop.f32.mrb[0].mxu0
      %1295 = vdwg.mxu0
      %v1297 = vsel %vm828, %v968, 0
      %v1300 = vsel %vm976, %v243, 0
      %1302 = vmatprep.subr.bf16.mxu0 0
      %1303 = vmatpush1.bf16.msra.mxu0 %v1300
      %1304 = vmatprep.subr.bf16.mxu0 0
      %1305 = vmatpush1.bf16.msra.mxu0 0
      %1306 = vmatprep.subr.bf16.mxu0 0
      %1307 = vmatpush1.bf16.msra.mxu0 0
      %1308 = vmatprep.subr.bf16.mxu0 0
      %1309 = vmatpush1.bf16.msra.mxu0 0
      %1310 = vmatprep.subr.bf16.mxu0 0
      %1311 = vmatpush1.bf16.msra.mxu0 0
      %1312 = vmatprep.subr.bf16.mxu0 0
      %1313 = vmatpush1.bf16.msra.mxu0 0
      %1314 = vmatprep.subr.bf16.mxu0 0
      %1315 = vmatpush1.bf16.msra.mxu0 0
      %1316 = vmatprep.subr.bf16.mxu0 0
      %1317 = vmatpush1.bf16.msra.mxu0 0
      %1318 = vmatprep.subr.bf16.mxu0 0
      %1319 = vmatpush1.bf16.msra.mxu0 0
      %1320 = vmatprep.subr.bf16.mxu0 0
      %1321 = vmatpush1.bf16.msra.mxu0 0
      %1322 = vmatprep.subr.bf16.mxu0 0
      %1323 = vmatpush1.bf16.msra.mxu0 0
      %1324 = vmatprep.subr.bf16.mxu0 0
      %1325 = vmatpush1.bf16.msra.mxu0 0
      %1326 = vmatprep.subr.bf16.mxu0 0
      %1327 = vmatpush1.bf16.msra.mxu0 0
      %1328 = vmatprep.subr.bf16.mxu0 0
      %1329 = vmatpush1.bf16.msra.mxu0 0
      %1330 = vmatprep.subr.bf16.mxu0 0
      %1331 = vmatpush1.bf16.msra.mxu0 0
      %1332 = vmatprep.subr.bf16.mxu0 0
      %1333 = vmatpush1.bf16.msra.mxu0 0
      %1334 = vmatprep.mubr.bf16.mxu0 0
      %1335 = vmatmul.mubr.bf16.gmra.mrb[0].mxu0 %v1297
      %v1336 = vpop.f32.mrb[0].mxu0
      %v1337 = vadd.f32 0.0, %v1336
      %v1338 = vpop.f32.mrb[0].mxu0
      %v1339 = vpop.f32.mrb[0].mxu0
      %v1340 = vpop.f32.mrb[0].mxu0
      %1341 = vdwg.mxu0
      %v1343 = vsel %vm828, %v969, 0
      %v1346 = vsel %vm976, %v244, 0
      %1348 = vmatprep.subr.bf16.mxu0 0
      %1349 = vmatpush1.bf16.msra.mxu0 %v1346
      %1350 = vmatprep.subr.bf16.mxu0 0
      %1351 = vmatpush1.bf16.msra.mxu0 0
      %1352 = vmatprep.subr.bf16.mxu0 0
      %1353 = vmatpush1.bf16.msra.mxu0 0
      %1354 = vmatprep.subr.bf16.mxu0 0
      %1355 = vmatpush1.bf16.msra.mxu0 0
      %1356 = vmatprep.subr.bf16.mxu0 0
      %1357 = vmatpush1.bf16.msra.mxu0 0
      %1358 = vmatprep.subr.bf16.mxu0 0
      %1359 = vmatpush1.bf16.msra.mxu0 0
      %1360 = vmatprep.subr.bf16.mxu0 0
      %1361 = vmatpush1.bf16.msra.mxu0 0
      %1362 = vmatprep.subr.bf16.mxu0 0
      %1363 = vmatpush1.bf16.msra.mxu0 0
      %1364 = vmatprep.subr.bf16.mxu0 0
      %1365 = vmatpush1.bf16.msra.mxu0 0
      %1366 = vmatprep.subr.bf16.mxu0 0
      %1367 = vmatpush1.bf16.msra.mxu0 0
      %1368 = vmatprep.subr.bf16.mxu0 0
      %1369 = vmatpush1.bf16.msra.mxu0 0
      %1370 = vmatprep.subr.bf16.mxu0 0
      %1371 = vmatpush1.bf16.msra.mxu0 0
      %1372 = vmatprep.subr.bf16.mxu0 0
      %1373 = vmatpush1.bf16.msra.mxu0 0
      %1374 = vmatprep.subr.bf16.mxu0 0
      %1375 = vmatpush1.bf16.msra.mxu0 0
      %1376 = vmatprep.subr.bf16.mxu0 0
      %1377 = vmatpush1.bf16.msra.mxu0 0
      %1378 = vmatprep.subr.bf16.mxu0 0
      %1379 = vmatpush1.bf16.msra.mxu0 0
      %1380 = vmatprep.mubr.bf16.mxu0 0
      %1381 = vmatmul.mubr.bf16.gmra.mrb[0].mxu0 %v1343
      %v1382 = vpop.f32.mrb[0].mxu0
      %v1383 = vadd.f32 0.0, %v1382
      %v1384 = vpop.f32.mrb[0].mxu0
      %v1385 = vpop.f32.mrb[0].mxu0
      %v1386 = vpop.f32.mrb[0].mxu0
      %1387 = vdwg.mxu0
      %v1389 = vsel %vm828, %v970, 0
      %v1392 = vsel %vm976, %v245, 0
      %1394 = vmatprep.subr.bf16.mxu0 0
      %1395 = vmatpush1.bf16.msra.mxu0 %v1392
      %1396 = vmatprep.subr.bf16.mxu0 0
      %1397 = vmatpush1.bf16.msra.mxu0 0
      %1398 = vmatprep.subr.bf16.mxu0 0
      %1399 = vmatpush1.bf16.msra.mxu0 0
      %1400 = vmatprep.subr.bf16.mxu0 0
      %1401 = vmatpush1.bf16.msra.mxu0 0
      %1402 = vmatprep.subr.bf16.mxu0 0
      %1403 = vmatpush1.bf16.msra.mxu0 0
      %1404 = vmatprep.subr.bf16.mxu0 0
      %1405 = vmatpush1.bf16.msra.mxu0 0
      %1406 = vmatprep.subr.bf16.mxu0 0
      %1407 = vmatpush1.bf16.msra.mxu0 0
      %1408 = vmatprep.subr.bf16.mxu0 0
      %1409 = vmatpush1.bf16.msra.mxu0 0
      %1410 = vmatprep.subr.bf16.mxu0 0
      %1411 = vmatpush1.bf16.msra.mxu0 0
      %1412 = vmatprep.subr.bf16.mxu0 0
      %1413 = vmatpush1.bf16.msra.mxu0 0
      %1414 = vmatprep.subr.bf16.mxu0 0
      %1415 = vmatpush1.bf16.msra.mxu0 0
      %1416 = vmatprep.subr.bf16.mxu0 0
      %1417 = vmatpush1.bf16.msra.mxu0 0
      %1418 = vmatprep.subr.bf16.mxu0 0
      %1419 = vmatpush1.bf16.msra.mxu0 0
      %1420 = vmatprep.subr.bf16.mxu0 0
      %1421 = vmatpush1.bf16.msra.mxu0 0
      %1422 = vmatprep.subr.bf16.mxu0 0
      %1423 = vmatpush1.bf16.msra.mxu0 0
      %1424 = vmatprep.subr.bf16.mxu0 0
      %1425 = vmatpush1.bf16.msra.mxu0 0
      %1426 = vmatprep.mubr.bf16.mxu0 0
      %1427 = vmatmul.mubr.bf16.gmra.mrb[0].mxu0 %v1389
      %v1428 = vpop.f32.mrb[0].mxu0
      %v1429 = vadd.f32 0.0, %v1428
      %v1430 = vpop.f32.mrb[0].mxu0
      %v1431 = vpop.f32.mrb[0].mxu0
      %v1432 = vpop.f32.mrb[0].mxu0
      %1433 = vdwg.mxu0
      %v1435 = vsel %vm828, %v971, 0
      %v1438 = vsel %vm976, %v246, 0
      %1440 = vmatprep.subr.bf16.mxu0 0
      %1441 = vmatpush1.bf16.msra.mxu0 %v1438
      %1442 = vmatprep.subr.bf16.mxu0 0
      %1443 = vmatpush1.bf16.msra.mxu0 0
      %1444 = vmatprep.subr.bf16.mxu0 0
      %1445 = vmatpush1.bf16.msra.mxu0 0
      %1446 = vmatprep.subr.bf16.mxu0 0
      %1447 = vmatpush1.bf16.msra.mxu0 0
      %1448 = vmatprep.subr.bf16.mxu0 0
      %1449 = vmatpush1.bf16.msra.mxu0 0
      %1450 = vmatprep.subr.bf16.mxu0 0
      %1451 = vmatpush1.bf16.msra.mxu0 0
      %1452 = vmatprep.subr.bf16.mxu0 0
      %1453 = vmatpush1.bf16.msra.mxu0 0
      %1454 = vmatprep.subr.bf16.mxu0 0
      %1455 = vmatpush1.bf16.msra.mxu0 0
      %1456 = vmatprep.subr.bf16.mxu0 0
      %1457 = vmatpush1.bf16.msra.mxu0 0
      %1458 = vmatprep.subr.bf16.mxu0 0
      %1459 = vmatpush1.bf16.msra.mxu0 0
      %1460 = vmatprep.subr.bf16.mxu0 0
      %1461 = vmatpush1.bf16.msra.mxu0 0
      %1462 = vmatprep.subr.bf16.mxu0 0
      %1463 = vmatpush1.bf16.msra.mxu0 0
      %1464 = vmatprep.subr.bf16.mxu0 0
      %1465 = vmatpush1.bf16.msra.mxu0 0
      %1466 = vmatprep.subr.bf16.mxu0 0
      %1467 = vmatpush1.bf16.msra.mxu0 0
      %1468 = vmatprep.subr.bf16.mxu0 0
      %1469 = vmatpush1.bf16.msra.mxu0 0
      %1470 = vmatprep.subr.bf16.mxu0 0
      %1471 = vmatpush1.bf16.msra.mxu0 0
      %1472 = vmatprep.mubr.bf16.mxu0 0
      %1473 = vmatmul.mubr.bf16.gmra.mrb[0].mxu0 %v1435
      %v1474 = vpop.f32.mrb[0].mxu0
      %v1475 = vadd.f32 0.0, %v1474
      %v1476 = vpop.f32.mrb[0].mxu0
      %v1477 = vpop.f32.mrb[0].mxu0
      %v1478 = vpop.f32.mrb[0].mxu0
      %1479 = vdwg.mxu0
      %v1481 = vsel %vm828, %v972, 0
      %v1484 = vsel %vm976, %v247, 0
      %1486 = vmatprep.subr.bf16.mxu0 0
      %1487 = vmatpush1.bf16.msra.mxu0 %v1484
      %1488 = vmatprep.subr.bf16.mxu0 0
      %1489 = vmatpush1.bf16.msra.mxu0 0
      %1490 = vmatprep.subr.bf16.mxu0 0
      %1491 = vmatpush1.bf16.msra.mxu0 0
      %1492 = vmatprep.subr.bf16.mxu0 0
      %1493 = vmatpush1.bf16.msra.mxu0 0
      %1494 = vmatprep.subr.bf16.mxu0 0
      %1495 = vmatpush1.bf16.msra.mxu0 0
      %1496 = vmatprep.subr.bf16.mxu0 0
      %1497 = vmatpush1.bf16.msra.mxu0 0
      %1498 = vmatprep.subr.bf16.mxu0 0
      %1499 = vmatpush1.bf16.msra.mxu0 0
      %1500 = vmatprep.subr.bf16.mxu0 0
      %1501 = vmatpush1.bf16.msra.mxu0 0
      %1502 = vmatprep.subr.bf16.mxu0 0
      %1503 = vmatpush1.bf16.msra.mxu0 0
      %1504 = vmatprep.subr.bf16.mxu0 0
      %1505 = vmatpush1.bf16.msra.mxu0 0
      %1506 = vmatprep.subr.bf16.mxu0 0
      %1507 = vmatpush1.bf16.msra.mxu0 0
      %1508 = vmatprep.subr.bf16.mxu0 0
      %1509 = vmatpush1.bf16.msra.mxu0 0
      %1510 = vmatprep.subr.bf16.mxu0 0
      %1511 = vmatpush1.bf16.msra.mxu0 0
      %1512 = vmatprep.subr.bf16.mxu0 0
      %1513 = vmatpush1.bf16.msra.mxu0 0
      %1514 = vmatprep.subr.bf16.mxu0 0
      %1515 = vmatpush1.bf16.msra.mxu0 0
      %1516 = vmatprep.subr.bf16.mxu0 0
      %1517 = vmatpush1.bf16.msra.mxu0 0
      %1518 = vmatprep.mubr.bf16.mxu0 0
      %1519 = vmatmul.mubr.bf16.gmra.mrb[0].mxu0 %v1481
      %v1520 = vpop.f32.mrb[0].mxu0
      %v1521 = vadd.f32 0.0, %v1520
      %v1522 = vpop.f32.mrb[0].mxu0
      %v1523 = vpop.f32.mrb[0].mxu0
      %v1524 = vpop.f32.mrb[0].mxu0
      %1525 = vdwg.mxu0
      %v1526 = vpack.c.bf16 %v1015, %v1015
      %v1527 = vpack.c.bf16 %v1061, %v1061
      %v1528 = vpack.c.bf16 %v1107, %v1107
      %v1529 = vpack.c.bf16 %v1153, %v1153
      %v1530 = vpack.c.bf16 %v1199, %v1199
      %v1531 = vpack.c.bf16 %v1245, %v1245
      %v1532 = vpack.c.bf16 %v1291, %v1291
      %v1533 = vpack.c.bf16 %v1337, %v1337
      %v1534 = vpack.c.bf16 %v1383, %v1383
      %v1535 = vpack.c.bf16 %v1429, %v1429
      %v1536 = vpack.c.bf16 %v1475, %v1475
      %v1537 = vpack.c.bf16 %v1521, %v1521
      %vm1538 = vcmask 519168
      %1539 = vst.msk [vmem:[%s210] sm:$0xf] %vm1538, %v1526
      %1540 = vst.msk [vmem:[%s210 + $0x4] sm:$0xf] %vm1538, %v1527
      %1541 = vst.msk [vmem:[%s210 + $0x8] sm:$0xf] %vm1538, %v1528
      %1542 = vst.msk [vmem:[%s210 + $0xc] sm:$0xf] %vm1538, %v1529
      %1543 = vst.msk [vmem:[%s210 + $0x10] sm:$0xf] %vm1538, %v1530
      %1544 = vst.msk [vmem:[%s210 + $0x14] sm:$0xf] %vm1538, %v1531
      %1545 = vst.msk [vmem:[%s210 + $0x18] sm:$0xf] %vm1538, %v1532
      %1546 = vst.msk [vmem:[%s210 + $0x1c] sm:$0xf] %vm1538, %v1533
      %1547 = vst.msk [vmem:[%s210 + $0x20] sm:$0xf] %vm1538, %v1534
      %1548 = vst.msk [vmem:[%s210 + $0x24] sm:$0xf] %vm1538, %v1535
      %1549 = vst.msk [vmem:[%s210 + $0x28] sm:$0xf] %vm1538, %v1536
      %1550 = vst.msk [vmem:[%s210 + $0x2c] sm:$0xf] %vm1538, %v1537
      %p1551 = scmp.lt.s32.totalorder %s14, 1
      %s1552 = scalar_select %p1551, %s14, 1
      %s1553 = smul.addr %s1552, 12
      %s1554 = smul.addr %s1553, 4
      %s1555 = scalar_lea.vmem %s3, %s1554
      // Predicated region
      $region33: #{closed_call.17} parent=31 // pred_check
        %p1556 = pneg %p110
      $region34: #{closed_call.17} parent=31 // pred_check_branch
        %1558 = sbr.rel (%p1556) target = $region36
      $region35: #{closed_call.17} parent=31 // pred_region
        _
      $region36: #{closed_call.17} parent=31 // pred_fallthru
        _
    $region32: #{closed_call.17} parent=5 // pred_fallthru
      _
    %p1559 = scmp.le.s32.totalorder 2, %s9
    // Predicated region
    $region37: #{closed_call.17} parent=5 // pred_check
      %p1560 = pneg %p1559
    $region38: #{closed_call.17} parent=5 // pred_check_branch
      %1562 = sbr.rel (%p1560) target = $region40
    $region39: #{closed_call.17} parent=5 // pred_region
      %s1563 = ssub.s32 %s9, 2
      // Predicated region
      $region41: #{closed_call.17} parent=39 // pred_check
        %p1564 = pneg %p116
      $region42: #{closed_call.17} parent=39 // pred_check_branch
        %1566 = sbr.rel (%p1564) target = $region44
      $region43: #{closed_call.17} parent=39 // pred_region
        %p1567 = scmp.lt.s32.totalorder %s15, 1
        %s1568 = scalar_select %p1567, %s15, 1
        %s1569 = smul.addr %s1568, 12
        %s1570 = smul.addr %s1569, 4
        %s1571 = scalar_lea.vmem %s3, %s1570
      $region44: #{closed_call.17} parent=39 // pred_fallthru
        _
    $region40: #{closed_call.17} parent=5 // pred_fallthru
      _
  $region6: #{closed_call.17} parent=0 // loop_footer
    %s13 = sadd.s32 1, %s9
  $region7: #{closed_call.17} parent=0 // loop_footer_branch
    %8 = sbr.rel target = $region3
  $region8: #{closed_call.17} parent=0 // loop_exit
    _

// kernel: closed_call.18
$region0: #{closed_call.18}
  #allocation0 [shape = 'u32[]', space=smem, size = 0x4, offset = 0x4, fixed_abs, tag = 'smem constant byte address 0x4 - core index']
  #allocation1 [shape = 'u32[144,128]{1,0:T(1,128)}', space=vmem, size = 0x12000, scoped, tag = 'internal scratch']
  #allocation2 [shape = 'f32[16,256]{1,0:T(8,128)}', space=vmem, size = 0x4000, scoped, tag = 'scratch operand']
  %s0 = inlined_call_operand.vmem [shape: bf16[16,768], index: 0, kind: input, shape index: {}]
  %s1 = inlined_call_operand.vmem [shape: bf16[768,768], index: 1, kind: input, shape index: {}]
  %s2 = inlined_call_operand.vmem [shape: f32[1,768], index: 2, kind: input, shape index: {}]
  %s3 = inlined_call_operand.vmem [shape: bf16[16,768], index: 3, kind: input, shape index: {}]
  %s4 = inlined_call_operand.vmem [shape: bf16[16,768], index: 4, kind: output, shape index: {}]
  %s5 = sld [smem:[#allocation0]]
  $region205: #{closed_call.18} parent=0
    _
  %s7 = ssub.s32 1, %s5
  %s8 = scalar_select 0, %s7, %s5
  $region1: #{closed_call.18} parent=0
    #allocation3 [shape = 'u8[16384]{0}', space=vmem, size = 0x4000, scoped, tag = 'input window, operand 0']
    #allocation4 [shape = 'u8[262144]{0}', space=vmem, size = 0x40000, scoped, tag = 'input window, operand 1']
    #allocation5 [shape = 'u8[16384]{0}', space=vmem, size = 0x4000, scoped, tag = 'input window, operand 3']
    #allocation6 [shape = 'u8[16384]{0}', space=vmem, size = 0x4000, scoped, tag = 'output window, operand 0']
    loop: start=0, step=1, limit=11
    $region2: #{closed_call.18} parent=1 // loop_pre_header
      _
    $region3: #{closed_call.18} parent=1 // loop_header
      %s10 = sphi 0, %s14
      %p11 = scmp.ge.s32.totalorder %s10, 11
      %s17 = sphi 0, %s36
      %s18 = sphi 0, %s32
      %s19 = sphi 0, %s28
      %s20 = sphi 0, %s17
      %s21 = sphi 0, %s18
      %s22 = sphi 0, %s19
      %s23 = sphi 0, %s20
      %s24 = sphi 0, %s21
      %s25 = sphi 0, %s22
      %s41 = sphi 0, %s43
      %s44 = sphi 0, %s41
      %s45 = sphi 0, %s44
      %s61 = sphi 0, %s45
      %s69 = sphi 0, %s71
      %s72 = sphi 0, %s69
      %s73 = sphi 0, %s72
      %s89 = sphi 0, %s73
      %s95 = sphi 0, %s97
      %s98 = sphi 0, %s95
      %s99 = sphi 0, %s98
      %s115 = sphi 0, %s99
      %s123 = sphi 0, %s125
      %s126 = sphi 0, %s123
      %s127 = sphi 0, %s126
      %s143 = sphi 0, %s127
      %s151 = sphi 0, %s153
      %s154 = sphi 0, %s151
      %s155 = sphi 0, %s154
      %s171 = sphi 0, %s155
    $region4: #{closed_call.18} parent=1 // loop_header_branch
      %13 = sbr.rel (%p11) target = $region8
    $region5: #{closed_call.18} parent=1 // loop_body
      %s15 = ssub.s32 %s10, 1
      %s16 = ssub.s32 %s10, 2
      %s26 = sadd.s32 1, %s19
      %p27 = scmp.ge.s32.totalorder %s26, 3
      %s28 = scalar_select %p27, 0, %s26
      %s29 = sadd.s32 1, %s18
      %s30 = scalar_select %p27, %s29, %s18
      %p31 = scmp.ge.s32.totalorder %s30, 3
      %s32 = scalar_select %p31, 0, %s30
      %s33 = sadd.s32 1, %s17
      %s34 = scalar_select %p31, %s33, %s17
      %p35 = scmp.ge.s32.totalorder %s34, 1
      %s36 = scalar_select %p35, 0, %s34
      %s37 = ssub.s32 %s17, %s36
      %s38 = ssub.s32 %s19, %s28
      %s39 = sor.u32 %s37, %s38
      %p40 = scmp.eq.s32.totalorder %s39, 0
      %s42 = sadd.s32 %s41, 1
      %s43 = scalar_select %p40, %s41, %s42
      %p46 = pneg %p40
      %p47 = scmp.eq.s32.totalorder %s10, 8
      %p48 = por %p46, %p47
      %p49 = scmp.ne.s32.totalorder %s41, %s44
      %p50 = scmp.eq.s32.totalorder %s10, 0
      %p51 = por %p49, %p50
      %p52 = scmp.ne.s32.totalorder %s41, %s44
      %p53 = scmp.eq.s32.totalorder %s15, 8
      %p54 = por %p52, %p53
      %p55 = scmp.ne.s32.totalorder %s44, %s45
      %p56 = scmp.eq.s32.totalorder %s15, 0
      %p57 = por %p55, %p56
      %p58 = scmp.ne.s32.totalorder %s44, %s45
      %p59 = scmp.eq.s32.totalorder %s16, 8
      %p60 = por %p58, %p59
      %p62 = scmp.ne.s32.totalorder %s45, %s61
      %p63 = scmp.eq.s32.totalorder %s16, 0
      %p64 = por %p62, %p63
      %s65 = ssub.s32 %s19, %s28
      %s66 = ssub.s32 %s18, %s32
      %s67 = sor.u32 %s65, %s66
      %p68 = scmp.eq.s32.totalorder %s67, 0
      %s70 = sadd.s32 %s69, 1
      %s71 = scalar_select %p68, %s69, %s70
      %p74 = pneg %p68
      %p75 = scmp.eq.s32.totalorder %s10, 8
      %p76 = por %p74, %p75
      %p77 = scmp.ne.s32.totalorder %s69, %s72
      %p78 = scmp.eq.s32.totalorder %s10, 0
      %p79 = por %p77, %p78
      %p80 = scmp.ne.s32.totalorder %s69, %s72
      %p81 = scmp.eq.s32.totalorder %s15, 8
      %p82 = por %p80, %p81
      %p83 = scmp.ne.s32.totalorder %s72, %s73
      %p84 = scmp.eq.s32.totalorder %s15, 0
      %p85 = por %p83, %p84
      %p86 = scmp.ne.s32.totalorder %s72, %s73
      %p87 = scmp.eq.s32.totalorder %s16, 8
      %p88 = por %p86, %p87
      %p90 = scmp.ne.s32.totalorder %s73, %s89
      %p91 = scmp.eq.s32.totalorder %s16, 0
      %p92 = por %p90, %p91
      %s93 = ssub.s32 %s18, %s32
      %p94 = scmp.eq.s32.totalorder %s93, 0
      %s96 = sadd.s32 %s95, 1
      %s97 = scalar_select %p94, %s95, %s96
      %p100 = pneg %p94
      %p101 = scmp.eq.s32.totalorder %s10, 8
      %p102 = por %p100, %p101
      %p103 = scmp.ne.s32.totalorder %s95, %s98
      %p104 = scmp.eq.s32.totalorder %s10, 0
      %p105 = por %p103, %p104
      %p106 = scmp.ne.s32.totalorder %s95, %s98
      %p107 = scmp.eq.s32.totalorder %s15, 8
      %p108 = por %p106, %p107
      %p109 = scmp.ne.s32.totalorder %s98, %s99
      %p110 = scmp.eq.s32.totalorder %s15, 0
      %p111 = por %p109, %p110
      %p112 = scmp.ne.s32.totalorder %s98, %s99
      %p113 = scmp.eq.s32.totalorder %s16, 8
      %p114 = por %p112, %p113
      %p116 = scmp.ne.s32.totalorder %s99, %s115
      %p117 = scmp.eq.s32.totalorder %s16, 0
      %p118 = por %p116, %p117
      %s119 = ssub.s32 %s17, %s36
      %s120 = ssub.s32 %s18, %s32
      %s121 = sor.u32 %s119, %s120
      %p122 = scmp.eq.s32.totalorder %s121, 0
      %s124 = sadd.s32 %s123, 1
      %s125 = scalar_select %p122, %s123, %s124
      %p128 = pneg %p122
      %p129 = scmp.eq.s32.totalorder %s10, 8
      %p130 = por %p128, %p129
      %p131 = scmp.ne.s32.totalorder %s123, %s126
      %p132 = scmp.eq.s32.totalorder %s10, 0
      %p133 = por %p131, %p132
      %p134 = scmp.ne.s32.totalorder %s123, %s126
      %p135 = scmp.eq.s32.totalorder %s15, 8
      %p136 = por %p134, %p135
      %p137 = scmp.ne.s32.totalorder %s126, %s127
      %p138 = scmp.eq.s32.totalorder %s15, 0
      %p139 = por %p137, %p138
      %p140 = scmp.ne.s32.totalorder %s126, %s127
      %p141 = scmp.eq.s32.totalorder %s16, 8
      %p142 = por %p140, %p141
      %p144 = scmp.ne.s32.totalorder %s127, %s143
      %p145 = scmp.eq.s32.totalorder %s16, 0
      %p146 = por %p144, %p145
      %s147 = ssub.s32 %s17, %s36
      %s148 = ssub.s32 %s18, %s32
      %s149 = sor.u32 %s147, %s148
      %p150 = scmp.eq.s32.totalorder %s149, 0
      %s152 = sadd.s32 %s151, 1
      %s153 = scalar_select %p150, %s151, %s152
      %p156 = pneg %p150
      %p157 = scmp.eq.s32.totalorder %s10, 8
      %p158 = por %p156, %p157
      %p159 = scmp.ne.s32.totalorder %s151, %s154
      %p160 = scmp.eq.s32.totalorder %s10, 0
      %p161 = por %p159, %p160
      %p162 = scmp.ne.s32.totalorder %s151, %s154
      %p163 = scmp.eq.s32.totalorder %s15, 8
      %p164 = por %p162, %p163
      %p165 = scmp.ne.s32.totalorder %s154, %s155
      %p166 = scmp.eq.s32.totalorder %s15, 0
      %p167 = por %p165, %p166
      %p168 = scmp.ne.s32.totalorder %s154, %s155
      %p169 = scmp.eq.s32.totalorder %s16, 8
      %p170 = por %p168, %p169
      %p172 = scmp.ne.s32.totalorder %s155, %s171
      %p173 = scmp.eq.s32.totalorder %s16, 0
      %p174 = por %p172, %p173
      %p175 = scmp.le.s32.totalorder 1, %s10
      %p176 = scmp.lt.s32.totalorder %s10, 10
      %p177 = pnand %p175, %p176
      %p178 = pneg %p177
      // Predicated region
      $region9: #{closed_call.18} parent=5 // pred_check
        _
      $region10: #{closed_call.18} parent=5 // pred_check_branch
        %180 = sbr.rel (%p177) target = $region12
      $region11: #{closed_call.18} parent=5 // pred_region
        %s181 = ssub.s32 %s10, 1
      $region12: #{closed_call.18} parent=5 // pred_fallthru
        _
      %p182 = scmp.lt.s32.totalorder %s10, 9
      // Predicated region
      $region13: #{closed_call.18} parent=5 // pred_check
        %p183 = pneg %p182
      $region14: #{closed_call.18} parent=5 // pred_check_branch
        %185 = sbr.rel (%p183) target = $region16
      $region15: #{closed_call.18} parent=5 // pred_region
        // Predicated region
        $region17: #{closed_call.18} parent=15 // pred_check
          %p186 = pneg %p51
        $region18: #{closed_call.18} parent=15 // pred_check_branch
          %188 = sbr.rel (%p186) target = $region20
        $region19: #{closed_call.18} parent=15 // pred_region
          %s189 = sand.u32 %s41, 1
          %s190 = sand.u32 %s41, 1
          %s191 = smul.addr %s190, 16
          %s192 = scalar_lea.vmem [#allocation3], %s191
          %s193 = smul.u32 2, %s17
          %s194 = smul.u32 2, %s19
          %s195 = smul.addr %s193, 6
          %s196 = sadd.s32 %s194, %s195
          %s197 = smul.addr %s196, 4
          %s198 = scalar_lea.vmem %s0, %s197
          // Predicated region
          $region21: #{closed_call.18} parent=19 // pred_check
            _
          $region22: #{closed_call.18} parent=19 // pred_check_branch
            %200 = sbr.rel (0) target = $region24
          $region23: #{closed_call.18} parent=19 // pred_region
            // Predicated region
            $region25: #{closed_call.18} parent=23 // pred_check
              _
            $region26: #{closed_call.18} parent=23 // pred_check_branch
              %202 = sbr.rel (0) target = $region28
            $region27: #{closed_call.18} parent=23 // pred_region
              // Predicated region
              $region40: #{closed_call.18} parent=27 // pred_check
                _
              $region41: #{closed_call.18} parent=27 // pred_check_branch
                %219 = sbr.rel (0) target = $region43
              $region42: #{closed_call.18} parent=27 // pred_region
                loop: start=0, step=1, limit=1
                $region44: #{closed_call.18} parent=42 // loop_pre_header
                  _
                $region45: #{closed_call.18} parent=42 // loop_header
                  %s221 = sphi 0, %s225
                  %p222 = scmp.ge.s32.totalorder %s221, 1
                  %s226 = sphi %s198, %s198
                  %s227 = sphi %s192, %s192
                $region46: #{closed_call.18} parent=42 // loop_header_branch
                  %224 = sbr.rel (%p222) target = $region50
                $region47: #{closed_call.18} parent=42 // loop_body
                  %v228 = vld [vmem:[%s226] sm:$0xff]
                  %229 = vst [vmem:[%s227] sm:$0xff] %v228
                  %v230 = vld [vmem:[%s226 + $0x18] sm:$0xff]
                  %231 = vst [vmem:[%s227 + $0x8] sm:$0xff] %v230
                $region48: #{closed_call.18} parent=42 // loop_footer
                  %s225 = sadd.s32 1, %s221
                $region49: #{closed_call.18} parent=42 // loop_footer_branch
                  %220 = sbr.rel target = $region45
                $region50: #{closed_call.18} parent=42 // loop_exit
                  _
              $region43: #{closed_call.18} parent=27 // pred_fallthru
                _
              // Predicated region
              $region51: #{closed_call.18} parent=27 // pred_check
                _
              $region52: #{closed_call.18} parent=27 // pred_check_branch
                %233 = sbr.rel target = $region54
              $region53: #{closed_call.18} parent=27 // pred_region
                _
              $region54: #{closed_call.18} parent=27 // pred_fallthru
                _
            $region28: #{closed_call.18} parent=23 // pred_fallthru
              _
            // Predicated region
            $region29: #{closed_call.18} parent=23 // pred_check
              _
            $region30: #{closed_call.18} parent=23 // pred_check_branch
              %204 = sbr.rel target = $region32
            $region31: #{closed_call.18} parent=23 // pred_region
              loop: start=0, step=1, limit=1
              $region33: #{closed_call.18} parent=31 // loop_pre_header
                _
              $region34: #{closed_call.18} parent=31 // loop_header
                %s207 = sphi 0, %s211
                %p208 = scmp.ge.s32.totalorder %s207, 1
                %s212 = sphi %s198, %s198
                %s213 = sphi %s192, %s192
              $region35: #{closed_call.18} parent=31 // loop_header_branch
                %210 = sbr.rel (%p208) target = $region39
              $region36: #{closed_call.18} parent=31 // loop_body
                %v214 = vld [vmem:[%s212] sm:$0xff]
                %215 = vst [vmem:[%s213] sm:$0xff] %v214
                %v216 = vld [vmem:[%s212 + $0x18] sm:$0xff]
                %217 = vst [vmem:[%s213 + $0x8] sm:$0xff] %v216
              $region37: #{closed_call.18} parent=31 // loop_footer
                %s211 = sadd.s32 1, %s207
              $region38: #{closed_call.18} parent=31 // loop_footer_branch
                %206 = sbr.rel target = $region34
              $region39: #{closed_call.18} parent=31 // loop_exit
                _
            $region32: #{closed_call.18} parent=23 // pred_fallthru
              _
          $region24: #{closed_call.18} parent=19 // pred_fallthru
            _
          %234 = vnop
        $region20: #{closed_call.18} parent=15 // pred_fallthru
          _
        // Predicated region
        $region55: #{closed_call.18} parent=15 // pred_check
          %p235 = pneg %p79
        $region56: #{closed_call.18} parent=15 // pred_check_branch
          %237 = sbr.rel (%p235) target = $region58
        $region57: #{closed_call.18} parent=15 // pred_region
          %s238 = sand.u32 %s69, 1
          %s239 = sand.u32 %s69, 1
          %s240 = smul.addr %s239, 256
          %s241 = scalar_lea.vmem [#allocation4], %s240
          %s242 = smul.u32 32, %s19
          %s243 = smul.u32 2, %s18
          %s244 = smul.addr %s242, 6
          %s245 = sadd.s32 %s243, %s244
          %s246 = smul.addr %s245, 4
          %s247 = scalar_lea.vmem %s1, %s246
          // Predicated region
          $region59: #{closed_call.18} parent=57 // pred_check
            _
          $region60: #{closed_call.18} parent=57 // pred_check_branch
            %249 = sbr.rel (0) target = $region62
          $region61: #{closed_call.18} parent=57 // pred_region
            // Predicated region
            $region63: #{closed_call.18} parent=61 // pred_check
              _
            $region64: #{closed_call.18} parent=61 // pred_check_branch
              %251 = sbr.rel (0) target = $region66
            $region65: #{closed_call.18} parent=61 // pred_region
              // Predicated region
              $region78: #{closed_call.18} parent=65 // pred_check
                _
              $region79: #{closed_call.18} parent=65 // pred_check_branch
                %328 = sbr.rel (0) target = $region81
              $region80: #{closed_call.18} parent=65 // pred_region
                loop: start=0, step=1, limit=1
                $region82: #{closed_call.18} parent=80 // loop_pre_header
                  _
                $region83: #{closed_call.18} parent=80 // loop_header
                  %s330 = sphi 0, %s334
                  %p331 = scmp.ge.s32.totalorder %s330, 1
                  %s335 = sphi %s247, %s247
                  %s336 = sphi %s241, %s241
                $region84: #{closed_call.18} parent=80 // loop_header_branch
                  %333 = sbr.rel (%p331) target = $region88
                $region85: #{closed_call.18} parent=80 // loop_body
                  %v337 = vld [vmem:[%s335] sm:$0xff]
                  %338 = vst [vmem:[%s336] sm:$0xff] %v337
                  %v339 = vld [vmem:[%s335 + $0x18] sm:$0xff]
                  %340 = vst [vmem:[%s336 + $0x8] sm:$0xff] %v339
                  %v341 = vld [vmem:[%s335 + $0x30] sm:$0xff]
                  %342 = vst [vmem:[%s336 + $0x10] sm:$0xff] %v341
                  %v343 = vld [vmem:[%s335 + $0x48] sm:$0xff]
                  %344 = vst [vmem:[%s336 + $0x18] sm:$0xff] %v343
                  %v345 = vld [vmem:[%s335 + $0x60] sm:$0xff]
                  %346 = vst [vmem:[%s336 + $0x20] sm:$0xff] %v345
                  %v347 = vld [vmem:[%s335 + $0x78] sm:$0xff]
                  %348 = vst [vmem:[%s336 + $0x28] sm:$0xff] %v347
                  %v349 = vld [vmem:[%s335 + $0x90] sm:$0xff]
                  %350 = vst [vmem:[%s336 + $0x30] sm:$0xff] %v349
                  %v351 = vld [vmem:[%s335 + $0xa8] sm:$0xff]
                  %352 = vst [vmem:[%s336 + $0x38] sm:$0xff] %v351
                  %v353 = vld [vmem:[%s335 + $0xc0] sm:$0xff]
                  %354 = vst [vmem:[%s336 + $0x40] sm:$0xff] %v353
                  %v355 = vld [vmem:[%s335 + $0xd8] sm:$0xff]
                  %356 = vst [vmem:[%s336 + $0x48] sm:$0xff] %v355
                  %v357 = vld [vmem:[%s335 + $0xf0] sm:$0xff]
                  %358 = vst [vmem:[%s336 + $0x50] sm:$0xff] %v357
                  %v359 = vld [vmem:[%s335 + $0x108] sm:$0xff]
                  %360 = vst [vmem:[%s336 + $0x58] sm:$0xff] %v359
                  %v361 = vld [vmem:[%s335 + $0x120] sm:$0xff]
                  %362 = vst [vmem:[%s336 + $0x60] sm:$0xff] %v361
                  %v363 = vld [vmem:[%s335 + $0x138] sm:$0xff]
                  %364 = vst [vmem:[%s336 + $0x68] sm:$0xff] %v363
                  %v365 = vld [vmem:[%s335 + $0x150] sm:$0xff]
                  %366 = vst [vmem:[%s336 + $0x70] sm:$0xff] %v365
                  %v367 = vld [vmem:[%s335 + $0x168] sm:$0xff]
                  %368 = vst [vmem:[%s336 + $0x78] sm:$0xff] %v367
                  %v369 = vld [vmem:[%s335 + $0x180] sm:$0xff]
                  %370 = vst [vmem:[%s336 + $0x80] sm:$0xff] %v369
                  %v371 = vld [vmem:[%s335 + $0x198] sm:$0xff]
                  %372 = vst [vmem:[%s336 + $0x88] sm:$0xff] %v371
                  %v373 = vld [vmem:[%s335 + $0x1b0] sm:$0xff]
                  %374 = vst [vmem:[%s336 + $0x90] sm:$0xff] %v373
                  %v375 = vld [vmem:[%s335 + $0x1c8] sm:$0xff]
                  %376 = vst [vmem:[%s336 + $0x98] sm:$0xff] %v375
                  %v377 = vld [vmem:[%s335 + $0x1e0] sm:$0xff]
                  %378 = vst [vmem:[%s336 + $0xa0] sm:$0xff] %v377
                  %v379 = vld [vmem:[%s335 + $0x1f8] sm:$0xff]
                  %380 = vst [vmem:[%s336 + $0xa8] sm:$0xff] %v379
                  %v381 = vld [vmem:[%s335 + $0x210] sm:$0xff]
                  %382 = vst [vmem:[%s336 + $0xb0] sm:$0xff] %v381
                  %v383 = vld [vmem:[%s335 + $0x228] sm:$0xff]
                  %384 = vst [vmem:[%s336 + $0xb8] sm:$0xff] %v383
                  %v385 = vld [vmem:[%s335 + $0x240] sm:$0xff]
                  %386 = vst [vmem:[%s336 + $0xc0] sm:$0xff] %v385
                  %v387 = vld [vmem:[%s335 + $0x258] sm:$0xff]
                  %388 = vst [vmem:[%s336 + $0xc8] sm:$0xff] %v387
                  %v389 = vld [vmem:[%s335 + $0x270] sm:$0xff]
                  %390 = vst [vmem:[%s336 + $0xd0] sm:$0xff] %v389
                  %v391 = vld [vmem:[%s335 + $0x288] sm:$0xff]
                  %392 = vst [vmem:[%s336 + $0xd8] sm:$0xff] %v391
                  %v393 = vld [vmem:[%s335 + $0x2a0] sm:$0xff]
                  %394 = vst [vmem:[%s336 + $0xe0] sm:$0xff] %v393
                  %v395 = vld [vmem:[%s335 + $0x2b8] sm:$0xff]
                  %396 = vst [vmem:[%s336 + $0xe8] sm:$0xff] %v395
                  %v397 = vld [vmem:[%s335 + $0x2d0] sm:$0xff]
                  %398 = vst [vmem:[%s336 + $0xf0] sm:$0xff] %v397
                  %v399 = vld [vmem:[%s335 + $0x2e8] sm:$0xff]
                  %400 = vst [vmem:[%s336 + $0xf8] sm:$0xff] %v399
                $region86: #{closed_call.18} parent=80 // loop_footer
                  %s334 = sadd.s32 1, %s330
                $region87: #{closed_call.18} parent=80 // loop_footer_branch
                  %329 = sbr.rel target = $region83
                $region88: #{closed_call.18} parent=80 // loop_exit
                  _
              $region81: #{closed_call.18} parent=65 // pred_fallthru
                _
              // Predicated region
              $region89: #{closed_call.18} parent=65 // pred_check
                _
              $region90: #{closed_call.18} parent=65 // pred_check_branch
                %402 = sbr.rel target = $region92
              $region91: #{closed_call.18} parent=65 // pred_region
                _
              $region92: #{closed_call.18} parent=65 // pred_fallthru
                _
            $region66: #{closed_call.18} parent=61 // pred_fallthru
              _
            // Predicated region
            $region67: #{closed_call.18} parent=61 // pred_check
              _
            $region68: #{closed_call.18} parent=61 // pred_check_branch
              %253 = sbr.rel target = $region70
            $region69: #{closed_call.18} parent=61 // pred_region
              loop: start=0, step=1, limit=1
              $region71: #{closed_call.18} parent=69 // loop_pre_header
                _
              $region72: #{closed_call.18} parent=69 // loop_header
                %s256 = sphi 0, %s260
                %p257 = scmp.ge.s32.totalorder %s256, 1
                %s261 = sphi %s247, %s247
                %s262 = sphi %s241, %s241
              $region73: #{closed_call.18} parent=69 // loop_header_branch
                %259 = sbr.rel (%p257) target = $region77
              $region74: #{closed_call.18} parent=69 // loop_body
                %v263 = vld [vmem:[%s261] sm:$0xff]
                %264 = vst [vmem:[%s262] sm:$0xff] %v263
                %v265 = vld [vmem:[%s261 + $0x18] sm:$0xff]
                %266 = vst [vmem:[%s262 + $0x8] sm:$0xff] %v265
                %v267 = vld [vmem:[%s261 + $0x30] sm:$0xff]
                %268 = vst [vmem:[%s262 + $0x10] sm:$0xff] %v267
                %v269 = vld [vmem:[%s261 + $0x48] sm:$0xff]
                %270 = vst [vmem:[%s262 + $0x18] sm:$0xff] %v269
                %v271 = vld [vmem:[%s261 + $0x60] sm:$0xff]
                %272 = vst [vmem:[%s262 + $0x20] sm:$0xff] %v271
                %v273 = vld [vmem:[%s261 + $0x78] sm:$0xff]
                %274 = vst [vmem:[%s262 + $0x28] sm:$0xff] %v273
                %v275 = vld [vmem:[%s261 + $0x90] sm:$0xff]
                %276 = vst [vmem:[%s262 + $0x30] sm:$0xff] %v275
                %v277 = vld [vmem:[%s261 + $0xa8] sm:$0xff]
                %278 = vst [vmem:[%s262 + $0x38] sm:$0xff] %v277
                %v279 = vld [vmem:[%s261 + $0xc0] sm:$0xff]
                %280 = vst [vmem:[%s262 + $0x40] sm:$0xff] %v279
                %v281 = vld [vmem:[%s261 + $0xd8] sm:$0xff]
                %282 = vst [vmem:[%s262 + $0x48] sm:$0xff] %v281
                %v283 = vld [vmem:[%s261 + $0xf0] sm:$0xff]
                %284 = vst [vmem:[%s262 + $0x50] sm:$0xff] %v283
                %v285 = vld [vmem:[%s261 + $0x108] sm:$0xff]
                %286 = vst [vmem:[%s262 + $0x58] sm:$0xff] %v285
                %v287 = vld [vmem:[%s261 + $0x120] sm:$0xff]
                %288 = vst [vmem:[%s262 + $0x60] sm:$0xff] %v287
                %v289 = vld [vmem:[%s261 + $0x138] sm:$0xff]
                %290 = vst [vmem:[%s262 + $0x68] sm:$0xff] %v289
                %v291 = vld [vmem:[%s261 + $0x150] sm:$0xff]
                %292 = vst [vmem:[%s262 + $0x70] sm:$0xff] %v291
                %v293 = vld [vmem:[%s261 + $0x168] sm:$0xff]
                %294 = vst [vmem:[%s262 + $0x78] sm:$0xff] %v293
                %v295 = vld [vmem:[%s261 + $0x180] sm:$0xff]
                %296 = vst [vmem:[%s262 + $0x80] sm:$0xff] %v295
                %v297 = vld [vmem:[%s261 + $0x198] sm:$0xff]
                %298 = vst [vmem:[%s262 + $0x88] sm:$0xff] %v297
                %v299 = vld [vmem:[%s261 + $0x1b0] sm:$0xff]
                %300 = vst [vmem:[%s262 + $0x90] sm:$0xff] %v299
                %v301 = vld [vmem:[%s261 + $0x1c8] sm:$0xff]
                %302 = vst [vmem:[%s262 + $0x98] sm:$0xff] %v301
                %v303 = vld [vmem:[%s261 + $0x1e0] sm:$0xff]
                %304 = vst [vmem:[%s262 + $0xa0] sm:$0xff] %v303
                %v305 = vld [vmem:[%s261 + $0x1f8] sm:$0xff]
                %306 = vst [vmem:[%s262 + $0xa8] sm:$0xff] %v305
                %v307 = vld [vmem:[%s261 + $0x210] sm:$0xff]
                %308 = vst [vmem:[%s262 + $0xb0] sm:$0xff] %v307
                %v309 = vld [vmem:[%s261 + $0x228] sm:$0xff]
                %310 = vst [vmem:[%s262 + $0xb8] sm:$0xff] %v309
                %v311 = vld [vmem:[%s261 + $0x240] sm:$0xff]
                %312 = vst [vmem:[%s262 + $0xc0] sm:$0xff] %v311
                %v313 = vld [vmem:[%s261 + $0x258] sm:$0xff]
                %314 = vst [vmem:[%s262 + $0xc8] sm:$0xff] %v313
                %v315 = vld [vmem:[%s261 + $0x270] sm:$0xff]
                %316 = vst [vmem:[%s262 + $0xd0] sm:$0xff] %v315
                %v317 = vld [vmem:[%s261 + $0x288] sm:$0xff]
                %318 = vst [vmem:[%s262 + $0xd8] sm:$0xff] %v317
                %v319 = vld [vmem:[%s261 + $0x2a0] sm:$0xff]
                %320 = vst [vmem:[%s262 + $0xe0] sm:$0xff] %v319
                %v321 = vld [vmem:[%s261 + $0x2b8] sm:$0xff]
                %322 = vst [vmem:[%s262 + $0xe8] sm:$0xff] %v321
                %v323 = vld [vmem:[%s261 + $0x2d0] sm:$0xff]
                %324 = vst [vmem:[%s262 + $0xf0] sm:$0xff] %v323
                %v325 = vld [vmem:[%s261 + $0x2e8] sm:$0xff]
                %326 = vst [vmem:[%s262 + $0xf8] sm:$0xff] %v325
              $region75: #{closed_call.18} parent=69 // loop_footer
                %s260 = sadd.s32 1, %s256
              $region76: #{closed_call.18} parent=69 // loop_footer_branch
                %255 = sbr.rel target = $region72
              $region77: #{closed_call.18} parent=69 // loop_exit
                _
            $region70: #{closed_call.18} parent=61 // pred_fallthru
              _
          $region62: #{closed_call.18} parent=57 // pred_fallthru
            _
          %403 = vnop
        $region58: #{closed_call.18} parent=15 // pred_fallthru
          _
        // Predicated region
        $region93: #{closed_call.18} parent=15 // pred_check
          %p404 = pneg %p105
        $region94: #{closed_call.18} parent=15 // pred_check_branch
          %406 = sbr.rel (%p404) target = $region96
        $region95: #{closed_call.18} parent=15 // pred_region
          %s407 = smul.u32 2, %s18
          %p408 = scmp.lt.s32.totalorder %s407, 5
          %s409 = scalar_select %p408, %s407, 5
          %s410 = scalar_lea.vmem %s2, %s409
          %s411 = smul.u32 2, %s18
        $region96: #{closed_call.18} parent=15 // pred_fallthru
          _
        // Predicated region
        $region97: #{closed_call.18} parent=15 // pred_check
          %p412 = pneg %p133
        $region98: #{closed_call.18} parent=15 // pred_check_branch
          %414 = sbr.rel (%p412) target = $region100
        $region99: #{closed_call.18} parent=15 // pred_region
          %s415 = sand.u32 %s123, 1
          %s416 = sand.u32 %s123, 1
          %s417 = smul.addr %s416, 16
          %s418 = scalar_lea.vmem [#allocation5], %s417
          %s419 = smul.u32 2, %s17
          %s420 = smul.u32 2, %s18
          %s421 = smul.addr %s419, 6
          %s422 = sadd.s32 %s420, %s421
          %s423 = smul.addr %s422, 4
          %s424 = scalar_lea.vmem %s3, %s423
          // Predicated region
          $region101: #{closed_call.18} parent=99 // pred_check
            _
          $region102: #{closed_call.18} parent=99 // pred_check_branch
            %426 = sbr.rel (0) target = $region104
          $region103: #{closed_call.18} parent=99 // pred_region
            // Predicated region
            $region105: #{closed_call.18} parent=103 // pred_check
              _
            $region106: #{closed_call.18} parent=103 // pred_check_branch
              %428 = sbr.rel (0) target = $region108
            $region107: #{closed_call.18} parent=103 // pred_region
              // Predicated region
              $region120: #{closed_call.18} parent=107 // pred_check
                _
              $region121: #{closed_call.18} parent=107 // pred_check_branch
                %445 = sbr.rel (0) target = $region123
              $region122: #{closed_call.18} parent=107 // pred_region
                loop: start=0, step=1, limit=1
                $region124: #{closed_call.18} parent=122 // loop_pre_header
                  _
                $region125: #{closed_call.18} parent=122 // loop_header
                  %s447 = sphi 0, %s451
                  %p448 = scmp.ge.s32.totalorder %s447, 1
                  %s452 = sphi %s424, %s424
                  %s453 = sphi %s418, %s418
                $region126: #{closed_call.18} parent=122 // loop_header_branch
                  %450 = sbr.rel (%p448) target = $region130
                $region127: #{closed_call.18} parent=122 // loop_body
                  %v454 = vld [vmem:[%s452] sm:$0xff]
                  %455 = vst [vmem:[%s453] sm:$0xff] %v454
                  %v456 = vld [vmem:[%s452 + $0x18] sm:$0xff]
                  %457 = vst [vmem:[%s453 + $0x8] sm:$0xff] %v456
                $region128: #{closed_call.18} parent=122 // loop_footer
                  %s451 = sadd.s32 1, %s447
                $region129: #{closed_call.18} parent=122 // loop_footer_branch
                  %446 = sbr.rel target = $region125
                $region130: #{closed_call.18} parent=122 // loop_exit
                  _
              $region123: #{closed_call.18} parent=107 // pred_fallthru
                _
              // Predicated region
              $region131: #{closed_call.18} parent=107 // pred_check
                _
              $region132: #{closed_call.18} parent=107 // pred_check_branch
                %459 = sbr.rel target = $region134
              $region133: #{closed_call.18} parent=107 // pred_region
                _
              $region134: #{closed_call.18} parent=107 // pred_fallthru
                _
            $region108: #{closed_call.18} parent=103 // pred_fallthru
              _
            // Predicated region
            $region109: #{closed_call.18} parent=103 // pred_check
              _
            $region110: #{closed_call.18} parent=103 // pred_check_branch
              %430 = sbr.rel target = $region112
            $region111: #{closed_call.18} parent=103 // pred_region
              loop: start=0, step=1, limit=1
              $region113: #{closed_call.18} parent=111 // loop_pre_header
                _
              $region114: #{closed_call.18} parent=111 // loop_header
                %s433 = sphi 0, %s437
                %p434 = scmp.ge.s32.totalorder %s433, 1
                %s438 = sphi %s424, %s424
                %s439 = sphi %s418, %s418
              $region115: #{closed_call.18} parent=111 // loop_header_branch
                %436 = sbr.rel (%p434) target = $region119
              $region116: #{closed_call.18} parent=111 // loop_body
                %v440 = vld [vmem:[%s438] sm:$0xff]
                %441 = vst [vmem:[%s439] sm:$0xff] %v440
                %v442 = vld [vmem:[%s438 + $0x18] sm:$0xff]
                %443 = vst [vmem:[%s439 + $0x8] sm:$0xff] %v442
              $region117: #{closed_call.18} parent=111 // loop_footer
                %s437 = sadd.s32 1, %s433
              $region118: #{closed_call.18} parent=111 // loop_footer_branch
                %432 = sbr.rel target = $region114
              $region119: #{closed_call.18} parent=111 // loop_exit
                _
            $region112: #{closed_call.18} parent=103 // pred_fallthru
              _
          $region104: #{closed_call.18} parent=99 // pred_fallthru
            _
          %460 = vnop
        $region100: #{closed_call.18} parent=15 // pred_fallthru
          _
      $region16: #{closed_call.18} parent=5 // pred_fallthru
        _
      %p461 = scmp.le.s32.totalorder 1, %s10
      %p462 = scmp.lt.s32.totalorder %s10, 10
      %p463 = pnand %p461, %p462
      %p464 = pneg %p463
      // Predicated region
      $region135: #{closed_call.18} parent=5 // pred_check
        _
      $region136: #{closed_call.18} parent=5 // pred_check_branch
        %466 = sbr.rel (%p463) target = $region138
      $region137: #{closed_call.18} parent=5 // pred_region
        %s467 = ssub.s32 %s10, 1
        %s468 = sand.u32 %s44, 1
        %s469 = sand.u32 %s44, 1
        %s470 = smul.addr %s469, 16
        %s471 = scalar_lea.vmem [#allocation3], %s470
        // Predicated region
        $region139: #{closed_call.18} parent=137 // pred_check
          %p472 = pneg %p57
        $region140: #{closed_call.18} parent=137 // pred_check_branch
          %474 = sbr.rel (%p472) target = $region142
        $region141: #{closed_call.18} parent=137 // pred_region
          _
        $region142: #{closed_call.18} parent=137 // pred_fallthru
          _
        %s475 = sand.u32 %s72, 1
        %s476 = sand.u32 %s72, 1
        %s477 = smul.addr %s476, 256
        %s478 = scalar_lea.vmem [#allocation4], %s477
        // Predicated region
        $region143: #{closed_call.18} parent=137 // pred_check
          %p479 = pneg %p85
        $region144: #{closed_call.18} parent=137 // pred_check_branch
          %481 = sbr.rel (%p479) target = $region146
        $region145: #{closed_call.18} parent=137 // pred_region
          _
        $region146: #{closed_call.18} parent=137 // pred_fallthru
          _
        %s482 = sand.u32 %s126, 1
        %s483 = sand.u32 %s126, 1
        %s484 = smul.addr %s483, 16
        %s485 = scalar_lea.vmem [#allocation5], %s484
        // Predicated region
        $region147: #{closed_call.18} parent=137 // pred_check
          %p486 = pneg %p139
        $region148: #{closed_call.18} parent=137 // pred_check_branch
          %488 = sbr.rel (%p486) target = $region150
        $region149: #{closed_call.18} parent=137 // pred_region
          _
        $region150: #{closed_call.18} parent=137 // pred_fallthru
          _
        %s489 = sand.u32 %s44, 1
        %s490 = sand.u32 %s44, 1
        %s491 = smul.addr %s490, 16
        %s492 = scalar_lea.vmem [#allocation3], %s491
        %p493 = pneg %p57
        %p494 = pneg %p54
        %s495 = sand.u32 %s72, 1
        %s496 = sand.u32 %s72, 1
        %s497 = smul.addr %s496, 256
        %s498 = scalar_lea.vmem [#allocation4], %s497
        %p499 = pneg %p85
        %p500 = pneg %p82
        %s501 = smul.u32 2, %s21
        %p502 = scmp.lt.s32.totalorder %s501, 5
        %s503 = scalar_select %p502, %s501, 5
        %s504 = scalar_lea.vmem %s2, %s503
        %p505 = pneg %p111
        %p506 = pneg %p108
        %s507 = sand.u32 %s126, 1
        %s508 = sand.u32 %s126, 1
        %s509 = smul.addr %s508, 16
        %s510 = scalar_lea.vmem [#allocation5], %s509
        %p511 = pneg %p139
        %p512 = pneg %p136
        %p513 = pneg %p167
        %p514 = pneg %p164
        %s515 = sand.u32 %s154, 1
        %s516 = sand.u32 %s154, 1
        %s517 = smul.addr %s516, 16
        %s518 = scalar_lea.vmem [#allocation6], %s517
        %s519 = smul.u32 2, %s20
        %s520 = smul.u32 2, %s22
        %s521 = smul.u32 32, %s22
        %s522 = smul.u32 2, %s21
        %s523 = smul.u32 2, %s21
        %p524 = scmp.lt.s32.totalorder %s523, 5
        %s525 = scalar_select %p524, %s523, 5
        %s526 = scalar_lea.vmem %s2, %s525
        %s527 = smul.u32 2, %s21
        %s528 = smul.u32 2, %s20
        %s529 = smul.u32 2, %s21
        %s530 = smul.u32 2, %s20
        %s531 = smul.u32 2, %s21
        %p532 = scmp.eq.s32.totalorder %s22, 0
        // Predicated region
        $region151: #{closed_call.18} parent=137 // pred_check
          %p533 = pneg %p532
        $region152: #{closed_call.18} parent=137 // pred_check_branch
          %535 = sbr.rel (%p533) target = $region154
        $region153: #{closed_call.18} parent=137 // pred_region
          %536 = vst [vmem:[#allocation2] sm:$0xff] 0.0
          %537 = vst [vmem:[#allocation2 + $0x8] sm:$0xff] 0.0
          %538 = vst [vmem:[#allocation2 + $0x10] sm:$0xff] 0.0
          %539 = vst [vmem:[#allocation2 + $0x18] sm:$0xff] 0.0
        $region154: #{closed_call.18} parent=137 // pred_fallthru
          _
        %v540 = vld [vmem:[#allocation2] sm:$0xff]
        %v541 = vld [vmem:[#allocation2 + $0x8] sm:$0xff]
        %v542 = vld [vmem:[#allocation2 + $0x10] sm:$0xff]
        %v543 = vld [vmem:[#allocation2 + $0x18] sm:$0xff]
        %v544 = vld [vmem:[%s471] sm:$0xff]
        %v545 = vld [vmem:[%s471 + $0x8] sm:$0xff]
        %v546 = vld [vmem:[%s478] sm:$0xff]
        %v547 = vld [vmem:[%s478 + $0x8] sm:$0xff]
        %v548 = vld [vmem:[%s478 + $0x10] sm:$0xff]
        %v549 = vld [vmem:[%s478 + $0x18] sm:$0xff]
        %v550 = vld [vmem:[%s478 + $0x20] sm:$0xff]
        %v551 = vld [vmem:[%s478 + $0x28] sm:$0xff]
        %v552 = vld [vmem:[%s478 + $0x30] sm:$0xff]
        %v553 = vld [vmem:[%s478 + $0x38] sm:$0xff]
        %v554 = vld [vmem:[%s478 + $0x40] sm:$0xff]
        %v555 = vld [vmem:[%s478 + $0x48] sm:$0xff]
        %v556 = vld [vmem:[%s478 + $0x50] sm:$0xff]
        %v557 = vld [vmem:[%s478 + $0x58] sm:$0xff]
        %v558 = vld [vmem:[%s478 + $0x60] sm:$0xff]
        %v559 = vld [vmem:[%s478 + $0x68] sm:$0xff]
        %v560 = vld [vmem:[%s478 + $0x70] sm:$0xff]
        %v561 = vld [vmem:[%s478 + $0x78] sm:$0xff]
        %v562 = vld [vmem:[%s478 + $0x80] sm:$0xff]
        %v563 = vld [vmem:[%s478 + $0x88] sm:$0xff]
        %v564 = vld [vmem:[%s478 + $0x90] sm:$0xff]
        %v565 = vld [vmem:[%s478 + $0x98] sm:$0xff]
        %v566 = vld [vmem:[%s478 + $0xa0] sm:$0xff]
        %v567 = vld [vmem:[%s478 + $0xa8] sm:$0xff]
        %v568 = vld [vmem:[%s478 + $0xb0] sm:$0xff]
        %v569 = vld [vmem:[%s478 + $0xb8] sm:$0xff]
        %v570 = vld [vmem:[%s478 + $0xc0] sm:$0xff]
        %v571 = vld [vmem:[%s478 + $0xc8] sm:$0xff]
        %v572 = vld [vmem:[%s478 + $0xd0] sm:$0xff]
        %v573 = vld [vmem:[%s478 + $0xd8] sm:$0xff]
        %v574 = vld [vmem:[%s478 + $0xe0] sm:$0xff]
        %v575 = vld [vmem:[%s478 + $0xe8] sm:$0xff]
        %v576 = vld [vmem:[%s478 + $0xf0] sm:$0xff]
        %v577 = vld [vmem:[%s478 + $0xf8] sm:$0xff]
        %v580 = vunpack.c.l.b16 %v544
        %v581 = vunpack.c.h.b16 %v544
        %v582 = vunpack.c.l.b16 %v545
        %v583 = vunpack.c.h.b16 %v545
        %v584 = vpack.c.b16 %v582, %v580
        %v585 = vpack.c.b16 %v583, %v581
        %v620 = vunpack.c.l.b16 %v546
        %v621 = vunpack.c.h.b16 %v546
        %v622 = vunpack.c.l.b16 %v547
        %v623 = vunpack.c.h.b16 %v547
        %v624 = vunpack.c.l.b16 %v548
        %v625 = vunpack.c.h.b16 %v548
        %v626 = vunpack.c.l.b16 %v549
        %v627 = vunpack.c.h.b16 %v549
        %v628 = vunpack.c.l.b16 %v550
        %v629 = vunpack.c.h.b16 %v550
        %v630 = vunpack.c.l.b16 %v551
        %v631 = vunpack.c.h.b16 %v551
        %v632 = vunpack.c.l.b16 %v552
        %v633 = vunpack.c.h.b16 %v552
        %v634 = vunpack.c.l.b16 %v553
        %v635 = vunpack.c.h.b16 %v553
        %v636 = vunpack.c.l.b16 %v554
        %v637 = vunpack.c.h.b16 %v554
        %v638 = vunpack.c.l.b16 %v555
        %v639 = vunpack.c.h.b16 %v555
        %v640 = vunpack.c.l.b16 %v556
        %v641 = vunpack.c.h.b16 %v556
        %v642 = vunpack.c.l.b16 %v557
        %v643 = vunpack.c.h.b16 %v557
        %v644 = vunpack.c.l.b16 %v558
        %v645 = vunpack.c.h.b16 %v558
        %v646 = vunpack.c.l.b16 %v559
        %v647 = vunpack.c.h.b16 %v559
        %v648 = vunpack.c.l.b16 %v560
        %v649 = vunpack.c.h.b16 %v560
        %v650 = vunpack.c.l.b16 %v561
        %v651 = vunpack.c.h.b16 %v561
        %v652 = vunpack.c.l.b16 %v562
        %v653 = vunpack.c.h.b16 %v562
        %v654 = vunpack.c.l.b16 %v563
        %v655 = vunpack.c.h.b16 %v563
        %v656 = vunpack.c.l.b16 %v564
        %v657 = vunpack.c.h.b16 %v564
        %v658 = vunpack.c.l.b16 %v565
        %v659 = vunpack.c.h.b16 %v565
        %v660 = vunpack.c.l.b16 %v566
        %v661 = vunpack.c.h.b16 %v566
        %v662 = vunpack.c.l.b16 %v567
        %v663 = vunpack.c.h.b16 %v567
        %v664 = vunpack.c.l.b16 %v568
        %v665 = vunpack.c.h.b16 %v568
        %v666 = vunpack.c.l.b16 %v569
        %v667 = vunpack.c.h.b16 %v569
        %v668 = vunpack.c.l.b16 %v570
        %v669 = vunpack.c.h.b16 %v570
        %v670 = vunpack.c.l.b16 %v571
        %v671 = vunpack.c.h.b16 %v571
        %v672 = vunpack.c.l.b16 %v572
        %v673 = vunpack.c.h.b16 %v572
        %v674 = vunpack.c.l.b16 %v573
        %v675 = vunpack.c.h.b16 %v573
        %v676 = vunpack.c.l.b16 %v574
        %v677 = vunpack.c.h.b16 %v574
        %v678 = vunpack.c.l.b16 %v575
        %v679 = vunpack.c.h.b16 %v575
        %v680 = vunpack.c.l.b16 %v576
        %v681 = vunpack.c.h.b16 %v576
        %v682 = vunpack.c.l.b16 %v577
        %v683 = vunpack.c.h.b16 %v577
        %v684 = vpack.c.b16 %v622, %v620
        %v685 = vpack.c.b16 %v623, %v621
        %v686 = vpack.c.b16 %v626, %v624
        %v687 = vpack.c.b16 %v627, %v625
        %v688 = vpack.c.b16 %v630, %v628
        %v689 = vpack.c.b16 %v631, %v629
        %v690 = vpack.c.b16 %v634, %v632
        %v691 = vpack.c.b16 %v635, %v633
        %v692 = vpack.c.b16 %v638, %v636
        %v693 = vpack.c.b16 %v639, %v637
        %v694 = vpack.c.b16 %v642, %v640
        %v695 = vpack.c.b16 %v643, %v641
        %v696 = vpack.c.b16 %v646, %v644
        %v697 = vpack.c.b16 %v647, %v645
        %v698 = vpack.c.b16 %v650, %v648
        %v699 = vpack.c.b16 %v651, %v649
        %v700 = vpack.c.b16 %v654, %v652
        %v701 = vpack.c.b16 %v655, %v653
        %v702 = vpack.c.b16 %v658, %v656
        %v703 = vpack.c.b16 %v659, %v657
        %v704 = vpack.c.b16 %v662, %v660
        %v705 = vpack.c.b16 %v663, %v661
        %v706 = vpack.c.b16 %v666, %v664
        %v707 = vpack.c.b16 %v667, %v665
        %v708 = vpack.c.b16 %v670, %v668
        %v709 = vpack.c.b16 %v671, %v669
        %v710 = vpack.c.b16 %v674, %v672
        %v711 = vpack.c.b16 %v675, %v673
        %v712 = vpack.c.b16 %v678, %v676
        %v713 = vpack.c.b16 %v679, %v677
        %v714 = vpack.c.b16 %v682, %v680
        %v715 = vpack.c.b16 %v683, %v681
        %748 = vmatprep.subr.bf16.mxu0 %v685
        %749 = vmatpush1.bf16.msra.mxu0 %v684
        %750 = vmatprep.subr.bf16.mxu0 %v687
        %751 = vmatpush1.bf16.msra.mxu0 %v686
        %752 = vmatprep.subr.bf16.mxu0 %v689
        %753 = vmatpush1.bf16.msra.mxu0 %v688
        %754 = vmatprep.subr.bf16.mxu0 %v691
        %755 = vmatpush1.bf16.msra.mxu0 %v690
        %756 = vmatprep.subr.bf16.mxu0 %v693
        %757 = vmatpush1.bf16.msra.mxu0 %v692
        %758 = vmatprep.subr.bf16.mxu0 %v695
        %759 = vmatpush1.bf16.msra.mxu0 %v694
        %760 = vmatprep.subr.bf16.mxu0 %v697
        %761 = vmatpush1.bf16.msra.mxu0 %v696
        %762 = vmatprep.subr.bf16.mxu0 %v699
        %763 = vmatpush1.bf16.msra.mxu0 %v698
        %764 = vmatprep.subr.bf16.mxu0 %v701
        %765 = vmatpush1.bf16.msra.mxu0 %v700
        %766 = vmatprep.subr.bf16.mxu0 %v703
        %767 = vmatpush1.bf16.msra.mxu0 %v702
        %768 = vmatprep.subr.bf16.mxu0 %v705
        %769 = vmatpush1.bf16.msra.mxu0 %v704
        %770 = vmatprep.subr.bf16.mxu0 %v707
        %771 = vmatpush1.bf16.msra.mxu0 %v706
        %772 = vmatprep.subr.bf16.mxu0 %v709
        %773 = vmatpush1.bf16.msra.mxu0 %v708
        %774 = vmatprep.subr.bf16.mxu0 %v711
        %775 = vmatpush1.bf16.msra.mxu0 %v710
        %776 = vmatprep.subr.bf16.mxu0 %v713
        %777 = vmatpush1.bf16.msra.mxu0 %v712
        %778 = vmatprep.subr.bf16.mxu0 %v715
        %779 = vmatpush1.bf16.msra.mxu0 %v714
        %780 = vmatprep.mubr.bf16.mxu0 %v585
        %781 = vmatmul.mubr.bf16.gmra.mrb[0].mxu0 %v584
        %v782 = vpop.f32.mrb[0].mxu0
        %v783 = vadd.f32 0.0, %v782
        %v784 = vpop.f32.mrb[0].mxu0
        %v785 = vadd.f32 0.0, %v784
        %v786 = vpop.f32.mrb[0].mxu0
        %v787 = vadd.f32 0.0, %v786
        %v788 = vpop.f32.mrb[0].mxu0
        %v789 = vadd.f32 0.0, %v788
        %790 = vdwg.mxu0
        %v791 = vadd.f32 %v540, %v783
        %v792 = vadd.f32 %v541, %v785
        %v793 = vadd.f32 %v542, %v787
        %v794 = vadd.f32 %v543, %v789
        %795 = vst [vmem:[#allocation2] sm:$0xff] %v791
        %796 = vst [vmem:[#allocation2 + $0x8] sm:$0xff] %v792
        %797 = vst [vmem:[#allocation2 + $0x10] sm:$0xff] %v793
        %798 = vst [vmem:[#allocation2 + $0x18] sm:$0xff] %v794
        %p799 = scmp.eq.s32.totalorder %s22, 2
        // Predicated region
        $region155: #{closed_call.18} parent=137 // pred_check
          %p800 = pneg %p799
        $region156: #{closed_call.18} parent=137 // pred_check_branch
          %802 = sbr.rel (%p800) target = $region158
        $region157: #{closed_call.18} parent=137 // pred_region
          %v803 = vld [vmem:[#allocation2] sm:$0xff]
          %v804 = vld [vmem:[#allocation2 + $0x8] sm:$0xff]
          %v805 = vld [vmem:[#allocation2 + $0x10] sm:$0xff]
          %v806 = vld [vmem:[#allocation2 + $0x18] sm:$0xff]
          %v807 = vld [vmem:[%s526] sm:$0x3]
          %v809 = vlaneseq
          %v810 = vshrl.u32 %v809, 7
          %v811 = vsub.s32 0, %v810
          %v812 = vrot.slane %v807, %v811
          %v813 = vlaneseq
          %v814 = vshrl.u32 %v813, 7
          %v815 = vsub.s32 1, %v814
          %v816 = vrot.slane %v807, %v815
          %v819 = vadd.f32 %v803, %v812
          %v820 = vadd.f32 %v804, %v816
          %v821 = vadd.f32 %v805, %v812
          %v822 = vadd.f32 %v806, %v816
          %v823 = vld [vmem:[%s485] sm:$0xff]
          %v824 = vld [vmem:[%s485 + $0x8] sm:$0xff]
          %v825 = vunpack.c.l.bf16 %v823
          %v826 = vunpack.c.h.bf16 %v823
          %v827 = vunpack.c.l.bf16 %v824
          %v828 = vunpack.c.h.bf16 %v824
          %v829 = vadd.f32 %v819, %v825
          %v830 = vadd.f32 %v820, %v826
          %v831 = vadd.f32 %v821, %v827
          %v832 = vadd.f32 %v822, %v828
          %v833 = vpack.c.bf16 %v831, %v829
          %v834 = vpack.c.bf16 %v832, %v830
          %v837 = vunpack.c.l.b16 %v833
          %v838 = vunpack.c.l.b16 %v834
          %v839 = vunpack.c.h.b16 %v833
          %v840 = vunpack.c.h.b16 %v834
          %v841 = vpack.c.b16 %v838, %v837
          %v842 = vpack.c.b16 %v840, %v839
          %845 = vst [vmem:[%s518] sm:$0xff] %v841
          %846 = vst [vmem:[%s518 + $0x8] sm:$0xff] %v842
        $region158: #{closed_call.18} parent=137 // pred_fallthru
          _
        %s847 = sand.u32 %s154, 1
        %s848 = sand.u32 %s154, 1
        %s849 = smul.addr %s848, 16
        %s850 = scalar_lea.vmem [#allocation6], %s849
        // Predicated region
        $region159: #{closed_call.18} parent=137 // pred_check
          %p851 = pneg %p164
        $region160: #{closed_call.18} parent=137 // pred_check_branch
          %853 = sbr.rel (%p851) target = $region162
        $region161: #{closed_call.18} parent=137 // pred_region
          %s854 = smul.u32 2, %s20
          %s855 = smul.u32 2, %s21
          %s856 = smul.addr %s854, 6
          %s857 = sadd.s32 %s855, %s856
          %s858 = smul.addr %s857, 4
          %s859 = scalar_lea.vmem %s4, %s858
          // Predicated region
          $region163: #{closed_call.18} parent=161 // pred_check
            _
          $region164: #{closed_call.18} parent=161 // pred_check_branch
            %861 = sbr.rel (0) target = $region166
          $region165: #{closed_call.18} parent=161 // pred_region
            // Predicated region
            $region167: #{closed_call.18} parent=165 // pred_check
              _
            $region168: #{closed_call.18} parent=165 // pred_check_branch
              %863 = sbr.rel (0) target = $region170
            $region169: #{closed_call.18} parent=165 // pred_region
              // Predicated region
              $region182: #{closed_call.18} parent=169 // pred_check
                _
              $region183: #{closed_call.18} parent=169 // pred_check_branch
                %880 = sbr.rel (0) target = $region185
              $region184: #{closed_call.18} parent=169 // pred_region
                loop: start=0, step=1, limit=1
                $region186: #{closed_call.18} parent=184 // loop_pre_header
                  _
                $region187: #{closed_call.18} parent=184 // loop_header
                  %s882 = sphi 0, %s886
                  %p883 = scmp.ge.s32.totalorder %s882, 1
                  %s887 = sphi %s850, %s850
                  %s888 = sphi %s859, %s859
                $region188: #{closed_call.18} parent=184 // loop_header_branch
                  %885 = sbr.rel (%p883) target = $region192
                $region189: #{closed_call.18} parent=184 // loop_body
                  %v889 = vld [vmem:[%s887] sm:$0xff]
                  %890 = vst [vmem:[%s888] sm:$0xff] %v889
                  %v891 = vld [vmem:[%s887 + $0x8] sm:$0xff]
                  %892 = vst [vmem:[%s888 + $0x18] sm:$0xff] %v891
                $region190: #{closed_call.18} parent=184 // loop_footer
                  %s886 = sadd.s32 1, %s882
                $region191: #{closed_call.18} parent=184 // loop_footer_branch
                  %881 = sbr.rel target = $region187
                $region192: #{closed_call.18} parent=184 // loop_exit
                  _
              $region185: #{closed_call.18} parent=169 // pred_fallthru
                _
              // Predicated region
              $region193: #{closed_call.18} parent=169 // pred_check
                _
              $region194: #{closed_call.18} parent=169 // pred_check_branch
                %894 = sbr.rel target = $region196
              $region195: #{closed_call.18} parent=169 // pred_region
                _
              $region196: #{closed_call.18} parent=169 // pred_fallthru
                _
            $region170: #{closed_call.18} parent=165 // pred_fallthru
              _
            // Predicated region
            $region171: #{closed_call.18} parent=165 // pred_check
              _
            $region172: #{closed_call.18} parent=165 // pred_check_branch
              %865 = sbr.rel target = $region174
            $region173: #{closed_call.18} parent=165 // pred_region
              loop: start=0, step=1, limit=1
              $region175: #{closed_call.18} parent=173 // loop_pre_header
                _
              $region176: #{closed_call.18} parent=173 // loop_header
                %s868 = sphi 0, %s872
                %p869 = scmp.ge.s32.totalorder %s868, 1
                %s873 = sphi %s850, %s850
                %s874 = sphi %s859, %s859
              $region177: #{closed_call.18} parent=173 // loop_header_branch
                %871 = sbr.rel (%p869) target = $region181
              $region178: #{closed_call.18} parent=173 // loop_body
                %v875 = vld [vmem:[%s873] sm:$0xff]
                %876 = vst [vmem:[%s874] sm:$0xff] %v875
                %v877 = vld [vmem:[%s873 + $0x8] sm:$0xff]
                %878 = vst [vmem:[%s874 + $0x18] sm:$0xff] %v877
              $region179: #{closed_call.18} parent=173 // loop_footer
                %s872 = sadd.s32 1, %s868
              $region180: #{closed_call.18} parent=173 // loop_footer_branch
                %867 = sbr.rel target = $region176
              $region181: #{closed_call.18} parent=173 // loop_exit
                _
            $region174: #{closed_call.18} parent=165 // pred_fallthru
              _
          $region166: #{closed_call.18} parent=161 // pred_fallthru
            _
          %895 = vnop
        $region162: #{closed_call.18} parent=137 // pred_fallthru
          _
      $region138: #{closed_call.18} parent=5 // pred_fallthru
        _
      %p896 = scmp.le.s32.totalorder 2, %s10
      // Predicated region
      $region197: #{closed_call.18} parent=5 // pred_check
        %p897 = pneg %p896
      $region198: #{closed_call.18} parent=5 // pred_check_branch
        %899 = sbr.rel (%p897) target = $region200
      $region199: #{closed_call.18} parent=5 // pred_region
        %s900 = ssub.s32 %s10, 2
        // Predicated region
        $region201: #{closed_call.18} parent=199 // pred_check
          %p901 = pneg %p170
        $region202: #{closed_call.18} parent=199 // pred_check_branch
          %903 = sbr.rel (%p901) target = $region204
        $region203: #{closed_call.18} parent=199 // pred_region
          %s904 = sand.u32 %s155, 1
          %s905 = sand.u32 %s155, 1
          %s906 = smul.addr %s905, 16
          %s907 = scalar_lea.vmem [#allocation6], %s906
        $region204: #{closed_call.18} parent=199 // pred_fallthru
          _
      $region200: #{closed_call.18} parent=5 // pred_fallthru
        _
    $region6: #{closed_call.18} parent=1 // loop_footer
      %s14 = sadd.s32 1, %s10
    $region7: #{closed_call.18} parent=1 // loop_footer_branch
      %9 = sbr.rel target = $region3
    $region8: #{closed_call.18} parent=1 // loop_exit
      _

// kernel: closed_call.19
$region0: #{closed_call.19}
  #allocation0 [shape = 'u32[]', space=smem, size = 0x4, offset = 0x4, fixed_abs, tag = 'smem constant byte address 0x4 - core index']
  #allocation1 [shape = 'u32[144,128]{1,0:T(1,128)}', space=vmem, size = 0x12000, scoped, tag = 'internal scratch']
  %s0 = inlined_call_operand.vmem [shape: bf16[16,768], index: 0, kind: input, shape index: {}]
  %s1 = inlined_call_operand.vmem [shape: f32[1,768], index: 1, kind: input, shape index: {}]
  %s2 = inlined_call_operand.vmem [shape: f32[1,768], index: 2, kind: input, shape index: {}]
  %s3 = inlined_call_operand.vmem [shape: bf16[768,3072], index: 3, kind: input, shape index: {}]
  %s4 = inlined_call_operand.vmem [shape: f32[1,3072], index: 4, kind: input, shape index: {}]
  %s5 = inlined_call_operand.vmem [shape: bf16[16,3072], index: 5, kind: output, shape index: {}]
  %s6 = sld [smem:[#allocation0]]
  $region95: #{closed_call.19} parent=0
    _
  %s8 = ssub.s32 1, %s6
  %s9 = scalar_select 0, %s8, %s6
  $region1: #{closed_call.19} parent=0
    #allocation2 [shape = 'u8[1572864]{0}', space=vmem, size = 0x180000, scoped, tag = 'input window, operand 3']
    #allocation3 [shape = 'u8[32768]{0}', space=vmem, size = 0x8000, scoped, tag = 'output window, operand 0']
    loop: start=0, step=1, limit=8
    $region2: #{closed_call.19} parent=1 // loop_pre_header
      _
    $region3: #{closed_call.19} parent=1 // loop_header
      %s11 = sphi 0, %s15
      %p12 = scmp.ge.s32.totalorder %s11, 8
      %s18 = sphi 0, %s30
      %s19 = sphi 0, %s26
      %s20 = sphi 0, %s18
      %s21 = sphi 0, %s19
      %s22 = sphi 0, %s20
      %s23 = sphi 0, %s21
      %s33 = sphi 0, %s35
      %s36 = sphi 0, %s33
      %s37 = sphi 0, %s36
      %s53 = sphi 0, %s37
      %s57 = sphi 0, %s57
      %s59 = sphi 0, %s57
      %s60 = sphi 0, %s59
      %s74 = sphi 0, %s60
      %s78 = sphi 0, %s78
      %s80 = sphi 0, %s78
      %s81 = sphi 0, %s80
      %s95 = sphi 0, %s81
      %s101 = sphi 0, %s103
      %s104 = sphi 0, %s101
      %s105 = sphi 0, %s104
      %s121 = sphi 0, %s105
      %s127 = sphi 0, %s129
      %s130 = sphi 0, %s127
      %s131 = sphi 0, %s130
      %s147 = sphi 0, %s131
      %s155 = sphi 0, %s157
      %s158 = sphi 0, %s155
      %s159 = sphi 0, %s158
      %s175 = sphi 0, %s159
    $region4: #{closed_call.19} parent=1 // loop_header_branch
      %14 = sbr.rel (%p12) target = $region8
    $region5: #{closed_call.19} parent=1 // loop_body
      %s16 = ssub.s32 %s11, 1
      %s17 = ssub.s32 %s11, 2
      %s24 = sadd.s32 1, %s19
      %p25 = scmp.ge.s32.totalorder %s24, 6
      %s26 = scalar_select %p25, 0, %s24
      %s27 = sadd.s32 1, %s18
      %s28 = scalar_select %p25, %s27, %s18
      %p29 = scmp.ge.s32.totalorder %s28, 1
      %s30 = scalar_select %p29, 0, %s28
      %s31 = ssub.s32 %s18, %s30
      %p32 = scmp.eq.s32.totalorder %s31, 0
      %s34 = sadd.s32 %s33, 1
      %s35 = scalar_select %p32, %s33, %s34
      %p38 = pneg %p32
      %p39 = scmp.eq.s32.totalorder %s11, 5
      %p40 = por %p38, %p39
      %p41 = scmp.ne.s32.totalorder %s33, %s36
      %p42 = scmp.eq.s32.totalorder %s11, 0
      %p43 = por %p41, %p42
      %p44 = scmp.ne.s32.totalorder %s33, %s36
      %p45 = scmp.eq.s32.totalorder %s16, 5
      %p46 = por %p44, %p45
      %p47 = scmp.ne.s32.totalorder %s36, %s37
      %p48 = scmp.eq.s32.totalorder %s16, 0
      %p49 = por %p47, %p48
      %p50 = scmp.ne.s32.totalorder %s36, %s37
      %p51 = scmp.eq.s32.totalorder %s17, 5
      %p52 = por %p50, %p51
      %p54 = scmp.ne.s32.totalorder %s37, %s53
      %p55 = scmp.eq.s32.totalorder %s17, 0
      %p56 = por %p54, %p55
      %s58 = sadd.s32 %s57, 1
      %p61 = scmp.eq.s32.totalorder %s11, 5
      %p62 = scmp.ne.s32.totalorder %s57, %s59
      %p63 = scmp.eq.s32.totalorder %s11, 0
      %p64 = por %p62, %p63
      %p65 = scmp.ne.s32.totalorder %s57, %s59
      %p66 = scmp.eq.s32.totalorder %s16, 5
      %p67 = por %p65, %p66
      %p68 = scmp.ne.s32.totalorder %s59, %s60
      %p69 = scmp.eq.s32.totalorder %s16, 0
      %p70 = por %p68, %p69
      %p71 = scmp.ne.s32.totalorder %s59, %s60
      %p72 = scmp.eq.s32.totalorder %s17, 5
      %p73 = por %p71, %p72
      %p75 = scmp.ne.s32.totalorder %s60, %s74
      %p76 = scmp.eq.s32.totalorder %s17, 0
      %p77 = por %p75, %p76
      %s79 = sadd.s32 %s78, 1
      %p82 = scmp.eq.s32.totalorder %s11, 5
      %p83 = scmp.ne.s32.totalorder %s78, %s80
      %p84 = scmp.eq.s32.totalorder %s11, 0
      %p85 = por %p83, %p84
      %p86 = scmp.ne.s32.totalorder %s78, %s80
      %p87 = scmp.eq.s32.totalorder %s16, 5
      %p88 = por %p86, %p87
      %p89 = scmp.ne.s32.totalorder %s80, %s81
      %p90 = scmp.eq.s32.totalorder %s16, 0
      %p91 = por %p89, %p90
      %p92 = scmp.ne.s32.totalorder %s80, %s81
      %p93 = scmp.eq.s32.totalorder %s17, 5
      %p94 = por %p92, %p93
      %p96 = scmp.ne.s32.totalorder %s81, %s95
      %p97 = scmp.eq.s32.totalorder %s17, 0
      %p98 = por %p96, %p97
      %s99 = ssub.s32 %s19, %s26
      %p100 = scmp.eq.s32.totalorder %s99, 0
      %s102 = sadd.s32 %s101, 1
      %s103 = scalar_select %p100, %s101, %s102
      %p106 = pneg %p100
      %p107 = scmp.eq.s32.totalorder %s11, 5
      %p108 = por %p106, %p107
      %p109 = scmp.ne.s32.totalorder %s101, %s104
      %p110 = scmp.eq.s32.totalorder %s11, 0
      %p111 = por %p109, %p110
      %p112 = scmp.ne.s32.totalorder %s101, %s104
      %p113 = scmp.eq.s32.totalorder %s16, 5
      %p114 = por %p112, %p113
      %p115 = scmp.ne.s32.totalorder %s104, %s105
      %p116 = scmp.eq.s32.totalorder %s16, 0
      %p117 = por %p115, %p116
      %p118 = scmp.ne.s32.totalorder %s104, %s105
      %p119 = scmp.eq.s32.totalorder %s17, 5
      %p120 = por %p118, %p119
      %p122 = scmp.ne.s32.totalorder %s105, %s121
      %p123 = scmp.eq.s32.totalorder %s17, 0
      %p124 = por %p122, %p123
      %s125 = ssub.s32 %s19, %s26
      %p126 = scmp.eq.s32.totalorder %s125, 0
      %s128 = sadd.s32 %s127, 1
      %s129 = scalar_select %p126, %s127, %s128
      %p132 = pneg %p126
      %p133 = scmp.eq.s32.totalorder %s11, 5
      %p134 = por %p132, %p133
      %p135 = scmp.ne.s32.totalorder %s127, %s130
      %p136 = scmp.eq.s32.totalorder %s11, 0
      %p137 = por %p135, %p136
      %p138 = scmp.ne.s32.totalorder %s127, %s130
      %p139 = scmp.eq.s32.totalorder %s16, 5
      %p140 = por %p138, %p139
      %p141 = scmp.ne.s32.totalorder %s130, %s131
      %p142 = scmp.eq.s32.totalorder %s16, 0
      %p143 = por %p141, %p142
      %p144 = scmp.ne.s32.totalorder %s130, %s131
      %p145 = scmp.eq.s32.totalorder %s17, 5
      %p146 = por %p144, %p145
      %p148 = scmp.ne.s32.totalorder %s131, %s147
      %p149 = scmp.eq.s32.totalorder %s17, 0
      %p150 = por %p148, %p149
      %s151 = ssub.s32 %s18, %s30
      %s152 = ssub.s32 %s19, %s26
      %s153 = sor.u32 %s151, %s152
      %p154 = scmp.eq.s32.totalorder %s153, 0
      %s156 = sadd.s32 %s155, 1
      %s157 = scalar_select %p154, %s155, %s156
      %p160 = pneg %p154
      %p161 = scmp.eq.s32.totalorder %s11, 5
      %p162 = por %p160, %p161
      %p163 = scmp.ne.s32.totalorder %s155, %s158
      %p164 = scmp.eq.s32.totalorder %s11, 0
      %p165 = por %p163, %p164
      %p166 = scmp.ne.s32.totalorder %s155, %s158
      %p167 = scmp.eq.s32.totalorder %s16, 5
      %p168 = por %p166, %p167
      %p169 = scmp.ne.s32.totalorder %s158, %s159
      %p170 = scmp.eq.s32.totalorder %s16, 0
      %p171 = por %p169, %p170
      %p172 = scmp.ne.s32.totalorder %s158, %s159
      %p173 = scmp.eq.s32.totalorder %s17, 5
      %p174 = por %p172, %p173
      %p176 = scmp.ne.s32.totalorder %s159, %s175
      %p177 = scmp.eq.s32.totalorder %s17, 0
      %p178 = por %p176, %p177
      %p179 = scmp.le.s32.totalorder 1, %s11
      %p180 = scmp.lt.s32.totalorder %s11, 7
      %p181 = pnand %p179, %p180
      %p182 = pneg %p181
      // Predicated region
      $region9: #{closed_call.19} parent=5 // pred_check
        _
      $region10: #{closed_call.19} parent=5 // pred_check_branch
        %184 = sbr.rel (%p181) target = $region12
      $region11: #{closed_call.19} parent=5 // pred_region
        %s185 = ssub.s32 %s11, 1
        // Predicated region
        $region13: #{closed_call.19} parent=11 // pred_check
          %p186 = pneg %p49
        $region14: #{closed_call.19} parent=11 // pred_check_branch
          %188 = sbr.rel (%p186) target = $region16
        $region15: #{closed_call.19} parent=11 // pred_region
          %s189 = smul.u32 2, %s20
          %p190 = scmp.lt.s32.totalorder %s189, 1
          %s191 = scalar_select %p190, %s189, 1
          %s192 = smul.addr %s191, 6
          %s193 = smul.addr %s192, 4
          %s194 = scalar_lea.vmem %s0, %s193
          %s195 = smul.u32 2, %s20
        $region16: #{closed_call.19} parent=11 // pred_fallthru
          _
        // Predicated region
        $region17: #{closed_call.19} parent=11 // pred_check
          %p196 = pneg %p70
        $region18: #{closed_call.19} parent=11 // pred_check_branch
          %198 = sbr.rel (%p196) target = $region20
        $region19: #{closed_call.19} parent=11 // pred_region
          _
        $region20: #{closed_call.19} parent=11 // pred_fallthru
          _
        // Predicated region
        $region21: #{closed_call.19} parent=11 // pred_check
          %p199 = pneg %p91
        $region22: #{closed_call.19} parent=11 // pred_check_branch
          %201 = sbr.rel (%p199) target = $region24
        $region23: #{closed_call.19} parent=11 // pred_region
          _
        $region24: #{closed_call.19} parent=11 // pred_fallthru
          _
      $region12: #{closed_call.19} parent=5 // pred_fallthru
        _
      %p202 = scmp.lt.s32.totalorder %s11, 6
      // Predicated region
      $region25: #{closed_call.19} parent=5 // pred_check
        %p203 = pneg %p202
      $region26: #{closed_call.19} parent=5 // pred_check_branch
        %205 = sbr.rel (%p203) target = $region28
      $region27: #{closed_call.19} parent=5 // pred_region
        // Predicated region
        $region29: #{closed_call.19} parent=27 // pred_check
          %p206 = pneg %p111
        $region30: #{closed_call.19} parent=27 // pred_check_branch
          %208 = sbr.rel (%p206) target = $region32
        $region31: #{closed_call.19} parent=27 // pred_region
          %s209 = sand.u32 %s101, 1
          %s210 = sand.u32 %s101, 1
          %s211 = smul.addr %s210, 1536
          %s212 = scalar_lea.vmem [#allocation2], %s211
          %s213 = smul.u32 4, %s19
          %s214 = smul.addr %s213, 4
          %s215 = scalar_lea.vmem %s3, %s214
          // Predicated region
          $region33: #{closed_call.19} parent=31 // pred_check
            _
          $region34: #{closed_call.19} parent=31 // pred_check_branch
            %217 = sbr.rel (0) target = $region36
          $region35: #{closed_call.19} parent=31 // pred_region
            // Predicated region
            $region37: #{closed_call.19} parent=35 // pred_check
              _
            $region38: #{closed_call.19} parent=35 // pred_check_branch
              %219 = sbr.rel (0) target = $region40
            $region39: #{closed_call.19} parent=35 // pred_region
              loop: start=0, step=1, limit=1
              $region41: #{closed_call.19} parent=39 // loop_pre_header
                _
              $region42: #{closed_call.19} parent=39 // loop_header
                %s221 = sphi 0, %s225
                %p222 = scmp.ge.s32.totalorder %s221, 1
                %s226 = sphi %s215, %s215
                %s227 = sphi %s212, %s212
              $region43: #{closed_call.19} parent=39 // loop_header_branch
                %224 = sbr.rel (%p222) target = $region47
              $region44: #{closed_call.19} parent=39 // loop_body
                %v228 = vld [vmem:[%s226] sm:$0xff]
                %229 = vst [vmem:[%s227] sm:$0xff] %v228
                %v230 = vld [vmem:[%s226 + $0x8] sm:$0xff]
                %231 = vst [vmem:[%s227 + $0x8] sm:$0xff] %v230
                %v232 = vld [vmem:[%s226 + $0x60] sm:$0xff]
                %233 = vst [vmem:[%s227 + $0x10] sm:$0xff] %v232
                %v234 = vld [vmem:[%s226 + $0x68] sm:$0xff]
                %235 = vst [vmem:[%s227 + $0x18] sm:$0xff] %v234
                %v236 = vld [vmem:[%s226 + $0xc0] sm:$0xff]
                %237 = vst [vmem:[%s227 + $0x20] sm:$0xff] %v236
                %v238 = vld [vmem:[%s226 + $0xc8] sm:$0xff]
                %239 = vst [vmem:[%s227 + $0x28] sm:$0xff] %v238
                %v240 = vld [vmem:[%s226 + $0x120] sm:$0xff]
                %241 = vst [vmem:[%s227 + $0x30] sm:$0xff] %v240
                %v242 = vld [vmem:[%s226 + $0x128] sm:$0xff]
                %243 = vst [vmem:[%s227 + $0x38] sm:$0xff] %v242
                %v244 = vld [vmem:[%s226 + $0x180] sm:$0xff]
                %245 = vst [vmem:[%s227 + $0x40] sm:$0xff] %v244
                %v246 = vld [vmem:[%s226 + $0x188] sm:$0xff]
                %247 = vst [vmem:[%s227 + $0x48] sm:$0xff] %v246
                %v248 = vld [vmem:[%s226 + $0x1e0] sm:$0xff]
                %249 = vst [vmem:[%s227 + $0x50] sm:$0xff] %v248
                %v250 = vld [vmem:[%s226 + $0x1e8] sm:$0xff]
                %251 = vst [vmem:[%s227 + $0x58] sm:$0xff] %v250
                %v252 = vld [vmem:[%s226 + $0x240] sm:$0xff]
                %253 = vst [vmem:[%s227 + $0x60] sm:$0xff] %v252
                %v254 = vld [vmem:[%s226 + $0x248] sm:$0xff]
                %255 = vst [vmem:[%s227 + $0x68] sm:$0xff] %v254
                %v256 = vld [vmem:[%s226 + $0x2a0] sm:$0xff]
                %257 = vst [vmem:[%s227 + $0x70] sm:$0xff] %v256
                %v258 = vld [vmem:[%s226 + $0x2a8] sm:$0xff]
                %259 = vst [vmem:[%s227 + $0x78] sm:$0xff] %v258
                %v260 = vld [vmem:[%s226 + $0x300] sm:$0xff]
                %261 = vst [vmem:[%s227 + $0x80] sm:$0xff] %v260
                %v262 = vld [vmem:[%s226 + $0x308] sm:$0xff]
                %263 = vst [vmem:[%s227 + $0x88] sm:$0xff] %v262
                %v264 = vld [vmem:[%s226 + $0x360] sm:$0xff]
                %265 = vst [vmem:[%s227 + $0x90] sm:$0xff] %v264
                %v266 = vld [vmem:[%s226 + $0x368] sm:$0xff]
                %267 = vst [vmem:[%s227 + $0x98] sm:$0xff] %v266
                %v268 = vld [vmem:[%s226 + $0x3c0] sm:$0xff]
                %269 = vst [vmem:[%s227 + $0xa0] sm:$0xff] %v268
                %v270 = vld [vmem:[%s226 + $0x3c8] sm:$0xff]
                %271 = vst [vmem:[%s227 + $0xa8] sm:$0xff] %v270
                %v272 = vld [vmem:[%s226 + $0x420] sm:$0xff]
                %273 = vst [vmem:[%s227 + $0xb0] sm:$0xff] %v272
                %v274 = vld [vmem:[%s226 + $0x428] sm:$0xff]
                %275 = vst [vmem:[%s227 + $0xb8] sm:$0xff] %v274
                %v276 = vld [vmem:[%s226 + $0x480] sm:$0xff]
                %277 = vst [vmem:[%s227 + $0xc0] sm:$0xff] %v276
                %v278 = vld [vmem:[%s226 + $0x488] sm:$0xff]
                %279 = vst [vmem:[%s227 + $0xc8] sm:$0xff] %v278
                %v280 = vld [vmem:[%s226 + $0x4e0] sm:$0xff]
                %281 = vst [vmem:[%s227 + $0xd0] sm:$0xff] %v280
                %v282 = vld [vmem:[%s226 + $0x4e8] sm:$0xff]
                %283 = vst [vmem:[%s227 + $0xd8] sm:$0xff] %v282
                %v284 = vld [vmem:[%s226 + $0x540] sm:$0xff]
                %285 = vst [vmem:[%s227 + $0xe0] sm:$0xff] %v284
                %v286 = vld [vmem:[%s226 + $0x548] sm:$0xff]
                %287 = vst [vmem:[%s227 + $0xe8] sm:$0xff] %v286
                %v288 = vld [vmem:[%s226 + $0x5a0] sm:$0xff]
                %289 = vst [vmem:[%s227 + $0xf0] sm:$0xff] %v288
                %v290 = vld [vmem:[%s226 + $0x5a8] sm:$0xff]
                %291 = vst [vmem:[%s227 + $0xf8] sm:$0xff] %v290
                %v292 = vld [vmem:[%s226 + $0x600] sm:$0xff]
                %293 = vst [vmem:[%s227 + $0x100] sm:$0xff] %v292
                %v294 = vld [vmem:[%s226 + $0x608] sm:$0xff]
                %295 = vst [vmem:[%s227 + $0x108] sm:$0xff] %v294
                %v296 = vld [vmem:[%s226 + $0x660] sm:$0xff]
                %297 = vst [vmem:[%s227 + $0x110] sm:$0xff] %v296
                %v298 = vld [vmem:[%s226 + $0x668] sm:$0xff]
                %299 = vst [vmem:[%s227 + $0x118] sm:$0xff] %v298
                %v300 = vld [vmem:[%s226 + $0x6c0] sm:$0xff]
                %301 = vst [vmem:[%s227 + $0x120] sm:$0xff] %v300
                %v302 = vld [vmem:[%s226 + $0x6c8] sm:$0xff]
                %303 = vst [vmem:[%s227 + $0x128] sm:$0xff] %v302
                %v304 = vld [vmem:[%s226 + $0x720] sm:$0xff]
                %305 = vst [vmem:[%s227 + $0x130] sm:$0xff] %v304
                %v306 = vld [vmem:[%s226 + $0x728] sm:$0xff]
                %307 = vst [vmem:[%s227 + $0x138] sm:$0xff] %v306
                %v308 = vld [vmem:[%s226 + $0x780] sm:$0xff]
                %309 = vst [vmem:[%s227 + $0x140] sm:$0xff] %v308
                %v310 = vld [vmem:[%s226 + $0x788] sm:$0xff]
                %311 = vst [vmem:[%s227 + $0x148] sm:$0xff] %v310
                %v312 = vld [vmem:[%s226 + $0x7e0] sm:$0xff]
                %313 = vst [vmem:[%s227 + $0x150] sm:$0xff] %v312
                %v314 = vld [vmem:[%s226 + $0x7e8] sm:$0xff]
                %315 = vst [vmem:[%s227 + $0x158] sm:$0xff] %v314
                %v316 = vld [vmem:[%s226 + $0x840] sm:$0xff]
                %317 = vst [vmem:[%s227 + $0x160] sm:$0xff] %v316
                %v318 = vld [vmem:[%s226 + $0x848] sm:$0xff]
                %319 = vst [vmem:[%s227 + $0x168] sm:$0xff] %v318
                %v320 = vld [vmem:[%s226 + $0x8a0] sm:$0xff]
                %321 = vst [vmem:[%s227 + $0x170] sm:$0xff] %v320
                %v322 = vld [vmem:[%s226 + $0x8a8] sm:$0xff]
                %323 = vst [vmem:[%s227 + $0x178] sm:$0xff] %v322
                %v324 = vld [vmem:[%s226 + $0x900] sm:$0xff]
                %325 = vst [vmem:[%s227 + $0x180] sm:$0xff] %v324
                %v326 = vld [vmem:[%s226 + $0x908] sm:$0xff]
                %327 = vst [vmem:[%s227 + $0x188] sm:$0xff] %v326
                %v328 = vld [vmem:[%s226 + $0x960] sm:$0xff]
                %329 = vst [vmem:[%s227 + $0x190] sm:$0xff] %v328
                %v330 = vld [vmem:[%s226 + $0x968] sm:$0xff]
                %331 = vst [vmem:[%s227 + $0x198] sm:$0xff] %v330
                %v332 = vld [vmem:[%s226 + $0x9c0] sm:$0xff]
                %333 = vst [vmem:[%s227 + $0x1a0] sm:$0xff] %v332
                %v334 = vld [vmem:[%s226 + $0x9c8] sm:$0xff]
                %335 = vst [vmem:[%s227 + $0x1a8] sm:$0xff] %v334
                %v336 = vld [vmem:[%s226 + $0xa20] sm:$0xff]
                %337 = vst [vmem:[%s227 + $0x1b0] sm:$0xff] %v336
                %v338 = vld [vmem:[%s226 + $0xa28] sm:$0xff]
                %339 = vst [vmem:[%s227 + $0x1b8] sm:$0xff] %v338
                %v340 = vld [vmem:[%s226 + $0xa80] sm:$0xff]
                %341 = vst [vmem:[%s227 + $0x1c0] sm:$0xff] %v340
                %v342 = vld [vmem:[%s226 + $0xa88] sm:$0xff]
                %343 = vst [vmem:[%s227 + $0x1c8] sm:$0xff] %v342
                %v344 = vld [vmem:[%s226 + $0xae0] sm:$0xff]
                %345 = vst [vmem:[%s227 + $0x1d0] sm:$0xff] %v344
                %v346 = vld [vmem:[%s226 + $0xae8] sm:$0xff]
                %347 = vst [vmem:[%s227 + $0x1d8] sm:$0xff] %v346
                %v348 = vld [vmem:[%s226 + $0xb40] sm:$0xff]
                %349 = vst [vmem:[%s227 + $0x1e0] sm:$0xff] %v348
                %v350 = vld [vmem:[%s226 + $0xb48] sm:$0xff]
                %351 = vst [vmem:[%s227 + $0x1e8] sm:$0xff] %v350
                %v352 = vld [vmem:[%s226 + $0xba0] sm:$0xff]
                %353 = vst [vmem:[%s227 + $0x1f0] sm:$0xff] %v352
                %v354 = vld [vmem:[%s226 + $0xba8] sm:$0xff]
                %355 = vst [vmem:[%s227 + $0x1f8] sm:$0xff] %v354
                %v356 = vld [vmem:[%s226 + $0xc00] sm:$0xff]
                %357 = vst [vmem:[%s227 + $0x200] sm:$0xff] %v356
                %v358 = vld [vmem:[%s226 + $0xc08] sm:$0xff]
                %359 = vst [vmem:[%s227 + $0x208] sm:$0xff] %v358
                %v360 = vld [vmem:[%s226 + $0xc60] sm:$0xff]
                %361 = vst [vmem:[%s227 + $0x210] sm:$0xff] %v360
                %v362 = vld [vmem:[%s226 + $0xc68] sm:$0xff]
                %363 = vst [vmem:[%s227 + $0x218] sm:$0xff] %v362
                %v364 = vld [vmem:[%s226 + $0xcc0] sm:$0xff]
                %365 = vst [vmem:[%s227 + $0x220] sm:$0xff] %v364
                %v366 = vld [vmem:[%s226 + $0xcc8] sm:$0xff]
                %367 = vst [vmem:[%s227 + $0x228] sm:$0xff] %v366
                %v368 = vld [vmem:[%s226 + $0xd20] sm:$0xff]
                %369 = vst [vmem:[%s227 + $0x230] sm:$0xff] %v368
                %v370 = vld [vmem:[%s226 + $0xd28] sm:$0xff]
                %371 = vst [vmem:[%s227 + $0x238] sm:$0xff] %v370
                %v372 = vld [vmem:[%s226 + $0xd80] sm:$0xff]
                %373 = vst [vmem:[%s227 + $0x240] sm:$0xff] %v372
                %v374 = vld [vmem:[%s226 + $0xd88] sm:$0xff]
                %375 = vst [vmem:[%s227 + $0x248] sm:$0xff] %v374
                %v376 = vld [vmem:[%s226 + $0xde0] sm:$0xff]
                %377 = vst [vmem:[%s227 + $0x250] sm:$0xff] %v376
                %v378 = vld [vmem:[%s226 + $0xde8] sm:$0xff]
                %379 = vst [vmem:[%s227 + $0x258] sm:$0xff] %v378
                %v380 = vld [vmem:[%s226 + $0xe40] sm:$0xff]
                %381 = vst [vmem:[%s227 + $0x260] sm:$0xff] %v380
                %v382 = vld [vmem:[%s226 + $0xe48] sm:$0xff]
                %383 = vst [vmem:[%s227 + $0x268] sm:$0xff] %v382
                %v384 = vld [vmem:[%s226 + $0xea0] sm:$0xff]
                %385 = vst [vmem:[%s227 + $0x270] sm:$0xff] %v384
                %v386 = vld [vmem:[%s226 + $0xea8] sm:$0xff]
                %387 = vst [vmem:[%s227 + $0x278] sm:$0xff] %v386
                %v388 = vld [vmem:[%s226 + $0xf00] sm:$0xff]
                %389 = vst [vmem:[%s227 + $0x280] sm:$0xff] %v388
                %v390 = vld [vmem:[%s226 + $0xf08] sm:$0xff]
                %391 = vst [vmem:[%s227 + $0x288] sm:$0xff] %v390
                %v392 = vld [vmem:[%s226 + $0xf60] sm:$0xff]
                %393 = vst [vmem:[%s227 + $0x290] sm:$0xff] %v392
                %v394 = vld [vmem:[%s226 + $0xf68] sm:$0xff]
                %395 = vst [vmem:[%s227 + $0x298] sm:$0xff] %v394
                %v396 = vld [vmem:[%s226 + $0xfc0] sm:$0xff]
                %397 = vst [vmem:[%s227 + $0x2a0] sm:$0xff] %v396
                %v398 = vld [vmem:[%s226 + $0xfc8] sm:$0xff]
                %399 = vst [vmem:[%s227 + $0x2a8] sm:$0xff] %v398
                %v400 = vld [vmem:[%s226 + $0x1020] sm:$0xff]
                %401 = vst [vmem:[%s227 + $0x2b0] sm:$0xff] %v400
                %v402 = vld [vmem:[%s226 + $0x1028] sm:$0xff]
                %403 = vst [vmem:[%s227 + $0x2b8] sm:$0xff] %v402
                %v404 = vld [vmem:[%s226 + $0x1080] sm:$0xff]
                %405 = vst [vmem:[%s227 + $0x2c0] sm:$0xff] %v404
                %v406 = vld [vmem:[%s226 + $0x1088] sm:$0xff]
                %407 = vst [vmem:[%s227 + $0x2c8] sm:$0xff] %v406
                %v408 = vld [vmem:[%s226 + $0x10e0] sm:$0xff]
                %409 = vst [vmem:[%s227 + $0x2d0] sm:$0xff] %v408
                %v410 = vld [vmem:[%s226 + $0x10e8] sm:$0xff]
                %411 = vst [vmem:[%s227 + $0x2d8] sm:$0xff] %v410
                %v412 = vld [vmem:[%s226 + $0x1140] sm:$0xff]
                %413 = vst [vmem:[%s227 + $0x2e0] sm:$0xff] %v412
                %v414 = vld [vmem:[%s226 + $0x1148] sm:$0xff]
                %415 = vst [vmem:[%s227 + $0x2e8] sm:$0xff] %v414
                %v416 = vld [vmem:[%s226 + $0x11a0] sm:$0xff]
                %417 = vst [vmem:[%s227 + $0x2f0] sm:$0xff] %v416
                %v418 = vld [vmem:[%s226 + $0x11a8] sm:$0xff]
                %419 = vst [vmem:[%s227 + $0x2f8] sm:$0xff] %v418
                %v420 = vld [vmem:[%s226 + $0x1200] sm:$0xff]
                %421 = vst [vmem:[%s227 + $0x300] sm:$0xff] %v420
                %v422 = vld [vmem:[%s226 + $0x1208] sm:$0xff]
                %423 = vst [vmem:[%s227 + $0x308] sm:$0xff] %v422
                %v424 = vld [vmem:[%s226 + $0x1260] sm:$0xff]
                %425 = vst [vmem:[%s227 + $0x310] sm:$0xff] %v424
                %v426 = vld [vmem:[%s226 + $0x1268] sm:$0xff]
                %427 = vst [vmem:[%s227 + $0x318] sm:$0xff] %v426
                %v428 = vld [vmem:[%s226 + $0x12c0] sm:$0xff]
                %429 = vst [vmem:[%s227 + $0x320] sm:$0xff] %v428
                %v430 = vld [vmem:[%s226 + $0x12c8] sm:$0xff]
                %431 = vst [vmem:[%s227 + $0x328] sm:$0xff] %v430
                %v432 = vld [vmem:[%s226 + $0x1320] sm:$0xff]
                %433 = vst [vmem:[%s227 + $0x330] sm:$0xff] %v432
                %v434 = vld [vmem:[%s226 + $0x1328] sm:$0xff]
                %435 = vst [vmem:[%s227 + $0x338] sm:$0xff] %v434
                %v436 = vld [vmem:[%s226 + $0x1380] sm:$0xff]
                %437 = vst [vmem:[%s227 + $0x340] sm:$0xff] %v436
                %v438 = vld [vmem:[%s226 + $0x1388] sm:$0xff]
                %439 = vst [vmem:[%s227 + $0x348] sm:$0xff] %v438
                %v440 = vld [vmem:[%s226 + $0x13e0] sm:$0xff]
                %441 = vst [vmem:[%s227 + $0x350] sm:$0xff] %v440
                %v442 = vld [vmem:[%s226 + $0x13e8] sm:$0xff]
                %443 = vst [vmem:[%s227 + $0x358] sm:$0xff] %v442
                %v444 = vld [vmem:[%s226 + $0x1440] sm:$0xff]
                %445 = vst [vmem:[%s227 + $0x360] sm:$0xff] %v444
                %v446 = vld [vmem:[%s226 + $0x1448] sm:$0xff]
                %447 = vst [vmem:[%s227 + $0x368] sm:$0xff] %v446
                %v448 = vld [vmem:[%s226 + $0x14a0] sm:$0xff]
                %449 = vst [vmem:[%s227 + $0x370] sm:$0xff] %v448
                %v450 = vld [vmem:[%s226 + $0x14a8] sm:$0xff]
                %451 = vst [vmem:[%s227 + $0x378] sm:$0xff] %v450
                %v452 = vld [vmem:[%s226 + $0x1500] sm:$0xff]
                %453 = vst [vmem:[%s227 + $0x380] sm:$0xff] %v452
                %v454 = vld [vmem:[%s226 + $0x1508] sm:$0xff]
                %455 = vst [vmem:[%s227 + $0x388] sm:$0xff] %v454
                %v456 = vld [vmem:[%s226 + $0x1560] sm:$0xff]
                %457 = vst [vmem:[%s227 + $0x390] sm:$0xff] %v456
                %v458 = vld [vmem:[%s226 + $0x1568] sm:$0xff]
                %459 = vst [vmem:[%s227 + $0x398] sm:$0xff] %v458
                %v460 = vld [vmem:[%s226 + $0x15c0] sm:$0xff]
                %461 = vst [vmem:[%s227 + $0x3a0] sm:$0xff] %v460
                %v462 = vld [vmem:[%s226 + $0x15c8] sm:$0xff]
                %463 = vst [vmem:[%s227 + $0x3a8] sm:$0xff] %v462
                %v464 = vld [vmem:[%s226 + $0x1620] sm:$0xff]
                %465 = vst [vmem:[%s227 + $0x3b0] sm:$0xff] %v464
                %v466 = vld [vmem:[%s226 + $0x1628] sm:$0xff]
                %467 = vst [vmem:[%s227 + $0x3b8] sm:$0xff] %v466
                %v468 = vld [vmem:[%s226 + $0x1680] sm:$0xff]
                %469 = vst [vmem:[%s227 + $0x3c0] sm:$0xff] %v468
                %v470 = vld [vmem:[%s226 + $0x1688] sm:$0xff]
                %471 = vst [vmem:[%s227 + $0x3c8] sm:$0xff] %v470
                %v472 = vld [vmem:[%s226 + $0x16e0] sm:$0xff]
                %473 = vst [vmem:[%s227 + $0x3d0] sm:$0xff] %v472
                %v474 = vld [vmem:[%s226 + $0x16e8] sm:$0xff]
                %475 = vst [vmem:[%s227 + $0x3d8] sm:$0xff] %v474
                %v476 = vld [vmem:[%s226 + $0x1740] sm:$0xff]
                %477 = vst [vmem:[%s227 + $0x3e0] sm:$0xff] %v476
                %v478 = vld [vmem:[%s226 + $0x1748] sm:$0xff]
                %479 = vst [vmem:[%s227 + $0x3e8] sm:$0xff] %v478
                %v480 = vld [vmem:[%s226 + $0x17a0] sm:$0xff]
                %481 = vst [vmem:[%s227 + $0x3f0] sm:$0xff] %v480
                %v482 = vld [vmem:[%s226 + $0x17a8] sm:$0xff]
                %483 = vst [vmem:[%s227 + $0x3f8] sm:$0xff] %v482
                %v484 = vld [vmem:[%s226 + $0x1800] sm:$0xff]
                %485 = vst [vmem:[%s227 + $0x400] sm:$0xff] %v484
                %v486 = vld [vmem:[%s226 + $0x1808] sm:$0xff]
                %487 = vst [vmem:[%s227 + $0x408] sm:$0xff] %v486
                %v488 = vld [vmem:[%s226 + $0x1860] sm:$0xff]
                %489 = vst [vmem:[%s227 + $0x410] sm:$0xff] %v488
                %v490 = vld [vmem:[%s226 + $0x1868] sm:$0xff]
                %491 = vst [vmem:[%s227 + $0x418] sm:$0xff] %v490
                %v492 = vld [vmem:[%s226 + $0x18c0] sm:$0xff]
                %493 = vst [vmem:[%s227 + $0x420] sm:$0xff] %v492
                %v494 = vld [vmem:[%s226 + $0x18c8] sm:$0xff]
                %495 = vst [vmem:[%s227 + $0x428] sm:$0xff] %v494
                %v496 = vld [vmem:[%s226 + $0x1920] sm:$0xff]
                %497 = vst [vmem:[%s227 + $0x430] sm:$0xff] %v496
                %v498 = vld [vmem:[%s226 + $0x1928] sm:$0xff]
                %499 = vst [vmem:[%s227 + $0x438] sm:$0xff] %v498
                %v500 = vld [vmem:[%s226 + $0x1980] sm:$0xff]
                %501 = vst [vmem:[%s227 + $0x440] sm:$0xff] %v500
                %v502 = vld [vmem:[%s226 + $0x1988] sm:$0xff]
                %503 = vst [vmem:[%s227 + $0x448] sm:$0xff] %v502
                %v504 = vld [vmem:[%s226 + $0x19e0] sm:$0xff]
                %505 = vst [vmem:[%s227 + $0x450] sm:$0xff] %v504
                %v506 = vld [vmem:[%s226 + $0x19e8] sm:$0xff]
                %507 = vst [vmem:[%s227 + $0x458] sm:$0xff] %v506
                %v508 = vld [vmem:[%s226 + $0x1a40] sm:$0xff]
                %509 = vst [vmem:[%s227 + $0x460] sm:$0xff] %v508
                %v510 = vld [vmem:[%s226 + $0x1a48] sm:$0xff]
                %511 = vst [vmem:[%s227 + $0x468] sm:$0xff] %v510
                %v512 = vld [vmem:[%s226 + $0x1aa0] sm:$0xff]
                %513 = vst [vmem:[%s227 + $0x470] sm:$0xff] %v512
                %v514 = vld [vmem:[%s226 + $0x1aa8] sm:$0xff]
                %515 = vst [vmem:[%s227 + $0x478] sm:$0xff] %v514
                %v516 = vld [vmem:[%s226 + $0x1b00] sm:$0xff]
                %517 = vst [vmem:[%s227 + $0x480] sm:$0xff] %v516
                %v518 = vld [vmem:[%s226 + $0x1b08] sm:$0xff]
                %519 = vst [vmem:[%s227 + $0x488] sm:$0xff] %v518
                %v520 = vld [vmem:[%s226 + $0x1b60] sm:$0xff]
                %521 = vst [vmem:[%s227 + $0x490] sm:$0xff] %v520
                %v522 = vld [vmem:[%s226 + $0x1b68] sm:$0xff]
                %523 = vst [vmem:[%s227 + $0x498] sm:$0xff] %v522
                %v524 = vld [vmem:[%s226 + $0x1bc0] sm:$0xff]
                %525 = vst [vmem:[%s227 + $0x4a0] sm:$0xff] %v524
                %v526 = vld [vmem:[%s226 + $0x1bc8] sm:$0xff]
                %527 = vst [vmem:[%s227 + $0x4a8] sm:$0xff] %v526
                %v528 = vld [vmem:[%s226 + $0x1c20] sm:$0xff]
                %529 = vst [vmem:[%s227 + $0x4b0] sm:$0xff] %v528
                %v530 = vld [vmem:[%s226 + $0x1c28] sm:$0xff]
                %531 = vst [vmem:[%s227 + $0x4b8] sm:$0xff] %v530
                %v532 = vld [vmem:[%s226 + $0x1c80] sm:$0xff]
                %533 = vst [vmem:[%s227 + $0x4c0] sm:$0xff] %v532
                %v534 = vld [vmem:[%s226 + $0x1c88] sm:$0xff]
                %535 = vst [vmem:[%s227 + $0x4c8] sm:$0xff] %v534
                %v536 = vld [vmem:[%s226 + $0x1ce0] sm:$0xff]
                %537 = vst [vmem:[%s227 + $0x4d0] sm:$0xff] %v536
                %v538 = vld [vmem:[%s226 + $0x1ce8] sm:$0xff]
                %539 = vst [vmem:[%s227 + $0x4d8] sm:$0xff] %v538
                %v540 = vld [vmem:[%s226 + $0x1d40] sm:$0xff]
                %541 = vst [vmem:[%s227 + $0x4e0] sm:$0xff] %v540
                %v542 = vld [vmem:[%s226 + $0x1d48] sm:$0xff]
                %543 = vst [vmem:[%s227 + $0x4e8] sm:$0xff] %v542
                %v544 = vld [vmem:[%s226 + $0x1da0] sm:$0xff]
                %545 = vst [vmem:[%s227 + $0x4f0] sm:$0xff] %v544
                %v546 = vld [vmem:[%s226 + $0x1da8] sm:$0xff]
                %547 = vst [vmem:[%s227 + $0x4f8] sm:$0xff] %v546
                %v548 = vld [vmem:[%s226 + $0x1e00] sm:$0xff]
                %549 = vst [vmem:[%s227 + $0x500] sm:$0xff] %v548
                %v550 = vld [vmem:[%s226 + $0x1e08] sm:$0xff]
                %551 = vst [vmem:[%s227 + $0x508] sm:$0xff] %v550
                %v552 = vld [vmem:[%s226 + $0x1e60] sm:$0xff]
                %553 = vst [vmem:[%s227 + $0x510] sm:$0xff] %v552
                %v554 = vld [vmem:[%s226 + $0x1e68] sm:$0xff]
                %555 = vst [vmem:[%s227 + $0x518] sm:$0xff] %v554
                %v556 = vld [vmem:[%s226 + $0x1ec0] sm:$0xff]
                %557 = vst [vmem:[%s227 + $0x520] sm:$0xff] %v556
                %v558 = vld [vmem:[%s226 + $0x1ec8] sm:$0xff]
                %559 = vst [vmem:[%s227 + $0x528] sm:$0xff] %v558
                %v560 = vld [vmem:[%s226 + $0x1f20] sm:$0xff]
                %561 = vst [vmem:[%s227 + $0x530] sm:$0xff] %v560
                %v562 = vld [vmem:[%s226 + $0x1f28] sm:$0xff]
                %563 = vst [vmem:[%s227 + $0x538] sm:$0xff] %v562
                %v564 = vld [vmem:[%s226 + $0x1f80] sm:$0xff]
                %565 = vst [vmem:[%s227 + $0x540] sm:$0xff] %v564
                %v566 = vld [vmem:[%s226 + $0x1f88] sm:$0xff]
                %567 = vst [vmem:[%s227 + $0x548] sm:$0xff] %v566
                %v568 = vld [vmem:[%s226 + $0x1fe0] sm:$0xff]
                %569 = vst [vmem:[%s227 + $0x550] sm:$0xff] %v568
                %v570 = vld [vmem:[%s226 + $0x1fe8] sm:$0xff]
                %571 = vst [vmem:[%s227 + $0x558] sm:$0xff] %v570
                %v572 = vld [vmem:[%s226 + $0x2040] sm:$0xff]
                %573 = vst [vmem:[%s227 + $0x560] sm:$0xff] %v572
                %v574 = vld [vmem:[%s226 + $0x2048] sm:$0xff]
                %575 = vst [vmem:[%s227 + $0x568] sm:$0xff] %v574
                %v576 = vld [vmem:[%s226 + $0x20a0] sm:$0xff]
                %577 = vst [vmem:[%s227 + $0x570] sm:$0xff] %v576
                %v578 = vld [vmem:[%s226 + $0x20a8] sm:$0xff]
                %579 = vst [vmem:[%s227 + $0x578] sm:$0xff] %v578
                %v580 = vld [vmem:[%s226 + $0x2100] sm:$0xff]
                %581 = vst [vmem:[%s227 + $0x580] sm:$0xff] %v580
                %v582 = vld [vmem:[%s226 + $0x2108] sm:$0xff]
                %583 = vst [vmem:[%s227 + $0x588] sm:$0xff] %v582
                %v584 = vld [vmem:[%s226 + $0x2160] sm:$0xff]
                %585 = vst [vmem:[%s227 + $0x590] sm:$0xff] %v584
                %v586 = vld [vmem:[%s226 + $0x2168] sm:$0xff]
                %587 = vst [vmem:[%s227 + $0x598] sm:$0xff] %v586
                %v588 = vld [vmem:[%s226 + $0x21c0] sm:$0xff]
                %589 = vst [vmem:[%s227 + $0x5a0] sm:$0xff] %v588
                %v590 = vld [vmem:[%s226 + $0x21c8] sm:$0xff]
                %591 = vst [vmem:[%s227 + $0x5a8] sm:$0xff] %v590
                %v592 = vld [vmem:[%s226 + $0x2220] sm:$0xff]
                %593 = vst [vmem:[%s227 + $0x5b0] sm:$0xff] %v592
                %v594 = vld [vmem:[%s226 + $0x2228] sm:$0xff]
                %595 = vst [vmem:[%s227 + $0x5b8] sm:$0xff] %v594
                %v596 = vld [vmem:[%s226 + $0x2280] sm:$0xff]
                %597 = vst [vmem:[%s227 + $0x5c0] sm:$0xff] %v596
                %v598 = vld [vmem:[%s226 + $0x2288] sm:$0xff]
                %599 = vst [vmem:[%s227 + $0x5c8] sm:$0xff] %v598
                %v600 = vld [vmem:[%s226 + $0x22e0] sm:$0xff]
                %601 = vst [vmem:[%s227 + $0x5d0] sm:$0xff] %v600
                %v602 = vld [vmem:[%s226 + $0x22e8] sm:$0xff]
                %603 = vst [vmem:[%s227 + $0x5d8] sm:$0xff] %v602
                %v604 = vld [vmem:[%s226 + $0x2340] sm:$0xff]
                %605 = vst [vmem:[%s227 + $0x5e0] sm:$0xff] %v604
                %v606 = vld [vmem:[%s226 + $0x2348] sm:$0xff]
                %607 = vst [vmem:[%s227 + $0x5e8] sm:$0xff] %v606
                %v608 = vld [vmem:[%s226 + $0x23a0] sm:$0xff]
                %609 = vst [vmem:[%s227 + $0x5f0] sm:$0xff] %v608
                %v610 = vld [vmem:[%s226 + $0x23a8] sm:$0xff]
                %611 = vst [vmem:[%s227 + $0x5f8] sm:$0xff] %v610
              $region45: #{closed_call.19} parent=39 // loop_footer
                %s225 = sadd.s32 1, %s221
              $region46: #{closed_call.19} parent=39 // loop_footer_branch
                %220 = sbr.rel target = $region42
              $region47: #{closed_call.19} parent=39 // loop_exit
                _
            $region40: #{closed_call.19} parent=35 // pred_fallthru
              _
            // Predicated region
            $region48: #{closed_call.19} parent=35 // pred_check
              _
            $region49: #{closed_call.19} parent=35 // pred_check_branch
              %613 = sbr.rel target = $region51
            $region50: #{closed_call.19} parent=35 // pred_region
              _
            $region51: #{closed_call.19} parent=35 // pred_fallthru
              _
          $region36: #{closed_call.19} parent=31 // pred_fallthru
            _
          %614 = vnop
        $region32: #{closed_call.19} parent=27 // pred_fallthru
          _
        // Predicated region
        $region52: #{closed_call.19} parent=27 // pred_check
          %p615 = pneg %p137
        $region53: #{closed_call.19} parent=27 // pred_check_branch
          %617 = sbr.rel (%p615) target = $region55
        $region54: #{closed_call.19} parent=27 // pred_region
          %s618 = smul.u32 4, %s19
          %p619 = scmp.lt.s32.totalorder %s618, 23
          %s620 = scalar_select %p619, %s618, 23
          %s621 = scalar_lea.vmem %s4, %s620
          %s622 = smul.u32 4, %s19
        $region55: #{closed_call.19} parent=27 // pred_fallthru
          _
      $region28: #{closed_call.19} parent=5 // pred_fallthru
        _
      %p623 = scmp.le.s32.totalorder 1, %s11
      %p624 = scmp.lt.s32.totalorder %s11, 7
      %p625 = pnand %p623, %p624
      %p626 = pneg %p625
      // Predicated region
      $region56: #{closed_call.19} parent=5 // pred_check
        _
      $region57: #{closed_call.19} parent=5 // pred_check_branch
        %628 = sbr.rel (%p625) target = $region59
      $region58: #{closed_call.19} parent=5 // pred_region
        %s629 = ssub.s32 %s11, 1
        %s630 = sand.u32 %s104, 1
        %s631 = sand.u32 %s104, 1
        %s632 = smul.addr %s631, 1536
        %s633 = scalar_lea.vmem [#allocation2], %s632
        // Predicated region
        $region60: #{closed_call.19} parent=58 // pred_check
          %p634 = pneg %p117
        $region61: #{closed_call.19} parent=58 // pred_check_branch
          %636 = sbr.rel (%p634) target = $region63
        $region62: #{closed_call.19} parent=58 // pred_region
          _
        $region63: #{closed_call.19} parent=58 // pred_fallthru
          _
        %s637 = smul.u32 2, %s20
        %p638 = scmp.lt.s32.totalorder %s637, 1
        %s639 = scalar_select %p638, %s637, 1
        %s640 = smul.addr %s639, 6
        %s641 = smul.addr %s640, 4
        %s642 = scalar_lea.vmem %s0, %s641
        %p643 = pneg %p49
        %p644 = pneg %p46
        %p645 = pneg %p70
        %p646 = pneg %p67
        %p647 = pneg %p91
        %p648 = pneg %p88
        %s649 = sand.u32 %s104, 1
        %s650 = sand.u32 %s104, 1
        %s651 = smul.addr %s650, 1536
        %s652 = scalar_lea.vmem [#allocation2], %s651
        %p653 = pneg %p117
        %p654 = pneg %p114
        %s655 = smul.u32 4, %s21
        %p656 = scmp.lt.s32.totalorder %s655, 23
        %s657 = scalar_select %p656, %s655, 23
        %s658 = scalar_lea.vmem %s4, %s657
        %p659 = pneg %p143
        %p660 = pneg %p140
        %p661 = pneg %p171
        %p662 = pneg %p168
        %s663 = sand.u32 %s158, 1
        %s664 = sand.u32 %s158, 1
        %s665 = smul.addr %s664, 32
        %s666 = scalar_lea.vmem [#allocation3], %s665
        %s667 = smul.u32 2, %s20
        %p668 = scmp.lt.s32.totalorder %s667, 1
        %s669 = scalar_select %p668, %s667, 1
        %s670 = smul.addr %s669, 6
        %s671 = smul.addr %s670, 4
        %s672 = scalar_lea.vmem %s0, %s671
        %s673 = smul.u32 2, %s20
        %s674 = smul.u32 4, %s21
        %s675 = smul.u32 4, %s21
        %p676 = scmp.lt.s32.totalorder %s675, 23
        %s677 = scalar_select %p676, %s675, 23
        %s678 = scalar_lea.vmem %s4, %s677
        %s679 = smul.u32 4, %s21
        %s680 = smul.u32 2, %s20
        %s681 = smul.u32 4, %s21
        %v682 = vld [vmem:[%s672] sm:$0xff]
        %v683 = vld [vmem:[%s672 + $0x8] sm:$0xff]
        %v684 = vld [vmem:[%s672 + $0x10] sm:$0xff]
        %v685 = vld [vmem:[%s672 + $0x18] sm:$0xff]
        %v686 = vld [vmem:[%s672 + $0x20] sm:$0xff]
        %v687 = vld [vmem:[%s672 + $0x28] sm:$0xff]
        %v688 = vunpack.c.l.bf16 %v682
        %v689 = vunpack.c.h.bf16 %v682
        %v690 = vunpack.c.l.bf16 %v683
        %v691 = vunpack.c.h.bf16 %v683
        %v692 = vunpack.c.l.bf16 %v684
        %v693 = vunpack.c.h.bf16 %v684
        %v694 = vunpack.c.l.bf16 %v685
        %v695 = vunpack.c.h.bf16 %v685
        %v696 = vunpack.c.l.bf16 %v686
        %v697 = vunpack.c.h.bf16 %v686
        %v698 = vunpack.c.l.bf16 %v687
        %v699 = vunpack.c.h.bf16 %v687
        %v700 = vadd.f32 %v688, %v689
        %v701 = vadd.f32 %v700, %v690
        %v702 = vadd.f32 %v701, %v691
        %v703 = vadd.f32 %v702, %v692
        %v704 = vadd.f32 %v703, %v693
        %705 = vadd.xlane.f32.xlu0 %v704
        %v706 = vpop.xlane.xlu0 %705
        %v707 = vadd.f32 %v694, %v695
        %v708 = vadd.f32 %v707, %v696
        %v709 = vadd.f32 %v708, %v697
        %v710 = vadd.f32 %v709, %v698
        %v711 = vadd.f32 %v710, %v699
        %712 = vadd.xlane.f32.xlu0 %v711
        %v713 = vpop.xlane.xlu0 %712
        %v714 = vrcp.pop 768.0
        %v715 = vmul.f32 %v706, %v714
        %v716 = vmul.f32 %v713, %v714
        %v717 = vsub.f32 %v688, %v715
        %v718 = vsub.f32 %v689, %v715
        %v719 = vsub.f32 %v690, %v715
        %v720 = vsub.f32 %v691, %v715
        %v721 = vsub.f32 %v692, %v715
        %v722 = vsub.f32 %v693, %v715
        %v723 = vsub.f32 %v694, %v716
        %v724 = vsub.f32 %v695, %v716
        %v725 = vsub.f32 %v696, %v716
        %v726 = vsub.f32 %v697, %v716
        %v727 = vsub.f32 %v698, %v716
        %v728 = vsub.f32 %v699, %v716
        %v729 = vmul.f32 %v717, %v717
        %v730 = vmul.f32 %v718, %v718
        %v731 = vmul.f32 %v719, %v719
        %v732 = vmul.f32 %v720, %v720
        %v733 = vmul.f32 %v721, %v721
        %v734 = vmul.f32 %v722, %v722
        %v735 = vmul.f32 %v723, %v723
        %v736 = vmul.f32 %v724, %v724
        %v737 = vmul.f32 %v725, %v725
        %v738 = vmul.f32 %v726, %v726
        %v739 = vmul.f32 %v727, %v727
        %v740 = vmul.f32 %v728, %v728
        %v741 = vadd.f32 %v729, %v730
        %v742 = vadd.f32 %v741, %v731
        %v743 = vadd.f32 %v742, %v732
        %v744 = vadd.f32 %v743, %v733
        %v745 = vadd.f32 %v744, %v734
        %746 = vadd.xlane.f32.xlu0 %v745
        %v747 = vpop.xlane.xlu0 %746
        %v748 = vadd.f32 %v735, %v736
        %v749 = vadd.f32 %v748, %v737
        %v750 = vadd.f32 %v749, %v738
        %v751 = vadd.f32 %v750, %v739
        %v752 = vadd.f32 %v751, %v740
        %753 = vadd.xlane.f32.xlu0 %v752
        %v754 = vpop.xlane.xlu0 %753
        %v755 = vmul.f32 %v747, %v714
        %v756 = vmul.f32 %v754, %v714
        %v757 = vadd.f32 %v755, 1e-06
        %v758 = vadd.f32 %v756, 1e-06
        %v759 = vrsqrt.pop %v757
        %v760 = vrsqrt.pop %v758
        %v761 = vmul.f32 %v717, %v759
        %v762 = vmul.f32 %v718, %v759
        %v763 = vmul.f32 %v719, %v759
        %v764 = vmul.f32 %v720, %v759
        %v765 = vmul.f32 %v721, %v759
        %v766 = vmul.f32 %v722, %v759
        %v767 = vmul.f32 %v723, %v760
        %v768 = vmul.f32 %v724, %v760
        %v769 = vmul.f32 %v725, %v760
        %v770 = vmul.f32 %v726, %v760
        %v771 = vmul.f32 %v727, %v760
        %v772 = vmul.f32 %v728, %v760
        %v773 = vld [vmem:[%s1] sm:$0x3f]
        %v775 = vlaneseq
        %v776 = vshrl.u32 %v775, 7
        %v777 = vsub.s32 0, %v776
        %v778 = vrot.slane %v773, %v777
        %v779 = vlaneseq
        %v780 = vshrl.u32 %v779, 7
        %v781 = vsub.s32 1, %v780
        %v782 = vrot.slane %v773, %v781
        %v783 = vlaneseq
        %v784 = vshrl.u32 %v783, 7
        %v785 = vsub.s32 2, %v784
        %v786 = vrot.slane %v773, %v785
        %v787 = vlaneseq
        %v788 = vshrl.u32 %v787, 7
        %v789 = vsub.s32 3, %v788
        %v790 = vrot.slane %v773, %v789
        %v791 = vlaneseq
        %v792 = vshrl.u32 %v791, 7
        %v793 = vsub.s32 4, %v792
        %v794 = vrot.slane %v773, %v793
        %v795 = vlaneseq
        %v796 = vshrl.u32 %v795, 7
        %v797 = vsub.s32 5, %v796
        %v798 = vrot.slane %v773, %v797
        %v805 = vmul.f32 %v761, %v778
        %v806 = vmul.f32 %v762, %v782
        %v807 = vmul.f32 %v763, %v786
        %v808 = vmul.f32 %v764, %v790
        %v809 = vmul.f32 %v765, %v794
        %v810 = vmul.f32 %v766, %v798
        %v811 = vmul.f32 %v767, %v778
        %v812 = vmul.f32 %v768, %v782
        %v813 = vmul.f32 %v769, %v786
        %v814 = vmul.f32 %v770, %v790
        %v815 = vmul.f32 %v771, %v794
        %v816 = vmul.f32 %v772, %v798
        %v817 = vld [vmem:[%s2] sm:$0x3f]
        %v819 = vlaneseq
        %v820 = vshrl.u32 %v819, 7
        %v821 = vsub.s32 0, %v820
        %v822 = vrot.slane %v817, %v821
        %v823 = vlaneseq
        %v824 = vshrl.u32 %v823, 7
        %v825 = vsub.s32 1, %v824
        %v826 = vrot.slane %v817, %v825
        %v827 = vlaneseq
        %v828 = vshrl.u32 %v827, 7
        %v829 = vsub.s32 2, %v828
        %v830 = vrot.slane %v817, %v829
        %v831 = vlaneseq
        %v832 = vshrl.u32 %v831, 7
        %v833 = vsub.s32 3, %v832
        %v834 = vrot.slane %v817, %v833
        %v835 = vlaneseq
        %v836 = vshrl.u32 %v835, 7
        %v837 = vsub.s32 4, %v836
        %v838 = vrot.slane %v817, %v837
        %v839 = vlaneseq
        %v840 = vshrl.u32 %v839, 7
        %v841 = vsub.s32 5, %v840
        %v842 = vrot.slane %v817, %v841
        %v849 = vadd.f32 %v805, %v822
        %v850 = vadd.f32 %v806, %v826
        %v851 = vadd.f32 %v807, %v830
        %v852 = vadd.f32 %v808, %v834
        %v853 = vadd.f32 %v809, %v838
        %v854 = vadd.f32 %v810, %v842
        %v855 = vadd.f32 %v811, %v822
        %v856 = vadd.f32 %v812, %v826
        %v857 = vadd.f32 %v813, %v830
        %v858 = vadd.f32 %v814, %v834
        %v859 = vadd.f32 %v815, %v838
        %v860 = vadd.f32 %v816, %v842
        %v861 = vpack.c.bf16 %v855, %v849
        %v862 = vpack.c.bf16 %v856, %v850
        %v863 = vpack.c.bf16 %v857, %v851
        %v864 = vpack.c.bf16 %v858, %v852
        %v865 = vpack.c.bf16 %v859, %v853
        %v866 = vpack.c.bf16 %v860, %v854
        %v867 = vld [vmem:[%s633] sm:$0xff]
        %v868 = vld [vmem:[%s633 + $0x8] sm:$0xff]
        %v869 = vld [vmem:[%s633 + $0x10] sm:$0xff]
        %v870 = vld [vmem:[%s633 + $0x18] sm:$0xff]
        %v871 = vld [vmem:[%s633 + $0x20] sm:$0xff]
        %v872 = vld [vmem:[%s633 + $0x28] sm:$0xff]
        %v873 = vld [vmem:[%s633 + $0x30] sm:$0xff]
        %v874 = vld [vmem:[%s633 + $0x38] sm:$0xff]
        %v875 = vld [vmem:[%s633 + $0x40] sm:$0xff]
        %v876 = vld [vmem:[%s633 + $0x48] sm:$0xff]
        %v877 = vld [vmem:[%s633 + $0x50] sm:$0xff]
        %v878 = vld [vmem:[%s633 + $0x58] sm:$0xff]
        %v879 = vld [vmem:[%s633 + $0x60] sm:$0xff]
        %v880 = vld [vmem:[%s633 + $0x68] sm:$0xff]
        %v881 = vld [vmem:[%s633 + $0x70] sm:$0xff]
        %v882 = vld [vmem:[%s633 + $0x78] sm:$0xff]
        %v883 = vld [vmem:[%s633 + $0x80] sm:$0xff]
        %v884 = vld [vmem:[%s633 + $0x88] sm:$0xff]
        %v885 = vld [vmem:[%s633 + $0x90] sm:$0xff]
        %v886 = vld [vmem:[%s633 + $0x98] sm:$0xff]
        %v887 = vld [vmem:[%s633 + $0xa0] sm:$0xff]
        %v888 = vld [vmem:[%s633 + $0xa8] sm:$0xff]
        %v889 = vld [vmem:[%s633 + $0xb0] sm:$0xff]
        %v890 = vld [vmem:[%s633 + $0xb8] sm:$0xff]
        %v891 = vld [vmem:[%s633 + $0xc0] sm:$0xff]
        %v892 = vld [vmem:[%s633 + $0xc8] sm:$0xff]
        %v893 = vld [vmem:[%s633 + $0xd0] sm:$0xff]
        %v894 = vld [vmem:[%s633 + $0xd8] sm:$0xff]
        %v895 = vld [vmem:[%s633 + $0xe0] sm:$0xff]
        %v896 = vld [vmem:[%s633 + $0xe8] sm:$0xff]
        %v897 = vld [vmem:[%s633 + $0xf0] sm:$0xff]
        %v898 = vld [vmem:[%s633 + $0xf8] sm:$0xff]
        %v899 = vld [vmem:[%s633 + $0x100] sm:$0xff]
        %v900 = vld [vmem:[%s633 + $0x108] sm:$0xff]
        %v901 = vld [vmem:[%s633 + $0x110] sm:$0xff]
        %v902 = vld [vmem:[%s633 + $0x118] sm:$0xff]
        %v903 = vld [vmem:[%s633 + $0x120] sm:$0xff]
        %v904 = vld [vmem:[%s633 + $0x128] sm:$0xff]
        %v905 = vld [vmem:[%s633 + $0x130] sm:$0xff]
        %v906 = vld [vmem:[%s633 + $0x138] sm:$0xff]
        %v907 = vld [vmem:[%s633 + $0x140] sm:$0xff]
        %v908 = vld [vmem:[%s633 + $0x148] sm:$0xff]
        %v909 = vld [vmem:[%s633 + $0x150] sm:$0xff]
        %v910 = vld [vmem:[%s633 + $0x158] sm:$0xff]
        %v911 = vld [vmem:[%s633 + $0x160] sm:$0xff]
        %v912 = vld [vmem:[%s633 + $0x168] sm:$0xff]
        %v913 = vld [vmem:[%s633 + $0x170] sm:$0xff]
        %v914 = vld [vmem:[%s633 + $0x178] sm:$0xff]
        %v915 = vld [vmem:[%s633 + $0x180] sm:$0xff]
        %v916 = vld [vmem:[%s633 + $0x188] sm:$0xff]
        %v917 = vld [vmem:[%s633 + $0x190] sm:$0xff]
        %v918 = vld [vmem:[%s633 + $0x198] sm:$0xff]
        %v919 = vld [vmem:[%s633 + $0x1a0] sm:$0xff]
        %v920 = vld [vmem:[%s633 + $0x1a8] sm:$0xff]
        %v921 = vld [vmem:[%s633 + $0x1b0] sm:$0xff]
        %v922 = vld [vmem:[%s633 + $0x1b8] sm:$0xff]
        %v923 = vld [vmem:[%s633 + $0x1c0] sm:$0xff]
        %v924 = vld [vmem:[%s633 + $0x1c8] sm:$0xff]
        %v925 = vld [vmem:[%s633 + $0x1d0] sm:$0xff]
        %v926 = vld [vmem:[%s633 + $0x1d8] sm:$0xff]
        %v927 = vld [vmem:[%s633 + $0x1e0] sm:$0xff]
        %v928 = vld [vmem:[%s633 + $0x1e8] sm:$0xff]
        %v929 = vld [vmem:[%s633 + $0x1f0] sm:$0xff]
        %v930 = vld [vmem:[%s633 + $0x1f8] sm:$0xff]
        %v931 = vld [vmem:[%s633 + $0x200] sm:$0xff]
        %v932 = vld [vmem:[%s633 + $0x208] sm:$0xff]
        %v933 = vld [vmem:[%s633 + $0x210] sm:$0xff]
        %v934 = vld [vmem:[%s633 + $0x218] sm:$0xff]
        %v935 = vld [vmem:[%s633 + $0x220] sm:$0xff]
        %v936 = vld [vmem:[%s633 + $0x228] sm:$0xff]
        %v937 = vld [vmem:[%s633 + $0x230] sm:$0xff]
        %v938 = vld [vmem:[%s633 + $0x238] sm:$0xff]
        %v939 = vld [vmem:[%s633 + $0x240] sm:$0xff]
        %v940 = vld [vmem:[%s633 + $0x248] sm:$0xff]
        %v941 = vld [vmem:[%s633 + $0x250] sm:$0xff]
        %v942 = vld [vmem:[%s633 + $0x258] sm:$0xff]
        %v943 = vld [vmem:[%s633 + $0x260] sm:$0xff]
        %v944 = vld [vmem:[%s633 + $0x268] sm:$0xff]
        %v945 = vld [vmem:[%s633 + $0x270] sm:$0xff]
        %v946 = vld [vmem:[%s633 + $0x278] sm:$0xff]
        %v947 = vld [vmem:[%s633 + $0x280] sm:$0xff]
        %v948 = vld [vmem:[%s633 + $0x288] sm:$0xff]
        %v949 = vld [vmem:[%s633 + $0x290] sm:$0xff]
        %v950 = vld [vmem:[%s633 + $0x298] sm:$0xff]
        %v951 = vld [vmem:[%s633 + $0x2a0] sm:$0xff]
        %v952 = vld [vmem:[%s633 + $0x2a8] sm:$0xff]
        %v953 = vld [vmem:[%s633 + $0x2b0] sm:$0xff]
        %v954 = vld [vmem:[%s633 + $0x2b8] sm:$0xff]
        %v955 = vld [vmem:[%s633 + $0x2c0] sm:$0xff]
        %v956 = vld [vmem:[%s633 + $0x2c8] sm:$0xff]
        %v957 = vld [vmem:[%s633 + $0x2d0] sm:$0xff]
        %v958 = vld [vmem:[%s633 + $0x2d8] sm:$0xff]
        %v959 = vld [vmem:[%s633 + $0x2e0] sm:$0xff]
        %v960 = vld [vmem:[%s633 + $0x2e8] sm:$0xff]
        %v961 = vld [vmem:[%s633 + $0x2f0] sm:$0xff]
        %v962 = vld [vmem:[%s633 + $0x2f8] sm:$0xff]
        %v963 = vld [vmem:[%s633 + $0x300] sm:$0xff]
        %v964 = vld [vmem:[%s633 + $0x308] sm:$0xff]
        %v965 = vld [vmem:[%s633 + $0x310] sm:$0xff]
        %v966 = vld [vmem:[%s633 + $0x318] sm:$0xff]
        %v967 = vld [vmem:[%s633 + $0x320] sm:$0xff]
        %v968 = vld [vmem:[%s633 + $0x328] sm:$0xff]
        %v969 = vld [vmem:[%s633 + $0x330] sm:$0xff]
        %v970 = vld [vmem:[%s633 + $0x338] sm:$0xff]
        %v971 = vld [vmem:[%s633 + $0x340] sm:$0xff]
        %v972 = vld [vmem:[%s633 + $0x348] sm:$0xff]
        %v973 = vld [vmem:[%s633 + $0x350] sm:$0xff]
        %v974 = vld [vmem:[%s633 + $0x358] sm:$0xff]
        %v975 = vld [vmem:[%s633 + $0x360] sm:$0xff]
        %v976 = vld [vmem:[%s633 + $0x368] sm:$0xff]
        %v977 = vld [vmem:[%s633 + $0x370] sm:$0xff]
        %v978 = vld [vmem:[%s633 + $0x378] sm:$0xff]
        %v979 = vld [vmem:[%s633 + $0x380] sm:$0xff]
        %v980 = vld [vmem:[%s633 + $0x388] sm:$0xff]
        %v981 = vld [vmem:[%s633 + $0x390] sm:$0xff]
        %v982 = vld [vmem:[%s633 + $0x398] sm:$0xff]
        %v983 = vld [vmem:[%s633 + $0x3a0] sm:$0xff]
        %v984 = vld [vmem:[%s633 + $0x3a8] sm:$0xff]
        %v985 = vld [vmem:[%s633 + $0x3b0] sm:$0xff]
        %v986 = vld [vmem:[%s633 + $0x3b8] sm:$0xff]
        %v987 = vld [vmem:[%s633 + $0x3c0] sm:$0xff]
        %v988 = vld [vmem:[%s633 + $0x3c8] sm:$0xff]
        %v989 = vld [vmem:[%s633 + $0x3d0] sm:$0xff]
        %v990 = vld [vmem:[%s633 + $0x3d8] sm:$0xff]
        %v991 = vld [vmem:[%s633 + $0x3e0] sm:$0xff]
        %v992 = vld [vmem:[%s633 + $0x3e8] sm:$0xff]
        %v993 = vld [vmem:[%s633 + $0x3f0] sm:$0xff]
        %v994 = vld [vmem:[%s633 + $0x3f8] sm:$0xff]
        %v995 = vld [vmem:[%s633 + $0x400] sm:$0xff]
        %v996 = vld [vmem:[%s633 + $0x408] sm:$0xff]
        %v997 = vld [vmem:[%s633 + $0x410] sm:$0xff]
        %v998 = vld [vmem:[%s633 + $0x418] sm:$0xff]
        %v999 = vld [vmem:[%s633 + $0x420] sm:$0xff]
        %v1000 = vld [vmem:[%s633 + $0x428] sm:$0xff]
        %v1001 = vld [vmem:[%s633 + $0x430] sm:$0xff]
        %v1002 = vld [vmem:[%s633 + $0x438] sm:$0xff]
        %v1003 = vld [vmem:[%s633 + $0x440] sm:$0xff]
        %v1004 = vld [vmem:[%s633 + $0x448] sm:$0xff]
        %v1005 = vld [vmem:[%s633 + $0x450] sm:$0xff]
        %v1006 = vld [vmem:[%s633 + $0x458] sm:$0xff]
        %v1007 = vld [vmem:[%s633 + $0x460] sm:$0xff]
        %v1008 = vld [vmem:[%s633 + $0x468] sm:$0xff]
        %v1009 = vld [vmem:[%s633 + $0x470] sm:$0xff]
        %v1010 = vld [vmem:[%s633 + $0x478] sm:$0xff]
        %v1011 = vld [vmem:[%s633 + $0x480] sm:$0xff]
        %v1012 = vld [vmem:[%s633 + $0x488] sm:$0xff]
        %v1013 = vld [vmem:[%s633 + $0x490] sm:$0xff]
        %v1014 = vld [vmem:[%s633 + $0x498] sm:$0xff]
        %v1015 = vld [vmem:[%s633 + $0x4a0] sm:$0xff]
        %v1016 = vld [vmem:[%s633 + $0x4a8] sm:$0xff]
        %v1017 = vld [vmem:[%s633 + $0x4b0] sm:$0xff]
        %v1018 = vld [vmem:[%s633 + $0x4b8] sm:$0xff]
        %v1019 = vld [vmem:[%s633 + $0x4c0] sm:$0xff]
        %v1020 = vld [vmem:[%s633 + $0x4c8] sm:$0xff]
        %v1021 = vld [vmem:[%s633 + $0x4d0] sm:$0xff]
        %v1022 = vld [vmem:[%s633 + $0x4d8] sm:$0xff]
        %v1023 = vld [vmem:[%s633 + $0x4e0] sm:$0xff]
        %v1024 = vld [vmem:[%s633 + $0x4e8] sm:$0xff]
        %v1025 = vld [vmem:[%s633 + $0x4f0] sm:$0xff]
        %v1026 = vld [vmem:[%s633 + $0x4f8] sm:$0xff]
        %v1027 = vld [vmem:[%s633 + $0x500] sm:$0xff]
        %v1028 = vld [vmem:[%s633 + $0x508] sm:$0xff]
        %v1029 = vld [vmem:[%s633 + $0x510] sm:$0xff]
        %v1030 = vld [vmem:[%s633 + $0x518] sm:$0xff]
        %v1031 = vld [vmem:[%s633 + $0x520] sm:$0xff]
        %v1032 = vld [vmem:[%s633 + $0x528] sm:$0xff]
        %v1033 = vld [vmem:[%s633 + $0x530] sm:$0xff]
        %v1034 = vld [vmem:[%s633 + $0x538] sm:$0xff]
        %v1035 = vld [vmem:[%s633 + $0x540] sm:$0xff]
        %v1036 = vld [vmem:[%s633 + $0x548] sm:$0xff]
        %v1037 = vld [vmem:[%s633 + $0x550] sm:$0xff]
        %v1038 = vld [vmem:[%s633 + $0x558] sm:$0xff]
        %v1039 = vld [vmem:[%s633 + $0x560] sm:$0xff]
        %v1040 = vld [vmem:[%s633 + $0x568] sm:$0xff]
        %v1041 = vld [vmem:[%s633 + $0x570] sm:$0xff]
        %v1042 = vld [vmem:[%s633 + $0x578] sm:$0xff]
        %v1043 = vld [vmem:[%s633 + $0x580] sm:$0xff]
        %v1044 = vld [vmem:[%s633 + $0x588] sm:$0xff]
        %v1045 = vld [vmem:[%s633 + $0x590] sm:$0xff]
        %v1046 = vld [vmem:[%s633 + $0x598] sm:$0xff]
        %v1047 = vld [vmem:[%s633 + $0x5a0] sm:$0xff]
        %v1048 = vld [vmem:[%s633 + $0x5a8] sm:$0xff]
        %v1049 = vld [vmem:[%s633 + $0x5b0] sm:$0xff]
        %v1050 = vld [vmem:[%s633 + $0x5b8] sm:$0xff]
        %v1051 = vld [vmem:[%s633 + $0x5c0] sm:$0xff]
        %v1052 = vld [vmem:[%s633 + $0x5c8] sm:$0xff]
        %v1053 = vld [vmem:[%s633 + $0x5d0] sm:$0xff]
        %v1054 = vld [vmem:[%s633 + $0x5d8] sm:$0xff]
        %v1055 = vld [vmem:[%s633 + $0x5e0] sm:$0xff]
        %v1056 = vld [vmem:[%s633 + $0x5e8] sm:$0xff]
        %v1057 = vld [vmem:[%s633 + $0x5f0] sm:$0xff]
        %v1058 = vld [vmem:[%s633 + $0x5f8] sm:$0xff]
        %v1059 = vld [vmem:[%s678] sm:$0xf]
        %v1061 = vlaneseq
        %v1062 = vshrl.u32 %v1061, 7
        %v1063 = vsub.s32 0, %v1062
        %v1064 = vrot.slane %v1059, %v1063
        %v1065 = vlaneseq
        %v1066 = vshrl.u32 %v1065, 7
        %v1067 = vsub.s32 1, %v1066
        %v1068 = vrot.slane %v1059, %v1067
        %v1069 = vlaneseq
        %v1070 = vshrl.u32 %v1069, 7
        %v1071 = vsub.s32 2, %v1070
        %v1072 = vrot.slane %v1059, %v1071
        %v1073 = vlaneseq
        %v1074 = vshrl.u32 %v1073, 7
        %v1075 = vsub.s32 3, %v1074
        %v1076 = vrot.slane %v1059, %v1075
        %v1273 = vunpack.c.l.b16 %v867
        %v1274 = vunpack.c.h.b16 %v867
        %v1275 = vunpack.c.l.b16 %v868
        %v1276 = vunpack.c.h.b16 %v868
        %v1277 = vunpack.c.l.b16 %v869
        %v1278 = vunpack.c.h.b16 %v869
        %v1279 = vunpack.c.l.b16 %v870
        %v1280 = vunpack.c.h.b16 %v870
        %v1281 = vunpack.c.l.b16 %v871
        %v1282 = vunpack.c.h.b16 %v871
        %v1283 = vunpack.c.l.b16 %v872
        %v1284 = vunpack.c.h.b16 %v872
        %v1285 = vunpack.c.l.b16 %v873
        %v1286 = vunpack.c.h.b16 %v873
        %v1287 = vunpack.c.l.b16 %v874
        %v1288 = vunpack.c.h.b16 %v874
        %v1289 = vunpack.c.l.b16 %v875
        %v1290 = vunpack.c.h.b16 %v875
        %v1291 = vunpack.c.l.b16 %v876
        %v1292 = vunpack.c.h.b16 %v876
        %v1293 = vunpack.c.l.b16 %v877
        %v1294 = vunpack.c.h.b16 %v877
        %v1295 = vunpack.c.l.b16 %v878
        %v1296 = vunpack.c.h.b16 %v878
        %v1297 = vunpack.c.l.b16 %v879
        %v1298 = vunpack.c.h.b16 %v879
        %v1299 = vunpack.c.l.b16 %v880
        %v1300 = vunpack.c.h.b16 %v880
        %v1301 = vunpack.c.l.b16 %v881
        %v1302 = vunpack.c.h.b16 %v881
        %v1303 = vunpack.c.l.b16 %v882
        %v1304 = vunpack.c.h.b16 %v882
        %v1305 = vunpack.c.l.b16 %v883
        %v1306 = vunpack.c.h.b16 %v883
        %v1307 = vunpack.c.l.b16 %v884
        %v1308 = vunpack.c.h.b16 %v884
        %v1309 = vunpack.c.l.b16 %v885
        %v1310 = vunpack.c.h.b16 %v885
        %v1311 = vunpack.c.l.b16 %v886
        %v1312 = vunpack.c.h.b16 %v886
        %v1313 = vunpack.c.l.b16 %v887
        %v1314 = vunpack.c.h.b16 %v887
        %v1315 = vunpack.c.l.b16 %v888
        %v1316 = vunpack.c.h.b16 %v888
        %v1317 = vunpack.c.l.b16 %v889
        %v1318 = vunpack.c.h.b16 %v889
        %v1319 = vunpack.c.l.b16 %v890
        %v1320 = vunpack.c.h.b16 %v890
        %v1321 = vunpack.c.l.b16 %v891
        %v1322 = vunpack.c.h.b16 %v891
        %v1323 = vunpack.c.l.b16 %v892
        %v1324 = vunpack.c.h.b16 %v892
        %v1325 = vunpack.c.l.b16 %v893
        %v1326 = vunpack.c.h.b16 %v893
        %v1327 = vunpack.c.l.b16 %v894
        %v1328 = vunpack.c.h.b16 %v894
        %v1329 = vunpack.c.l.b16 %v895
        %v1330 = vunpack.c.h.b16 %v895
        %v1331 = vunpack.c.l.b16 %v896
        %v1332 = vunpack.c.h.b16 %v896
        %v1333 = vunpack.c.l.b16 %v897
        %v1334 = vunpack.c.h.b16 %v897
        %v1335 = vunpack.c.l.b16 %v898
        %v1336 = vunpack.c.h.b16 %v898
        %v1337 = vunpack.c.l.b16 %v899
        %v1338 = vunpack.c.h.b16 %v899
        %v1339 = vunpack.c.l.b16 %v900
        %v1340 = vunpack.c.h.b16 %v900
        %v1341 = vunpack.c.l.b16 %v901
        %v1342 = vunpack.c.h.b16 %v901
        %v1343 = vunpack.c.l.b16 %v902
        %v1344 = vunpack.c.h.b16 %v902
        %v1345 = vunpack.c.l.b16 %v903
        %v1346 = vunpack.c.h.b16 %v903
        %v1347 = vunpack.c.l.b16 %v904
        %v1348 = vunpack.c.h.b16 %v904
        %v1349 = vunpack.c.l.b16 %v905
        %v1350 = vunpack.c.h.b16 %v905
        %v1351 = vunpack.c.l.b16 %v906
        %v1352 = vunpack.c.h.b16 %v906
        %v1353 = vunpack.c.l.b16 %v907
        %v1354 = vunpack.c.h.b16 %v907
        %v1355 = vunpack.c.l.b16 %v908
        %v1356 = vunpack.c.h.b16 %v908
        %v1357 = vunpack.c.l.b16 %v909
        %v1358 = vunpack.c.h.b16 %v909
        %v1359 = vunpack.c.l.b16 %v910
        %v1360 = vunpack.c.h.b16 %v910
        %v1361 = vunpack.c.l.b16 %v911
        %v1362 = vunpack.c.h.b16 %v911
        %v1363 = vunpack.c.l.b16 %v912
        %v1364 = vunpack.c.h.b16 %v912
        %v1365 = vunpack.c.l.b16 %v913
        %v1366 = vunpack.c.h.b16 %v913
        %v1367 = vunpack.c.l.b16 %v914
        %v1368 = vunpack.c.h.b16 %v914
        %v1369 = vunpack.c.l.b16 %v915
        %v1370 = vunpack.c.h.b16 %v915
        %v1371 = vunpack.c.l.b16 %v916
        %v1372 = vunpack.c.h.b16 %v916
        %v1373 = vunpack.c.l.b16 %v917
        %v1374 = vunpack.c.h.b16 %v917
        %v1375 = vunpack.c.l.b16 %v918
        %v1376 = vunpack.c.h.b16 %v918
        %v1377 = vunpack.c.l.b16 %v919
        %v1378 = vunpack.c.h.b16 %v919
        %v1379 = vunpack.c.l.b16 %v920
        %v1380 = vunpack.c.h.b16 %v920
        %v1381 = vunpack.c.l.b16 %v921
        %v1382 = vunpack.c.h.b16 %v921
        %v1383 = vunpack.c.l.b16 %v922
        %v1384 = vunpack.c.h.b16 %v922
        %v1385 = vunpack.c.l.b16 %v923
        %v1386 = vunpack.c.h.b16 %v923
        %v1387 = vunpack.c.l.b16 %v924
        %v1388 = vunpack.c.h.b16 %v924
        %v1389 = vunpack.c.l.b16 %v925
        %v1390 = vunpack.c.h.b16 %v925
        %v1391 = vunpack.c.l.b16 %v926
        %v1392 = vunpack.c.h.b16 %v926
        %v1393 = vunpack.c.l.b16 %v927
        %v1394 = vunpack.c.h.b16 %v927
        %v1395 = vunpack.c.l.b16 %v928
        %v1396 = vunpack.c.h.b16 %v928
        %v1397 = vunpack.c.l.b16 %v929
        %v1398 = vunpack.c.h.b16 %v929
        %v1399 = vunpack.c.l.b16 %v930
        %v1400 = vunpack.c.h.b16 %v930
        %v1401 = vunpack.c.l.b16 %v931
        %v1402 = vunpack.c.h.b16 %v931
        %v1403 = vunpack.c.l.b16 %v932
        %v1404 = vunpack.c.h.b16 %v932
        %v1405 = vunpack.c.l.b16 %v933
        %v1406 = vunpack.c.h.b16 %v933
        %v1407 = vunpack.c.l.b16 %v934
        %v1408 = vunpack.c.h.b16 %v934
        %v1409 = vunpack.c.l.b16 %v935
        %v1410 = vunpack.c.h.b16 %v935
        %v1411 = vunpack.c.l.b16 %v936
        %v1412 = vunpack.c.h.b16 %v936
        %v1413 = vunpack.c.l.b16 %v937
        %v1414 = vunpack.c.h.b16 %v937
        %v1415 = vunpack.c.l.b16 %v938
        %v1416 = vunpack.c.h.b16 %v938
        %v1417 = vunpack.c.l.b16 %v939
        %v1418 = vunpack.c.h.b16 %v939
        %v1419 = vunpack.c.l.b16 %v940
        %v1420 = vunpack.c.h.b16 %v940
        %v1421 = vunpack.c.l.b16 %v941
        %v1422 = vunpack.c.h.b16 %v941
        %v1423 = vunpack.c.l.b16 %v942
        %v1424 = vunpack.c.h.b16 %v942
        %v1425 = vunpack.c.l.b16 %v943
        %v1426 = vunpack.c.h.b16 %v943
        %v1427 = vunpack.c.l.b16 %v944
        %v1428 = vunpack.c.h.b16 %v944
        %v1429 = vunpack.c.l.b16 %v945
        %v1430 = vunpack.c.h.b16 %v945
        %v1431 = vunpack.c.l.b16 %v946
        %v1432 = vunpack.c.h.b16 %v946
        %v1433 = vunpack.c.l.b16 %v947
        %v1434 = vunpack.c.h.b16 %v947
        %v1435 = vunpack.c.l.b16 %v948
        %v1436 = vunpack.c.h.b16 %v948
        %v1437 = vunpack.c.l.b16 %v949
        %v1438 = vunpack.c.h.b16 %v949
        %v1439 = vunpack.c.l.b16 %v950
        %v1440 = vunpack.c.h.b16 %v950
        %v1441 = vunpack.c.l.b16 %v951
        %v1442 = vunpack.c.h.b16 %v951
        %v1443 = vunpack.c.l.b16 %v952
        %v1444 = vunpack.c.h.b16 %v952
        %v1445 = vunpack.c.l.b16 %v953
        %v1446 = vunpack.c.h.b16 %v953
        %v1447 = vunpack.c.l.b16 %v954
        %v1448 = vunpack.c.h.b16 %v954
        %v1449 = vunpack.c.l.b16 %v955
        %v1450 = vunpack.c.h.b16 %v955
        %v1451 = vunpack.c.l.b16 %v956
        %v1452 = vunpack.c.h.b16 %v956
        %v1453 = vunpack.c.l.b16 %v957
        %v1454 = vunpack.c.h.b16 %v957
        %v1455 = vunpack.c.l.b16 %v958
        %v1456 = vunpack.c.h.b16 %v958
        %v1457 = vunpack.c.l.b16 %v959
        %v1458 = vunpack.c.h.b16 %v959
        %v1459 = vunpack.c.l.b16 %v960
        %v1460 = vunpack.c.h.b16 %v960
        %v1461 = vunpack.c.l.b16 %v961
        %v1462 = vunpack.c.h.b16 %v961
        %v1463 = vunpack.c.l.b16 %v962
        %v1464 = vunpack.c.h.b16 %v962
        %v1465 = vunpack.c.l.b16 %v963
        %v1466 = vunpack.c.h.b16 %v963
        %v1467 = vunpack.c.l.b16 %v964
        %v1468 = vunpack.c.h.b16 %v964
        %v1469 = vunpack.c.l.b16 %v965
        %v1470 = vunpack.c.h.b16 %v965
        %v1471 = vunpack.c.l.b16 %v966
        %v1472 = vunpack.c.h.b16 %v966
        %v1473 = vunpack.c.l.b16 %v967
        %v1474 = vunpack.c.h.b16 %v967
        %v1475 = vunpack.c.l.b16 %v968
        %v1476 = vunpack.c.h.b16 %v968
        %v1477 = vunpack.c.l.b16 %v969
        %v1478 = vunpack.c.h.b16 %v969
        %v1479 = vunpack.c.l.b16 %v970
        %v1480 = vunpack.c.h.b16 %v970
        %v1481 = vunpack.c.l.b16 %v971
        %v1482 = vunpack.c.h.b16 %v971
        %v1483 = vunpack.c.l.b16 %v972
        %v1484 = vunpack.c.h.b16 %v972
        %v1485 = vunpack.c.l.b16 %v973
        %v1486 = vunpack.c.h.b16 %v973
        %v1487 = vunpack.c.l.b16 %v974
        %v1488 = vunpack.c.h.b16 %v974
        %v1489 = vunpack.c.l.b16 %v975
        %v1490 = vunpack.c.h.b16 %v975
        %v1491 = vunpack.c.l.b16 %v976
        %v1492 = vunpack.c.h.b16 %v976
        %v1493 = vunpack.c.l.b16 %v977
        %v1494 = vunpack.c.h.b16 %v977
        %v1495 = vunpack.c.l.b16 %v978
        %v1496 = vunpack.c.h.b16 %v978
        %v1497 = vunpack.c.l.b16 %v979
        %v1498 = vunpack.c.h.b16 %v979
        %v1499 = vunpack.c.l.b16 %v980
        %v1500 = vunpack.c.h.b16 %v980
        %v1501 = vunpack.c.l.b16 %v981
        %v1502 = vunpack.c.h.b16 %v981
        %v1503 = vunpack.c.l.b16 %v982
        %v1504 = vunpack.c.h.b16 %v982
        %v1505 = vunpack.c.l.b16 %v983
        %v1506 = vunpack.c.h.b16 %v983
        %v1507 = vunpack.c.l.b16 %v984
        %v1508 = vunpack.c.h.b16 %v984
        %v1509 = vunpack.c.l.b16 %v985
        %v1510 = vunpack.c.h.b16 %v985
        %v1511 = vunpack.c.l.b16 %v986
        %v1512 = vunpack.c.h.b16 %v986
        %v1513 = vunpack.c.l.b16 %v987
        %v1514 = vunpack.c.h.b16 %v987
        %v1515 = vunpack.c.l.b16 %v988
        %v1516 = vunpack.c.h.b16 %v988
        %v1517 = vunpack.c.l.b16 %v989
        %v1518 = vunpack.c.h.b16 %v989
        %v1519 = vunpack.c.l.b16 %v990
        %v1520 = vunpack.c.h.b16 %v990
        %v1521 = vunpack.c.l.b16 %v991
        %v1522 = vunpack.c.h.b16 %v991
        %v1523 = vunpack.c.l.b16 %v992
        %v1524 = vunpack.c.h.b16 %v992
        %v1525 = vunpack.c.l.b16 %v993
        %v1526 = vunpack.c.h.b16 %v993
        %v1527 = vunpack.c.l.b16 %v994
        %v1528 = vunpack.c.h.b16 %v994
        %v1529 = vunpack.c.l.b16 %v995
        %v1530 = vunpack.c.h.b16 %v995
        %v1531 = vunpack.c.l.b16 %v996
        %v1532 = vunpack.c.h.b16 %v996
        %v1533 = vunpack.c.l.b16 %v997
        %v1534 = vunpack.c.h.b16 %v997
        %v1535 = vunpack.c.l.b16 %v998
        %v1536 = vunpack.c.h.b16 %v998
        %v1537 = vunpack.c.l.b16 %v999
        %v1538 = vunpack.c.h.b16 %v999
        %v1539 = vunpack.c.l.b16 %v1000
        %v1540 = vunpack.c.h.b16 %v1000
        %v1541 = vunpack.c.l.b16 %v1001
        %v1542 = vunpack.c.h.b16 %v1001
        %v1543 = vunpack.c.l.b16 %v1002
        %v1544 = vunpack.c.h.b16 %v1002
        %v1545 = vunpack.c.l.b16 %v1003
        %v1546 = vunpack.c.h.b16 %v1003
        %v1547 = vunpack.c.l.b16 %v1004
        %v1548 = vunpack.c.h.b16 %v1004
        %v1549 = vunpack.c.l.b16 %v1005
        %v1550 = vunpack.c.h.b16 %v1005
        %v1551 = vunpack.c.l.b16 %v1006
        %v1552 = vunpack.c.h.b16 %v1006
        %v1553 = vunpack.c.l.b16 %v1007
        %v1554 = vunpack.c.h.b16 %v1007
        %v1555 = vunpack.c.l.b16 %v1008
        %v1556 = vunpack.c.h.b16 %v1008
        %v1557 = vunpack.c.l.b16 %v1009
        %v1558 = vunpack.c.h.b16 %v1009
        %v1559 = vunpack.c.l.b16 %v1010
        %v1560 = vunpack.c.h.b16 %v1010
        %v1561 = vunpack.c.l.b16 %v1011
        %v1562 = vunpack.c.h.b16 %v1011
        %v1563 = vunpack.c.l.b16 %v1012
        %v1564 = vunpack.c.h.b16 %v1012
        %v1565 = vunpack.c.l.b16 %v1013
        %v1566 = vunpack.c.h.b16 %v1013
        %v1567 = vunpack.c.l.b16 %v1014
        %v1568 = vunpack.c.h.b16 %v1014
        %v1569 = vunpack.c.l.b16 %v1015
        %v1570 = vunpack.c.h.b16 %v1015
        %v1571 = vunpack.c.l.b16 %v1016
        %v1572 = vunpack.c.h.b16 %v1016
        %v1573 = vunpack.c.l.b16 %v1017
        %v1574 = vunpack.c.h.b16 %v1017
        %v1575 = vunpack.c.l.b16 %v1018
        %v1576 = vunpack.c.h.b16 %v1018
        %v1577 = vunpack.c.l.b16 %v1019
        %v1578 = vunpack.c.h.b16 %v1019
        %v1579 = vunpack.c.l.b16 %v1020
        %v1580 = vunpack.c.h.b16 %v1020
        %v1581 = vunpack.c.l.b16 %v1021
        %v1582 = vunpack.c.h.b16 %v1021
        %v1583 = vunpack.c.l.b16 %v1022
        %v1584 = vunpack.c.h.b16 %v1022
        %v1585 = vunpack.c.l.b16 %v1023
        %v1586 = vunpack.c.h.b16 %v1023
        %v1587 = vunpack.c.l.b16 %v1024
        %v1588 = vunpack.c.h.b16 %v1024
        %v1589 = vunpack.c.l.b16 %v1025
        %v1590 = vunpack.c.h.b16 %v1025
        %v1591 = vunpack.c.l.b16 %v1026
        %v1592 = vunpack.c.h.b16 %v1026
        %v1593 = vunpack.c.l.b16 %v1027
        %v1594 = vunpack.c.h.b16 %v1027
        %v1595 = vunpack.c.l.b16 %v1028
        %v1596 = vunpack.c.h.b16 %v1028
        %v1597 = vunpack.c.l.b16 %v1029
        %v1598 = vunpack.c.h.b16 %v1029
        %v1599 = vunpack.c.l.b16 %v1030
        %v1600 = vunpack.c.h.b16 %v1030
        %v1601 = vunpack.c.l.b16 %v1031
        %v1602 = vunpack.c.h.b16 %v1031
        %v1603 = vunpack.c.l.b16 %v1032
        %v1604 = vunpack.c.h.b16 %v1032
        %v1605 = vunpack.c.l.b16 %v1033
        %v1606 = vunpack.c.h.b16 %v1033
        %v1607 = vunpack.c.l.b16 %v1034
        %v1608 = vunpack.c.h.b16 %v1034
        %v1609 = vunpack.c.l.b16 %v1035
        %v1610 = vunpack.c.h.b16 %v1035
        %v1611 = vunpack.c.l.b16 %v1036
        %v1612 = vunpack.c.h.b16 %v1036
        %v1613 = vunpack.c.l.b16 %v1037
        %v1614 = vunpack.c.h.b16 %v1037
        %v1615 = vunpack.c.l.b16 %v1038
        %v1616 = vunpack.c.h.b16 %v1038
        %v1617 = vunpack.c.l.b16 %v1039
        %v1618 = vunpack.c.h.b16 %v1039
        %v1619 = vunpack.c.l.b16 %v1040
        %v1620 = vunpack.c.h.b16 %v1040
        %v1621 = vunpack.c.l.b16 %v1041
        %v1622 = vunpack.c.h.b16 %v1041
        %v1623 = vunpack.c.l.b16 %v1042
        %v1624 = vunpack.c.h.b16 %v1042
        %v1625 = vunpack.c.l.b16 %v1043
        %v1626 = vunpack.c.h.b16 %v1043
        %v1627 = vunpack.c.l.b16 %v1044
        %v1628 = vunpack.c.h.b16 %v1044
        %v1629 = vunpack.c.l.b16 %v1045
        %v1630 = vunpack.c.h.b16 %v1045
        %v1631 = vunpack.c.l.b16 %v1046
        %v1632 = vunpack.c.h.b16 %v1046
        %v1633 = vunpack.c.l.b16 %v1047
        %v1634 = vunpack.c.h.b16 %v1047
        %v1635 = vunpack.c.l.b16 %v1048
        %v1636 = vunpack.c.h.b16 %v1048
        %v1637 = vunpack.c.l.b16 %v1049
        %v1638 = vunpack.c.h.b16 %v1049
        %v1639 = vunpack.c.l.b16 %v1050
        %v1640 = vunpack.c.h.b16 %v1050
        %v1641 = vunpack.c.l.b16 %v1051
        %v1642 = vunpack.c.h.b16 %v1051
        %v1643 = vunpack.c.l.b16 %v1052
        %v1644 = vunpack.c.h.b16 %v1052
        %v1645 = vunpack.c.l.b16 %v1053
        %v1646 = vunpack.c.h.b16 %v1053
        %v1647 = vunpack.c.l.b16 %v1054
        %v1648 = vunpack.c.h.b16 %v1054
        %v1649 = vunpack.c.l.b16 %v1055
        %v1650 = vunpack.c.h.b16 %v1055
        %v1651 = vunpack.c.l.b16 %v1056
        %v1652 = vunpack.c.h.b16 %v1056
        %v1653 = vunpack.c.l.b16 %v1057
        %v1654 = vunpack.c.h.b16 %v1057
        %v1655 = vunpack.c.l.b16 %v1058
        %v1656 = vunpack.c.h.b16 %v1058
        %v1657 = vpack.c.b16 %v1277, %v1273
        %v1658 = vpack.c.b16 %v1278, %v1274
        %v1659 = vpack.c.b16 %v1279, %v1275
        %v1660 = vpack.c.b16 %v1280, %v1276
        %v1661 = vpack.c.b16 %v1285, %v1281
        %v1662 = vpack.c.b16 %v1286, %v1282
        %v1663 = vpack.c.b16 %v1287, %v1283
        %v1664 = vpack.c.b16 %v1288, %v1284
        %v1665 = vpack.c.b16 %v1293, %v1289
        %v1666 = vpack.c.b16 %v1294, %v1290
        %v1667 = vpack.c.b16 %v1295, %v1291
        %v1668 = vpack.c.b16 %v1296, %v1292
        %v1669 = vpack.c.b16 %v1301, %v1297
        %v1670 = vpack.c.b16 %v1302, %v1298
        %v1671 = vpack.c.b16 %v1303, %v1299
        %v1672 = vpack.c.b16 %v1304, %v1300
        %v1673 = vpack.c.b16 %v1309, %v1305
        %v1674 = vpack.c.b16 %v1310, %v1306
        %v1675 = vpack.c.b16 %v1311, %v1307
        %v1676 = vpack.c.b16 %v1312, %v1308
        %v1677 = vpack.c.b16 %v1317, %v1313
        %v1678 = vpack.c.b16 %v1318, %v1314
        %v1679 = vpack.c.b16 %v1319, %v1315
        %v1680 = vpack.c.b16 %v1320, %v1316
        %v1681 = vpack.c.b16 %v1325, %v1321
        %v1682 = vpack.c.b16 %v1326, %v1322
        %v1683 = vpack.c.b16 %v1327, %v1323
        %v1684 = vpack.c.b16 %v1328, %v1324
        %v1685 = vpack.c.b16 %v1333, %v1329
        %v1686 = vpack.c.b16 %v1334, %v1330
        %v1687 = vpack.c.b16 %v1335, %v1331
        %v1688 = vpack.c.b16 %v1336, %v1332
        %v1689 = vpack.c.b16 %v1341, %v1337
        %v1690 = vpack.c.b16 %v1342, %v1338
        %v1691 = vpack.c.b16 %v1343, %v1339
        %v1692 = vpack.c.b16 %v1344, %v1340
        %v1693 = vpack.c.b16 %v1349, %v1345
        %v1694 = vpack.c.b16 %v1350, %v1346
        %v1695 = vpack.c.b16 %v1351, %v1347
        %v1696 = vpack.c.b16 %v1352, %v1348
        %v1697 = vpack.c.b16 %v1357, %v1353
        %v1698 = vpack.c.b16 %v1358, %v1354
        %v1699 = vpack.c.b16 %v1359, %v1355
        %v1700 = vpack.c.b16 %v1360, %v1356
        %v1701 = vpack.c.b16 %v1365, %v1361
        %v1702 = vpack.c.b16 %v1366, %v1362
        %v1703 = vpack.c.b16 %v1367, %v1363
        %v1704 = vpack.c.b16 %v1368, %v1364
        %v1705 = vpack.c.b16 %v1373, %v1369
        %v1706 = vpack.c.b16 %v1374, %v1370
        %v1707 = vpack.c.b16 %v1375, %v1371
        %v1708 = vpack.c.b16 %v1376, %v1372
        %v1709 = vpack.c.b16 %v1381, %v1377
        %v1710 = vpack.c.b16 %v1382, %v1378
        %v1711 = vpack.c.b16 %v1383, %v1379
        %v1712 = vpack.c.b16 %v1384, %v1380
        %v1713 = vpack.c.b16 %v1389, %v1385
        %v1714 = vpack.c.b16 %v1390, %v1386
        %v1715 = vpack.c.b16 %v1391, %v1387
        %v1716 = vpack.c.b16 %v1392, %v1388
        %v1717 = vpack.c.b16 %v1397, %v1393
        %v1718 = vpack.c.b16 %v1398, %v1394
        %v1719 = vpack.c.b16 %v1399, %v1395
        %v1720 = vpack.c.b16 %v1400, %v1396
        %v1721 = vpack.c.b16 %v1405, %v1401
        %v1722 = vpack.c.b16 %v1406, %v1402
        %v1723 = vpack.c.b16 %v1407, %v1403
        %v1724 = vpack.c.b16 %v1408, %v1404
        %v1725 = vpack.c.b16 %v1413, %v1409
        %v1726 = vpack.c.b16 %v1414, %v1410
        %v1727 = vpack.c.b16 %v1415, %v1411
        %v1728 = vpack.c.b16 %v1416, %v1412
        %v1729 = vpack.c.b16 %v1421, %v1417
        %v1730 = vpack.c.b16 %v1422, %v1418
        %v1731 = vpack.c.b16 %v1423, %v1419
        %v1732 = vpack.c.b16 %v1424, %v1420
        %v1733 = vpack.c.b16 %v1429, %v1425
        %v1734 = vpack.c.b16 %v1430, %v1426
        %v1735 = vpack.c.b16 %v1431, %v1427
        %v1736 = vpack.c.b16 %v1432, %v1428
        %v1737 = vpack.c.b16 %v1437, %v1433
        %v1738 = vpack.c.b16 %v1438, %v1434
        %v1739 = vpack.c.b16 %v1439, %v1435
        %v1740 = vpack.c.b16 %v1440, %v1436
        %v1741 = vpack.c.b16 %v1445, %v1441
        %v1742 = vpack.c.b16 %v1446, %v1442
        %v1743 = vpack.c.b16 %v1447, %v1443
        %v1744 = vpack.c.b16 %v1448, %v1444
        %v1745 = vpack.c.b16 %v1453, %v1449
        %v1746 = vpack.c.b16 %v1454, %v1450
        %v1747 = vpack.c.b16 %v1455, %v1451
        %v1748 = vpack.c.b16 %v1456, %v1452
        %v1749 = vpack.c.b16 %v1461, %v1457
        %v1750 = vpack.c.b16 %v1462, %v1458
        %v1751 = vpack.c.b16 %v1463, %v1459
        %v1752 = vpack.c.b16 %v1464, %v1460
        %v1753 = vpack.c.b16 %v1469, %v1465
        %v1754 = vpack.c.b16 %v1470, %v1466
        %v1755 = vpack.c.b16 %v1471, %v1467
        %v1756 = vpack.c.b16 %v1472, %v1468
        %v1757 = vpack.c.b16 %v1477, %v1473
        %v1758 = vpack.c.b16 %v1478, %v1474
        %v1759 = vpack.c.b16 %v1479, %v1475
        %v1760 = vpack.c.b16 %v1480, %v1476
        %v1761 = vpack.c.b16 %v1485, %v1481
        %v1762 = vpack.c.b16 %v1486, %v1482
        %v1763 = vpack.c.b16 %v1487, %v1483
        %v1764 = vpack.c.b16 %v1488, %v1484
        %v1765 = vpack.c.b16 %v1493, %v1489
        %v1766 = vpack.c.b16 %v1494, %v1490
        %v1767 = vpack.c.b16 %v1495, %v1491
        %v1768 = vpack.c.b16 %v1496, %v1492
        %v1769 = vpack.c.b16 %v1501, %v1497
        %v1770 = vpack.c.b16 %v1502, %v1498
        %v1771 = vpack.c.b16 %v1503, %v1499
        %v1772 = vpack.c.b16 %v1504, %v1500
        %v1773 = vpack.c.b16 %v1509, %v1505
        %v1774 = vpack.c.b16 %v1510, %v1506
        %v1775 = vpack.c.b16 %v1511, %v1507
        %v1776 = vpack.c.b16 %v1512, %v1508
        %v1777 = vpack.c.b16 %v1517, %v1513
        %v1778 = vpack.c.b16 %v1518, %v1514
        %v1779 = vpack.c.b16 %v1519, %v1515
        %v1780 = vpack.c.b16 %v1520, %v1516
        %v1781 = vpack.c.b16 %v1525, %v1521
        %v1782 = vpack.c.b16 %v1526, %v1522
        %v1783 = vpack.c.b16 %v1527, %v1523
        %v1784 = vpack.c.b16 %v1528, %v1524
        %v1785 = vpack.c.b16 %v1533, %v1529
        %v1786 = vpack.c.b16 %v1534, %v1530
        %v1787 = vpack.c.b16 %v1535, %v1531
        %v1788 = vpack.c.b16 %v1536, %v1532
        %v1789 = vpack.c.b16 %v1541, %v1537
        %v1790 = vpack.c.b16 %v1542, %v1538
        %v1791 = vpack.c.b16 %v1543, %v1539
        %v1792 = vpack.c.b16 %v1544, %v1540
        %v1793 = vpack.c.b16 %v1549, %v1545
        %v1794 = vpack.c.b16 %v1550, %v1546
        %v1795 = vpack.c.b16 %v1551, %v1547
        %v1796 = vpack.c.b16 %v1552, %v1548
        %v1797 = vpack.c.b16 %v1557, %v1553
        %v1798 = vpack.c.b16 %v1558, %v1554
        %v1799 = vpack.c.b16 %v1559, %v1555
        %v1800 = vpack.c.b16 %v1560, %v1556
        %v1801 = vpack.c.b16 %v1565, %v1561
        %v1802 = vpack.c.b16 %v1566, %v1562
        %v1803 = vpack.c.b16 %v1567, %v1563
        %v1804 = vpack.c.b16 %v1568, %v1564
        %v1805 = vpack.c.b16 %v1573, %v1569
        %v1806 = vpack.c.b16 %v1574, %v1570
        %v1807 = vpack.c.b16 %v1575, %v1571
        %v1808 = vpack.c.b16 %v1576, %v1572
        %v1809 = vpack.c.b16 %v1581, %v1577
        %v1810 = vpack.c.b16 %v1582, %v1578
        %v1811 = vpack.c.b16 %v1583, %v1579
        %v1812 = vpack.c.b16 %v1584, %v1580
        %v1813 = vpack.c.b16 %v1589, %v1585
        %v1814 = vpack.c.b16 %v1590, %v1586
        %v1815 = vpack.c.b16 %v1591, %v1587
        %v1816 = vpack.c.b16 %v1592, %v1588
        %v1817 = vpack.c.b16 %v1597, %v1593
        %v1818 = vpack.c.b16 %v1598, %v1594
        %v1819 = vpack.c.b16 %v1599, %v1595
        %v1820 = vpack.c.b16 %v1600, %v1596
        %v1821 = vpack.c.b16 %v1605, %v1601
        %v1822 = vpack.c.b16 %v1606, %v1602
        %v1823 = vpack.c.b16 %v1607, %v1603
        %v1824 = vpack.c.b16 %v1608, %v1604
        %v1825 = vpack.c.b16 %v1613, %v1609
        %v1826 = vpack.c.b16 %v1614, %v1610
        %v1827 = vpack.c.b16 %v1615, %v1611
        %v1828 = vpack.c.b16 %v1616, %v1612
        %v1829 = vpack.c.b16 %v1621, %v1617
        %v1830 = vpack.c.b16 %v1622, %v1618
        %v1831 = vpack.c.b16 %v1623, %v1619
        %v1832 = vpack.c.b16 %v1624, %v1620
        %v1833 = vpack.c.b16 %v1629, %v1625
        %v1834 = vpack.c.b16 %v1630, %v1626
        %v1835 = vpack.c.b16 %v1631, %v1627
        %v1836 = vpack.c.b16 %v1632, %v1628
        %v1837 = vpack.c.b16 %v1637, %v1633
        %v1838 = vpack.c.b16 %v1638, %v1634
        %v1839 = vpack.c.b16 %v1639, %v1635
        %v1840 = vpack.c.b16 %v1640, %v1636
        %v1841 = vpack.c.b16 %v1645, %v1641
        %v1842 = vpack.c.b16 %v1646, %v1642
        %v1843 = vpack.c.b16 %v1647, %v1643
        %v1844 = vpack.c.b16 %v1648, %v1644
        %v1845 = vpack.c.b16 %v1653, %v1649
        %v1846 = vpack.c.b16 %v1654, %v1650
        %v1847 = vpack.c.b16 %v1655, %v1651
        %v1848 = vpack.c.b16 %v1656, %v1652
        %2041 = vmatprep.subr.bf16.mxu0 %v1658
        %2042 = vmatpush1.bf16.msra.mxu0 %v1657
        %2043 = vmatprep.subr.bf16.mxu0 %v1662
        %2044 = vmatpush1.bf16.msra.mxu0 %v1661
        %2045 = vmatprep.subr.bf16.mxu0 %v1666
        %2046 = vmatpush1.bf16.msra.mxu0 %v1665
        %2047 = vmatprep.subr.bf16.mxu0 %v1670
        %2048 = vmatpush1.bf16.msra.mxu0 %v1669
        %2049 = vmatprep.subr.bf16.mxu0 %v1674
        %2050 = vmatpush1.bf16.msra.mxu0 %v1673
        %2051 = vmatprep.subr.bf16.mxu0 %v1678
        %2052 = vmatpush1.bf16.msra.mxu0 %v1677
        %2053 = vmatprep.subr.bf16.mxu0 %v1682
        %2054 = vmatpush1.bf16.msra.mxu0 %v1681
        %2055 = vmatprep.subr.bf16.mxu0 %v1686
        %2056 = vmatpush1.bf16.msra.mxu0 %v1685
        %2057 = vmatprep.subr.bf16.mxu0 %v1690
        %2058 = vmatpush1.bf16.msra.mxu0 %v1689
        %2059 = vmatprep.subr.bf16.mxu0 %v1694
        %2060 = vmatpush1.bf16.msra.mxu0 %v1693
        %2061 = vmatprep.subr.bf16.mxu0 %v1698
        %2062 = vmatpush1.bf16.msra.mxu0 %v1697
        %2063 = vmatprep.subr.bf16.mxu0 %v1702
        %2064 = vmatpush1.bf16.msra.mxu0 %v1701
        %2065 = vmatprep.subr.bf16.mxu0 %v1706
        %2066 = vmatpush1.bf16.msra.mxu0 %v1705
        %2067 = vmatprep.subr.bf16.mxu0 %v1710
        %2068 = vmatpush1.bf16.msra.mxu0 %v1709
        %2069 = vmatprep.subr.bf16.mxu0 %v1714
        %2070 = vmatpush1.bf16.msra.mxu0 %v1713
        %2071 = vmatprep.subr.bf16.mxu0 %v1718
        %2072 = vmatpush1.bf16.msra.mxu0 %v1717
        %2073 = vmatprep.mubr.bf16.mxu0 %v862
        %2074 = vmatmul.mubr.bf16.gmra.mrb[0].mxu0 %v861
        %v2075 = vpop.f32.mrb[0].mxu0
        %v2076 = vadd.f32 %v1064, %v2075
        %v2077 = vpop.f32.mrb[0].mxu0
        %v2078 = vadd.f32 %v1068, %v2077
        %v2079 = vpop.f32.mrb[0].mxu0
        %v2080 = vadd.f32 %v1064, %v2079
        %v2081 = vpop.f32.mrb[0].mxu0
        %v2082 = vadd.f32 %v1068, %v2081
        %2083 = vdwg.mxu0
        %2084 = vmatprep.subr.bf16.mxu0 %v1722
        %2085 = vmatpush1.bf16.msra.mxu0 %v1721
        %2086 = vmatprep.subr.bf16.mxu0 %v1726
        %2087 = vmatpush1.bf16.msra.mxu0 %v1725
        %2088 = vmatprep.subr.bf16.mxu0 %v1730
        %2089 = vmatpush1.bf16.msra.mxu0 %v1729
        %2090 = vmatprep.subr.bf16.mxu0 %v1734
        %2091 = vmatpush1.bf16.msra.mxu0 %v1733
        %2092 = vmatprep.subr.bf16.mxu0 %v1738
        %2093 = vmatpush1.bf16.msra.mxu0 %v1737
        %2094 = vmatprep.subr.bf16.mxu0 %v1742
        %2095 = vmatpush1.bf16.msra.mxu0 %v1741
        %2096 = vmatprep.subr.bf16.mxu0 %v1746
        %2097 = vmatpush1.bf16.msra.mxu0 %v1745
        %2098 = vmatprep.subr.bf16.mxu0 %v1750
        %2099 = vmatpush1.bf16.msra.mxu0 %v1749
        %2100 = vmatprep.subr.bf16.mxu0 %v1754
        %2101 = vmatpush1.bf16.msra.mxu0 %v1753
        %2102 = vmatprep.subr.bf16.mxu0 %v1758
        %2103 = vmatpush1.bf16.msra.mxu0 %v1757
        %2104 = vmatprep.subr.bf16.mxu0 %v1762
        %2105 = vmatpush1.bf16.msra.mxu0 %v1761
        %2106 = vmatprep.subr.bf16.mxu0 %v1766
        %2107 = vmatpush1.bf16.msra.mxu0 %v1765
        %2108 = vmatprep.subr.bf16.mxu0 %v1770
        %2109 = vmatpush1.bf16.msra.mxu0 %v1769
        %2110 = vmatprep.subr.bf16.mxu0 %v1774
        %2111 = vmatpush1.bf16.msra.mxu0 %v1773
        %2112 = vmatprep.subr.bf16.mxu0 %v1778
        %2113 = vmatpush1.bf16.msra.mxu0 %v1777
        %2114 = vmatprep.subr.bf16.mxu0 %v1782
        %2115 = vmatpush1.bf16.msra.mxu0 %v1781
        %2116 = vmatprep.mubr.bf16.mxu0 %v864
        %2117 = vmatmul.mubr.bf16.gmra.mrb[0].mxu0 %v863
        %v2118 = vpop.f32.mrb[0].mxu0
        %v2119 = vadd.f32 %v2076, %v2118
        %v2120 = vpop.f32.mrb[0].mxu0
        %v2121 = vadd.f32 %v2078, %v2120
        %v2122 = vpop.f32.mrb[0].mxu0
        %v2123 = vadd.f32 %v2080, %v2122
        %v2124 = vpop.f32.mrb[0].mxu0
        %v2125 = vadd.f32 %v2082, %v2124
        %2126 = vdwg.mxu0
        %2127 = vmatprep.subr.bf16.mxu0 %v1786
        %2128 = vmatpush1.bf16.msra.mxu0 %v1785
        %2129 = vmatprep.subr.bf16.mxu0 %v1790
        %2130 = vmatpush1.bf16.msra.mxu0 %v1789
        %2131 = vmatprep.subr.bf16.mxu0 %v1794
        %2132 = vmatpush1.bf16.msra.mxu0 %v1793
        %2133 = vmatprep.subr.bf16.mxu0 %v1798
        %2134 = vmatpush1.bf16.msra.mxu0 %v1797
        %2135 = vmatprep.subr.bf16.mxu0 %v1802
        %2136 = vmatpush1.bf16.msra.mxu0 %v1801
        %2137 = vmatprep.subr.bf16.mxu0 %v1806
        %2138 = vmatpush1.bf16.msra.mxu0 %v1805
        %2139 = vmatprep.subr.bf16.mxu0 %v1810
        %2140 = vmatpush1.bf16.msra.mxu0 %v1809
        %2141 = vmatprep.subr.bf16.mxu0 %v1814
        %2142 = vmatpush1.bf16.msra.mxu0 %v1813
        %2143 = vmatprep.subr.bf16.mxu0 %v1818
        %2144 = vmatpush1.bf16.msra.mxu0 %v1817
        %2145 = vmatprep.subr.bf16.mxu0 %v1822
        %2146 = vmatpush1.bf16.msra.mxu0 %v1821
        %2147 = vmatprep.subr.bf16.mxu0 %v1826
        %2148 = vmatpush1.bf16.msra.mxu0 %v1825
        %2149 = vmatprep.subr.bf16.mxu0 %v1830
        %2150 = vmatpush1.bf16.msra.mxu0 %v1829
        %2151 = vmatprep.subr.bf16.mxu0 %v1834
        %2152 = vmatpush1.bf16.msra.mxu0 %v1833
        %2153 = vmatprep.subr.bf16.mxu0 %v1838
        %2154 = vmatpush1.bf16.msra.mxu0 %v1837
        %2155 = vmatprep.subr.bf16.mxu0 %v1842
        %2156 = vmatpush1.bf16.msra.mxu0 %v1841
        %2157 = vmatprep.subr.bf16.mxu0 %v1846
        %2158 = vmatpush1.bf16.msra.mxu0 %v1845
        %2159 = vmatprep.mubr.bf16.mxu0 %v866
        %2160 = vmatmul.mubr.bf16.gmra.mrb[0].mxu0 %v865
        %v2161 = vpop.f32.mrb[0].mxu0
        %v2162 = vadd.f32 %v2119, %v2161
        %v2163 = vpop.f32.mrb[0].mxu0
        %v2164 = vadd.f32 %v2121, %v2163
        %v2165 = vpop.f32.mrb[0].mxu0
        %v2166 = vadd.f32 %v2123, %v2165
        %v2167 = vpop.f32.mrb[0].mxu0
        %v2168 = vadd.f32 %v2125, %v2167
        %2169 = vdwg.mxu0
        %2170 = vmatprep.subr.bf16.mxu0 %v1660
        %2171 = vmatpush1.bf16.msra.mxu0 %v1659
        %2172 = vmatprep.subr.bf16.mxu0 %v1664
        %2173 = vmatpush1.bf16.msra.mxu0 %v1663
        %2174 = vmatprep.subr.bf16.mxu0 %v1668
        %2175 = vmatpush1.bf16.msra.mxu0 %v1667
        %2176 = vmatprep.subr.bf16.mxu0 %v1672
        %2177 = vmatpush1.bf16.msra.mxu0 %v1671
        %2178 = vmatprep.subr.bf16.mxu0 %v1676
        %2179 = vmatpush1.bf16.msra.mxu0 %v1675
        %2180 = vmatprep.subr.bf16.mxu0 %v1680
        %2181 = vmatpush1.bf16.msra.mxu0 %v1679
        %2182 = vmatprep.subr.bf16.mxu0 %v1684
        %2183 = vmatpush1.bf16.msra.mxu0 %v1683
        %2184 = vmatprep.subr.bf16.mxu0 %v1688
        %2185 = vmatpush1.bf16.msra.mxu0 %v1687
        %2186 = vmatprep.subr.bf16.mxu0 %v1692
        %2187 = vmatpush1.bf16.msra.mxu0 %v1691
        %2188 = vmatprep.subr.bf16.mxu0 %v1696
        %2189 = vmatpush1.bf16.msra.mxu0 %v1695
        %2190 = vmatprep.subr.bf16.mxu0 %v1700
        %2191 = vmatpush1.bf16.msra.mxu0 %v1699
        %2192 = vmatprep.subr.bf16.mxu0 %v1704
        %2193 = vmatpush1.bf16.msra.mxu0 %v1703
        %2194 = vmatprep.subr.bf16.mxu0 %v1708
        %2195 = vmatpush1.bf16.msra.mxu0 %v1707
        %2196 = vmatprep.subr.bf16.mxu0 %v1712
        %2197 = vmatpush1.bf16.msra.mxu0 %v1711
        %2198 = vmatprep.subr.bf16.mxu0 %v1716
        %2199 = vmatpush1.bf16.msra.mxu0 %v1715
        %2200 = vmatprep.subr.bf16.mxu0 %v1720
        %2201 = vmatpush1.bf16.msra.mxu0 %v1719
        %2202 = vmatprep.mubr.bf16.mxu0 %v862
        %2203 = vmatmul.mubr.bf16.gmra.mrb[0].mxu0 %v861
        %v2204 = vpop.f32.mrb[0].mxu0
        %v2205 = vadd.f32 %v1072, %v2204
        %v2206 = vpop.f32.mrb[0].mxu0
        %v2207 = vadd.f32 %v1076, %v2206
        %v2208 = vpop.f32.mrb[0].mxu0
        %v2209 = vadd.f32 %v1072, %v2208
        %v2210 = vpop.f32.mrb[0].mxu0
        %v2211 = vadd.f32 %v1076, %v2210
        %2212 = vdwg.mxu0
        %2213 = vmatprep.subr.bf16.mxu0 %v1724
        %2214 = vmatpush1.bf16.msra.mxu0 %v1723
        %2215 = vmatprep.subr.bf16.mxu0 %v1728
        %2216 = vmatpush1.bf16.msra.mxu0 %v1727
        %2217 = vmatprep.subr.bf16.mxu0 %v1732
        %2218 = vmatpush1.bf16.msra.mxu0 %v1731
        %2219 = vmatprep.subr.bf16.mxu0 %v1736
        %2220 = vmatpush1.bf16.msra.mxu0 %v1735
        %2221 = vmatprep.subr.bf16.mxu0 %v1740
        %2222 = vmatpush1.bf16.msra.mxu0 %v1739
        %2223 = vmatprep.subr.bf16.mxu0 %v1744
        %2224 = vmatpush1.bf16.msra.mxu0 %v1743
        %2225 = vmatprep.subr.bf16.mxu0 %v1748
        %2226 = vmatpush1.bf16.msra.mxu0 %v1747
        %2227 = vmatprep.subr.bf16.mxu0 %v1752
        %2228 = vmatpush1.bf16.msra.mxu0 %v1751
        %2229 = vmatprep.subr.bf16.mxu0 %v1756
        %2230 = vmatpush1.bf16.msra.mxu0 %v1755
        %2231 = vmatprep.subr.bf16.mxu0 %v1760
        %2232 = vmatpush1.bf16.msra.mxu0 %v1759
        %2233 = vmatprep.subr.bf16.mxu0 %v1764
        %2234 = vmatpush1.bf16.msra.mxu0 %v1763
        %2235 = vmatprep.subr.bf16.mxu0 %v1768
        %2236 = vmatpush1.bf16.msra.mxu0 %v1767
        %2237 = vmatprep.subr.bf16.mxu0 %v1772
        %2238 = vmatpush1.bf16.msra.mxu0 %v1771
        %2239 = vmatprep.subr.bf16.mxu0 %v1776
        %2240 = vmatpush1.bf16.msra.mxu0 %v1775
        %2241 = vmatprep.subr.bf16.mxu0 %v1780
        %2242 = vmatpush1.bf16.msra.mxu0 %v1779
        %2243 = vmatprep.subr.bf16.mxu0 %v1784
        %2244 = vmatpush1.bf16.msra.mxu0 %v1783
        %2245 = vmatprep.mubr.bf16.mxu0 %v864
        %2246 = vmatmul.mubr.bf16.gmra.mrb[0].mxu0 %v863
        %v2247 = vpop.f32.mrb[0].mxu0
        %v2248 = vadd.f32 %v2205, %v2247
        %v2249 = vpop.f32.mrb[0].mxu0
        %v2250 = vadd.f32 %v2207, %v2249
        %v2251 = vpop.f32.mrb[0].mxu0
        %v2252 = vadd.f32 %v2209, %v2251
        %v2253 = vpop.f32.mrb[0].mxu0
        %v2254 = vadd.f32 %v2211, %v2253
        %2255 = vdwg.mxu0
        %2256 = vmatprep.subr.bf16.mxu0 %v1788
        %2257 = vmatpush1.bf16.msra.mxu0 %v1787
        %2258 = vmatprep.subr.bf16.mxu0 %v1792
        %2259 = vmatpush1.bf16.msra.mxu0 %v1791
        %2260 = vmatprep.subr.bf16.mxu0 %v1796
        %2261 = vmatpush1.bf16.msra.mxu0 %v1795
        %2262 = vmatprep.subr.bf16.mxu0 %v1800
        %2263 = vmatpush1.bf16.msra.mxu0 %v1799
        %2264 = vmatprep.subr.bf16.mxu0 %v1804
        %2265 = vmatpush1.bf16.msra.mxu0 %v1803
        %2266 = vmatprep.subr.bf16.mxu0 %v1808
        %2267 = vmatpush1.bf16.msra.mxu0 %v1807
        %2268 = vmatprep.subr.bf16.mxu0 %v1812
        %2269 = vmatpush1.bf16.msra.mxu0 %v1811
        %2270 = vmatprep.subr.bf16.mxu0 %v1816
        %2271 = vmatpush1.bf16.msra.mxu0 %v1815
        %2272 = vmatprep.subr.bf16.mxu0 %v1820
        %2273 = vmatpush1.bf16.msra.mxu0 %v1819
        %2274 = vmatprep.subr.bf16.mxu0 %v1824
        %2275 = vmatpush1.bf16.msra.mxu0 %v1823
        %2276 = vmatprep.subr.bf16.mxu0 %v1828
        %2277 = vmatpush1.bf16.msra.mxu0 %v1827
        %2278 = vmatprep.subr.bf16.mxu0 %v1832
        %2279 = vmatpush1.bf16.msra.mxu0 %v1831
        %2280 = vmatprep.subr.bf16.mxu0 %v1836
        %2281 = vmatpush1.bf16.msra.mxu0 %v1835
        %2282 = vmatprep.subr.bf16.mxu0 %v1840
        %2283 = vmatpush1.bf16.msra.mxu0 %v1839
        %2284 = vmatprep.subr.bf16.mxu0 %v1844
        %2285 = vmatpush1.bf16.msra.mxu0 %v1843
        %2286 = vmatprep.subr.bf16.mxu0 %v1848
        %2287 = vmatpush1.bf16.msra.mxu0 %v1847
        %2288 = vmatprep.mubr.bf16.mxu0 %v866
        %2289 = vmatmul.mubr.bf16.gmra.mrb[0].mxu0 %v865
        %v2290 = vpop.f32.mrb[0].mxu0
        %v2291 = vadd.f32 %v2248, %v2290
        %v2292 = vpop.f32.mrb[0].mxu0
        %v2293 = vadd.f32 %v2250, %v2292
        %v2294 = vpop.f32.mrb[0].mxu0
        %v2295 = vadd.f32 %v2252, %v2294
        %v2296 = vpop.f32.mrb[0].mxu0
        %v2297 = vadd.f32 %v2254, %v2296
        %2298 = vdwg.mxu0
        %v2299 = vmul.f32 %v2162, %v2162
        %v2300 = vmul.f32 %v2164, %v2164
        %v2301 = vmul.f32 %v2291, %v2291
        %v2302 = vmul.f32 %v2293, %v2293
        %v2303 = vmul.f32 %v2166, %v2166
        %v2304 = vmul.f32 %v2168, %v2168
        %v2305 = vmul.f32 %v2295, %v2295
        %v2306 = vmul.f32 %v2297, %v2297
        %v2307 = vmul.f32 %v2162, %v2299
        %v2308 = vmul.f32 %v2164, %v2300
        %v2309 = vmul.f32 %v2291, %v2301
        %v2310 = vmul.f32 %v2293, %v2302
        %v2311 = vmul.f32 %v2166, %v2303
        %v2312 = vmul.f32 %v2168, %v2304
        %v2313 = vmul.f32 %v2295, %v2305
        %v2314 = vmul.f32 %v2297, %v2306
        %v2315 = vmul.f32 %v2307, 0.044715
        %v2316 = vmul.f32 %v2308, 0.044715
        %v2317 = vmul.f32 %v2309, 0.044715
        %v2318 = vmul.f32 %v2310, 0.044715
        %v2319 = vmul.f32 %v2311, 0.044715
        %v2320 = vmul.f32 %v2312, 0.044715
        %v2321 = vmul.f32 %v2313, 0.044715
        %v2322 = vmul.f32 %v2314, 0.044715
        %v2323 = vadd.f32 %v2162, %v2315
        %v2324 = vadd.f32 %v2164, %v2316
        %v2325 = vadd.f32 %v2291, %v2317
        %v2326 = vadd.f32 %v2293, %v2318
        %v2327 = vadd.f32 %v2166, %v2319
        %v2328 = vadd.f32 %v2168, %v2320
        %v2329 = vadd.f32 %v2295, %v2321
        %v2330 = vadd.f32 %v2297, %v2322
        %v2331 = vmul.f32 %v2323, 0.7978846
        %v2332 = vmul.f32 %v2324, 0.7978846
        %v2333 = vmul.f32 %v2325, 0.7978846
        %v2334 = vmul.f32 %v2326, 0.7978846
        %v2335 = vmul.f32 %v2327, 0.7978846
        %v2336 = vmul.f32 %v2328, 0.7978846
        %v2337 = vmul.f32 %v2329, 0.7978846
        %v2338 = vmul.f32 %v2330, 0.7978846
        %v2339 = vtanh.pop %v2331
        %v2340 = vtanh.pop %v2332
        %v2341 = vtanh.pop %v2333
        %v2342 = vtanh.pop %v2334
        %v2343 = vtanh.pop %v2335
        %v2344 = vtanh.pop %v2336
        %v2345 = vtanh.pop %v2337
        %v2346 = vtanh.pop %v2338
        %v2347 = vadd.f32 %v2339, 1.0
        %v2348 = vadd.f32 %v2340, 1.0
        %v2349 = vadd.f32 %v2341, 1.0
        %v2350 = vadd.f32 %v2342, 1.0
        %v2351 = vadd.f32 %v2343, 1.0
        %v2352 = vadd.f32 %v2344, 1.0
        %v2353 = vadd.f32 %v2345, 1.0
        %v2354 = vadd.f32 %v2346, 1.0
        %v2355 = vmul.f32 %v2347, 0.5
        %v2356 = vmul.f32 %v2348, 0.5
        %v2357 = vmul.f32 %v2349, 0.5
        %v2358 = vmul.f32 %v2350, 0.5
        %v2359 = vmul.f32 %v2351, 0.5
        %v2360 = vmul.f32 %v2352, 0.5
        %v2361 = vmul.f32 %v2353, 0.5
        %v2362 = vmul.f32 %v2354, 0.5
        %v2363 = vmul.f32 %v2162, %v2355
        %v2364 = vmul.f32 %v2164, %v2356
        %v2365 = vmul.f32 %v2291, %v2357
        %v2366 = vmul.f32 %v2293, %v2358
        %v2367 = vmul.f32 %v2166, %v2359
        %v2368 = vmul.f32 %v2168, %v2360
        %v2369 = vmul.f32 %v2295, %v2361
        %v2370 = vmul.f32 %v2297, %v2362
        %v2371 = vpack.c.bf16 %v2367, %v2363
        %v2372 = vpack.c.bf16 %v2368, %v2364
        %v2373 = vpack.c.bf16 %v2369, %v2365
        %v2374 = vpack.c.bf16 %v2370, %v2366
        %v2379 = vunpack.c.l.b16 %v2371
        %v2380 = vunpack.c.l.b16 %v2372
        %v2381 = vunpack.c.l.b16 %v2373
        %v2382 = vunpack.c.l.b16 %v2374
        %v2383 = vunpack.c.h.b16 %v2371
        %v2384 = vunpack.c.h.b16 %v2372
        %v2385 = vunpack.c.h.b16 %v2373
        %v2386 = vunpack.c.h.b16 %v2374
        %v2387 = vpack.c.b16 %v2380, %v2379
        %v2388 = vpack.c.b16 %v2382, %v2381
        %v2389 = vpack.c.b16 %v2384, %v2383
        %v2390 = vpack.c.b16 %v2386, %v2385
        %2395 = vst [vmem:[%s666] sm:$0xff] %v2387
        %2396 = vst [vmem:[%s666 + $0x8] sm:$0xff] %v2388
        %2397 = vst [vmem:[%s666 + $0x10] sm:$0xff] %v2389
        %2398 = vst [vmem:[%s666 + $0x18] sm:$0xff] %v2390
        %s2399 = sand.u32 %s158, 1
        %s2400 = sand.u32 %s158, 1
        %s2401 = smul.addr %s2400, 32
        %s2402 = scalar_lea.vmem [#allocation3], %s2401
        // Predicated region
        $region64: #{closed_call.19} parent=58 // pred_check
          %p2403 = pneg %p168
        $region65: #{closed_call.19} parent=58 // pred_check_branch
          %2405 = sbr.rel (%p2403) target = $region67
        $region66: #{closed_call.19} parent=58 // pred_region
          %s2406 = smul.u32 2, %s20
          %s2407 = smul.u32 4, %s21
          %s2408 = smul.addr %s2406, 24
          %s2409 = sadd.s32 %s2407, %s2408
          %s2410 = smul.addr %s2409, 4
          %s2411 = scalar_lea.vmem %s5, %s2410
          // Predicated region
          $region68: #{closed_call.19} parent=66 // pred_check
            _
          $region69: #{closed_call.19} parent=66 // pred_check_branch
            %2413 = sbr.rel (0) target = $region71
          $region70: #{closed_call.19} parent=66 // pred_region
            // Predicated region
            $region72: #{closed_call.19} parent=70 // pred_check
              _
            $region73: #{closed_call.19} parent=70 // pred_check_branch
              %2415 = sbr.rel (0) target = $region75
            $region74: #{closed_call.19} parent=70 // pred_region
              loop: start=0, step=1, limit=1
              $region76: #{closed_call.19} parent=74 // loop_pre_header
                _
              $region77: #{closed_call.19} parent=74 // loop_header
                %s2417 = sphi 0, %s2421
                %p2418 = scmp.ge.s32.totalorder %s2417, 1
                %s2422 = sphi %s2402, %s2402
                %s2423 = sphi %s2411, %s2411
              $region78: #{closed_call.19} parent=74 // loop_header_branch
                %2420 = sbr.rel (%p2418) target = $region82
              $region79: #{closed_call.19} parent=74 // loop_body
                %v2424 = vld [vmem:[%s2422] sm:$0xff]
                %2425 = vst [vmem:[%s2423] sm:$0xff] %v2424
                %v2426 = vld [vmem:[%s2422 + $0x8] sm:$0xff]
                %2427 = vst [vmem:[%s2423 + $0x8] sm:$0xff] %v2426
                %v2428 = vld [vmem:[%s2422 + $0x10] sm:$0xff]
                %2429 = vst [vmem:[%s2423 + $0x60] sm:$0xff] %v2428
                %v2430 = vld [vmem:[%s2422 + $0x18] sm:$0xff]
                %2431 = vst [vmem:[%s2423 + $0x68] sm:$0xff] %v2430
              $region80: #{closed_call.19} parent=74 // loop_footer
                %s2421 = sadd.s32 1, %s2417
              $region81: #{closed_call.19} parent=74 // loop_footer_branch
                %2416 = sbr.rel target = $region77
              $region82: #{closed_call.19} parent=74 // loop_exit
                _
            $region75: #{closed_call.19} parent=70 // pred_fallthru
              _
            // Predicated region
            $region83: #{closed_call.19} parent=70 // pred_check
              _
            $region84: #{closed_call.19} parent=70 // pred_check_branch
              %2433 = sbr.rel target = $region86
            $region85: #{closed_call.19} parent=70 // pred_region
              _
            $region86: #{closed_call.19} parent=70 // pred_fallthru
              _
          $region71: #{closed_call.19} parent=66 // pred_fallthru
            _
          %2434 = vnop
        $region67: #{closed_call.19} parent=58 // pred_fallthru
          _
      $region59: #{closed_call.19} parent=5 // pred_fallthru
        _
      %p2435 = scmp.le.s32.totalorder 2, %s11
      // Predicated region
      $region87: #{closed_call.19} parent=5 // pred_check
        %p2436 = pneg %p2435
      $region88: #{closed_call.19} parent=5 // pred_check_branch
        %2438 = sbr.rel (%p2436) target = $region90
      $region89: #{closed_call.19} parent=5 // pred_region
        %s2439 = ssub.s32 %s11, 2
        // Predicated region
        $region91: #{closed_call.19} parent=89 // pred_check
          %p2440 = pneg %p174
        $region92: #{closed_call.19} parent=89 // pred_check_branch
          %2442 = sbr.rel (%p2440) target = $region94
        $region93: #{closed_call.19} parent=89 // pred_region
          %s2443 = sand.u32 %s159, 1
          %s2444 = sand.u32 %s159, 1
          %s2445 = smul.addr %s2444, 32
          %s2446 = scalar_lea.vmem [#allocation3], %s2445
        $region94: #{closed_call.19} parent=89 // pred_fallthru
          _
      $region90: #{closed_call.19} parent=5 // pred_fallthru
        _
    $region6: #{closed_call.19} parent=1 // loop_footer
      %s15 = sadd.s32 1, %s11
    $region7: #{closed_call.19} parent=1 // loop_footer_branch
      %10 = sbr.rel target = $region3
    $region8: #{closed_call.19} parent=1 // loop_exit
      _

// kernel: closed_call.20
$region0: #{closed_call.20}
  #allocation0 [shape = 'u32[]', space=smem, size = 0x4, offset = 0x4, fixed_abs, tag = 'smem constant byte address 0x4 - core index']
  #allocation1 [shape = 'u32[144,128]{1,0:T(1,128)}', space=vmem, size = 0x12000, scoped, tag = 'internal scratch']
  #allocation2 [shape = 'f32[16,256]{1,0:T(8,128)}', space=vmem, size = 0x4000, scoped, tag = 'scratch operand']
  %s0 = inlined_call_operand.vmem [shape: bf16[16,3072], index: 0, kind: input, shape index: {}]
  %s1 = inlined_call_operand.vmem [shape: bf16[3072,768], index: 1, kind: input, shape index: {}]
  %s2 = inlined_call_operand.vmem [shape: f32[1,768], index: 2, kind: input, shape index: {}]
  %s3 = inlined_call_operand.vmem [shape: bf16[16,768], index: 3, kind: input, shape index: {}]
  %s4 = inlined_call_operand.vmem [shape: bf16[16,768], index: 4, kind: output, shape index: {}]
  %s5 = sld [smem:[#allocation0]]
  $region190: #{closed_call.20} parent=0
    _
  %s7 = ssub.s32 1, %s5
  %s8 = scalar_select 0, %s7, %s5
  $region1: #{closed_call.20} parent=0
    #allocation3 [shape = 'u8[32768]{0}', space=vmem, size = 0x8000, scoped, tag = 'input window, operand 0']
    #allocation4 [shape = 'u8[524288]{0}', space=vmem, size = 0x80000, scoped, tag = 'input window, operand 1']
    #allocation5 [shape = 'u8[16384]{0}', space=vmem, size = 0x4000, scoped, tag = 'input window, operand 3']
    #allocation6 [shape = 'u8[16384]{0}', space=vmem, size = 0x4000, scoped, tag = 'output window, operand 0']
    loop: start=0, step=1, limit=20
    $region2: #{closed_call.20} parent=1 // loop_pre_header
      _
    $region3: #{closed_call.20} parent=1 // loop_header
      %s10 = sphi 0, %s14
      %p11 = scmp.ge.s32.totalorder %s10, 20
      %s17 = sphi 0, %s36
      %s18 = sphi 0, %s32
      %s19 = sphi 0, %s28
      %s20 = sphi 0, %s17
      %s21 = sphi 0, %s18
      %s22 = sphi 0, %s19
      %s23 = sphi 0, %s20
      %s24 = sphi 0, %s21
      %s25 = sphi 0, %s22
      %s41 = sphi 0, %s43
      %s44 = sphi 0, %s41
      %s45 = sphi 0, %s44
      %s61 = sphi 0, %s45
      %s69 = sphi 0, %s71
      %s72 = sphi 0, %s69
      %s73 = sphi 0, %s72
      %s89 = sphi 0, %s73
      %s95 = sphi 0, %s97
      %s98 = sphi 0, %s95
      %s99 = sphi 0, %s98
      %s115 = sphi 0, %s99
      %s123 = sphi 0, %s125
      %s126 = sphi 0, %s123
      %s127 = sphi 0, %s126
      %s143 = sphi 0, %s127
      %s151 = sphi 0, %s153
      %s154 = sphi 0, %s151
      %s155 = sphi 0, %s154
      %s171 = sphi 0, %s155
    $region4: #{closed_call.20} parent=1 // loop_header_branch
      %13 = sbr.rel (%p11) target = $region8
    $region5: #{closed_call.20} parent=1 // loop_body
      %s15 = ssub.s32 %s10, 1
      %s16 = ssub.s32 %s10, 2
      %s26 = sadd.s32 1, %s19
      %p27 = scmp.ge.s32.totalorder %s26, 6
      %s28 = scalar_select %p27, 0, %s26
      %s29 = sadd.s32 1, %s18
      %s30 = scalar_select %p27, %s29, %s18
      %p31 = scmp.ge.s32.totalorder %s30, 3
      %s32 = scalar_select %p31, 0, %s30
      %s33 = sadd.s32 1, %s17
      %s34 = scalar_select %p31, %s33, %s17
      %p35 = scmp.ge.s32.totalorder %s34, 1
      %s36 = scalar_select %p35, 0, %s34
      %s37 = ssub.s32 %s17, %s36
      %s38 = ssub.s32 %s19, %s28
      %s39 = sor.u32 %s37, %s38
      %p40 = scmp.eq.s32.totalorder %s39, 0
      %s42 = sadd.s32 %s41, 1
      %s43 = scalar_select %p40, %s41, %s42
      %p46 = pneg %p40
      %p47 = scmp.eq.s32.totalorder %s10, 17
      %p48 = por %p46, %p47
      %p49 = scmp.ne.s32.totalorder %s41, %s44
      %p50 = scmp.eq.s32.totalorder %s10, 0
      %p51 = por %p49, %p50
      %p52 = scmp.ne.s32.totalorder %s41, %s44
      %p53 = scmp.eq.s32.totalorder %s15, 17
      %p54 = por %p52, %p53
      %p55 = scmp.ne.s32.totalorder %s44, %s45
      %p56 = scmp.eq.s32.totalorder %s15, 0
      %p57 = por %p55, %p56
      %p58 = scmp.ne.s32.totalorder %s44, %s45
      %p59 = scmp.eq.s32.totalorder %s16, 17
      %p60 = por %p58, %p59
      %p62 = scmp.ne.s32.totalorder %s45, %s61
      %p63 = scmp.eq.s32.totalorder %s16, 0
      %p64 = por %p62, %p63
      %s65 = ssub.s32 %s19, %s28
      %s66 = ssub.s32 %s18, %s32
      %s67 = sor.u32 %s65, %s66
      %p68 = scmp.eq.s32.totalorder %s67, 0
      %s70 = sadd.s32 %s69, 1
      %s71 = scalar_select %p68, %s69, %s70
      %p74 = pneg %p68
      %p75 = scmp.eq.s32.totalorder %s10, 17
      %p76 = por %p74, %p75
      %p77 = scmp.ne.s32.totalorder %s69, %s72
      %p78 = scmp.eq.s32.totalorder %s10, 0
      %p79 = por %p77, %p78
      %p80 = scmp.ne.s32.totalorder %s69, %s72
      %p81 = scmp.eq.s32.totalorder %s15, 17
      %p82 = por %p80, %p81
      %p83 = scmp.ne.s32.totalorder %s72, %s73
      %p84 = scmp.eq.s32.totalorder %s15, 0
      %p85 = por %p83, %p84
      %p86 = scmp.ne.s32.totalorder %s72, %s73
      %p87 = scmp.eq.s32.totalorder %s16, 17
      %p88 = por %p86, %p87
      %p90 = scmp.ne.s32.totalorder %s73, %s89
      %p91 = scmp.eq.s32.totalorder %s16, 0
      %p92 = por %p90, %p91
      %s93 = ssub.s32 %s18, %s32
      %p94 = scmp.eq.s32.totalorder %s93, 0
      %s96 = sadd.s32 %s95, 1
      %s97 = scalar_select %p94, %s95, %s96
      %p100 = pneg %p94
      %p101 = scmp.eq.s32.totalorder %s10, 17
      %p102 = por %p100, %p101
      %p103 = scmp.ne.s32.totalorder %s95, %s98
      %p104 = scmp.eq.s32.totalorder %s10, 0
      %p105 = por %p103, %p104
      %p106 = scmp.ne.s32.totalorder %s95, %s98
      %p107 = scmp.eq.s32.totalorder %s15, 17
      %p108 = por %p106, %p107
      %p109 = scmp.ne.s32.totalorder %s98, %s99
      %p110 = scmp.eq.s32.totalorder %s15, 0
      %p111 = por %p109, %p110
      %p112 = scmp.ne.s32.totalorder %s98, %s99
      %p113 = scmp.eq.s32.totalorder %s16, 17
      %p114 = por %p112, %p113
      %p116 = scmp.ne.s32.totalorder %s99, %s115
      %p117 = scmp.eq.s32.totalorder %s16, 0
      %p118 = por %p116, %p117
      %s119 = ssub.s32 %s17, %s36
      %s120 = ssub.s32 %s18, %s32
      %s121 = sor.u32 %s119, %s120
      %p122 = scmp.eq.s32.totalorder %s121, 0
      %s124 = sadd.s32 %s123, 1
      %s125 = scalar_select %p122, %s123, %s124
      %p128 = pneg %p122
      %p129 = scmp.eq.s32.totalorder %s10, 17
      %p130 = por %p128, %p129
      %p131 = scmp.ne.s32.totalorder %s123, %s126
      %p132 = scmp.eq.s32.totalorder %s10, 0
      %p133 = por %p131, %p132
      %p134 = scmp.ne.s32.totalorder %s123, %s126
      %p135 = scmp.eq.s32.totalorder %s15, 17
      %p136 = por %p134, %p135
      %p137 = scmp.ne.s32.totalorder %s126, %s127
      %p138 = scmp.eq.s32.totalorder %s15, 0
      %p139 = por %p137, %p138
      %p140 = scmp.ne.s32.totalorder %s126, %s127
      %p141 = scmp.eq.s32.totalorder %s16, 17
      %p142 = por %p140, %p141
      %p144 = scmp.ne.s32.totalorder %s127, %s143
      %p145 = scmp.eq.s32.totalorder %s16, 0
      %p146 = por %p144, %p145
      %s147 = ssub.s32 %s17, %s36
      %s148 = ssub.s32 %s18, %s32
      %s149 = sor.u32 %s147, %s148
      %p150 = scmp.eq.s32.totalorder %s149, 0
      %s152 = sadd.s32 %s151, 1
      %s153 = scalar_select %p150, %s151, %s152
      %p156 = pneg %p150
      %p157 = scmp.eq.s32.totalorder %s10, 17
      %p158 = por %p156, %p157
      %p159 = scmp.ne.s32.totalorder %s151, %s154
      %p160 = scmp.eq.s32.totalorder %s10, 0
      %p161 = por %p159, %p160
      %p162 = scmp.ne.s32.totalorder %s151, %s154
      %p163 = scmp.eq.s32.totalorder %s15, 17
      %p164 = por %p162, %p163
      %p165 = scmp.ne.s32.totalorder %s154, %s155
      %p166 = scmp.eq.s32.totalorder %s15, 0
      %p167 = por %p165, %p166
      %p168 = scmp.ne.s32.totalorder %s154, %s155
      %p169 = scmp.eq.s32.totalorder %s16, 17
      %p170 = por %p168, %p169
      %p172 = scmp.ne.s32.totalorder %s155, %s171
      %p173 = scmp.eq.s32.totalorder %s16, 0
      %p174 = por %p172, %p173
      %p175 = scmp.le.s32.totalorder 1, %s10
      %p176 = scmp.lt.s32.totalorder %s10, 19
      %p177 = pnand %p175, %p176
      %p178 = pneg %p177
      // Predicated region
      $region9: #{closed_call.20} parent=5 // pred_check
        _
      $region10: #{closed_call.20} parent=5 // pred_check_branch
        %180 = sbr.rel (%p177) target = $region12
      $region11: #{closed_call.20} parent=5 // pred_region
        %s181 = ssub.s32 %s10, 1
      $region12: #{closed_call.20} parent=5 // pred_fallthru
        _
      %p182 = scmp.lt.s32.totalorder %s10, 18
      // Predicated region
      $region13: #{closed_call.20} parent=5 // pred_check
        %p183 = pneg %p182
      $region14: #{closed_call.20} parent=5 // pred_check_branch
        %185 = sbr.rel (%p183) target = $region16
      $region15: #{closed_call.20} parent=5 // pred_region
        // Predicated region
        $region17: #{closed_call.20} parent=15 // pred_check
          %p186 = pneg %p51
        $region18: #{closed_call.20} parent=15 // pred_check_branch
          %188 = sbr.rel (%p186) target = $region20
        $region19: #{closed_call.20} parent=15 // pred_region
          %s189 = sand.u32 %s41, 1
          %s190 = sand.u32 %s41, 1
          %s191 = smul.addr %s190, 32
          %s192 = scalar_lea.vmem [#allocation3], %s191
          %s193 = smul.u32 2, %s17
          %s194 = smul.u32 4, %s19
          %s195 = smul.addr %s193, 24
          %s196 = sadd.s32 %s194, %s195
          %s197 = smul.addr %s196, 4
          %s198 = scalar_lea.vmem %s0, %s197
          // Predicated region
          $region21: #{closed_call.20} parent=19 // pred_check
            _
          $region22: #{closed_call.20} parent=19 // pred_check_branch
            %200 = sbr.rel (0) target = $region24
          $region23: #{closed_call.20} parent=19 // pred_region
            // Predicated region
            $region25: #{closed_call.20} parent=23 // pred_check
              _
            $region26: #{closed_call.20} parent=23 // pred_check_branch
              %202 = sbr.rel (0) target = $region28
            $region27: #{closed_call.20} parent=23 // pred_region
              loop: start=0, step=1, limit=1
              $region29: #{closed_call.20} parent=27 // loop_pre_header
                _
              $region30: #{closed_call.20} parent=27 // loop_header
                %s204 = sphi 0, %s208
                %p205 = scmp.ge.s32.totalorder %s204, 1
                %s209 = sphi %s198, %s198
                %s210 = sphi %s192, %s192
              $region31: #{closed_call.20} parent=27 // loop_header_branch
                %207 = sbr.rel (%p205) target = $region35
              $region32: #{closed_call.20} parent=27 // loop_body
                %v211 = vld [vmem:[%s209] sm:$0xff]
                %212 = vst [vmem:[%s210] sm:$0xff] %v211
                %v213 = vld [vmem:[%s209 + $0x8] sm:$0xff]
                %214 = vst [vmem:[%s210 + $0x8] sm:$0xff] %v213
                %v215 = vld [vmem:[%s209 + $0x60] sm:$0xff]
                %216 = vst [vmem:[%s210 + $0x10] sm:$0xff] %v215
                %v217 = vld [vmem:[%s209 + $0x68] sm:$0xff]
                %218 = vst [vmem:[%s210 + $0x18] sm:$0xff] %v217
              $region33: #{closed_call.20} parent=27 // loop_footer
                %s208 = sadd.s32 1, %s204
              $region34: #{closed_call.20} parent=27 // loop_footer_branch
                %203 = sbr.rel target = $region30
              $region35: #{closed_call.20} parent=27 // loop_exit
                _
            $region28: #{closed_call.20} parent=23 // pred_fallthru
              _
            // Predicated region
            $region36: #{closed_call.20} parent=23 // pred_check
              _
            $region37: #{closed_call.20} parent=23 // pred_check_branch
              %220 = sbr.rel target = $region39
            $region38: #{closed_call.20} parent=23 // pred_region
              _
            $region39: #{closed_call.20} parent=23 // pred_fallthru
              _
          $region24: #{closed_call.20} parent=19 // pred_fallthru
            _
          %221 = vnop
        $region20: #{closed_call.20} parent=15 // pred_fallthru
          _
        // Predicated region
        $region40: #{closed_call.20} parent=15 // pred_check
          %p222 = pneg %p79
        $region41: #{closed_call.20} parent=15 // pred_check_branch
          %224 = sbr.rel (%p222) target = $region43
        $region42: #{closed_call.20} parent=15 // pred_region
          %s225 = sand.u32 %s69, 1
          %s226 = sand.u32 %s69, 1
          %s227 = smul.addr %s226, 512
          %s228 = scalar_lea.vmem [#allocation4], %s227
          %s229 = smul.u32 64, %s19
          %s230 = smul.u32 2, %s18
          %s231 = smul.addr %s229, 6
          %s232 = sadd.s32 %s230, %s231
          %s233 = smul.addr %s232, 4
          %s234 = scalar_lea.vmem %s1, %s233
          // Predicated region
          $region44: #{closed_call.20} parent=42 // pred_check
            _
          $region45: #{closed_call.20} parent=42 // pred_check_branch
            %236 = sbr.rel (0) target = $region47
          $region46: #{closed_call.20} parent=42 // pred_region
            // Predicated region
            $region48: #{closed_call.20} parent=46 // pred_check
              _
            $region49: #{closed_call.20} parent=46 // pred_check_branch
              %238 = sbr.rel (0) target = $region51
            $region50: #{closed_call.20} parent=46 // pred_region
              // Predicated region
              $region63: #{closed_call.20} parent=50 // pred_check
                _
              $region64: #{closed_call.20} parent=50 // pred_check_branch
                %379 = sbr.rel (0) target = $region66
              $region65: #{closed_call.20} parent=50 // pred_region
                loop: start=0, step=1, limit=1
                $region67: #{closed_call.20} parent=65 // loop_pre_header
                  _
                $region68: #{closed_call.20} parent=65 // loop_header
                  %s381 = sphi 0, %s385
                  %p382 = scmp.ge.s32.totalorder %s381, 1
                  %s386 = sphi %s234, %s234
                  %s387 = sphi %s228, %s228
                $region69: #{closed_call.20} parent=65 // loop_header_branch
                  %384 = sbr.rel (%p382) target = $region73
                $region70: #{closed_call.20} parent=65 // loop_body
                  %v388 = vld [vmem:[%s386] sm:$0xff]
                  %389 = vst [vmem:[%s387] sm:$0xff] %v388
                  %v390 = vld [vmem:[%s386 + $0x18] sm:$0xff]
                  %391 = vst [vmem:[%s387 + $0x8] sm:$0xff] %v390
                  %v392 = vld [vmem:[%s386 + $0x30] sm:$0xff]
                  %393 = vst [vmem:[%s387 + $0x10] sm:$0xff] %v392
                  %v394 = vld [vmem:[%s386 + $0x48] sm:$0xff]
                  %395 = vst [vmem:[%s387 + $0x18] sm:$0xff] %v394
                  %v396 = vld [vmem:[%s386 + $0x60] sm:$0xff]
                  %397 = vst [vmem:[%s387 + $0x20] sm:$0xff] %v396
                  %v398 = vld [vmem:[%s386 + $0x78] sm:$0xff]
                  %399 = vst [vmem:[%s387 + $0x28] sm:$0xff] %v398
                  %v400 = vld [vmem:[%s386 + $0x90] sm:$0xff]
                  %401 = vst [vmem:[%s387 + $0x30] sm:$0xff] %v400
                  %v402 = vld [vmem:[%s386 + $0xa8] sm:$0xff]
                  %403 = vst [vmem:[%s387 + $0x38] sm:$0xff] %v402
                  %v404 = vld [vmem:[%s386 + $0xc0] sm:$0xff]
                  %405 = vst [vmem:[%s387 + $0x40] sm:$0xff] %v404
                  %v406 = vld [vmem:[%s386 + $0xd8] sm:$0xff]
                  %407 = vst [vmem:[%s387 + $0x48] sm:$0xff] %v406
                  %v408 = vld [vmem:[%s386 + $0xf0] sm:$0xff]
                  %409 = vst [vmem:[%s387 + $0x50] sm:$0xff] %v408
                  %v410 = vld [vmem:[%s386 + $0x108] sm:$0xff]
                  %411 = vst [vmem:[%s387 + $0x58] sm:$0xff] %v410
                  %v412 = vld [vmem:[%s386 + $0x120] sm:$0xff]
                  %413 = vst [vmem:[%s387 + $0x60] sm:$0xff] %v412
                  %v414 = vld [vmem:[%s386 + $0x138] sm:$0xff]
                  %415 = vst [vmem:[%s387 + $0x68] sm:$0xff] %v414
                  %v416 = vld [vmem:[%s386 + $0x150] sm:$0xff]
                  %417 = vst [vmem:[%s387 + $0x70] sm:$0xff] %v416
                  %v418 = vld [vmem:[%s386 + $0x168] sm:$0xff]
                  %419 = vst [vmem:[%s387 + $0x78] sm:$0xff] %v418
                  %v420 = vld [vmem:[%s386 + $0x180] sm:$0xff]
                  %421 = vst [vmem:[%s387 + $0x80] sm:$0xff] %v420
                  %v422 = vld [vmem:[%s386 + $0x198] sm:$0xff]
                  %423 = vst [vmem:[%s387 + $0x88] sm:$0xff] %v422
                  %v424 = vld [vmem:[%s386 + $0x1b0] sm:$0xff]
                  %425 = vst [vmem:[%s387 + $0x90] sm:$0xff] %v424
                  %v426 = vld [vmem:[%s386 + $0x1c8] sm:$0xff]
                  %427 = vst [vmem:[%s387 + $0x98] sm:$0xff] %v426
                  %v428 = vld [vmem:[%s386 + $0x1e0] sm:$0xff]
                  %429 = vst [vmem:[%s387 + $0xa0] sm:$0xff] %v428
                  %v430 = vld [vmem:[%s386 + $0x1f8] sm:$0xff]
                  %431 = vst [vmem:[%s387 + $0xa8] sm:$0xff] %v430
                  %v432 = vld [vmem:[%s386 + $0x210] sm:$0xff]
                  %433 = vst [vmem:[%s387 + $0xb0] sm:$0xff] %v432
                  %v434 = vld [vmem:[%s386 + $0x228] sm:$0xff]
                  %435 = vst [vmem:[%s387 + $0xb8] sm:$0xff] %v434
                  %v436 = vld [vmem:[%s386 + $0x240] sm:$0xff]
                  %437 = vst [vmem:[%s387 + $0xc0] sm:$0xff] %v436
                  %v438 = vld [vmem:[%s386 + $0x258] sm:$0xff]
                  %439 = vst [vmem:[%s387 + $0xc8] sm:$0xff] %v438
                  %v440 = vld [vmem:[%s386 + $0x270] sm:$0xff]
                  %441 = vst [vmem:[%s387 + $0xd0] sm:$0xff] %v440
                  %v442 = vld [vmem:[%s386 + $0x288] sm:$0xff]
                  %443 = vst [vmem:[%s387 + $0xd8] sm:$0xff] %v442
                  %v444 = vld [vmem:[%s386 + $0x2a0] sm:$0xff]
                  %445 = vst [vmem:[%s387 + $0xe0] sm:$0xff] %v444
                  %v446 = vld [vmem:[%s386 + $0x2b8] sm:$0xff]
                  %447 = vst [vmem:[%s387 + $0xe8] sm:$0xff] %v446
                  %v448 = vld [vmem:[%s386 + $0x2d0] sm:$0xff]
                  %449 = vst [vmem:[%s387 + $0xf0] sm:$0xff] %v448
                  %v450 = vld [vmem:[%s386 + $0x2e8] sm:$0xff]
                  %451 = vst [vmem:[%s387 + $0xf8] sm:$0xff] %v450
                  %v452 = vld [vmem:[%s386 + $0x300] sm:$0xff]
                  %453 = vst [vmem:[%s387 + $0x100] sm:$0xff] %v452
                  %v454 = vld [vmem:[%s386 + $0x318] sm:$0xff]
                  %455 = vst [vmem:[%s387 + $0x108] sm:$0xff] %v454
                  %v456 = vld [vmem:[%s386 + $0x330] sm:$0xff]
                  %457 = vst [vmem:[%s387 + $0x110] sm:$0xff] %v456
                  %v458 = vld [vmem:[%s386 + $0x348] sm:$0xff]
                  %459 = vst [vmem:[%s387 + $0x118] sm:$0xff] %v458
                  %v460 = vld [vmem:[%s386 + $0x360] sm:$0xff]
                  %461 = vst [vmem:[%s387 + $0x120] sm:$0xff] %v460
                  %v462 = vld [vmem:[%s386 + $0x378] sm:$0xff]
                  %463 = vst [vmem:[%s387 + $0x128] sm:$0xff] %v462
                  %v464 = vld [vmem:[%s386 + $0x390] sm:$0xff]
                  %465 = vst [vmem:[%s387 + $0x130] sm:$0xff] %v464
                  %v466 = vld [vmem:[%s386 + $0x3a8] sm:$0xff]
                  %467 = vst [vmem:[%s387 + $0x138] sm:$0xff] %v466
                  %v468 = vld [vmem:[%s386 + $0x3c0] sm:$0xff]
                  %469 = vst [vmem:[%s387 + $0x140] sm:$0xff] %v468
                  %v470 = vld [vmem:[%s386 + $0x3d8] sm:$0xff]
                  %471 = vst [vmem:[%s387 + $0x148] sm:$0xff] %v470
                  %v472 = vld [vmem:[%s386 + $0x3f0] sm:$0xff]
                  %473 = vst [vmem:[%s387 + $0x150] sm:$0xff] %v472
                  %v474 = vld [vmem:[%s386 + $0x408] sm:$0xff]
                  %475 = vst [vmem:[%s387 + $0x158] sm:$0xff] %v474
                  %v476 = vld [vmem:[%s386 + $0x420] sm:$0xff]
                  %477 = vst [vmem:[%s387 + $0x160] sm:$0xff] %v476
                  %v478 = vld [vmem:[%s386 + $0x438] sm:$0xff]
                  %479 = vst [vmem:[%s387 + $0x168] sm:$0xff] %v478
                  %v480 = vld [vmem:[%s386 + $0x450] sm:$0xff]
                  %481 = vst [vmem:[%s387 + $0x170] sm:$0xff] %v480
                  %v482 = vld [vmem:[%s386 + $0x468] sm:$0xff]
                  %483 = vst [vmem:[%s387 + $0x178] sm:$0xff] %v482
                  %v484 = vld [vmem:[%s386 + $0x480] sm:$0xff]
                  %485 = vst [vmem:[%s387 + $0x180] sm:$0xff] %v484
                  %v486 = vld [vmem:[%s386 + $0x498] sm:$0xff]
                  %487 = vst [vmem:[%s387 + $0x188] sm:$0xff] %v486
                  %v488 = vld [vmem:[%s386 + $0x4b0] sm:$0xff]
                  %489 = vst [vmem:[%s387 + $0x190] sm:$0xff] %v488
                  %v490 = vld [vmem:[%s386 + $0x4c8] sm:$0xff]
                  %491 = vst [vmem:[%s387 + $0x198] sm:$0xff] %v490
                  %v492 = vld [vmem:[%s386 + $0x4e0] sm:$0xff]
                  %493 = vst [vmem:[%s387 + $0x1a0] sm:$0xff] %v492
                  %v494 = vld [vmem:[%s386 + $0x4f8] sm:$0xff]
                  %495 = vst [vmem:[%s387 + $0x1a8] sm:$0xff] %v494
                  %v496 = vld [vmem:[%s386 + $0x510] sm:$0xff]
                  %497 = vst [vmem:[%s387 + $0x1b0] sm:$0xff] %v496
                  %v498 = vld [vmem:[%s386 + $0x528] sm:$0xff]
                  %499 = vst [vmem:[%s387 + $0x1b8] sm:$0xff] %v498
                  %v500 = vld [vmem:[%s386 + $0x540] sm:$0xff]
                  %501 = vst [vmem:[%s387 + $0x1c0] sm:$0xff] %v500
                  %v502 = vld [vmem:[%s386 + $0x558] sm:$0xff]
                  %503 = vst [vmem:[%s387 + $0x1c8] sm:$0xff] %v502
                  %v504 = vld [vmem:[%s386 + $0x570] sm:$0xff]
                  %505 = vst [vmem:[%s387 + $0x1d0] sm:$0xff] %v504
                  %v506 = vld [vmem:[%s386 + $0x588] sm:$0xff]
                  %507 = vst [vmem:[%s387 + $0x1d8] sm:$0xff] %v506
                  %v508 = vld [vmem:[%s386 + $0x5a0] sm:$0xff]
                  %509 = vst [vmem:[%s387 + $0x1e0] sm:$0xff] %v508
                  %v510 = vld [vmem:[%s386 + $0x5b8] sm:$0xff]
                  %511 = vst [vmem:[%s387 + $0x1e8] sm:$0xff] %v510
                  %v512 = vld [vmem:[%s386 + $0x5d0] sm:$0xff]
                  %513 = vst [vmem:[%s387 + $0x1f0] sm:$0xff] %v512
                  %v514 = vld [vmem:[%s386 + $0x5e8] sm:$0xff]
                  %515 = vst [vmem:[%s387 + $0x1f8] sm:$0xff] %v514
                $region71: #{closed_call.20} parent=65 // loop_footer
                  %s385 = sadd.s32 1, %s381
                $region72: #{closed_call.20} parent=65 // loop_footer_branch
                  %380 = sbr.rel target = $region68
                $region73: #{closed_call.20} parent=65 // loop_exit
                  _
              $region66: #{closed_call.20} parent=50 // pred_fallthru
                _
              // Predicated region
              $region74: #{closed_call.20} parent=50 // pred_check
                _
              $region75: #{closed_call.20} parent=50 // pred_check_branch
                %517 = sbr.rel target = $region77
              $region76: #{closed_call.20} parent=50 // pred_region
                _
              $region77: #{closed_call.20} parent=50 // pred_fallthru
                _
            $region51: #{closed_call.20} parent=46 // pred_fallthru
              _
            // Predicated region
            $region52: #{closed_call.20} parent=46 // pred_check
              _
            $region53: #{closed_call.20} parent=46 // pred_check_branch
              %240 = sbr.rel target = $region55
            $region54: #{closed_call.20} parent=46 // pred_region
              loop: start=0, step=1, limit=1
              $region56: #{closed_call.20} parent=54 // loop_pre_header
                _
              $region57: #{closed_call.20} parent=54 // loop_header
                %s243 = sphi 0, %s247
                %p244 = scmp.ge.s32.totalorder %s243, 1
                %s248 = sphi %s234, %s234
                %s249 = sphi %s228, %s228
              $region58: #{closed_call.20} parent=54 // loop_header_branch
                %246 = sbr.rel (%p244) target = $region62
              $region59: #{closed_call.20} parent=54 // loop_body
                %v250 = vld [vmem:[%s248] sm:$0xff]
                %251 = vst [vmem:[%s249] sm:$0xff] %v250
                %v252 = vld [vmem:[%s248 + $0x18] sm:$0xff]
                %253 = vst [vmem:[%s249 + $0x8] sm:$0xff] %v252
                %v254 = vld [vmem:[%s248 + $0x30] sm:$0xff]
                %255 = vst [vmem:[%s249 + $0x10] sm:$0xff] %v254
                %v256 = vld [vmem:[%s248 + $0x48] sm:$0xff]
                %257 = vst [vmem:[%s249 + $0x18] sm:$0xff] %v256
                %v258 = vld [vmem:[%s248 + $0x60] sm:$0xff]
                %259 = vst [vmem:[%s249 + $0x20] sm:$0xff] %v258
                %v260 = vld [vmem:[%s248 + $0x78] sm:$0xff]
                %261 = vst [vmem:[%s249 + $0x28] sm:$0xff] %v260
                %v262 = vld [vmem:[%s248 + $0x90] sm:$0xff]
                %263 = vst [vmem:[%s249 + $0x30] sm:$0xff] %v262
                %v264 = vld [vmem:[%s248 + $0xa8] sm:$0xff]
                %265 = vst [vmem:[%s249 + $0x38] sm:$0xff] %v264
                %v266 = vld [vmem:[%s248 + $0xc0] sm:$0xff]
                %267 = vst [vmem:[%s249 + $0x40] sm:$0xff] %v266
                %v268 = vld [vmem:[%s248 + $0xd8] sm:$0xff]
                %269 = vst [vmem:[%s249 + $0x48] sm:$0xff] %v268
                %v270 = vld [vmem:[%s248 + $0xf0] sm:$0xff]
                %271 = vst [vmem:[%s249 + $0x50] sm:$0xff] %v270
                %v272 = vld [vmem:[%s248 + $0x108] sm:$0xff]
                %273 = vst [vmem:[%s249 + $0x58] sm:$0xff] %v272
                %v274 = vld [vmem:[%s248 + $0x120] sm:$0xff]
                %275 = vst [vmem:[%s249 + $0x60] sm:$0xff] %v274
                %v276 = vld [vmem:[%s248 + $0x138] sm:$0xff]
                %277 = vst [vmem:[%s249 + $0x68] sm:$0xff] %v276
                %v278 = vld [vmem:[%s248 + $0x150] sm:$0xff]
                %279 = vst [vmem:[%s249 + $0x70] sm:$0xff] %v278
                %v280 = vld [vmem:[%s248 + $0x168] sm:$0xff]
                %281 = vst [vmem:[%s249 + $0x78] sm:$0xff] %v280
                %v282 = vld [vmem:[%s248 + $0x180] sm:$0xff]
                %283 = vst [vmem:[%s249 + $0x80] sm:$0xff] %v282
                %v284 = vld [vmem:[%s248 + $0x198] sm:$0xff]
                %285 = vst [vmem:[%s249 + $0x88] sm:$0xff] %v284
                %v286 = vld [vmem:[%s248 + $0x1b0] sm:$0xff]
                %287 = vst [vmem:[%s249 + $0x90] sm:$0xff] %v286
                %v288 = vld [vmem:[%s248 + $0x1c8] sm:$0xff]
                %289 = vst [vmem:[%s249 + $0x98] sm:$0xff] %v288
                %v290 = vld [vmem:[%s248 + $0x1e0] sm:$0xff]
                %291 = vst [vmem:[%s249 + $0xa0] sm:$0xff] %v290
                %v292 = vld [vmem:[%s248 + $0x1f8] sm:$0xff]
                %293 = vst [vmem:[%s249 + $0xa8] sm:$0xff] %v292
                %v294 = vld [vmem:[%s248 + $0x210] sm:$0xff]
                %295 = vst [vmem:[%s249 + $0xb0] sm:$0xff] %v294
                %v296 = vld [vmem:[%s248 + $0x228] sm:$0xff]
                %297 = vst [vmem:[%s249 + $0xb8] sm:$0xff] %v296
                %v298 = vld [vmem:[%s248 + $0x240] sm:$0xff]
                %299 = vst [vmem:[%s249 + $0xc0] sm:$0xff] %v298
                %v300 = vld [vmem:[%s248 + $0x258] sm:$0xff]
                %301 = vst [vmem:[%s249 + $0xc8] sm:$0xff] %v300
                %v302 = vld [vmem:[%s248 + $0x270] sm:$0xff]
                %303 = vst [vmem:[%s249 + $0xd0] sm:$0xff] %v302
                %v304 = vld [vmem:[%s248 + $0x288] sm:$0xff]
                %305 = vst [vmem:[%s249 + $0xd8] sm:$0xff] %v304
                %v306 = vld [vmem:[%s248 + $0x2a0] sm:$0xff]
                %307 = vst [vmem:[%s249 + $0xe0] sm:$0xff] %v306
                %v308 = vld [vmem:[%s248 + $0x2b8] sm:$0xff]
                %309 = vst [vmem:[%s249 + $0xe8] sm:$0xff] %v308
                %v310 = vld [vmem:[%s248 + $0x2d0] sm:$0xff]
                %311 = vst [vmem:[%s249 + $0xf0] sm:$0xff] %v310
                %v312 = vld [vmem:[%s248 + $0x2e8] sm:$0xff]
                %313 = vst [vmem:[%s249 + $0xf8] sm:$0xff] %v312
                %v314 = vld [vmem:[%s248 + $0x300] sm:$0xff]
                %315 = vst [vmem:[%s249 + $0x100] sm:$0xff] %v314
                %v316 = vld [vmem:[%s248 + $0x318] sm:$0xff]
                %317 = vst [vmem:[%s249 + $0x108] sm:$0xff] %v316
                %v318 = vld [vmem:[%s248 + $0x330] sm:$0xff]
                %319 = vst [vmem:[%s249 + $0x110] sm:$0xff] %v318
                %v320 = vld [vmem:[%s248 + $0x348] sm:$0xff]
                %321 = vst [vmem:[%s249 + $0x118] sm:$0xff] %v320
                %v322 = vld [vmem:[%s248 + $0x360] sm:$0xff]
                %323 = vst [vmem:[%s249 + $0x120] sm:$0xff] %v322
                %v324 = vld [vmem:[%s248 + $0x378] sm:$0xff]
                %325 = vst [vmem:[%s249 + $0x128] sm:$0xff] %v324
                %v326 = vld [vmem:[%s248 + $0x390] sm:$0xff]
                %327 = vst [vmem:[%s249 + $0x130] sm:$0xff] %v326
                %v328 = vld [vmem:[%s248 + $0x3a8] sm:$0xff]
                %329 = vst [vmem:[%s249 + $0x138] sm:$0xff] %v328
                %v330 = vld [vmem:[%s248 + $0x3c0] sm:$0xff]
                %331 = vst [vmem:[%s249 + $0x140] sm:$0xff] %v330
                %v332 = vld [vmem:[%s248 + $0x3d8] sm:$0xff]
                %333 = vst [vmem:[%s249 + $0x148] sm:$0xff] %v332
                %v334 = vld [vmem:[%s248 + $0x3f0] sm:$0xff]
                %335 = vst [vmem:[%s249 + $0x150] sm:$0xff] %v334
                %v336 = vld [vmem:[%s248 + $0x408] sm:$0xff]
                %337 = vst [vmem:[%s249 + $0x158] sm:$0xff] %v336
                %v338 = vld [vmem:[%s248 + $0x420] sm:$0xff]
                %339 = vst [vmem:[%s249 + $0x160] sm:$0xff] %v338
                %v340 = vld [vmem:[%s248 + $0x438] sm:$0xff]
                %341 = vst [vmem:[%s249 + $0x168] sm:$0xff] %v340
                %v342 = vld [vmem:[%s248 + $0x450] sm:$0xff]
                %343 = vst [vmem:[%s249 + $0x170] sm:$0xff] %v342
                %v344 = vld [vmem:[%s248 + $0x468] sm:$0xff]
                %345 = vst [vmem:[%s249 + $0x178] sm:$0xff] %v344
                %v346 = vld [vmem:[%s248 + $0x480] sm:$0xff]
                %347 = vst [vmem:[%s249 + $0x180] sm:$0xff] %v346
                %v348 = vld [vmem:[%s248 + $0x498] sm:$0xff]
                %349 = vst [vmem:[%s249 + $0x188] sm:$0xff] %v348
                %v350 = vld [vmem:[%s248 + $0x4b0] sm:$0xff]
                %351 = vst [vmem:[%s249 + $0x190] sm:$0xff] %v350
                %v352 = vld [vmem:[%s248 + $0x4c8] sm:$0xff]
                %353 = vst [vmem:[%s249 + $0x198] sm:$0xff] %v352
                %v354 = vld [vmem:[%s248 + $0x4e0] sm:$0xff]
                %355 = vst [vmem:[%s249 + $0x1a0] sm:$0xff] %v354
                %v356 = vld [vmem:[%s248 + $0x4f8] sm:$0xff]
                %357 = vst [vmem:[%s249 + $0x1a8] sm:$0xff] %v356
                %v358 = vld [vmem:[%s248 + $0x510] sm:$0xff]
                %359 = vst [vmem:[%s249 + $0x1b0] sm:$0xff] %v358
                %v360 = vld [vmem:[%s248 + $0x528] sm:$0xff]
                %361 = vst [vmem:[%s249 + $0x1b8] sm:$0xff] %v360
                %v362 = vld [vmem:[%s248 + $0x540] sm:$0xff]
                %363 = vst [vmem:[%s249 + $0x1c0] sm:$0xff] %v362
                %v364 = vld [vmem:[%s248 + $0x558] sm:$0xff]
                %365 = vst [vmem:[%s249 + $0x1c8] sm:$0xff] %v364
                %v366 = vld [vmem:[%s248 + $0x570] sm:$0xff]
                %367 = vst [vmem:[%s249 + $0x1d0] sm:$0xff] %v366
                %v368 = vld [vmem:[%s248 + $0x588] sm:$0xff]
                %369 = vst [vmem:[%s249 + $0x1d8] sm:$0xff] %v368
                %v370 = vld [vmem:[%s248 + $0x5a0] sm:$0xff]
                %371 = vst [vmem:[%s249 + $0x1e0] sm:$0xff] %v370
                %v372 = vld [vmem:[%s248 + $0x5b8] sm:$0xff]
                %373 = vst [vmem:[%s249 + $0x1e8] sm:$0xff] %v372
                %v374 = vld [vmem:[%s248 + $0x5d0] sm:$0xff]
                %375 = vst [vmem:[%s249 + $0x1f0] sm:$0xff] %v374
                %v376 = vld [vmem:[%s248 + $0x5e8] sm:$0xff]
                %377 = vst [vmem:[%s249 + $0x1f8] sm:$0xff] %v376
              $region60: #{closed_call.20} parent=54 // loop_footer
                %s247 = sadd.s32 1, %s243
              $region61: #{closed_call.20} parent=54 // loop_footer_branch
                %242 = sbr.rel target = $region57
              $region62: #{closed_call.20} parent=54 // loop_exit
                _
            $region55: #{closed_call.20} parent=46 // pred_fallthru
              _
          $region47: #{closed_call.20} parent=42 // pred_fallthru
            _
          %518 = vnop
        $region43: #{closed_call.20} parent=15 // pred_fallthru
          _
        // Predicated region
        $region78: #{closed_call.20} parent=15 // pred_check
          %p519 = pneg %p105
        $region79: #{closed_call.20} parent=15 // pred_check_branch
          %521 = sbr.rel (%p519) target = $region81
        $region80: #{closed_call.20} parent=15 // pred_region
          %s522 = smul.u32 2, %s18
          %p523 = scmp.lt.s32.totalorder %s522, 5
          %s524 = scalar_select %p523, %s522, 5
          %s525 = scalar_lea.vmem %s2, %s524
          %s526 = smul.u32 2, %s18
        $region81: #{closed_call.20} parent=15 // pred_fallthru
          _
        // Predicated region
        $region82: #{closed_call.20} parent=15 // pred_check
          %p527 = pneg %p133
        $region83: #{closed_call.20} parent=15 // pred_check_branch
          %529 = sbr.rel (%p527) target = $region85
        $region84: #{closed_call.20} parent=15 // pred_region
          %s530 = sand.u32 %s123, 1
          %s531 = sand.u32 %s123, 1
          %s532 = smul.addr %s531, 16
          %s533 = scalar_lea.vmem [#allocation5], %s532
          %s534 = smul.u32 2, %s17
          %s535 = smul.u32 2, %s18
          %s536 = smul.addr %s534, 6
          %s537 = sadd.s32 %s535, %s536
          %s538 = smul.addr %s537, 4
          %s539 = scalar_lea.vmem %s3, %s538
          // Predicated region
          $region86: #{closed_call.20} parent=84 // pred_check
            _
          $region87: #{closed_call.20} parent=84 // pred_check_branch
            %541 = sbr.rel (0) target = $region89
          $region88: #{closed_call.20} parent=84 // pred_region
            // Predicated region
            $region90: #{closed_call.20} parent=88 // pred_check
              _
            $region91: #{closed_call.20} parent=88 // pred_check_branch
              %543 = sbr.rel (0) target = $region93
            $region92: #{closed_call.20} parent=88 // pred_region
              // Predicated region
              $region105: #{closed_call.20} parent=92 // pred_check
                _
              $region106: #{closed_call.20} parent=92 // pred_check_branch
                %560 = sbr.rel (0) target = $region108
              $region107: #{closed_call.20} parent=92 // pred_region
                loop: start=0, step=1, limit=1
                $region109: #{closed_call.20} parent=107 // loop_pre_header
                  _
                $region110: #{closed_call.20} parent=107 // loop_header
                  %s562 = sphi 0, %s566
                  %p563 = scmp.ge.s32.totalorder %s562, 1
                  %s567 = sphi %s539, %s539
                  %s568 = sphi %s533, %s533
                $region111: #{closed_call.20} parent=107 // loop_header_branch
                  %565 = sbr.rel (%p563) target = $region115
                $region112: #{closed_call.20} parent=107 // loop_body
                  %v569 = vld [vmem:[%s567] sm:$0xff]
                  %570 = vst [vmem:[%s568] sm:$0xff] %v569
                  %v571 = vld [vmem:[%s567 + $0x18] sm:$0xff]
                  %572 = vst [vmem:[%s568 + $0x8] sm:$0xff] %v571
                $region113: #{closed_call.20} parent=107 // loop_footer
                  %s566 = sadd.s32 1, %s562
                $region114: #{closed_call.20} parent=107 // loop_footer_branch
                  %561 = sbr.rel target = $region110
                $region115: #{closed_call.20} parent=107 // loop_exit
                  _
              $region108: #{closed_call.20} parent=92 // pred_fallthru
                _
              // Predicated region
              $region116: #{closed_call.20} parent=92 // pred_check
                _
              $region117: #{closed_call.20} parent=92 // pred_check_branch
                %574 = sbr.rel target = $region119
              $region118: #{closed_call.20} parent=92 // pred_region
                _
              $region119: #{closed_call.20} parent=92 // pred_fallthru
                _
            $region93: #{closed_call.20} parent=88 // pred_fallthru
              _
            // Predicated region
            $region94: #{closed_call.20} parent=88 // pred_check
              _
            $region95: #{closed_call.20} parent=88 // pred_check_branch
              %545 = sbr.rel target = $region97
            $region96: #{closed_call.20} parent=88 // pred_region
              loop: start=0, step=1, limit=1
              $region98: #{closed_call.20} parent=96 // loop_pre_header
                _
              $region99: #{closed_call.20} parent=96 // loop_header
                %s548 = sphi 0, %s552
                %p549 = scmp.ge.s32.totalorder %s548, 1
                %s553 = sphi %s539, %s539
                %s554 = sphi %s533, %s533
              $region100: #{closed_call.20} parent=96 // loop_header_branch
                %551 = sbr.rel (%p549) target = $region104
              $region101: #{closed_call.20} parent=96 // loop_body
                %v555 = vld [vmem:[%s553] sm:$0xff]
                %556 = vst [vmem:[%s554] sm:$0xff] %v555
                %v557 = vld [vmem:[%s553 + $0x18] sm:$0xff]
                %558 = vst [vmem:[%s554 + $0x8] sm:$0xff] %v557
              $region102: #{closed_call.20} parent=96 // loop_footer
                %s552 = sadd.s32 1, %s548
              $region103: #{closed_call.20} parent=96 // loop_footer_branch
                %547 = sbr.rel target = $region99
              $region104: #{closed_call.20} parent=96 // loop_exit
                _
            $region97: #{closed_call.20} parent=88 // pred_fallthru
              _
          $region89: #{closed_call.20} parent=84 // pred_fallthru
            _
          %575 = vnop
        $region85: #{closed_call.20} parent=15 // pred_fallthru
          _
      $region16: #{closed_call.20} parent=5 // pred_fallthru
        _
      %p576 = scmp.le.s32.totalorder 1, %s10
      %p577 = scmp.lt.s32.totalorder %s10, 19
      %p578 = pnand %p576, %p577
      %p579 = pneg %p578
      // Predicated region
      $region120: #{closed_call.20} parent=5 // pred_check
        _
      $region121: #{closed_call.20} parent=5 // pred_check_branch
        %581 = sbr.rel (%p578) target = $region123
      $region122: #{closed_call.20} parent=5 // pred_region
        %s582 = ssub.s32 %s10, 1
        %s583 = sand.u32 %s44, 1
        %s584 = sand.u32 %s44, 1
        %s585 = smul.addr %s584, 32
        %s586 = scalar_lea.vmem [#allocation3], %s585
        // Predicated region
        $region124: #{closed_call.20} parent=122 // pred_check
          %p587 = pneg %p57
        $region125: #{closed_call.20} parent=122 // pred_check_branch
          %589 = sbr.rel (%p587) target = $region127
        $region126: #{closed_call.20} parent=122 // pred_region
          _
        $region127: #{closed_call.20} parent=122 // pred_fallthru
          _
        %s590 = sand.u32 %s72, 1
        %s591 = sand.u32 %s72, 1
        %s592 = smul.addr %s591, 512
        %s593 = scalar_lea.vmem [#allocation4], %s592
        // Predicated region
        $region128: #{closed_call.20} parent=122 // pred_check
          %p594 = pneg %p85
        $region129: #{closed_call.20} parent=122 // pred_check_branch
          %596 = sbr.rel (%p594) target = $region131
        $region130: #{closed_call.20} parent=122 // pred_region
          _
        $region131: #{closed_call.20} parent=122 // pred_fallthru
          _
        %s597 = sand.u32 %s126, 1
        %s598 = sand.u32 %s126, 1
        %s599 = smul.addr %s598, 16
        %s600 = scalar_lea.vmem [#allocation5], %s599
        // Predicated region
        $region132: #{closed_call.20} parent=122 // pred_check
          %p601 = pneg %p139
        $region133: #{closed_call.20} parent=122 // pred_check_branch
          %603 = sbr.rel (%p601) target = $region135
        $region134: #{closed_call.20} parent=122 // pred_region
          _
        $region135: #{closed_call.20} parent=122 // pred_fallthru
          _
        %s604 = sand.u32 %s44, 1
        %s605 = sand.u32 %s44, 1
        %s606 = smul.addr %s605, 32
        %s607 = scalar_lea.vmem [#allocation3], %s606
        %p608 = pneg %p57
        %p609 = pneg %p54
        %s610 = sand.u32 %s72, 1
        %s611 = sand.u32 %s72, 1
        %s612 = smul.addr %s611, 512
        %s613 = scalar_lea.vmem [#allocation4], %s612
        %p614 = pneg %p85
        %p615 = pneg %p82
        %s616 = smul.u32 2, %s21
        %p617 = scmp.lt.s32.totalorder %s616, 5
        %s618 = scalar_select %p617, %s616, 5
        %s619 = scalar_lea.vmem %s2, %s618
        %p620 = pneg %p111
        %p621 = pneg %p108
        %s622 = sand.u32 %s126, 1
        %s623 = sand.u32 %s126, 1
        %s624 = smul.addr %s623, 16
        %s625 = scalar_lea.vmem [#allocation5], %s624
        %p626 = pneg %p139
        %p627 = pneg %p136
        %p628 = pneg %p167
        %p629 = pneg %p164
        %s630 = sand.u32 %s154, 1
        %s631 = sand.u32 %s154, 1
        %s632 = smul.addr %s631, 16
        %s633 = scalar_lea.vmem [#allocation6], %s632
        %s634 = smul.u32 2, %s20
        %s635 = smul.u32 4, %s22
        %s636 = smul.u32 64, %s22
        %s637 = smul.u32 2, %s21
        %s638 = smul.u32 2, %s21
        %p639 = scmp.lt.s32.totalorder %s638, 5
        %s640 = scalar_select %p639, %s638, 5
        %s641 = scalar_lea.vmem %s2, %s640
        %s642 = smul.u32 2, %s21
        %s643 = smul.u32 2, %s20
        %s644 = smul.u32 2, %s21
        %s645 = smul.u32 2, %s20
        %s646 = smul.u32 2, %s21
        %p647 = scmp.eq.s32.totalorder %s22, 0
        // Predicated region
        $region136: #{closed_call.20} parent=122 // pred_check
          %p648 = pneg %p647
        $region137: #{closed_call.20} parent=122 // pred_check_branch
          %650 = sbr.rel (%p648) target = $region139
        $region138: #{closed_call.20} parent=122 // pred_region
          %651 = vst [vmem:[#allocation2] sm:$0xff] 0.0
          %652 = vst [vmem:[#allocation2 + $0x8] sm:$0xff] 0.0
          %653 = vst [vmem:[#allocation2 + $0x10] sm:$0xff] 0.0
          %654 = vst [vmem:[#allocation2 + $0x18] sm:$0xff] 0.0
        $region139: #{closed_call.20} parent=122 // pred_fallthru
          _
        %v655 = vld [vmem:[#allocation2] sm:$0xff]
        %v656 = vld [vmem:[#allocation2 + $0x8] sm:$0xff]
        %v657 = vld [vmem:[#allocation2 + $0x10] sm:$0xff]
        %v658 = vld [vmem:[#allocation2 + $0x18] sm:$0xff]
        %v659 = vld [vmem:[%s586] sm:$0xff]
        %v660 = vld [vmem:[%s586 + $0x8] sm:$0xff]
        %v661 = vld [vmem:[%s586 + $0x10] sm:$0xff]
        %v662 = vld [vmem:[%s586 + $0x18] sm:$0xff]
        %v663 = vld [vmem:[%s593] sm:$0xff]
        %v664 = vld [vmem:[%s593 + $0x8] sm:$0xff]
        %v665 = vld [vmem:[%s593 + $0x10] sm:$0xff]
        %v666 = vld [vmem:[%s593 + $0x18] sm:$0xff]
        %v667 = vld [vmem:[%s593 + $0x20] sm:$0xff]
        %v668 = vld [vmem:[%s593 + $0x28] sm:$0xff]
        %v669 = vld [vmem:[%s593 + $0x30] sm:$0xff]
        %v670 = vld [vmem:[%s593 + $0x38] sm:$0xff]
        %v671 = vld [vmem:[%s593 + $0x40] sm:$0xff]
        %v672 = vld [vmem:[%s593 + $0x48] sm:$0xff]
        %v673 = vld [vmem:[%s593 + $0x50] sm:$0xff]
        %v674 = vld [vmem:[%s593 + $0x58] sm:$0xff]
        %v675 = vld [vmem:[%s593 + $0x60] sm:$0xff]
        %v676 = vld [vmem:[%s593 + $0x68] sm:$0xff]
        %v677 = vld [vmem:[%s593 + $0x70] sm:$0xff]
        %v678 = vld [vmem:[%s593 + $0x78] sm:$0xff]
        %v679 = vld [vmem:[%s593 + $0x80] sm:$0xff]
        %v680 = vld [vmem:[%s593 + $0x88] sm:$0xff]
        %v681 = vld [vmem:[%s593 + $0x90] sm:$0xff]
        %v682 = vld [vmem:[%s593 + $0x98] sm:$0xff]
        %v683 = vld [vmem:[%s593 + $0xa0] sm:$0xff]
        %v684 = vld [vmem:[%s593 + $0xa8] sm:$0xff]
        %v685 = vld [vmem:[%s593 + $0xb0] sm:$0xff]
        %v686 = vld [vmem:[%s593 + $0xb8] sm:$0xff]
        %v687 = vld [vmem:[%s593 + $0xc0] sm:$0xff]
        %v688 = vld [vmem:[%s593 + $0xc8] sm:$0xff]
        %v689 = vld [vmem:[%s593 + $0xd0] sm:$0xff]
        %v690 = vld [vmem:[%s593 + $0xd8] sm:$0xff]
        %v691 = vld [vmem:[%s593 + $0xe0] sm:$0xff]
        %v692 = vld [vmem:[%s593 + $0xe8] sm:$0xff]
        %v693 = vld [vmem:[%s593 + $0xf0] sm:$0xff]
        %v694 = vld [vmem:[%s593 + $0xf8] sm:$0xff]
        %v695 = vld [vmem:[%s593 + $0x100] sm:$0xff]
        %v696 = vld [vmem:[%s593 + $0x108] sm:$0xff]
        %v697 = vld [vmem:[%s593 + $0x110] sm:$0xff]
        %v698 = vld [vmem:[%s593 + $0x118] sm:$0xff]
        %v699 = vld [vmem:[%s593 + $0x120] sm:$0xff]
        %v700 = vld [vmem:[%s593 + $0x128] sm:$0xff]
        %v701 = vld [vmem:[%s593 + $0x130] sm:$0xff]
        %v702 = vld [vmem:[%s593 + $0x138] sm:$0xff]
        %v703 = vld [vmem:[%s593 + $0x140] sm:$0xff]
        %v704 = vld [vmem:[%s593 + $0x148] sm:$0xff]
        %v705 = vld [vmem:[%s593 + $0x150] sm:$0xff]
        %v706 = vld [vmem:[%s593 + $0x158] sm:$0xff]
        %v707 = vld [vmem:[%s593 + $0x160] sm:$0xff]
        %v708 = vld [vmem:[%s593 + $0x168] sm:$0xff]
        %v709 = vld [vmem:[%s593 + $0x170] sm:$0xff]
        %v710 = vld [vmem:[%s593 + $0x178] sm:$0xff]
        %v711 = vld [vmem:[%s593 + $0x180] sm:$0xff]
        %v712 = vld [vmem:[%s593 + $0x188] sm:$0xff]
        %v713 = vld [vmem:[%s593 + $0x190] sm:$0xff]
        %v714 = vld [vmem:[%s593 + $0x198] sm:$0xff]
        %v715 = vld [vmem:[%s593 + $0x1a0] sm:$0xff]
        %v716 = vld [vmem:[%s593 + $0x1a8] sm:$0xff]
        %v717 = vld [vmem:[%s593 + $0x1b0] sm:$0xff]
        %v718 = vld [vmem:[%s593 + $0x1b8] sm:$0xff]
        %v719 = vld [vmem:[%s593 + $0x1c0] sm:$0xff]
        %v720 = vld [vmem:[%s593 + $0x1c8] sm:$0xff]
        %v721 = vld [vmem:[%s593 + $0x1d0] sm:$0xff]
        %v722 = vld [vmem:[%s593 + $0x1d8] sm:$0xff]
        %v723 = vld [vmem:[%s593 + $0x1e0] sm:$0xff]
        %v724 = vld [vmem:[%s593 + $0x1e8] sm:$0xff]
        %v725 = vld [vmem:[%s593 + $0x1f0] sm:$0xff]
        %v726 = vld [vmem:[%s593 + $0x1f8] sm:$0xff]
        %v731 = vunpack.c.l.b16 %v659
        %v732 = vunpack.c.h.b16 %v659
        %v733 = vunpack.c.l.b16 %v660
        %v734 = vunpack.c.h.b16 %v660
        %v735 = vunpack.c.l.b16 %v661
        %v736 = vunpack.c.h.b16 %v661
        %v737 = vunpack.c.l.b16 %v662
        %v738 = vunpack.c.h.b16 %v662
        %v739 = vpack.c.b16 %v735, %v731
        %v740 = vpack.c.b16 %v736, %v732
        %v741 = vpack.c.b16 %v737, %v733
        %v742 = vpack.c.b16 %v738, %v734
        %v811 = vunpack.c.l.b16 %v663
        %v812 = vunpack.c.h.b16 %v663
        %v813 = vunpack.c.l.b16 %v664
        %v814 = vunpack.c.h.b16 %v664
        %v815 = vunpack.c.l.b16 %v665
        %v816 = vunpack.c.h.b16 %v665
        %v817 = vunpack.c.l.b16 %v666
        %v818 = vunpack.c.h.b16 %v666
        %v819 = vunpack.c.l.b16 %v667
        %v820 = vunpack.c.h.b16 %v667
        %v821 = vunpack.c.l.b16 %v668
        %v822 = vunpack.c.h.b16 %v668
        %v823 = vunpack.c.l.b16 %v669
        %v824 = vunpack.c.h.b16 %v669
        %v825 = vunpack.c.l.b16 %v670
        %v826 = vunpack.c.h.b16 %v670
        %v827 = vunpack.c.l.b16 %v671
        %v828 = vunpack.c.h.b16 %v671
        %v829 = vunpack.c.l.b16 %v672
        %v830 = vunpack.c.h.b16 %v672
        %v831 = vunpack.c.l.b16 %v673
        %v832 = vunpack.c.h.b16 %v673
        %v833 = vunpack.c.l.b16 %v674
        %v834 = vunpack.c.h.b16 %v674
        %v835 = vunpack.c.l.b16 %v675
        %v836 = vunpack.c.h.b16 %v675
        %v837 = vunpack.c.l.b16 %v676
        %v838 = vunpack.c.h.b16 %v676
        %v839 = vunpack.c.l.b16 %v677
        %v840 = vunpack.c.h.b16 %v677
        %v841 = vunpack.c.l.b16 %v678
        %v842 = vunpack.c.h.b16 %v678
        %v843 = vunpack.c.l.b16 %v679
        %v844 = vunpack.c.h.b16 %v679
        %v845 = vunpack.c.l.b16 %v680
        %v846 = vunpack.c.h.b16 %v680
        %v847 = vunpack.c.l.b16 %v681
        %v848 = vunpack.c.h.b16 %v681
        %v849 = vunpack.c.l.b16 %v682
        %v850 = vunpack.c.h.b16 %v682
        %v851 = vunpack.c.l.b16 %v683
        %v852 = vunpack.c.h.b16 %v683
        %v853 = vunpack.c.l.b16 %v684
        %v854 = vunpack.c.h.b16 %v684
        %v855 = vunpack.c.l.b16 %v685
        %v856 = vunpack.c.h.b16 %v685
        %v857 = vunpack.c.l.b16 %v686
        %v858 = vunpack.c.h.b16 %v686
        %v859 = vunpack.c.l.b16 %v687
        %v860 = vunpack.c.h.b16 %v687
        %v861 = vunpack.c.l.b16 %v688
        %v862 = vunpack.c.h.b16 %v688
        %v863 = vunpack.c.l.b16 %v689
        %v864 = vunpack.c.h.b16 %v689
        %v865 = vunpack.c.l.b16 %v690
        %v866 = vunpack.c.h.b16 %v690
        %v867 = vunpack.c.l.b16 %v691
        %v868 = vunpack.c.h.b16 %v691
        %v869 = vunpack.c.l.b16 %v692
        %v870 = vunpack.c.h.b16 %v692
        %v871 = vunpack.c.l.b16 %v693
        %v872 = vunpack.c.h.b16 %v693
        %v873 = vunpack.c.l.b16 %v694
        %v874 = vunpack.c.h.b16 %v694
        %v875 = vunpack.c.l.b16 %v695
        %v876 = vunpack.c.h.b16 %v695
        %v877 = vunpack.c.l.b16 %v696
        %v878 = vunpack.c.h.b16 %v696
        %v879 = vunpack.c.l.b16 %v697
        %v880 = vunpack.c.h.b16 %v697
        %v881 = vunpack.c.l.b16 %v698
        %v882 = vunpack.c.h.b16 %v698
        %v883 = vunpack.c.l.b16 %v699
        %v884 = vunpack.c.h.b16 %v699
        %v885 = vunpack.c.l.b16 %v700
        %v886 = vunpack.c.h.b16 %v700
        %v887 = vunpack.c.l.b16 %v701
        %v888 = vunpack.c.h.b16 %v701
        %v889 = vunpack.c.l.b16 %v702
        %v890 = vunpack.c.h.b16 %v702
        %v891 = vunpack.c.l.b16 %v703
        %v892 = vunpack.c.h.b16 %v703
        %v893 = vunpack.c.l.b16 %v704
        %v894 = vunpack.c.h.b16 %v704
        %v895 = vunpack.c.l.b16 %v705
        %v896 = vunpack.c.h.b16 %v705
        %v897 = vunpack.c.l.b16 %v706
        %v898 = vunpack.c.h.b16 %v706
        %v899 = vunpack.c.l.b16 %v707
        %v900 = vunpack.c.h.b16 %v707
        %v901 = vunpack.c.l.b16 %v708
        %v902 = vunpack.c.h.b16 %v708
        %v903 = vunpack.c.l.b16 %v709
        %v904 = vunpack.c.h.b16 %v709
        %v905 = vunpack.c.l.b16 %v710
        %v906 = vunpack.c.h.b16 %v710
        %v907 = vunpack.c.l.b16 %v711
        %v908 = vunpack.c.h.b16 %v711
        %v909 = vunpack.c.l.b16 %v712
        %v910 = vunpack.c.h.b16 %v712
        %v911 = vunpack.c.l.b16 %v713
        %v912 = vunpack.c.h.b16 %v713
        %v913 = vunpack.c.l.b16 %v714
        %v914 = vunpack.c.h.b16 %v714
        %v915 = vunpack.c.l.b16 %v715
        %v916 = vunpack.c.h.b16 %v715
        %v917 = vunpack.c.l.b16 %v716
        %v918 = vunpack.c.h.b16 %v716
        %v919 = vunpack.c.l.b16 %v717
        %v920 = vunpack.c.h.b16 %v717
        %v921 = vunpack.c.l.b16 %v718
        %v922 = vunpack.c.h.b16 %v718
        %v923 = vunpack.c.l.b16 %v719
        %v924 = vunpack.c.h.b16 %v719
        %v925 = vunpack.c.l.b16 %v720
        %v926 = vunpack.c.h.b16 %v720
        %v927 = vunpack.c.l.b16 %v721
        %v928 = vunpack.c.h.b16 %v721
        %v929 = vunpack.c.l.b16 %v722
        %v930 = vunpack.c.h.b16 %v722
        %v931 = vunpack.c.l.b16 %v723
        %v932 = vunpack.c.h.b16 %v723
        %v933 = vunpack.c.l.b16 %v724
        %v934 = vunpack.c.h.b16 %v724
        %v935 = vunpack.c.l.b16 %v725
        %v936 = vunpack.c.h.b16 %v725
        %v937 = vunpack.c.l.b16 %v726
        %v938 = vunpack.c.h.b16 %v726
        %v939 = vpack.c.b16 %v813, %v811
        %v940 = vpack.c.b16 %v814, %v812
        %v941 = vpack.c.b16 %v817, %v815
        %v942 = vpack.c.b16 %v818, %v816
        %v943 = vpack.c.b16 %v821, %v819
        %v944 = vpack.c.b16 %v822, %v820
        %v945 = vpack.c.b16 %v825, %v823
        %v946 = vpack.c.b16 %v826, %v824
        %v947 = vpack.c.b16 %v829, %v827
        %v948 = vpack.c.b16 %v830, %v828
        %v949 = vpack.c.b16 %v833, %v831
        %v950 = vpack.c.b16 %v834, %v832
        %v951 = vpack.c.b16 %v837, %v835
        %v952 = vpack.c.b16 %v838, %v836
        %v953 = vpack.c.b16 %v841, %v839
        %v954 = vpack.c.b16 %v842, %v840
        %v955 = vpack.c.b16 %v845, %v843
        %v956 = vpack.c.b16 %v846, %v844
        %v957 = vpack.c.b16 %v849, %v847
        %v958 = vpack.c.b16 %v850, %v848
        %v959 = vpack.c.b16 %v853, %v851
        %v960 = vpack.c.b16 %v854, %v852
        %v961 = vpack.c.b16 %v857, %v855
        %v962 = vpack.c.b16 %v858, %v856
        %v963 = vpack.c.b16 %v861, %v859
        %v964 = vpack.c.b16 %v862, %v860
        %v965 = vpack.c.b16 %v865, %v863
        %v966 = vpack.c.b16 %v866, %v864
        %v967 = vpack.c.b16 %v869, %v867
        %v968 = vpack.c.b16 %v870, %v868
        %v969 = vpack.c.b16 %v873, %v871
        %v970 = vpack.c.b16 %v874, %v872
        %v971 = vpack.c.b16 %v877, %v875
        %v972 = vpack.c.b16 %v878, %v876
        %v973 = vpack.c.b16 %v881, %v879
        %v974 = vpack.c.b16 %v882, %v880
        %v975 = vpack.c.b16 %v885, %v883
        %v976 = vpack.c.b16 %v886, %v884
        %v977 = vpack.c.b16 %v889, %v887
        %v978 = vpack.c.b16 %v890, %v888
        %v979 = vpack.c.b16 %v893, %v891
        %v980 = vpack.c.b16 %v894, %v892
        %v981 = vpack.c.b16 %v897, %v895
        %v982 = vpack.c.b16 %v898, %v896
        %v983 = vpack.c.b16 %v901, %v899
        %v984 = vpack.c.b16 %v902, %v900
        %v985 = vpack.c.b16 %v905, %v903
        %v986 = vpack.c.b16 %v906, %v904
        %v987 = vpack.c.b16 %v909, %v907
        %v988 = vpack.c.b16 %v910, %v908
        %v989 = vpack.c.b16 %v913, %v911
        %v990 = vpack.c.b16 %v914, %v912
        %v991 = vpack.c.b16 %v917, %v915
        %v992 = vpack.c.b16 %v918, %v916
        %v993 = vpack.c.b16 %v921, %v919
        %v994 = vpack.c.b16 %v922, %v920
        %v995 = vpack.c.b16 %v925, %v923
        %v996 = vpack.c.b16 %v926, %v924
        %v997 = vpack.c.b16 %v929, %v927
        %v998 = vpack.c.b16 %v930, %v928
        %v999 = vpack.c.b16 %v933, %v931
        %v1000 = vpack.c.b16 %v934, %v932
        %v1001 = vpack.c.b16 %v937, %v935
        %v1002 = vpack.c.b16 %v938, %v936
        %1067 = vmatprep.subr.bf16.mxu0 %v940
        %1068 = vmatpush1.bf16.msra.mxu0 %v939
        %1069 = vmatprep.subr.bf16.mxu0 %v942
        %1070 = vmatpush1.bf16.msra.mxu0 %v941
        %1071 = vmatprep.subr.bf16.mxu0 %v944
        %1072 = vmatpush1.bf16.msra.mxu0 %v943
        %1073 = vmatprep.subr.bf16.mxu0 %v946
        %1074 = vmatpush1.bf16.msra.mxu0 %v945
        %1075 = vmatprep.subr.bf16.mxu0 %v948
        %1076 = vmatpush1.bf16.msra.mxu0 %v947
        %1077 = vmatprep.subr.bf16.mxu0 %v950
        %1078 = vmatpush1.bf16.msra.mxu0 %v949
        %1079 = vmatprep.subr.bf16.mxu0 %v952
        %1080 = vmatpush1.bf16.msra.mxu0 %v951
        %1081 = vmatprep.subr.bf16.mxu0 %v954
        %1082 = vmatpush1.bf16.msra.mxu0 %v953
        %1083 = vmatprep.subr.bf16.mxu0 %v956
        %1084 = vmatpush1.bf16.msra.mxu0 %v955
        %1085 = vmatprep.subr.bf16.mxu0 %v958
        %1086 = vmatpush1.bf16.msra.mxu0 %v957
        %1087 = vmatprep.subr.bf16.mxu0 %v960
        %1088 = vmatpush1.bf16.msra.mxu0 %v959
        %1089 = vmatprep.subr.bf16.mxu0 %v962
        %1090 = vmatpush1.bf16.msra.mxu0 %v961
        %1091 = vmatprep.subr.bf16.mxu0 %v964
        %1092 = vmatpush1.bf16.msra.mxu0 %v963
        %1093 = vmatprep.subr.bf16.mxu0 %v966
        %1094 = vmatpush1.bf16.msra.mxu0 %v965
        %1095 = vmatprep.subr.bf16.mxu0 %v968
        %1096 = vmatpush1.bf16.msra.mxu0 %v967
        %1097 = vmatprep.subr.bf16.mxu0 %v970
        %1098 = vmatpush1.bf16.msra.mxu0 %v969
        %1099 = vmatprep.mubr.bf16.mxu0 %v740
        %1100 = vmatmul.mubr.bf16.gmra.mrb[0].mxu0 %v739
        %v1101 = vpop.f32.mrb[0].mxu0
        %v1102 = vadd.f32 0.0, %v1101
        %v1103 = vpop.f32.mrb[0].mxu0
        %v1104 = vadd.f32 0.0, %v1103
        %v1105 = vpop.f32.mrb[0].mxu0
        %v1106 = vadd.f32 0.0, %v1105
        %v1107 = vpop.f32.mrb[0].mxu0
        %v1108 = vadd.f32 0.0, %v1107
        %1109 = vdwg.mxu0
        %1110 = vmatprep.subr.bf16.mxu0 %v972
        %1111 = vmatpush1.bf16.msra.mxu0 %v971
        %1112 = vmatprep.subr.bf16.mxu0 %v974
        %1113 = vmatpush1.bf16.msra.mxu0 %v973
        %1114 = vmatprep.subr.bf16.mxu0 %v976
        %1115 = vmatpush1.bf16.msra.mxu0 %v975
        %1116 = vmatprep.subr.bf16.mxu0 %v978
        %1117 = vmatpush1.bf16.msra.mxu0 %v977
        %1118 = vmatprep.subr.bf16.mxu0 %v980
        %1119 = vmatpush1.bf16.msra.mxu0 %v979
        %1120 = vmatprep.subr.bf16.mxu0 %v982
        %1121 = vmatpush1.bf16.msra.mxu0 %v981
        %1122 = vmatprep.subr.bf16.mxu0 %v984
        %1123 = vmatpush1.bf16.msra.mxu0 %v983
        %1124 = vmatprep.subr.bf16.mxu0 %v986
        %1125 = vmatpush1.bf16.msra.mxu0 %v985
        %1126 = vmatprep.subr.bf16.mxu0 %v988
        %1127 = vmatpush1.bf16.msra.mxu0 %v987
        %1128 = vmatprep.subr.bf16.mxu0 %v990
        %1129 = vmatpush1.bf16.msra.mxu0 %v989
        %1130 = vmatprep.subr.bf16.mxu0 %v992
        %1131 = vmatpush1.bf16.msra.mxu0 %v991
        %1132 = vmatprep.subr.bf16.mxu0 %v994
        %1133 = vmatpush1.bf16.msra.mxu0 %v993
        %1134 = vmatprep.subr.bf16.mxu0 %v996
        %1135 = vmatpush1.bf16.msra.mxu0 %v995
        %1136 = vmatprep.subr.bf16.mxu0 %v998
        %1137 = vmatpush1.bf16.msra.mxu0 %v997
        %1138 = vmatprep.subr.bf16.mxu0 %v1000
        %1139 = vmatpush1.bf16.msra.mxu0 %v999
        %1140 = vmatprep.subr.bf16.mxu0 %v1002
        %1141 = vmatpush1.bf16.msra.mxu0 %v1001
        %1142 = vmatprep.mubr.bf16.mxu0 %v742
        %1143 = vmatmul.mubr.bf16.gmra.mrb[0].mxu0 %v741
        %v1144 = vpop.f32.mrb[0].mxu0
        %v1145 = vadd.f32 %v1102, %v1144
        %v1146 = vpop.f32.mrb[0].mxu0
        %v1147 = vadd.f32 %v1104, %v1146
        %v1148 = vpop.f32.mrb[0].mxu0
        %v1149 = vadd.f32 %v1106, %v1148
        %v1150 = vpop.f32.mrb[0].mxu0
        %v1151 = vadd.f32 %v1108, %v1150
        %1152 = vdwg.mxu0
        %v1153 = vadd.f32 %v655, %v1145
        %v1154 = vadd.f32 %v656, %v1147
        %v1155 = vadd.f32 %v657, %v1149
        %v1156 = vadd.f32 %v658, %v1151
        %1157 = vst [vmem:[#allocation2] sm:$0xff] %v1153
        %1158 = vst [vmem:[#allocation2 + $0x8] sm:$0xff] %v1154
        %1159 = vst [vmem:[#allocation2 + $0x10] sm:$0xff] %v1155
        %1160 = vst [vmem:[#allocation2 + $0x18] sm:$0xff] %v1156
        %p1161 = scmp.eq.s32.totalorder %s22, 5
        // Predicated region
        $region140: #{closed_call.20} parent=122 // pred_check
          %p1162 = pneg %p1161
        $region141: #{closed_call.20} parent=122 // pred_check_branch
          %1164 = sbr.rel (%p1162) target = $region143
        $region142: #{closed_call.20} parent=122 // pred_region
          %v1165 = vld [vmem:[#allocation2] sm:$0xff]
          %v1166 = vld [vmem:[#allocation2 + $0x8] sm:$0xff]
          %v1167 = vld [vmem:[#allocation2 + $0x10] sm:$0xff]
          %v1168 = vld [vmem:[#allocation2 + $0x18] sm:$0xff]
          %v1169 = vld [vmem:[%s641] sm:$0x3]
          %v1171 = vlaneseq
          %v1172 = vshrl.u32 %v1171, 7
          %v1173 = vsub.s32 0, %v1172
          %v1174 = vrot.slane %v1169, %v1173
          %v1175 = vlaneseq
          %v1176 = vshrl.u32 %v1175, 7
          %v1177 = vsub.s32 1, %v1176
          %v1178 = vrot.slane %v1169, %v1177
          %v1181 = vadd.f32 %v1165, %v1174
          %v1182 = vadd.f32 %v1166, %v1178
          %v1183 = vadd.f32 %v1167, %v1174
          %v1184 = vadd.f32 %v1168, %v1178
          %v1185 = vld [vmem:[%s600] sm:$0xff]
          %v1186 = vld [vmem:[%s600 + $0x8] sm:$0xff]
          %v1187 = vunpack.c.l.bf16 %v1185
          %v1188 = vunpack.c.h.bf16 %v1185
          %v1189 = vunpack.c.l.bf16 %v1186
          %v1190 = vunpack.c.h.bf16 %v1186
          %v1191 = vadd.f32 %v1181, %v1187
          %v1192 = vadd.f32 %v1182, %v1188
          %v1193 = vadd.f32 %v1183, %v1189
          %v1194 = vadd.f32 %v1184, %v1190
          %v1195 = vpack.c.bf16 %v1193, %v1191
          %v1196 = vpack.c.bf16 %v1194, %v1192
          %v1199 = vunpack.c.l.b16 %v1195
          %v1200 = vunpack.c.l.b16 %v1196
          %v1201 = vunpack.c.h.b16 %v1195
          %v1202 = vunpack.c.h.b16 %v1196
          %v1203 = vpack.c.b16 %v1200, %v1199
          %v1204 = vpack.c.b16 %v1202, %v1201
          %1207 = vst [vmem:[%s633] sm:$0xff] %v1203
          %1208 = vst [vmem:[%s633 + $0x8] sm:$0xff] %v1204
        $region143: #{closed_call.20} parent=122 // pred_fallthru
          _
        %s1209 = sand.u32 %s154, 1
        %s1210 = sand.u32 %s154, 1
        %s1211 = smul.addr %s1210, 16
        %s1212 = scalar_lea.vmem [#allocation6], %s1211
        // Predicated region
        $region144: #{closed_call.20} parent=122 // pred_check
          %p1213 = pneg %p164
        $region145: #{closed_call.20} parent=122 // pred_check_branch
          %1215 = sbr.rel (%p1213) target = $region147
        $region146: #{closed_call.20} parent=122 // pred_region
          %s1216 = smul.u32 2, %s20
          %s1217 = smul.u32 2, %s21
          %s1218 = smul.addr %s1216, 6
          %s1219 = sadd.s32 %s1217, %s1218
          %s1220 = smul.addr %s1219, 4
          %s1221 = scalar_lea.vmem %s4, %s1220
          // Predicated region
          $region148: #{closed_call.20} parent=146 // pred_check
            _
          $region149: #{closed_call.20} parent=146 // pred_check_branch
            %1223 = sbr.rel (0) target = $region151
          $region150: #{closed_call.20} parent=146 // pred_region
            // Predicated region
            $region152: #{closed_call.20} parent=150 // pred_check
              _
            $region153: #{closed_call.20} parent=150 // pred_check_branch
              %1225 = sbr.rel (0) target = $region155
            $region154: #{closed_call.20} parent=150 // pred_region
              // Predicated region
              $region167: #{closed_call.20} parent=154 // pred_check
                _
              $region168: #{closed_call.20} parent=154 // pred_check_branch
                %1242 = sbr.rel (0) target = $region170
              $region169: #{closed_call.20} parent=154 // pred_region
                loop: start=0, step=1, limit=1
                $region171: #{closed_call.20} parent=169 // loop_pre_header
                  _
                $region172: #{closed_call.20} parent=169 // loop_header
                  %s1244 = sphi 0, %s1248
                  %p1245 = scmp.ge.s32.totalorder %s1244, 1
                  %s1249 = sphi %s1212, %s1212
                  %s1250 = sphi %s1221, %s1221
                $region173: #{closed_call.20} parent=169 // loop_header_branch
                  %1247 = sbr.rel (%p1245) target = $region177
                $region174: #{closed_call.20} parent=169 // loop_body
                  %v1251 = vld [vmem:[%s1249] sm:$0xff]
                  %1252 = vst [vmem:[%s1250] sm:$0xff] %v1251
                  %v1253 = vld [vmem:[%s1249 + $0x8] sm:$0xff]
                  %1254 = vst [vmem:[%s1250 + $0x18] sm:$0xff] %v1253
                $region175: #{closed_call.20} parent=169 // loop_footer
                  %s1248 = sadd.s32 1, %s1244
                $region176: #{closed_call.20} parent=169 // loop_footer_branch
                  %1243 = sbr.rel target = $region172
                $region177: #{closed_call.20} parent=169 // loop_exit
                  _
              $region170: #{closed_call.20} parent=154 // pred_fallthru
                _
              // Predicated region
              $region178: #{closed_call.20} parent=154 // pred_check
                _
              $region179: #{closed_call.20} parent=154 // pred_check_branch
                %1256 = sbr.rel target = $region181
              $region180: #{closed_call.20} parent=154 // pred_region
                _
              $region181: #{closed_call.20} parent=154 // pred_fallthru
                _
            $region155: #{closed_call.20} parent=150 // pred_fallthru
              _
            // Predicated region
            $region156: #{closed_call.20} parent=150 // pred_check
              _
            $region157: #{closed_call.20} parent=150 // pred_check_branch
              %1227 = sbr.rel target = $region159
            $region158: #{closed_call.20} parent=150 // pred_region
              loop: start=0, step=1, limit=1
              $region160: #{closed_call.20} parent=158 // loop_pre_header
                _
              $region161: #{closed_call.20} parent=158 // loop_header
                %s1230 = sphi 0, %s1234
                %p1231 = scmp.ge.s32.totalorder %s1230, 1
                %s1235 = sphi %s1212, %s1212
                %s1236 = sphi %s1221, %s1221
              $region162: #{closed_call.20} parent=158 // loop_header_branch
                %1233 = sbr.rel (%p1231) target = $region166
              $region163: #{closed_call.20} parent=158 // loop_body
                %v1237 = vld [vmem:[%s1235] sm:$0xff]
                %1238 = vst [vmem:[%s1236] sm:$0xff] %v1237
                %v1239 = vld [vmem:[%s1235 + $0x8] sm:$0xff]
                %1240 = vst [vmem:[%s1236 + $0x18] sm:$0xff] %v1239
              $region164: #{closed_call.20} parent=158 // loop_footer
                %s1234 = sadd.s32 1, %s1230
              $region165: #{closed_call.20} parent=158 // loop_footer_branch
                %1229 = sbr.rel target = $region161
              $region166: #{closed_call.20} parent=158 // loop_exit
                _
            $region159: #{closed_call.20} parent=150 // pred_fallthru
              _
          $region151: #{closed_call.20} parent=146 // pred_fallthru
            _
          %1257 = vnop
        $region147: #{closed_call.20} parent=122 // pred_fallthru
          _
      $region123: #{closed_call.20} parent=5 // pred_fallthru
        _
      %p1258 = scmp.le.s32.totalorder 2, %s10
      // Predicated region
      $region182: #{closed_call.20} parent=5 // pred_check
        %p1259 = pneg %p1258
      $region183: #{closed_call.20} parent=5 // pred_check_branch
        %1261 = sbr.rel (%p1259) target = $region185
      $region184: #{closed_call.20} parent=5 // pred_region
        %s1262 = ssub.s32 %s10, 2
        // Predicated region
        $region186: #{closed_call.20} parent=184 // pred_check
          %p1263 = pneg %p170
        $region187: #{closed_call.20} parent=184 // pred_check_branch
          %1265 = sbr.rel (%p1263) target = $region189
        $region188: #{closed_call.20} parent=184 // pred_region
          %s1266 = sand.u32 %s155, 1
          %s1267 = sand.u32 %s155, 1
          %s1268 = smul.addr %s1267, 16
          %s1269 = scalar_lea.vmem [#allocation6], %s1268
        $region189: #{closed_call.20} parent=184 // pred_fallthru
          _
      $region185: #{closed_call.20} parent=5 // pred_fallthru
        _
    $region6: #{closed_call.20} parent=1 // loop_footer
      %s14 = sadd.s32 1, %s10
    $region7: #{closed_call.20} parent=1 // loop_footer_branch
      %9 = sbr.rel target = $region3
    $region8: #{closed_call.20} parent=1 // loop_exit
      _

// kernel: _vit_forward_impl.3
$region0: #{_vit_forward_impl.3}
  #allocation0 [shape = 'u32[]', space=smem, size = 0x4, offset = 0x4, fixed_abs, tag = 'smem constant byte address 0x4 - core index']
  #allocation1 [shape = 'u32[144,128]{1,0:T(1,128)}', space=vmem, size = 0x12000, scoped, tag = 'internal scratch']
  %s0 = inlined_call_operand.vmem [shape: bf16[8,768], index: 0, kind: input, shape index: {}]
  %s1 = inlined_call_operand.vmem [shape: f32[1,768], index: 1, kind: input, shape index: {}]
  %s2 = inlined_call_operand.vmem [shape: f32[1,768], index: 2, kind: input, shape index: {}]
  %s3 = inlined_call_operand.vmem [shape: bf16[768,128], index: 3, kind: input, shape index: {}]
  %s4 = inlined_call_operand.vmem [shape: f32[1,128], index: 4, kind: input, shape index: {}]
  %s5 = inlined_call_operand.vmem [shape: f32[8,128], index: 5, kind: output, shape index: {}]
  %s6 = sld [smem:[#allocation0]]
  $region30: #{_vit_forward_impl.3} parent=0
    _
  %s8 = ssub.s32 1, %s6
  %s9 = scalar_select 0, %s8, %s6
  // Predicated region
  $region2: #{_vit_forward_impl.3} parent=0 // pred_check
    _
  $region3: #{_vit_forward_impl.3} parent=0 // pred_check_branch
    %11 = sbr.rel (0) target = $region5
  $region4: #{_vit_forward_impl.3} parent=0 // pred_region
    _
  $region5: #{_vit_forward_impl.3} parent=0 // pred_fallthru
    _
  // Predicated region
  $region6: #{_vit_forward_impl.3} parent=0 // pred_check
    _
  $region7: #{_vit_forward_impl.3} parent=0 // pred_check_branch
    %13 = sbr.rel (0) target = $region9
  $region8: #{_vit_forward_impl.3} parent=0 // pred_region
    _
  $region9: #{_vit_forward_impl.3} parent=0 // pred_fallthru
    _
  // Predicated region
  $region10: #{_vit_forward_impl.3} parent=0 // pred_check
    _
  $region11: #{_vit_forward_impl.3} parent=0 // pred_check_branch
    %15 = sbr.rel (0) target = $region13
  $region12: #{_vit_forward_impl.3} parent=0 // pred_region
    _
  $region13: #{_vit_forward_impl.3} parent=0 // pred_fallthru
    _
  // Predicated region
  $region14: #{_vit_forward_impl.3} parent=0 // pred_check
    _
  $region15: #{_vit_forward_impl.3} parent=0 // pred_check_branch
    %17 = sbr.rel (0) target = $region17
  $region16: #{_vit_forward_impl.3} parent=0 // pred_region
    _
  $region17: #{_vit_forward_impl.3} parent=0 // pred_fallthru
    _
  // Predicated region
  $region18: #{_vit_forward_impl.3} parent=0 // pred_check
    _
  $region19: #{_vit_forward_impl.3} parent=0 // pred_check_branch
    %19 = sbr.rel (0) target = $region21
  $region20: #{_vit_forward_impl.3} parent=0 // pred_region
    _
  $region21: #{_vit_forward_impl.3} parent=0 // pred_fallthru
    _
  %v21 = vld [vmem:[%s0] sm:$0xff]
  %v22 = vld [vmem:[%s0 + $0x8] sm:$0xff]
  %v23 = vld [vmem:[%s0 + $0x10] sm:$0xff]
  %v24 = vunpack.c.l.bf16 %v21
  %v25 = vunpack.c.h.bf16 %v21
  %v26 = vunpack.c.l.bf16 %v22
  %v27 = vunpack.c.h.bf16 %v22
  %v28 = vunpack.c.l.bf16 %v23
  %v29 = vunpack.c.h.bf16 %v23
  %v30 = vadd.f32 %v24, %v25
  %v31 = vadd.f32 %v30, %v26
  %v32 = vadd.f32 %v31, %v27
  %v33 = vadd.f32 %v32, %v28
  %v34 = vadd.f32 %v33, %v29
  %35 = vadd.xlane.f32.xlu0 %v34
  %v36 = vpop.xlane.xlu0 %35
  %v37 = vrcp.pop 768.0
  %v38 = vmul.f32 %v36, %v37
  %v39 = vsub.f32 %v24, %v38
  %v40 = vsub.f32 %v25, %v38
  %v41 = vsub.f32 %v26, %v38
  %v42 = vsub.f32 %v27, %v38
  %v43 = vsub.f32 %v28, %v38
  %v44 = vsub.f32 %v29, %v38
  %v45 = vmul.f32 %v39, %v39
  %v46 = vmul.f32 %v40, %v40
  %v47 = vmul.f32 %v41, %v41
  %v48 = vmul.f32 %v42, %v42
  %v49 = vmul.f32 %v43, %v43
  %v50 = vmul.f32 %v44, %v44
  %v51 = vadd.f32 %v45, %v46
  %v52 = vadd.f32 %v51, %v47
  %v53 = vadd.f32 %v52, %v48
  %v54 = vadd.f32 %v53, %v49
  %v55 = vadd.f32 %v54, %v50
  %56 = vadd.xlane.f32.xlu0 %v55
  %v57 = vpop.xlane.xlu0 %56
  %v58 = vmul.f32 %v57, %v37
  %v59 = vadd.f32 %v58, 1e-06
  %v60 = vrsqrt.pop %v59
  %v61 = vmul.f32 %v39, %v60
  %v62 = vmul.f32 %v40, %v60
  %v63 = vmul.f32 %v41, %v60
  %v64 = vmul.f32 %v42, %v60
  %v65 = vmul.f32 %v43, %v60
  %v66 = vmul.f32 %v44, %v60
  %v67 = vld [vmem:[%s1] sm:$0x3f]
  %v69 = vlaneseq
  %v70 = vshrl.u32 %v69, 7
  %v71 = vsub.s32 0, %v70
  %v72 = vrot.slane %v67, %v71
  %v73 = vlaneseq
  %v74 = vshrl.u32 %v73, 7
  %v75 = vsub.s32 1, %v74
  %v76 = vrot.slane %v67, %v75
  %v77 = vlaneseq
  %v78 = vshrl.u32 %v77, 7
  %v79 = vsub.s32 2, %v78
  %v80 = vrot.slane %v67, %v79
  %v81 = vlaneseq
  %v82 = vshrl.u32 %v81, 7
  %v83 = vsub.s32 3, %v82
  %v84 = vrot.slane %v67, %v83
  %v85 = vlaneseq
  %v86 = vshrl.u32 %v85, 7
  %v87 = vsub.s32 4, %v86
  %v88 = vrot.slane %v67, %v87
  %v89 = vlaneseq
  %v90 = vshrl.u32 %v89, 7
  %v91 = vsub.s32 5, %v90
  %v92 = vrot.slane %v67, %v91
  %v99 = vmul.f32 %v61, %v72
  %v100 = vmul.f32 %v62, %v76
  %v101 = vmul.f32 %v63, %v80
  %v102 = vmul.f32 %v64, %v84
  %v103 = vmul.f32 %v65, %v88
  %v104 = vmul.f32 %v66, %v92
  %v105 = vld [vmem:[%s2] sm:$0x3f]
  %v107 = vlaneseq
  %v108 = vshrl.u32 %v107, 7
  %v109 = vsub.s32 0, %v108
  %v110 = vrot.slane %v105, %v109
  %v111 = vlaneseq
  %v112 = vshrl.u32 %v111, 7
  %v113 = vsub.s32 1, %v112
  %v114 = vrot.slane %v105, %v113
  %v115 = vlaneseq
  %v116 = vshrl.u32 %v115, 7
  %v117 = vsub.s32 2, %v116
  %v118 = vrot.slane %v105, %v117
  %v119 = vlaneseq
  %v120 = vshrl.u32 %v119, 7
  %v121 = vsub.s32 3, %v120
  %v122 = vrot.slane %v105, %v121
  %v123 = vlaneseq
  %v124 = vshrl.u32 %v123, 7
  %v125 = vsub.s32 4, %v124
  %v126 = vrot.slane %v105, %v125
  %v127 = vlaneseq
  %v128 = vshrl.u32 %v127, 7
  %v129 = vsub.s32 5, %v128
  %v130 = vrot.slane %v105, %v129
  %v137 = vadd.f32 %v99, %v110
  %v138 = vadd.f32 %v100, %v114
  %v139 = vadd.f32 %v101, %v118
  %v140 = vadd.f32 %v102, %v122
  %v141 = vadd.f32 %v103, %v126
  %v142 = vadd.f32 %v104, %v130
  %v143 = vpack.c.bf16 %v137, %v137
  %v144 = vpack.c.bf16 %v138, %v138
  %v145 = vpack.c.bf16 %v139, %v139
  %v146 = vpack.c.bf16 %v140, %v140
  %v147 = vpack.c.bf16 %v141, %v141
  %v148 = vpack.c.bf16 %v142, %v142
  %v149 = vld [vmem:[%s3] sm:$0xf]
  %v150 = vld [vmem:[%s3 + $0x4] sm:$0xf]
  %v151 = vld [vmem:[%s3 + $0x8] sm:$0xf]
  %v152 = vld [vmem:[%s3 + $0xc] sm:$0xf]
  %v153 = vld [vmem:[%s3 + $0x10] sm:$0xf]
  %v154 = vld [vmem:[%s3 + $0x14] sm:$0xf]
  %v155 = vld [vmem:[%s3 + $0x18] sm:$0xf]
  %v156 = vld [vmem:[%s3 + $0x1c] sm:$0xf]
  %v157 = vld [vmem:[%s3 + $0x20] sm:$0xf]
  %v158 = vld [vmem:[%s3 + $0x24] sm:$0xf]
  %v159 = vld [vmem:[%s3 + $0x28] sm:$0xf]
  %v160 = vld [vmem:[%s3 + $0x2c] sm:$0xf]
  %v161 = vld [vmem:[%s3 + $0x30] sm:$0xf]
  %v162 = vld [vmem:[%s3 + $0x34] sm:$0xf]
  %v163 = vld [vmem:[%s3 + $0x38] sm:$0xf]
  %v164 = vld [vmem:[%s3 + $0x3c] sm:$0xf]
  %v165 = vld [vmem:[%s3 + $0x40] sm:$0xf]
  %v166 = vld [vmem:[%s3 + $0x44] sm:$0xf]
  %v167 = vld [vmem:[%s3 + $0x48] sm:$0xf]
  %v168 = vld [vmem:[%s3 + $0x4c] sm:$0xf]
  %v169 = vld [vmem:[%s3 + $0x50] sm:$0xf]
  %v170 = vld [vmem:[%s3 + $0x54] sm:$0xf]
  %v171 = vld [vmem:[%s3 + $0x58] sm:$0xf]
  %v172 = vld [vmem:[%s3 + $0x5c] sm:$0xf]
  %v173 = vld [vmem:[%s3 + $0x60] sm:$0xf]
  %v174 = vld [vmem:[%s3 + $0x64] sm:$0xf]
  %v175 = vld [vmem:[%s3 + $0x68] sm:$0xf]
  %v176 = vld [vmem:[%s3 + $0x6c] sm:$0xf]
  %v177 = vld [vmem:[%s3 + $0x70] sm:$0xf]
  %v178 = vld [vmem:[%s3 + $0x74] sm:$0xf]
  %v179 = vld [vmem:[%s3 + $0x78] sm:$0xf]
  %v180 = vld [vmem:[%s3 + $0x7c] sm:$0xf]
  %v181 = vld [vmem:[%s3 + $0x80] sm:$0xf]
  %v182 = vld [vmem:[%s3 + $0x84] sm:$0xf]
  %v183 = vld [vmem:[%s3 + $0x88] sm:$0xf]
  %v184 = vld [vmem:[%s3 + $0x8c] sm:$0xf]
  %v185 = vld [vmem:[%s3 + $0x90] sm:$0xf]
  %v186 = vld [vmem:[%s3 + $0x94] sm:$0xf]
  %v187 = vld [vmem:[%s3 + $0x98] sm:$0xf]
  %v188 = vld [vmem:[%s3 + $0x9c] sm:$0xf]
  %v189 = vld [vmem:[%s3 + $0xa0] sm:$0xf]
  %v190 = vld [vmem:[%s3 + $0xa4] sm:$0xf]
  %v191 = vld [vmem:[%s3 + $0xa8] sm:$0xf]
  %v192 = vld [vmem:[%s3 + $0xac] sm:$0xf]
  %v193 = vld [vmem:[%s3 + $0xb0] sm:$0xf]
  %v194 = vld [vmem:[%s3 + $0xb4] sm:$0xf]
  %v195 = vld [vmem:[%s3 + $0xb8] sm:$0xf]
  %v196 = vld [vmem:[%s3 + $0xbc] sm:$0xf]
  %v197 = vld [vmem:[%s3 + $0xc0] sm:$0xf]
  %v198 = vld [vmem:[%s3 + $0xc4] sm:$0xf]
  %v199 = vld [vmem:[%s3 + $0xc8] sm:$0xf]
  %v200 = vld [vmem:[%s3 + $0xcc] sm:$0xf]
  %v201 = vld [vmem:[%s3 + $0xd0] sm:$0xf]
  %v202 = vld [vmem:[%s3 + $0xd4] sm:$0xf]
  %v203 = vld [vmem:[%s3 + $0xd8] sm:$0xf]
  %v204 = vld [vmem:[%s3 + $0xdc] sm:$0xf]
  %v205 = vld [vmem:[%s3 + $0xe0] sm:$0xf]
  %v206 = vld [vmem:[%s3 + $0xe4] sm:$0xf]
  %v207 = vld [vmem:[%s3 + $0xe8] sm:$0xf]
  %v208 = vld [vmem:[%s3 + $0xec] sm:$0xf]
  %v209 = vld [vmem:[%s3 + $0xf0] sm:$0xf]
  %v210 = vld [vmem:[%s3 + $0xf4] sm:$0xf]
  %v211 = vld [vmem:[%s3 + $0xf8] sm:$0xf]
  %v212 = vld [vmem:[%s3 + $0xfc] sm:$0xf]
  %v213 = vld [vmem:[%s3 + $0x100] sm:$0xf]
  %v214 = vld [vmem:[%s3 + $0x104] sm:$0xf]
  %v215 = vld [vmem:[%s3 + $0x108] sm:$0xf]
  %v216 = vld [vmem:[%s3 + $0x10c] sm:$0xf]
  %v217 = vld [vmem:[%s3 + $0x110] sm:$0xf]
  %v218 = vld [vmem:[%s3 + $0x114] sm:$0xf]
  %v219 = vld [vmem:[%s3 + $0x118] sm:$0xf]
  %v220 = vld [vmem:[%s3 + $0x11c] sm:$0xf]
  %v221 = vld [vmem:[%s3 + $0x120] sm:$0xf]
  %v222 = vld [vmem:[%s3 + $0x124] sm:$0xf]
  %v223 = vld [vmem:[%s3 + $0x128] sm:$0xf]
  %v224 = vld [vmem:[%s3 + $0x12c] sm:$0xf]
  %v225 = vld [vmem:[%s3 + $0x130] sm:$0xf]
  %v226 = vld [vmem:[%s3 + $0x134] sm:$0xf]
  %v227 = vld [vmem:[%s3 + $0x138] sm:$0xf]
  %v228 = vld [vmem:[%s3 + $0x13c] sm:$0xf]
  %v229 = vld [vmem:[%s3 + $0x140] sm:$0xf]
  %v230 = vld [vmem:[%s3 + $0x144] sm:$0xf]
  %v231 = vld [vmem:[%s3 + $0x148] sm:$0xf]
  %v232 = vld [vmem:[%s3 + $0x14c] sm:$0xf]
  %v233 = vld [vmem:[%s3 + $0x150] sm:$0xf]
  %v234 = vld [vmem:[%s3 + $0x154] sm:$0xf]
  %v235 = vld [vmem:[%s3 + $0x158] sm:$0xf]
  %v236 = vld [vmem:[%s3 + $0x15c] sm:$0xf]
  %v237 = vld [vmem:[%s3 + $0x160] sm:$0xf]
  %v238 = vld [vmem:[%s3 + $0x164] sm:$0xf]
  %v239 = vld [vmem:[%s3 + $0x168] sm:$0xf]
  %v240 = vld [vmem:[%s3 + $0x16c] sm:$0xf]
  %v241 = vld [vmem:[%s3 + $0x170] sm:$0xf]
  %v242 = vld [vmem:[%s3 + $0x174] sm:$0xf]
  %v243 = vld [vmem:[%s3 + $0x178] sm:$0xf]
  %v244 = vld [vmem:[%s3 + $0x17c] sm:$0xf]
  %v245 = vld [vmem:[%s4] sm:$0x1]
  %v247 = vlaneseq
  %v248 = vshrl.u32 %v247, 7
  %v249 = vsub.s32 0, %v248
  %v250 = vrot.slane %v245, %v249
  %v348 = vunpack.c.l.b16 %v149
  %v349 = vunpack.c.l.b16 %v150
  %v350 = vunpack.c.l.b16 %v151
  %v351 = vunpack.c.l.b16 %v152
  %v352 = vunpack.c.l.b16 %v153
  %v353 = vunpack.c.l.b16 %v154
  %v354 = vunpack.c.l.b16 %v155
  %v355 = vunpack.c.l.b16 %v156
  %v356 = vunpack.c.l.b16 %v157
  %v357 = vunpack.c.l.b16 %v158
  %v358 = vunpack.c.l.b16 %v159
  %v359 = vunpack.c.l.b16 %v160
  %v360 = vunpack.c.l.b16 %v161
  %v361 = vunpack.c.l.b16 %v162
  %v362 = vunpack.c.l.b16 %v163
  %v363 = vunpack.c.l.b16 %v164
  %v364 = vunpack.c.l.b16 %v165
  %v365 = vunpack.c.l.b16 %v166
  %v366 = vunpack.c.l.b16 %v167
  %v367 = vunpack.c.l.b16 %v168
  %v368 = vunpack.c.l.b16 %v169
  %v369 = vunpack.c.l.b16 %v170
  %v370 = vunpack.c.l.b16 %v171
  %v371 = vunpack.c.l.b16 %v172
  %v372 = vunpack.c.l.b16 %v173
  %v373 = vunpack.c.l.b16 %v174
  %v374 = vunpack.c.l.b16 %v175
  %v375 = vunpack.c.l.b16 %v176
  %v376 = vunpack.c.l.b16 %v177
  %v377 = vunpack.c.l.b16 %v178
  %v378 = vunpack.c.l.b16 %v179
  %v379 = vunpack.c.l.b16 %v180
  %v380 = vunpack.c.l.b16 %v181
  %v381 = vunpack.c.l.b16 %v182
  %v382 = vunpack.c.l.b16 %v183
  %v383 = vunpack.c.l.b16 %v184
  %v384 = vunpack.c.l.b16 %v185
  %v385 = vunpack.c.l.b16 %v186
  %v386 = vunpack.c.l.b16 %v187
  %v387 = vunpack.c.l.b16 %v188
  %v388 = vunpack.c.l.b16 %v189
  %v389 = vunpack.c.l.b16 %v190
  %v390 = vunpack.c.l.b16 %v191
  %v391 = vunpack.c.l.b16 %v192
  %v392 = vunpack.c.l.b16 %v193
  %v393 = vunpack.c.l.b16 %v194
  %v394 = vunpack.c.l.b16 %v195
  %v395 = vunpack.c.l.b16 %v196
  %v396 = vunpack.c.l.b16 %v197
  %v397 = vunpack.c.l.b16 %v198
  %v398 = vunpack.c.l.b16 %v199
  %v399 = vunpack.c.l.b16 %v200
  %v400 = vunpack.c.l.b16 %v201
  %v401 = vunpack.c.l.b16 %v202
  %v402 = vunpack.c.l.b16 %v203
  %v403 = vunpack.c.l.b16 %v204
  %v404 = vunpack.c.l.b16 %v205
  %v405 = vunpack.c.l.b16 %v206
  %v406 = vunpack.c.l.b16 %v207
  %v407 = vunpack.c.l.b16 %v208
  %v408 = vunpack.c.l.b16 %v209
  %v409 = vunpack.c.l.b16 %v210
  %v410 = vunpack.c.l.b16 %v211
  %v411 = vunpack.c.l.b16 %v212
  %v412 = vunpack.c.l.b16 %v213
  %v413 = vunpack.c.l.b16 %v214
  %v414 = vunpack.c.l.b16 %v215
  %v415 = vunpack.c.l.b16 %v216
  %v416 = vunpack.c.l.b16 %v217
  %v417 = vunpack.c.l.b16 %v218
  %v418 = vunpack.c.l.b16 %v219
  %v419 = vunpack.c.l.b16 %v220
  %v420 = vunpack.c.l.b16 %v221
  %v421 = vunpack.c.l.b16 %v222
  %v422 = vunpack.c.l.b16 %v223
  %v423 = vunpack.c.l.b16 %v224
  %v424 = vunpack.c.l.b16 %v225
  %v425 = vunpack.c.l.b16 %v226
  %v426 = vunpack.c.l.b16 %v227
  %v427 = vunpack.c.l.b16 %v228
  %v428 = vunpack.c.l.b16 %v229
  %v429 = vunpack.c.l.b16 %v230
  %v430 = vunpack.c.l.b16 %v231
  %v431 = vunpack.c.l.b16 %v232
  %v432 = vunpack.c.l.b16 %v233
  %v433 = vunpack.c.l.b16 %v234
  %v434 = vunpack.c.l.b16 %v235
  %v435 = vunpack.c.l.b16 %v236
  %v436 = vunpack.c.l.b16 %v237
  %v437 = vunpack.c.l.b16 %v238
  %v438 = vunpack.c.l.b16 %v239
  %v439 = vunpack.c.l.b16 %v240
  %v440 = vunpack.c.l.b16 %v241
  %v441 = vunpack.c.l.b16 %v242
  %v442 = vunpack.c.l.b16 %v243
  %v443 = vunpack.c.l.b16 %v244
  %v444 = vpack.c.b16 %v349, %v348
  %v445 = vpack.c.b16 %v351, %v350
  %v446 = vpack.c.b16 %v353, %v352
  %v447 = vpack.c.b16 %v355, %v354
  %v448 = vpack.c.b16 %v357, %v356
  %v449 = vpack.c.b16 %v359, %v358
  %v450 = vpack.c.b16 %v361, %v360
  %v451 = vpack.c.b16 %v363, %v362
  %v452 = vpack.c.b16 %v365, %v364
  %v453 = vpack.c.b16 %v367, %v366
  %v454 = vpack.c.b16 %v369, %v368
  %v455 = vpack.c.b16 %v371, %v370
  %v456 = vpack.c.b16 %v373, %v372
  %v457 = vpack.c.b16 %v375, %v374
  %v458 = vpack.c.b16 %v377, %v376
  %v459 = vpack.c.b16 %v379, %v378
  %v460 = vpack.c.b16 %v381, %v380
  %v461 = vpack.c.b16 %v383, %v382
  %v462 = vpack.c.b16 %v385, %v384
  %v463 = vpack.c.b16 %v387, %v386
  %v464 = vpack.c.b16 %v389, %v388
  %v465 = vpack.c.b16 %v391, %v390
  %v466 = vpack.c.b16 %v393, %v392
  %v467 = vpack.c.b16 %v395, %v394
  %v468 = vpack.c.b16 %v397, %v396
  %v469 = vpack.c.b16 %v399, %v398
  %v470 = vpack.c.b16 %v401, %v400
  %v471 = vpack.c.b16 %v403, %v402
  %v472 = vpack.c.b16 %v405, %v404
  %v473 = vpack.c.b16 %v407, %v406
  %v474 = vpack.c.b16 %v409, %v408
  %v475 = vpack.c.b16 %v411, %v410
  %v476 = vpack.c.b16 %v413, %v412
  %v477 = vpack.c.b16 %v415, %v414
  %v478 = vpack.c.b16 %v417, %v416
  %v479 = vpack.c.b16 %v419, %v418
  %v480 = vpack.c.b16 %v421, %v420
  %v481 = vpack.c.b16 %v423, %v422
  %v482 = vpack.c.b16 %v425, %v424
  %v483 = vpack.c.b16 %v427, %v426
  %v484 = vpack.c.b16 %v429, %v428
  %v485 = vpack.c.b16 %v431, %v430
  %v486 = vpack.c.b16 %v433, %v432
  %v487 = vpack.c.b16 %v435, %v434
  %v488 = vpack.c.b16 %v437, %v436
  %v489 = vpack.c.b16 %v439, %v438
  %v490 = vpack.c.b16 %v441, %v440
  %v491 = vpack.c.b16 %v443, %v442
  %540 = vmatprep.subr.bf16.mxu0 0
  %541 = vmatpush1.bf16.msra.mxu0 %v444
  %542 = vmatprep.subr.bf16.mxu0 0
  %543 = vmatpush1.bf16.msra.mxu0 %v445
  %544 = vmatprep.subr.bf16.mxu0 0
  %545 = vmatpush1.bf16.msra.mxu0 %v446
  %546 = vmatprep.subr.bf16.mxu0 0
  %547 = vmatpush1.bf16.msra.mxu0 %v447
  %548 = vmatprep.subr.bf16.mxu0 0
  %549 = vmatpush1.bf16.msra.mxu0 %v448
  %550 = vmatprep.subr.bf16.mxu0 0
  %551 = vmatpush1.bf16.msra.mxu0 %v449
  %552 = vmatprep.subr.bf16.mxu0 0
  %553 = vmatpush1.bf16.msra.mxu0 %v450
  %554 = vmatprep.subr.bf16.mxu0 0
  %555 = vmatpush1.bf16.msra.mxu0 %v451
  %556 = vmatprep.subr.bf16.mxu0 0
  %557 = vmatpush1.bf16.msra.mxu0 %v452
  %558 = vmatprep.subr.bf16.mxu0 0
  %559 = vmatpush1.bf16.msra.mxu0 %v453
  %560 = vmatprep.subr.bf16.mxu0 0
  %561 = vmatpush1.bf16.msra.mxu0 %v454
  %562 = vmatprep.subr.bf16.mxu0 0
  %563 = vmatpush1.bf16.msra.mxu0 %v455
  %564 = vmatprep.subr.bf16.mxu0 0
  %565 = vmatpush1.bf16.msra.mxu0 %v456
  %566 = vmatprep.subr.bf16.mxu0 0
  %567 = vmatpush1.bf16.msra.mxu0 %v457
  %568 = vmatprep.subr.bf16.mxu0 0
  %569 = vmatpush1.bf16.msra.mxu0 %v458
  %570 = vmatprep.subr.bf16.mxu0 0
  %571 = vmatpush1.bf16.msra.mxu0 %v459
  %572 = vmatprep.mubr.bf16.mxu0 %v144
  %573 = vmatmul.mubr.bf16.gmra.mrb[0].mxu0 %v143
  %v574 = vpop.f32.mrb[0].mxu0
  %v575 = vadd.f32 %v250, %v574
  %v576 = vpop.f32.mrb[0].mxu0
  %v577 = vpop.f32.mrb[0].mxu0
  %v578 = vpop.f32.mrb[0].mxu0
  %579 = vdwg.mxu0
  %580 = vmatprep.subr.bf16.mxu0 0
  %581 = vmatpush1.bf16.msra.mxu0 %v460
  %582 = vmatprep.subr.bf16.mxu0 0
  %583 = vmatpush1.bf16.msra.mxu0 %v461
  %584 = vmatprep.subr.bf16.mxu0 0
  %585 = vmatpush1.bf16.msra.mxu0 %v462
  %586 = vmatprep.subr.bf16.mxu0 0
  %587 = vmatpush1.bf16.msra.mxu0 %v463
  %588 = vmatprep.subr.bf16.mxu0 0
  %589 = vmatpush1.bf16.msra.mxu0 %v464
  %590 = vmatprep.subr.bf16.mxu0 0
  %591 = vmatpush1.bf16.msra.mxu0 %v465
  %592 = vmatprep.subr.bf16.mxu0 0
  %593 = vmatpush1.bf16.msra.mxu0 %v466
  %594 = vmatprep.subr.bf16.mxu0 0
  %595 = vmatpush1.bf16.msra.mxu0 %v467
  %596 = vmatprep.subr.bf16.mxu0 0
  %597 = vmatpush1.bf16.msra.mxu0 %v468
  %598 = vmatprep.subr.bf16.mxu0 0
  %599 = vmatpush1.bf16.msra.mxu0 %v469
  %600 = vmatprep.subr.bf16.mxu0 0
  %601 = vmatpush1.bf16.msra.mxu0 %v470
  %602 = vmatprep.subr.bf16.mxu0 0
  %603 = vmatpush1.bf16.msra.mxu0 %v471
  %604 = vmatprep.subr.bf16.mxu0 0
  %605 = vmatpush1.bf16.msra.mxu0 %v472
  %606 = vmatprep.subr.bf16.mxu0 0
  %607 = vmatpush1.bf16.msra.mxu0 %v473
  %608 = vmatprep.subr.bf16.mxu0 0
  %609 = vmatpush1.bf16.msra.mxu0 %v474
  %610 = vmatprep.subr.bf16.mxu0 0
  %611 = vmatpush1.bf16.msra.mxu0 %v475
  %612 = vmatprep.mubr.bf16.mxu0 %v146
  %613 = vmatmul.mubr.bf16.gmra.mrb[0].mxu0 %v145
  %v614 = vpop.f32.mrb[0].mxu0
  %v615 = vadd.f32 %v575, %v614
  %v616 = vpop.f32.mrb[0].mxu0
  %v617 = vpop.f32.mrb[0].mxu0
  %v618 = vpop.f32.mrb[0].mxu0
  %619 = vdwg.mxu0
  %620 = vmatprep.subr.bf16.mxu0 0
  %621 = vmatpush1.bf16.msra.mxu0 %v476
  %622 = vmatprep.subr.bf16.mxu0 0
  %623 = vmatpush1.bf16.msra.mxu0 %v477
  %624 = vmatprep.subr.bf16.mxu0 0
  %625 = vmatpush1.bf16.msra.mxu0 %v478
  %626 = vmatprep.subr.bf16.mxu0 0
  %627 = vmatpush1.bf16.msra.mxu0 %v479
  %628 = vmatprep.subr.bf16.mxu0 0
  %629 = vmatpush1.bf16.msra.mxu0 %v480
  %630 = vmatprep.subr.bf16.mxu0 0
  %631 = vmatpush1.bf16.msra.mxu0 %v481
  %632 = vmatprep.subr.bf16.mxu0 0
  %633 = vmatpush1.bf16.msra.mxu0 %v482
  %634 = vmatprep.subr.bf16.mxu0 0
  %635 = vmatpush1.bf16.msra.mxu0 %v483
  %636 = vmatprep.subr.bf16.mxu0 0
  %637 = vmatpush1.bf16.msra.mxu0 %v484
  %638 = vmatprep.subr.bf16.mxu0 0
  %639 = vmatpush1.bf16.msra.mxu0 %v485
  %640 = vmatprep.subr.bf16.mxu0 0
  %641 = vmatpush1.bf16.msra.mxu0 %v486
  %642 = vmatprep.subr.bf16.mxu0 0
  %643 = vmatpush1.bf16.msra.mxu0 %v487
  %644 = vmatprep.subr.bf16.mxu0 0
  %645 = vmatpush1.bf16.msra.mxu0 %v488
  %646 = vmatprep.subr.bf16.mxu0 0
  %647 = vmatpush1.bf16.msra.mxu0 %v489
  %648 = vmatprep.subr.bf16.mxu0 0
  %649 = vmatpush1.bf16.msra.mxu0 %v490
  %650 = vmatprep.subr.bf16.mxu0 0
  %651 = vmatpush1.bf16.msra.mxu0 %v491
  %652 = vmatprep.mubr.bf16.mxu0 %v148
  %653 = vmatmul.mubr.bf16.gmra.mrb[0].mxu0 %v147
  %v654 = vpop.f32.mrb[0].mxu0
  %v655 = vadd.f32 %v615, %v654
  %v656 = vpop.f32.mrb[0].mxu0
  %v657 = vpop.f32.mrb[0].mxu0
  %v658 = vpop.f32.mrb[0].mxu0
  %659 = vdwg.mxu0
  %660 = vst [vmem:[%s5] sm:$0xff] %v655
  // Predicated region
  $region22: #{_vit_forward_impl.3} parent=0 // pred_check
    _
  $region23: #{_vit_forward_impl.3} parent=0 // pred_check_branch
    %662 = sbr.rel (0) target = $region25
  $region24: #{_vit_forward_impl.3} parent=0 // pred_region
    _
  $region25: #{_vit_forward_impl.3} parent=0 // pred_fallthru
    _
  // Predicated region
  $region26: #{_vit_forward_impl.3} parent=0 // pred_check
    _
  $region27: #{_vit_forward_impl.3} parent=0 // pred_check_branch
    %664 = sbr.rel (0) target = $region29
  $region28: #{_vit_forward_impl.3} parent=0 // pred_region
    _
  $region29: #{_vit_forward_impl.3} parent=0 // pred_fallthru
    _

</llo_original>
